<compile_context>
chip_gen: v5e
topology: v5e:2x2
jax: 0.10.0
libtpu: 0.0.40
codegen_flags: <defaults>
</compile_context>

<pallas_src>
import math

import jax
import jax.numpy as jnp
import numpy as np
from jax import lax
from jax.experimental import pallas as pl
from jax.experimental.pallas import tpu as pltpu

_LOG2PI = math.log(2.0 * math.pi)
_LOGVAR_CLAMP = 30.0  # numeric guard against exp overflow; inert for sane nets


# ----------------------------------------------------------------------------
# Fused kernel
# ----------------------------------------------------------------------------
def _make_elbo2_kernel(Sz, Sv, inner_method, outer_method):
    # module indices (used for the stacked W2 / hidden-bias / head refs)
    XE, YE, ZE, VE, ZGX, ZGY, VG, YGZ, XGZV = range(9)

    def kernel(x_ref, y_ref, ez_ref, ev_ref,
               w1_xe, w1_ye, w1_ze, w1_ve, w1_zgx, w1_zgy, w1_vxy, w1_ygz,
               w1_50s,            # (3, 50, 200)  [v_given_xyz.z, x_given_zv.z, x_given_zv.v]
               w2s,               # (9, 200, 200) bf16
               hb,                # (18, 200) f32, rows 2m / 2m+1 = b1 / b2 of module m
               w3_enc, b3_enc,    # (4, 200, 50), (4, 50)
               w3_zg, b3_zg,      # (2, 200, 2Z), (2, 2Z)
               w3_v, b3_v,        # (200, 2V), (1, 2V)
               w3_y, b3_y,        # (200, Y),  (1, Y)
               w3_x, b3_x,        # (200, X),  (1, X)
               o_ref):
        tb = x_ref.shape[0]
        t1 = Sz * tb

        # ---- helpers: bf16 MXU matmuls, f32 accumulation & elementwise ------
        def bf(a):
            return a.astype(jnp.bfloat16)

        def mm(a_bf, w_bf):
            return jnp.dot(a_bf, w_bf, preferred_element_type=jnp.float32)

        def mlp_body(h0, m):
            """Two ReLU hidden layers of module m; h0 is the pre-bias layer-1 output."""
            h1 = jnp.maximum(h0 + hb[2 * m:2 * m + 1, :], 0.0)
            h2 = jnp.maximum(mm(bf(h1), w2s[m]) + hb[2 * m + 1:2 * m + 2, :], 0.0)
            return h2

        def encoder(a_bf, w1_ref, m):
            """Deterministic LinearMap encoder (modules 0..3) -> (rows, 50)."""
            h2 = mlp_body(mm(a_bf, w1_ref[...]), m)
            return mm(bf(h2), w3_enc[m]) + b3_enc[m:m + 1, :]

        def gauss_z(a_bf, w1_ref, m, hidx):
            """Gaussian encoder with a single merged (mu | logvar) head."""
            h2 = mlp_body(mm(a_bf, w1_ref[...]), m)
            head = mm(bf(h2), w3_zg[hidx]) + b3_zg[hidx:hidx + 1, :]
            d = head.shape[-1] // 2
            mu = head[:, :d]
            lv = jnp.clip(head[:, d:], -_LOGVAR_CLAMP, _LOGVAR_CLAMP)
            return mu, lv

        x_blk = x_ref[...]                      # (tb, X)
        y_blk = y_ref[...]                      # (tb, Y)
        x_bf = bf(x_blk)
        y_bf = bf(y_blk)

        # ---- product-of-experts posterior q(z|x) * l(z;y) -------------------
        mu_zx, lv_zx = gauss_z(x_bf, w1_zgx, ZGX, 0)
        mu_zy, lv_zy = gauss_z(y_bf, w1_zgy, ZGY, 1)
        prec_x = jnp.exp(-lv_zx)
        prec_y = jnp.exp(-lv_zy)
        prec = prec_x + prec_y
        var_z = 1.0 / prec                       # EUP reciprocal
        std_z = lax.rsqrt(prec)                  # EUP rsqrt
        logvar_z = -jnp.log(prec)
        mu_z = var_z * (mu_zx * prec_x + mu_zy * prec_y)

        # ---- z samples: leading sample axis, collapse is a layout no-op -----
        ez = ez_ref[...]                                     # (Sz, tb, Z)
        z3 = mu_z + std_z * ez                               # (Sz, tb, Z)
        z_all = z3.reshape(t1, z3.shape[-1])                 # (t1, Z)
        lq_z = jnp.sum(-0.5 * (_LOG2PI + logvar_z + ez * ez),
                       axis=-1, keepdims=True)               # (Sz, tb, 1)
        lp_z = jnp.sum(-0.5 * (_LOG2PI + z3 * z3),
                       axis=-1, keepdims=True)               # (Sz, tb, 1)

        # ---- deterministic encoders (x/y once per row, z per (Sz,row)) ------
        x_red = encoder(x_bf, w1_xe, XE)                     # (tb, 50)
        y_red = encoder(y_bf, w1_ye, YE)                     # (tb, 50)
        z_all_bf = bf(z_all)                                 # reused: z_encoder + y_given_z
        z_red = encoder(z_all_bf, w1_ze, ZE)                 # (t1, 50)
        z_red_bf = bf(z_red)                                 # reused: v_given_xyz + x_given_zv

        # ---- q(v | x,y,z): fused [x_red | y_red] first-layer matmul ---------
        xy_bf = bf(jnp.concatenate([x_red, y_red], axis=-1))          # (tb, 100)
        h0_xy = mm(xy_bf, w1_vxy[...])                                 # (tb, H)
        h0_z = mm(z_red_bf, w1_50s[0])                                 # (t1, H)
        H = h0_z.shape[-1]
        h0 = (h0_z.reshape(Sz, tb, H) + h0_xy).reshape(t1, H)          # broadcast, no tile-copy
        h2 = mlp_body(h0, VG)
        head_v = mm(bf(h2), w3_v[...]) + b3_v[...]                     # (t1, 2V)
        V = head_v.shape[-1] // 2
        mu_v = head_v[:, :V]
        lv_v = jnp.clip(head_v[:, V:], -_LOGVAR_CLAMP, _LOGVAR_CLAMP)
        std_v = jnp.exp(0.5 * lv_v)
        lv_v3 = lv_v.reshape(Sz, tb, V)

        # ---- terms constant across the inner (Sv) samples --------------------
        logits_y = mm(bf(mlp_body(mm(z_all_bf, w1_ygz[...]), YGZ)), w3_y[...]) + b3_y[...]
        ly3 = logits_y.reshape(Sz, tb, logits_y.shape[-1])
        ll_y = jnp.sum(y_blk * ly3 - jnp.logaddexp(0.0, ly3),
                       axis=-1, keepdims=True)               # (Sz, tb, 1)
        const_term = ll_y + lp_z                             # (Sz, tb, 1)

        h0_xz = mm(z_red_bf, w1_50s[1])                      # (t1, H), reused over Sv

        ev = ev_ref[...]                                     # (Sv, Sz, tb, V)

        # ---- inner (Sv) loop: streaming online-logsumexp / running mean ------
        run_m = run_s = run_sum = None
        for sv in range(Sv):
            e3 = ev[sv]                                      # (Sz, tb, V)
            e = e3.reshape(t1, V)
            v = mu_v + std_v * e                             # (t1, V)
            v_red = encoder(bf(v), w1_ve, VE)                # (t1, 50)
            h0d = h0_xz + mm(bf(v_red), w1_50s[2])           # (t1, H)
            hd = mlp_body(h0d, XGZV)
            logits_x = mm(bf(hd), w3_x[...]) + b3_x[...]     # (t1, X)
            lx3 = logits_x.reshape(Sz, tb, logits_x.shape[-1])
            ll_x = jnp.sum(x_blk * lx3 - jnp.logaddexp(0.0, lx3),
                           axis=-1, keepdims=True)           # (Sz, tb, 1)
            v3 = v.reshape(Sz, tb, V)
            lq_v = jnp.sum(-0.5 * (_LOG2PI + lv_v3 + e3 * e3),
                           axis=-1, keepdims=True)           # (Sz, tb, 1)
            lp_v = jnp.sum(-0.5 * (_LOG2PI + v3 * v3),
                           axis=-1, keepdims=True)           # (Sz, tb, 1)
            val = ll_x + const_term + lp_v - lq_v            # (Sz, tb, 1)

            if inner_method == 'iwae':
                if sv == 0:
                    run_m, run_s = val, jnp.ones_like(val)
                else:
                    m_new = jnp.maximum(run_m, val)
                    run_s = run_s * jnp.exp(run_m - m_new) + jnp.exp(val - m_new)
                    run_m = m_new
            else:  # 'elbo'
                run_sum = val if sv == 0 else run_sum + val

        if inner_method == 'iwae':
            inner_b = run_m + jnp.log(run_s) - math.log(Sv)
        else:
            inner_b = run_sum * (1.0 / Sv)

        # ---- outer (Sz) bound per batch row ----------------------------------
        outer_vals = [inner_b[s] - lq_z[s] for s in range(Sz)]   # each (tb, 1)
        if outer_method == 'iwae':
            m = outer_vals[0]
            for ov in outer_vals[1:]:
                m = jnp.maximum(m, ov)
            acc = jnp.exp(outer_vals[0] - m)
            for ov in outer_vals[1:]:
                acc = acc + jnp.exp(ov - m)
            out = m + jnp.log(acc) - math.log(Sz)
        else:  # 'elbo'
            out = outer_vals[0]
            for ov in outer_vals[1:]:
                out = out + ov
            out = out * (1.0 / Sz)

        o_ref[...] = out.astype(o_ref.dtype)

    return kernel


# ----------------------------------------------------------------------------
# Parameter packing: 9 modules -> 21 operand refs
# ----------------------------------------------------------------------------
_MODS = ('x_encoder', 'y_encoder', 'z_encoder', 'v_encoder',
         'z_given_x', 'z_given_y', 'v_given_xyz', 'y_given_z', 'x_given_zv')


def _pack_params(p):
    bfc = lambda a: jnp.asarray(a, jnp.bfloat16)
    f32 = lambda a: jnp.asarray(a, jnp.float32)
    packed = [
        bfc(p['x_encoder']['w1']), bfc(p['y_encoder']['w1']),
        bfc(p['z_encoder']['w1']), bfc(p['v_encoder']['w1']),
        bfc(p['z_given_x']['w1']), bfc(p['z_given_y']['w1']),
        bfc(p['v_given_xyz']['w1_xy']), bfc(p['y_given_z']['w1']),
        jnp.stack([bfc(p['v_given_xyz']['w1_z']),
                   bfc(p['x_given_zv']['w1_z']),
                   bfc(p['x_given_zv']['w1_v'])]),                          # (3, 50, 200)
        jnp.stack([bfc(p[m]['w2']) for m in _MODS]),                        # (9, 200, 200)
        jnp.concatenate([f32(p[m][b]) for m in _MODS for b in ('b1', 'b2')],
                        axis=0),                                            # (18, 200)
        jnp.stack([bfc(p[m]['w3']) for m in _MODS[:4]]),                    # (4, 200, 50)
        jnp.concatenate([f32(p[m]['b3']) for m in _MODS[:4]], axis=0),      # (4, 50)
        jnp.stack([bfc(p['z_given_x']['w3']), bfc(p['z_given_y']['w3'])]),  # (2, 200, 2Z)
        jnp.concatenate([f32(p['z_given_x']['b3']),
                         f32(p['z_given_y']['b3'])], axis=0),               # (2, 2Z)
        bfc(p['v_given_xyz']['w3']), f32(p['v_given_xyz']['b3']),
        bfc(p['y_given_z']['w3']),   f32(p['y_given_z']['b3']),
        bfc(p['x_given_zv']['w3']),  f32(p['x_given_zv']['b3']),
    ]
    return packed


# ----------------------------------------------------------------------------
# Host wrapper
# ----------------------------------------------------------------------------
def _default_tile_b(B, cap=512):
    cands = [t for t in range(8, min(B, cap) + 1, 8) if B % t == 0]
    if not cands:
        return B
    multi = [t for t in cands if B // t >= 2]   # >=2 grid steps: both v7x TCs busy
    return max(multi) if multi else max(cands)


def elbo2_forward(params, x, y, eps_z, eps_v, n_samples_z=1, n_samples_v=1,
                  inner_method='iwae', outer_method='elbo', tile_b=None):
    if inner_method not in ('iwae', 'elbo') or outer_method not in ('iwae', 'elbo'):
        raise ValueError('inner_method/outer_method must be "iwae" or "elbo"')

    x = jnp.asarray(x, jnp.float32)
    y = jnp.asarray(y, jnp.float32)
    B, X_DIM = x.shape
    Y_DIM = y.shape[-1]
    Sz, Sv = int(n_samples_z), int(n_samples_v)
    Z_DIM = eps_z.shape[-1]
    V_DIM = eps_v.shape[-1]
    assert eps_z.shape == (B, Sz, Z_DIM)
    assert eps_v.shape == (B, Sz, Sv, V_DIM)

    if tile_b is None:
        tile_b = _default_tile_b(B)
    assert B % tile_b == 0, "batch size must be divisible by tile_b"
    assert tile_b % 8 == 0, "tile_b must be a multiple of 8 (sublane-aligned reshapes)"
    grid = (B // tile_b,)

    # Repeat index is the LEADING (slowest) axis so in-kernel sample expansion
    # is a pure leading-dim reshape (no relayout / copies).
    eps_z_k = jnp.transpose(jnp.asarray(eps_z, jnp.float32), (1, 0, 2))      # (Sz, B, Z)
    eps_v_k = jnp.transpose(jnp.asarray(eps_v, jnp.float32), (2, 1, 0, 3))   # (Sv, Sz, B, V)

    packed = _pack_params(params)
    kernel = _make_elbo2_kernel(Sz, Sv, inner_method, outer_method)

    in_specs = [
        pl.BlockSpec((tile_b, X_DIM), lambda i: (i, 0)),
        pl.BlockSpec((tile_b, Y_DIM), lambda i: (i, 0)),
        pl.BlockSpec((Sz, tile_b, Z_DIM), lambda i: (0, i, 0)),
        pl.BlockSpec((Sv, Sz, tile_b, V_DIM), lambda i: (0, 0, i, 0)),
    ]
    # Weights/biases: full blocks with constant index maps -> VMEM-resident.
    in_specs += [pl.BlockSpec(a.shape, (lambda i, nd=a.ndim: (0,) * nd)) for a in packed]

    # Scoped-VMEM limit derived from the chip (v5e/v6e: ~89 MiB, v7x: ~44 MiB).
    try:
        cap = int(pltpu.get_tpu_info().vmem_capacity_bytes)
    except Exception:
        cap = 0
    vmem_limit = min(96 * 1024 * 1024, int(cap * 0.7)) if cap else 48 * 1024 * 1024

    out = pl.pallas_call(
        kernel,
        out_shape=jax.ShapeDtypeStruct((B, 1), jnp.float32),
        grid=grid,
        in_specs=in_specs,
        out_specs=pl.BlockSpec((tile_b, 1), lambda i: (i, 0)),
        compiler_params=pltpu.CompilerParams(
            dimension_semantics=("parallel",),       # megacore / v7x 2-TC
            vmem_limit_bytes=vmem_limit),
    )(x, y, eps_z_k, eps_v_k, *packed)
    return out[:, 0]


# ----------------------------------------------------------------------------
# Parameter init (PyTorch-Linear-like uniform fan-in init, kernel layout)
# ----------------------------------------------------------------------------
def init_params(key, X_DIM, Y_DIM, Z_DIM, V_DIM, reduced=50, hidden=200):
    ks = jax.random.split(key, 9)

    def lin(k, din, dout):
        k1, k2 = jax.random.split(k)
        s = 1.0 / math.sqrt(din)
        return (jax.random.uniform(k1, (din, dout), jnp.float32, -s, s),
                jax.random.uniform(k2, (1, dout), jnp.float32, -s, s))

    def mlp(k, din, dout):
        k1, k2, k3 = jax.random.split(k, 3)
        w1, b1 = lin(k1, din, hidden)
        w2, b2 = lin(k2, hidden, hidden)
        w3, b3 = lin(k3, hidden, dout)
        return dict(w1=w1, b1=b1, w2=w2, b2=b2, w3=w3, b3=b3)

    vg = mlp(ks[6], 3 * reduced, 2 * V_DIM)        # merged (mu | logvar) head
    w1 = vg.pop('w1')
    vg['w1_xy'], vg['w1_z'] = w1[:2 * reduced], w1[2 * reduced:]

    xz = mlp(ks[8], 2 * reduced, X_DIM)
    w1 = xz.pop('w1')
    xz['w1_z'], xz['w1_v'] = w1[:reduced], w1[reduced:]

    return {
        'x_encoder':   mlp(ks[0], X_DIM, reduced),
        'y_encoder':   mlp(ks[1], Y_DIM, reduced),
        'z_encoder':   mlp(ks[2], Z_DIM, reduced),
        'v_encoder':   mlp(ks[3], V_DIM, reduced),
        'z_given_x':   mlp(ks[4], X_DIM, 2 * Z_DIM),   # merged (mu | logvar) head
        'z_given_y':   mlp(ks[5], Y_DIM, 2 * Z_DIM),
        'v_given_xyz': vg,
        'y_given_z':   mlp(ks[7], Z_DIM, Y_DIM),
        'x_given_zv':  xz,
    }


# ----------------------------------------------------------------------------
# Pure-JAX reference (mirrors the kernel math; used for correctness checking)
# ----------------------------------------------------------------------------
def _reference_forward(params, x, y, eps_z, eps_v,
                       inner_method='iwae', outer_method='elbo'):
    f32 = jnp.float32
    x = jnp.asarray(x, f32)
    y = jnp.asarray(y, f32)
    eps_z = jnp.asarray(eps_z, f32)
    eps_v = jnp.asarray(eps_v, f32)
    Sz = eps_z.shape[1]
    Sv = eps_v.shape[2]

    def mm(a, w):
        return jnp.dot(a.astype(jnp.bfloat16), jnp.asarray(w, jnp.bfloat16),
                       preferred_element_type=f32)

    def hidden(h0, p):
        h = jnp.maximum(h0 + p['b1'], 0.0)
        return jnp.maximum(mm(h, p['w2']) + p['b2'], 0.0)

    def linmap(a, p):
        return mm(hidden(mm(a, p['w1']), p), p['w3']) + p['b3']

    def gauss(a, p):
        head = mm(hidden(mm(a, p['w1']), p), p['w3']) + p['b3']
        d = head.shape[-1] // 2
        return head[..., :d], jnp.clip(head[..., d:], -_LOGVAR_CLAMP, _LOGVAR_CLAMP)

    def bern_ll(logits, target):
        return jnp.sum(target * logits - jnp.logaddexp(0.0, logits), axis=-1)

    mu_zx, lv_zx = gauss(x, params['z_given_x'])
    mu_zy, lv_zy = gauss(y, params['z_given_y'])
    prec_x = jnp.exp(-lv_zx)
    prec_y = jnp.exp(-lv_zy)
    prec = prec_x + prec_y
    var_z = 1.0 / prec
    std_z = lax.rsqrt(prec)
    logvar_z = -jnp.log(prec)
    mu_z = var_z * (mu_zx * prec_x + mu_zy * prec_y)

    z = mu_z[:, None, :] + std_z[:, None, :] * eps_z                     # (B, Sz, Z)
    lq_z = jnp.sum(-0.5 * (_LOG2PI + logvar_z[:, None, :] + eps_z ** 2), -1)

    x_red = linmap(x, params['x_encoder'])
    y_red = linmap(y, params['y_encoder'])
    z_red = linmap(z, params['z_encoder'])

    pv = params['v_given_xyz']
    xy_red = jnp.concatenate([x_red, y_red], axis=-1)
    h0 = mm(xy_red, pv['w1_xy'])[:, None, :] + mm(z_red, pv['w1_z'])
    head = mm(hidden(h0, pv), pv['w3']) + pv['b3']
    dv = head.shape[-1] // 2
    mu_v = head[..., :dv]
    lv_v = jnp.clip(head[..., dv:], -_LOGVAR_CLAMP, _LOGVAR_CLAMP)
    std_v = jnp.exp(0.5 * lv_v)

    v = mu_v[:, :, None, :] + std_v[:, :, None, :] * eps_v               # (B, Sz, Sv, V)
    lq_v = jnp.sum(-0.5 * (_LOG2PI + lv_v[:, :, None, :] + eps_v ** 2), -1)
    lp_z = jnp.sum(-0.5 * (_LOG2PI + z * z), -1)
    lp_v = jnp.sum(-0.5 * (_LOG2PI + v * v), -1)

    v_red = linmap(v, params['v_encoder'])
    pd = params['x_given_zv']
    h0 = mm(z_red, pd['w1_z'])[:, :, None, :] + mm(v_red, pd['w1_v'])
    logits_x = mm(hidden(h0, pd), pd['w3']) + pd['b3']
    logits_y = linmap(z, params['y_given_z'])

    ll_x = bern_ll(logits_x, x[:, None, None, :])                        # (B, Sz, Sv)
    ll_y = bern_ll(logits_y, y[:, None, :])                              # (B, Sz)

    inner = ll_x + ll_y[:, :, None] + lp_z[:, :, None] + lp_v - lq_v
    if inner_method == 'iwae':
        inner_b = jax.scipy.special.logsumexp(inner, axis=-1) - math.log(Sv)
    else:
        inner_b = jnp.mean(inner, axis=-1)
    outer = inner_b - lq_z
    if outer_method == 'iwae':
        return jax.scipy.special.logsumexp(outer, axis=-1) - math.log(Sz)
    return jnp.mean(outer, axis=-1)


# ----------------------------------------------------------------------------
if __name__ == "__main__":
    key = jax.random.PRNGKey(0)
    B, X_DIM, Y_DIM, Z_DIM, V_DIM = 16, 16, 16, 8, 8
    Sz, Sv = 2, 3

    kp, kx, ky, kez, kev = jax.random.split(key, 5)
    params = init_params(kp, X_DIM, Y_DIM, Z_DIM, V_DIM)

    # Bernoulli-style targets in [0, 1] (smoke-test data, not a trained model).
    x = jax.random.uniform(kx, (B, X_DIM), jnp.float32)
    y = jax.random.uniform(ky, (B, Y_DIM), jnp.float32)
    eps_z = jax.random.normal(kez, (B, Sz, Z_DIM), jnp.float32)
    eps_v = jax.random.normal(kev, (B, Sz, Sv, V_DIM), jnp.float32)

    out = elbo2_forward(params, x, y, eps_z, eps_v,
                        n_samples_z=Sz, n_samples_v=Sv,
                        inner_method='iwae', outer_method='elbo',
                        tile_b=8)                      # grid=(2,): exercises tiling
    out = jax.block_until_ready(out)

    ref = jax.block_until_ready(
        _reference_forward(params, x, y, eps_z, eps_v,
                           inner_method='iwae', outer_method='elbo'))

    assert out.shape == (B,) and out.dtype == jnp.float32
    assert bool(jnp.all(jnp.isfinite(out)))
    assert np.allclose(np.asarray(out), np.asarray(ref), rtol=1e-2, atol=2e-2), (
        np.asarray(out), np.asarray(ref))
    print("KERNEL_OK")
</pallas_src>

<mosaic_0001>
module attributes {stable_mosaic.version = 11 : i64} {
  func.func @kernel(%arg0: i32, %arg1: memref<8x16xf32, #tpu.memory_space<vmem>>, %arg2: memref<8x16xf32, #tpu.memory_space<vmem>>, %arg3: memref<2x8x8xf32, #tpu.memory_space<vmem>>, %arg4: memref<3x2x8x8xf32, #tpu.memory_space<vmem>>, %arg5: memref<16x200xbf16, #tpu.memory_space<vmem>>, %arg6: memref<16x200xbf16, #tpu.memory_space<vmem>>, %arg7: memref<8x200xbf16, #tpu.memory_space<vmem>>, %arg8: memref<8x200xbf16, #tpu.memory_space<vmem>>, %arg9: memref<16x200xbf16, #tpu.memory_space<vmem>>, %arg10: memref<16x200xbf16, #tpu.memory_space<vmem>>, %arg11: memref<100x200xbf16, #tpu.memory_space<vmem>>, %arg12: memref<8x200xbf16, #tpu.memory_space<vmem>>, %arg13: memref<3x50x200xbf16, #tpu.memory_space<vmem>>, %arg14: memref<9x200x200xbf16, #tpu.memory_space<vmem>>, %arg15: memref<18x200xf32, #tpu.memory_space<vmem>>, %arg16: memref<4x200x50xbf16, #tpu.memory_space<vmem>>, %arg17: memref<4x50xf32, #tpu.memory_space<vmem>>, %arg18: memref<2x200x16xbf16, #tpu.memory_space<vmem>>, %arg19: memref<2x16xf32, #tpu.memory_space<vmem>>, %arg20: memref<200x16xbf16, #tpu.memory_space<vmem>>, %arg21: memref<1x16xf32, #tpu.memory_space<vmem>>, %arg22: memref<200x16xbf16, #tpu.memory_space<vmem>>, %arg23: memref<1x16xf32, #tpu.memory_space<vmem>>, %arg24: memref<200x16xbf16, #tpu.memory_space<vmem>>, %arg25: memref<1x16xf32, #tpu.memory_space<vmem>>, %arg26: memref<8x1xf32, #tpu.memory_space<vmem>>) attributes {dimension_semantics = [#tpu.dimension_semantics<parallel>], iteration_bounds = array<i64: 2>, scalar_prefetch = 0 : i64, scratch_operands = 0 : i64, tpu.core_type = #tpu.core_type<tc>, window_params = [{transform_indices = @transform_0, window_bounds = array<i64: 8, 16>}, {transform_indices = @transform_1, window_bounds = array<i64: 8, 16>}, {transform_indices = @transform_2, window_bounds = array<i64: 2, 8, 8>}, {transform_indices = @transform_3, window_bounds = array<i64: 3, 2, 8, 8>}, {pipeline_mode = #tpu.pipeline_mode<synchronous>, transform_indices = @transform_4, window_bounds = array<i64: 16, 200>}, {pipeline_mode = #tpu.pipeline_mode<synchronous>, transform_indices = @transform_5, window_bounds = array<i64: 16, 200>}, {pipeline_mode = #tpu.pipeline_mode<synchronous>, transform_indices = @transform_6, window_bounds = array<i64: 8, 200>}, {pipeline_mode = #tpu.pipeline_mode<synchronous>, transform_indices = @transform_7, window_bounds = array<i64: 8, 200>}, {pipeline_mode = #tpu.pipeline_mode<synchronous>, transform_indices = @transform_8, window_bounds = array<i64: 16, 200>}, {pipeline_mode = #tpu.pipeline_mode<synchronous>, transform_indices = @transform_9, window_bounds = array<i64: 16, 200>}, {pipeline_mode = #tpu.pipeline_mode<synchronous>, transform_indices = @transform_10, window_bounds = array<i64: 100, 200>}, {pipeline_mode = #tpu.pipeline_mode<synchronous>, transform_indices = @transform_11, window_bounds = array<i64: 8, 200>}, {pipeline_mode = #tpu.pipeline_mode<synchronous>, transform_indices = @transform_12, window_bounds = array<i64: 3, 50, 200>}, {pipeline_mode = #tpu.pipeline_mode<synchronous>, transform_indices = @transform_13, window_bounds = array<i64: 9, 200, 200>}, {pipeline_mode = #tpu.pipeline_mode<synchronous>, transform_indices = @transform_14, window_bounds = array<i64: 18, 200>}, {pipeline_mode = #tpu.pipeline_mode<synchronous>, transform_indices = @transform_15, window_bounds = array<i64: 4, 200, 50>}, {pipeline_mode = #tpu.pipeline_mode<synchronous>, transform_indices = @transform_16, window_bounds = array<i64: 4, 50>}, {pipeline_mode = #tpu.pipeline_mode<synchronous>, transform_indices = @transform_17, window_bounds = array<i64: 2, 200, 16>}, {pipeline_mode = #tpu.pipeline_mode<synchronous>, transform_indices = @transform_18, window_bounds = array<i64: 2, 16>}, {pipeline_mode = #tpu.pipeline_mode<synchronous>, transform_indices = @transform_19, window_bounds = array<i64: 200, 16>}, {pipeline_mode = #tpu.pipeline_mode<synchronous>, transform_indices = @transform_20, window_bounds = array<i64: 1, 16>}, {pipeline_mode = #tpu.pipeline_mode<synchronous>, transform_indices = @transform_21, window_bounds = array<i64: 200, 16>}, {pipeline_mode = #tpu.pipeline_mode<synchronous>, transform_indices = @transform_22, window_bounds = array<i64: 1, 16>}, {pipeline_mode = #tpu.pipeline_mode<synchronous>, transform_indices = @transform_23, window_bounds = array<i64: 200, 16>}, {pipeline_mode = #tpu.pipeline_mode<synchronous>, transform_indices = @transform_24, window_bounds = array<i64: 1, 16>}, {transform_indices = @transform_25, window_bounds = array<i64: 8, 1>}]} {
    %c0 = arith.constant 0 : index
    %c0_0 = arith.constant 0 : index
    %0 = vector.load %arg1[%c0, %c0_0] : memref<8x16xf32, #tpu.memory_space<vmem>>, vector<8x16xf32>
    %c0_1 = arith.constant 0 : index
    %c0_2 = arith.constant 0 : index
    %1 = vector.load %arg2[%c0_1, %c0_2] : memref<8x16xf32, #tpu.memory_space<vmem>>, vector<8x16xf32>
    %2 = arith.truncf %0 : vector<8x16xf32> to vector<8x16xbf16>
    %3 = arith.truncf %1 : vector<8x16xf32> to vector<8x16xbf16>
    %c0_3 = arith.constant 0 : index
    %c0_4 = arith.constant 0 : index
    %4 = vector.load %arg9[%c0_3, %c0_4] : memref<16x200xbf16, #tpu.memory_space<vmem>>, vector<16x200xbf16>
    %cst = arith.constant dense<0.000000e+00> : vector<8x200xf32>
    %5 = tpu.matmul %2, %4, %cst {dimension_numbers = #tpu.dot_dimension_numbers<[1], [0], [0], [1], [0, 0, 1, 1], [], []>} : vector<8x16xbf16>, vector<16x200xbf16>, vector<8x200xf32> -> vector<8x200xf32>
    %c8 = arith.constant 8 : index
    %c0_5 = arith.constant 0 : index
    %6 = vector.load %arg15[%c8, %c0_5] : memref<18x200xf32, #tpu.memory_space<vmem>>, vector<1x200xf32>
    %7 = vector.broadcast %6 : vector<1x200xf32> to vector<8x200xf32>
    %8 = arith.addf %5, %7 : vector<8x200xf32>
    %cst_6 = arith.constant 0.000000e+00 : f32
    %9 = vector.broadcast %cst_6 : f32 to vector<8x200xf32>
    %10 = arith.maximumf %8, %9 : vector<8x200xf32>
    %11 = arith.truncf %10 : vector<8x200xf32> to vector<8x200xbf16>
    %c4 = arith.constant 4 : index
    %c0_7 = arith.constant 0 : index
    %c0_8 = arith.constant 0 : index
    %12 = vector.load %arg14[%c4, %c0_7, %c0_8] : memref<9x200x200xbf16, #tpu.memory_space<vmem>>, vector<1x200x200xbf16>
    %13 = vector.shape_cast %12 : vector<1x200x200xbf16> to vector<200x200xbf16>
    %cst_9 = arith.constant dense<0.000000e+00> : vector<8x200xf32>
    %14 = tpu.matmul %11, %13, %cst_9 {dimension_numbers = #tpu.dot_dimension_numbers<[1], [0], [0], [1], [0, 0, 1, 1], [], []>} : vector<8x200xbf16>, vector<200x200xbf16>, vector<8x200xf32> -> vector<8x200xf32>
    %c9 = arith.constant 9 : index
    %c0_10 = arith.constant 0 : index
    %15 = vector.load %arg15[%c9, %c0_10] : memref<18x200xf32, #tpu.memory_space<vmem>>, vector<1x200xf32>
    %16 = vector.broadcast %15 : vector<1x200xf32> to vector<8x200xf32>
    %17 = arith.addf %14, %16 : vector<8x200xf32>
    %cst_11 = arith.constant 0.000000e+00 : f32
    %18 = vector.broadcast %cst_11 : f32 to vector<8x200xf32>
    %19 = arith.maximumf %17, %18 : vector<8x200xf32>
    %20 = arith.truncf %19 : vector<8x200xf32> to vector<8x200xbf16>
    %c0_12 = arith.constant 0 : index
    %c0_13 = arith.constant 0 : index
    %c0_14 = arith.constant 0 : index
    %21 = vector.load %arg18[%c0_12, %c0_13, %c0_14] : memref<2x200x16xbf16, #tpu.memory_space<vmem>>, vector<1x200x16xbf16>
    %22 = vector.shape_cast %21 : vector<1x200x16xbf16> to vector<200x16xbf16>
    %cst_15 = arith.constant dense<0.000000e+00> : vector<8x16xf32>
    %23 = tpu.matmul %20, %22, %cst_15 {dimension_numbers = #tpu.dot_dimension_numbers<[1], [0], [0], [1], [0, 0, 1, 1], [], []>} : vector<8x200xbf16>, vector<200x16xbf16>, vector<8x16xf32> -> vector<8x16xf32>
    %c0_16 = arith.constant 0 : index
    %c0_17 = arith.constant 0 : index
    %24 = vector.load %arg19[%c0_16, %c0_17] : memref<2x16xf32, #tpu.memory_space<vmem>>, vector<1x16xf32>
    %25 = vector.broadcast %24 : vector<1x16xf32> to vector<8x16xf32>
    %26 = arith.addf %23, %25 : vector<8x16xf32>
    %27 = vector.extract_strided_slice %26 {offsets = [0, 0], sizes = [8, 8], strides = [1, 1]} : vector<8x16xf32> to vector<8x8xf32>
    %28 = vector.extract_strided_slice %26 {offsets = [0, 8], sizes = [8, 8], strides = [1, 1]} : vector<8x16xf32> to vector<8x8xf32>
    %cst_18 = arith.constant -3.000000e+01 : f32
    %cst_19 = arith.constant 3.000000e+01 : f32
    %29 = vector.broadcast %cst_18 : f32 to vector<8x8xf32>
    %30 = arith.maximumf %29, %28 : vector<8x8xf32>
    %31 = vector.broadcast %cst_19 : f32 to vector<8x8xf32>
    %32 = arith.minimumf %31, %30 : vector<8x8xf32>
    %c0_20 = arith.constant 0 : index
    %c0_21 = arith.constant 0 : index
    %33 = vector.load %arg10[%c0_20, %c0_21] : memref<16x200xbf16, #tpu.memory_space<vmem>>, vector<16x200xbf16>
    %cst_22 = arith.constant dense<0.000000e+00> : vector<8x200xf32>
    %34 = tpu.matmul %3, %33, %cst_22 {dimension_numbers = #tpu.dot_dimension_numbers<[1], [0], [0], [1], [0, 0, 1, 1], [], []>} : vector<8x16xbf16>, vector<16x200xbf16>, vector<8x200xf32> -> vector<8x200xf32>
    %c10 = arith.constant 10 : index
    %c0_23 = arith.constant 0 : index
    %35 = vector.load %arg15[%c10, %c0_23] : memref<18x200xf32, #tpu.memory_space<vmem>>, vector<1x200xf32>
    %36 = vector.broadcast %35 : vector<1x200xf32> to vector<8x200xf32>
    %37 = arith.addf %34, %36 : vector<8x200xf32>
    %cst_24 = arith.constant 0.000000e+00 : f32
    %38 = vector.broadcast %cst_24 : f32 to vector<8x200xf32>
    %39 = arith.maximumf %37, %38 : vector<8x200xf32>
    %40 = arith.truncf %39 : vector<8x200xf32> to vector<8x200xbf16>
    %c5 = arith.constant 5 : index
    %c0_25 = arith.constant 0 : index
    %c0_26 = arith.constant 0 : index
    %41 = vector.load %arg14[%c5, %c0_25, %c0_26] : memref<9x200x200xbf16, #tpu.memory_space<vmem>>, vector<1x200x200xbf16>
    %42 = vector.shape_cast %41 : vector<1x200x200xbf16> to vector<200x200xbf16>
    %cst_27 = arith.constant dense<0.000000e+00> : vector<8x200xf32>
    %43 = tpu.matmul %40, %42, %cst_27 {dimension_numbers = #tpu.dot_dimension_numbers<[1], [0], [0], [1], [0, 0, 1, 1], [], []>} : vector<8x200xbf16>, vector<200x200xbf16>, vector<8x200xf32> -> vector<8x200xf32>
    %c11 = arith.constant 11 : index
    %c0_28 = arith.constant 0 : index
    %44 = vector.load %arg15[%c11, %c0_28] : memref<18x200xf32, #tpu.memory_space<vmem>>, vector<1x200xf32>
    %45 = vector.broadcast %44 : vector<1x200xf32> to vector<8x200xf32>
    %46 = arith.addf %43, %45 : vector<8x200xf32>
    %cst_29 = arith.constant 0.000000e+00 : f32
    %47 = vector.broadcast %cst_29 : f32 to vector<8x200xf32>
    %48 = arith.maximumf %46, %47 : vector<8x200xf32>
    %49 = arith.truncf %48 : vector<8x200xf32> to vector<8x200xbf16>
    %c1 = arith.constant 1 : index
    %c0_30 = arith.constant 0 : index
    %c0_31 = arith.constant 0 : index
    %50 = vector.load %arg18[%c1, %c0_30, %c0_31] : memref<2x200x16xbf16, #tpu.memory_space<vmem>>, vector<1x200x16xbf16>
    %51 = vector.shape_cast %50 : vector<1x200x16xbf16> to vector<200x16xbf16>
    %cst_32 = arith.constant dense<0.000000e+00> : vector<8x16xf32>
    %52 = tpu.matmul %49, %51, %cst_32 {dimension_numbers = #tpu.dot_dimension_numbers<[1], [0], [0], [1], [0, 0, 1, 1], [], []>} : vector<8x200xbf16>, vector<200x16xbf16>, vector<8x16xf32> -> vector<8x16xf32>
    %c1_33 = arith.constant 1 : index
    %c0_34 = arith.constant 0 : index
    %53 = vector.load %arg19[%c1_33, %c0_34] : memref<2x16xf32, #tpu.memory_space<vmem>>, vector<1x16xf32>
    %54 = vector.broadcast %53 : vector<1x16xf32> to vector<8x16xf32>
    %55 = arith.addf %52, %54 : vector<8x16xf32>
    %56 = vector.extract_strided_slice %55 {offsets = [0, 0], sizes = [8, 8], strides = [1, 1]} : vector<8x16xf32> to vector<8x8xf32>
    %57 = vector.extract_strided_slice %55 {offsets = [0, 8], sizes = [8, 8], strides = [1, 1]} : vector<8x16xf32> to vector<8x8xf32>
    %cst_35 = arith.constant -3.000000e+01 : f32
    %cst_36 = arith.constant 3.000000e+01 : f32
    %58 = vector.broadcast %cst_35 : f32 to vector<8x8xf32>
    %59 = arith.maximumf %58, %57 : vector<8x8xf32>
    %60 = vector.broadcast %cst_36 : f32 to vector<8x8xf32>
    %61 = arith.minimumf %60, %59 : vector<8x8xf32>
    %cst_37 = arith.constant 0.000000e+00 : f32
    %62 = vector.broadcast %cst_37 : f32 to vector<8x8xf32>
    %63 = arith.subf %62, %32 : vector<8x8xf32>
    %64 = math.exp %63 : vector<8x8xf32>
    %cst_38 = arith.constant 0.000000e+00 : f32
    %65 = vector.broadcast %cst_38 : f32 to vector<8x8xf32>
    %66 = arith.subf %65, %61 : vector<8x8xf32>
    %67 = math.exp %66 : vector<8x8xf32>
    %68 = arith.addf %64, %67 : vector<8x8xf32>
    %cst_39 = arith.constant 1.000000e+00 : f32
    %69 = vector.broadcast %cst_39 : f32 to vector<8x8xf32>
    %70 = arith.divf %69, %68 : vector<8x8xf32>
    %71 = math.rsqrt %68 : vector<8x8xf32>
    %72 = math.log %68 : vector<8x8xf32>
    %cst_40 = arith.constant 0.000000e+00 : f32
    %73 = vector.broadcast %cst_40 : f32 to vector<8x8xf32>
    %74 = arith.subf %73, %72 : vector<8x8xf32>
    %75 = arith.mulf %27, %64 : vector<8x8xf32>
    %76 = arith.mulf %56, %67 : vector<8x8xf32>
    %77 = arith.addf %75, %76 : vector<8x8xf32>
    %78 = arith.mulf %70, %77 : vector<8x8xf32>
    %c0_41 = arith.constant 0 : index
    %c0_42 = arith.constant 0 : index
    %c0_43 = arith.constant 0 : index
    %79 = vector.load %arg3[%c0_41, %c0_42, %c0_43] : memref<2x8x8xf32, #tpu.memory_space<vmem>>, vector<2x8x8xf32>
    %80 = vector.shape_cast %71 : vector<8x8xf32> to vector<1x8x8xf32>
    %81 = vector.broadcast %80 : vector<1x8x8xf32> to vector<2x8x8xf32>
    %82 = arith.mulf %81, %79 : vector<2x8x8xf32>
    %83 = vector.shape_cast %78 : vector<8x8xf32> to vector<1x8x8xf32>
    %84 = vector.broadcast %83 : vector<1x8x8xf32> to vector<2x8x8xf32>
    %85 = arith.addf %84, %82 : vector<2x8x8xf32>
    %86 = vector.shape_cast %85 : vector<2x8x8xf32> to vector<16x8xf32>
    %cst_44 = arith.constant 1.83787704 : f32
    %87 = vector.broadcast %cst_44 : f32 to vector<8x8xf32>
    %88 = arith.addf %87, %74 : vector<8x8xf32>
    %89 = arith.mulf %79, %79 : vector<2x8x8xf32>
    %90 = vector.shape_cast %88 : vector<8x8xf32> to vector<1x8x8xf32>
    %91 = vector.broadcast %90 : vector<1x8x8xf32> to vector<2x8x8xf32>
    %92 = arith.addf %91, %89 : vector<2x8x8xf32>
    %cst_45 = arith.constant -5.000000e-01 : f32
    %93 = vector.broadcast %cst_45 : f32 to vector<2x8x8xf32>
    %94 = arith.mulf %93, %92 : vector<2x8x8xf32>
    %cst_46 = arith.constant dense<0.000000e+00> : vector<2x8xf32>
    %95 = vector.multi_reduction <add>, %94, %cst_46 [2] : vector<2x8x8xf32> to vector<2x8xf32>
    %96 = vector.shape_cast %95 : vector<2x8xf32> to vector<2x8x1xf32>
    %97 = arith.mulf %85, %85 : vector<2x8x8xf32>
    %cst_47 = arith.constant 1.83787704 : f32
    %98 = vector.broadcast %cst_47 : f32 to vector<2x8x8xf32>
    %99 = arith.addf %98, %97 : vector<2x8x8xf32>
    %cst_48 = arith.constant -5.000000e-01 : f32
    %100 = vector.broadcast %cst_48 : f32 to vector<2x8x8xf32>
    %101 = arith.mulf %100, %99 : vector<2x8x8xf32>
    %cst_49 = arith.constant dense<0.000000e+00> : vector<2x8xf32>
    %102 = vector.multi_reduction <add>, %101, %cst_49 [2] : vector<2x8x8xf32> to vector<2x8xf32>
    %103 = vector.shape_cast %102 : vector<2x8xf32> to vector<2x8x1xf32>
    %c0_50 = arith.constant 0 : index
    %c0_51 = arith.constant 0 : index
    %104 = vector.load %arg5[%c0_50, %c0_51] : memref<16x200xbf16, #tpu.memory_space<vmem>>, vector<16x200xbf16>
    %cst_52 = arith.constant dense<0.000000e+00> : vector<8x200xf32>
    %105 = tpu.matmul %2, %104, %cst_52 {dimension_numbers = #tpu.dot_dimension_numbers<[1], [0], [0], [1], [0, 0, 1, 1], [], []>} : vector<8x16xbf16>, vector<16x200xbf16>, vector<8x200xf32> -> vector<8x200xf32>
    %c0_53 = arith.constant 0 : index
    %c0_54 = arith.constant 0 : index
    %106 = vector.load %arg15[%c0_53, %c0_54] : memref<18x200xf32, #tpu.memory_space<vmem>>, vector<1x200xf32>
    %107 = vector.broadcast %106 : vector<1x200xf32> to vector<8x200xf32>
    %108 = arith.addf %105, %107 : vector<8x200xf32>
    %cst_55 = arith.constant 0.000000e+00 : f32
    %109 = vector.broadcast %cst_55 : f32 to vector<8x200xf32>
    %110 = arith.maximumf %108, %109 : vector<8x200xf32>
    %111 = arith.truncf %110 : vector<8x200xf32> to vector<8x200xbf16>
    %c0_56 = arith.constant 0 : index
    %c0_57 = arith.constant 0 : index
    %c0_58 = arith.constant 0 : index
    %112 = vector.load %arg14[%c0_56, %c0_57, %c0_58] : memref<9x200x200xbf16, #tpu.memory_space<vmem>>, vector<1x200x200xbf16>
    %113 = vector.shape_cast %112 : vector<1x200x200xbf16> to vector<200x200xbf16>
    %cst_59 = arith.constant dense<0.000000e+00> : vector<8x200xf32>
    %114 = tpu.matmul %111, %113, %cst_59 {dimension_numbers = #tpu.dot_dimension_numbers<[1], [0], [0], [1], [0, 0, 1, 1], [], []>} : vector<8x200xbf16>, vector<200x200xbf16>, vector<8x200xf32> -> vector<8x200xf32>
    %c1_60 = arith.constant 1 : index
    %c0_61 = arith.constant 0 : index
    %115 = vector.load %arg15[%c1_60, %c0_61] : memref<18x200xf32, #tpu.memory_space<vmem>>, vector<1x200xf32>
    %116 = vector.broadcast %115 : vector<1x200xf32> to vector<8x200xf32>
    %117 = arith.addf %114, %116 : vector<8x200xf32>
    %cst_62 = arith.constant 0.000000e+00 : f32
    %118 = vector.broadcast %cst_62 : f32 to vector<8x200xf32>
    %119 = arith.maximumf %117, %118 : vector<8x200xf32>
    %120 = arith.truncf %119 : vector<8x200xf32> to vector<8x200xbf16>
    %c0_63 = arith.constant 0 : index
    %c0_64 = arith.constant 0 : index
    %c0_65 = arith.constant 0 : index
    %121 = vector.load %arg16[%c0_63, %c0_64, %c0_65] : memref<4x200x50xbf16, #tpu.memory_space<vmem>>, vector<1x200x50xbf16>
    %122 = vector.shape_cast %121 : vector<1x200x50xbf16> to vector<200x50xbf16>
    %cst_66 = arith.constant dense<0.000000e+00> : vector<8x50xf32>
    %123 = tpu.matmul %120, %122, %cst_66 {dimension_numbers = #tpu.dot_dimension_numbers<[1], [0], [0], [1], [0, 0, 1, 1], [], []>} : vector<8x200xbf16>, vector<200x50xbf16>, vector<8x50xf32> -> vector<8x50xf32>
    %c0_67 = arith.constant 0 : index
    %c0_68 = arith.constant 0 : index
    %124 = vector.load %arg17[%c0_67, %c0_68] : memref<4x50xf32, #tpu.memory_space<vmem>>, vector<1x50xf32>
    %125 = vector.broadcast %124 : vector<1x50xf32> to vector<8x50xf32>
    %126 = arith.addf %123, %125 : vector<8x50xf32>
    %c0_69 = arith.constant 0 : index
    %c0_70 = arith.constant 0 : index
    %127 = vector.load %arg6[%c0_69, %c0_70] : memref<16x200xbf16, #tpu.memory_space<vmem>>, vector<16x200xbf16>
    %cst_71 = arith.constant dense<0.000000e+00> : vector<8x200xf32>
    %128 = tpu.matmul %3, %127, %cst_71 {dimension_numbers = #tpu.dot_dimension_numbers<[1], [0], [0], [1], [0, 0, 1, 1], [], []>} : vector<8x16xbf16>, vector<16x200xbf16>, vector<8x200xf32> -> vector<8x200xf32>
    %c2 = arith.constant 2 : index
    %c0_72 = arith.constant 0 : index
    %129 = vector.load %arg15[%c2, %c0_72] : memref<18x200xf32, #tpu.memory_space<vmem>>, vector<1x200xf32>
    %130 = vector.broadcast %129 : vector<1x200xf32> to vector<8x200xf32>
    %131 = arith.addf %128, %130 : vector<8x200xf32>
    %cst_73 = arith.constant 0.000000e+00 : f32
    %132 = vector.broadcast %cst_73 : f32 to vector<8x200xf32>
    %133 = arith.maximumf %131, %132 : vector<8x200xf32>
    %134 = arith.truncf %133 : vector<8x200xf32> to vector<8x200xbf16>
    %c1_74 = arith.constant 1 : index
    %c0_75 = arith.constant 0 : index
    %c0_76 = arith.constant 0 : index
    %135 = vector.load %arg14[%c1_74, %c0_75, %c0_76] : memref<9x200x200xbf16, #tpu.memory_space<vmem>>, vector<1x200x200xbf16>
    %136 = vector.shape_cast %135 : vector<1x200x200xbf16> to vector<200x200xbf16>
    %cst_77 = arith.constant dense<0.000000e+00> : vector<8x200xf32>
    %137 = tpu.matmul %134, %136, %cst_77 {dimension_numbers = #tpu.dot_dimension_numbers<[1], [0], [0], [1], [0, 0, 1, 1], [], []>} : vector<8x200xbf16>, vector<200x200xbf16>, vector<8x200xf32> -> vector<8x200xf32>
    %c3 = arith.constant 3 : index
    %c0_78 = arith.constant 0 : index
    %138 = vector.load %arg15[%c3, %c0_78] : memref<18x200xf32, #tpu.memory_space<vmem>>, vector<1x200xf32>
    %139 = vector.broadcast %138 : vector<1x200xf32> to vector<8x200xf32>
    %140 = arith.addf %137, %139 : vector<8x200xf32>
    %cst_79 = arith.constant 0.000000e+00 : f32
    %141 = vector.broadcast %cst_79 : f32 to vector<8x200xf32>
    %142 = arith.maximumf %140, %141 : vector<8x200xf32>
    %143 = arith.truncf %142 : vector<8x200xf32> to vector<8x200xbf16>
    %c1_80 = arith.constant 1 : index
    %c0_81 = arith.constant 0 : index
    %c0_82 = arith.constant 0 : index
    %144 = vector.load %arg16[%c1_80, %c0_81, %c0_82] : memref<4x200x50xbf16, #tpu.memory_space<vmem>>, vector<1x200x50xbf16>
    %145 = vector.shape_cast %144 : vector<1x200x50xbf16> to vector<200x50xbf16>
    %cst_83 = arith.constant dense<0.000000e+00> : vector<8x50xf32>
    %146 = tpu.matmul %143, %145, %cst_83 {dimension_numbers = #tpu.dot_dimension_numbers<[1], [0], [0], [1], [0, 0, 1, 1], [], []>} : vector<8x200xbf16>, vector<200x50xbf16>, vector<8x50xf32> -> vector<8x50xf32>
    %c1_84 = arith.constant 1 : index
    %c0_85 = arith.constant 0 : index
    %147 = vector.load %arg17[%c1_84, %c0_85] : memref<4x50xf32, #tpu.memory_space<vmem>>, vector<1x50xf32>
    %148 = vector.broadcast %147 : vector<1x50xf32> to vector<8x50xf32>
    %149 = arith.addf %146, %148 : vector<8x50xf32>
    %150 = arith.truncf %86 : vector<16x8xf32> to vector<16x8xbf16>
    %c0_86 = arith.constant 0 : index
    %c0_87 = arith.constant 0 : index
    %151 = vector.load %arg7[%c0_86, %c0_87] : memref<8x200xbf16, #tpu.memory_space<vmem>>, vector<8x200xbf16>
    %cst_88 = arith.constant dense<0.000000e+00> : vector<16x200xf32>
    %152 = tpu.matmul %150, %151, %cst_88 {dimension_numbers = #tpu.dot_dimension_numbers<[1], [0], [0], [1], [0, 0, 1, 1], [], []>} : vector<16x8xbf16>, vector<8x200xbf16>, vector<16x200xf32> -> vector<16x200xf32>
    %c4_89 = arith.constant 4 : index
    %c0_90 = arith.constant 0 : index
    %153 = vector.load %arg15[%c4_89, %c0_90] : memref<18x200xf32, #tpu.memory_space<vmem>>, vector<1x200xf32>
    %154 = vector.broadcast %153 : vector<1x200xf32> to vector<16x200xf32>
    %155 = arith.addf %152, %154 : vector<16x200xf32>
    %cst_91 = arith.constant 0.000000e+00 : f32
    %156 = vector.broadcast %cst_91 : f32 to vector<16x200xf32>
    %157 = arith.maximumf %155, %156 : vector<16x200xf32>
    %158 = arith.truncf %157 : vector<16x200xf32> to vector<16x200xbf16>
    %c2_92 = arith.constant 2 : index
    %c0_93 = arith.constant 0 : index
    %c0_94 = arith.constant 0 : index
    %159 = vector.load %arg14[%c2_92, %c0_93, %c0_94] : memref<9x200x200xbf16, #tpu.memory_space<vmem>>, vector<1x200x200xbf16>
    %160 = vector.shape_cast %159 : vector<1x200x200xbf16> to vector<200x200xbf16>
    %cst_95 = arith.constant dense<0.000000e+00> : vector<16x200xf32>
    %161 = tpu.matmul %158, %160, %cst_95 {dimension_numbers = #tpu.dot_dimension_numbers<[1], [0], [0], [1], [0, 0, 1, 1], [], []>} : vector<16x200xbf16>, vector<200x200xbf16>, vector<16x200xf32> -> vector<16x200xf32>
    %c5_96 = arith.constant 5 : index
    %c0_97 = arith.constant 0 : index
    %162 = vector.load %arg15[%c5_96, %c0_97] : memref<18x200xf32, #tpu.memory_space<vmem>>, vector<1x200xf32>
    %163 = vector.broadcast %162 : vector<1x200xf32> to vector<16x200xf32>
    %164 = arith.addf %161, %163 : vector<16x200xf32>
    %cst_98 = arith.constant 0.000000e+00 : f32
    %165 = vector.broadcast %cst_98 : f32 to vector<16x200xf32>
    %166 = arith.maximumf %164, %165 : vector<16x200xf32>
    %167 = arith.truncf %166 : vector<16x200xf32> to vector<16x200xbf16>
    %c2_99 = arith.constant 2 : index
    %c0_100 = arith.constant 0 : index
    %c0_101 = arith.constant 0 : index
    %168 = vector.load %arg16[%c2_99, %c0_100, %c0_101] : memref<4x200x50xbf16, #tpu.memory_space<vmem>>, vector<1x200x50xbf16>
    %169 = vector.shape_cast %168 : vector<1x200x50xbf16> to vector<200x50xbf16>
    %cst_102 = arith.constant dense<0.000000e+00> : vector<16x50xf32>
    %170 = tpu.matmul %167, %169, %cst_102 {dimension_numbers = #tpu.dot_dimension_numbers<[1], [0], [0], [1], [0, 0, 1, 1], [], []>} : vector<16x200xbf16>, vector<200x50xbf16>, vector<16x50xf32> -> vector<16x50xf32>
    %c2_103 = arith.constant 2 : index
    %c0_104 = arith.constant 0 : index
    %171 = vector.load %arg17[%c2_103, %c0_104] : memref<4x50xf32, #tpu.memory_space<vmem>>, vector<1x50xf32>
    %172 = vector.broadcast %171 : vector<1x50xf32> to vector<16x50xf32>
    %173 = arith.addf %170, %172 : vector<16x50xf32>
    %174 = arith.truncf %173 : vector<16x50xf32> to vector<16x50xbf16>
    %175 = tpu.concatenate %126, %149 in 1 : vector<8x50xf32>, vector<8x50xf32> -> vector<8x100xf32>
    %176 = arith.truncf %175 : vector<8x100xf32> to vector<8x100xbf16>
    %c0_105 = arith.constant 0 : index
    %c0_106 = arith.constant 0 : index
    %177 = vector.load %arg11[%c0_105, %c0_106] : memref<100x200xbf16, #tpu.memory_space<vmem>>, vector<100x200xbf16>
    %cst_107 = arith.constant dense<0.000000e+00> : vector<8x200xf32>
    %178 = tpu.matmul %176, %177, %cst_107 {dimension_numbers = #tpu.dot_dimension_numbers<[1], [0], [0], [1], [0, 0, 1, 1], [], []>} : vector<8x100xbf16>, vector<100x200xbf16>, vector<8x200xf32> -> vector<8x200xf32>
    %c0_108 = arith.constant 0 : index
    %c0_109 = arith.constant 0 : index
    %c0_110 = arith.constant 0 : index
    %179 = vector.load %arg13[%c0_108, %c0_109, %c0_110] : memref<3x50x200xbf16, #tpu.memory_space<vmem>>, vector<1x50x200xbf16>
    %180 = vector.shape_cast %179 : vector<1x50x200xbf16> to vector<50x200xbf16>
    %cst_111 = arith.constant dense<0.000000e+00> : vector<16x200xf32>
    %181 = tpu.matmul %174, %180, %cst_111 {dimension_numbers = #tpu.dot_dimension_numbers<[1], [0], [0], [1], [0, 0, 1, 1], [], []>} : vector<16x50xbf16>, vector<50x200xbf16>, vector<16x200xf32> -> vector<16x200xf32>
    %182 = vector.shape_cast %181 : vector<16x200xf32> to vector<2x8x200xf32>
    %183 = vector.shape_cast %178 : vector<8x200xf32> to vector<1x8x200xf32>
    %184 = vector.broadcast %183 : vector<1x8x200xf32> to vector<2x8x200xf32>
    %185 = arith.addf %182, %184 : vector<2x8x200xf32>
    %186 = vector.shape_cast %185 : vector<2x8x200xf32> to vector<16x200xf32>
    %c12 = arith.constant 12 : index
    %c0_112 = arith.constant 0 : index
    %187 = vector.load %arg15[%c12, %c0_112] : memref<18x200xf32, #tpu.memory_space<vmem>>, vector<1x200xf32>
    %188 = vector.broadcast %187 : vector<1x200xf32> to vector<16x200xf32>
    %189 = arith.addf %186, %188 : vector<16x200xf32>
    %cst_113 = arith.constant 0.000000e+00 : f32
    %190 = vector.broadcast %cst_113 : f32 to vector<16x200xf32>
    %191 = arith.maximumf %189, %190 : vector<16x200xf32>
    %192 = arith.truncf %191 : vector<16x200xf32> to vector<16x200xbf16>
    %c6 = arith.constant 6 : index
    %c0_114 = arith.constant 0 : index
    %c0_115 = arith.constant 0 : index
    %193 = vector.load %arg14[%c6, %c0_114, %c0_115] : memref<9x200x200xbf16, #tpu.memory_space<vmem>>, vector<1x200x200xbf16>
    %194 = vector.shape_cast %193 : vector<1x200x200xbf16> to vector<200x200xbf16>
    %cst_116 = arith.constant dense<0.000000e+00> : vector<16x200xf32>
    %195 = tpu.matmul %192, %194, %cst_116 {dimension_numbers = #tpu.dot_dimension_numbers<[1], [0], [0], [1], [0, 0, 1, 1], [], []>} : vector<16x200xbf16>, vector<200x200xbf16>, vector<16x200xf32> -> vector<16x200xf32>
    %c13 = arith.constant 13 : index
    %c0_117 = arith.constant 0 : index
    %196 = vector.load %arg15[%c13, %c0_117] : memref<18x200xf32, #tpu.memory_space<vmem>>, vector<1x200xf32>
    %197 = vector.broadcast %196 : vector<1x200xf32> to vector<16x200xf32>
    %198 = arith.addf %195, %197 : vector<16x200xf32>
    %cst_118 = arith.constant 0.000000e+00 : f32
    %199 = vector.broadcast %cst_118 : f32 to vector<16x200xf32>
    %200 = arith.maximumf %198, %199 : vector<16x200xf32>
    %201 = arith.truncf %200 : vector<16x200xf32> to vector<16x200xbf16>
    %c0_119 = arith.constant 0 : index
    %c0_120 = arith.constant 0 : index
    %202 = vector.load %arg20[%c0_119, %c0_120] : memref<200x16xbf16, #tpu.memory_space<vmem>>, vector<200x16xbf16>
    %cst_121 = arith.constant dense<0.000000e+00> : vector<16x16xf32>
    %203 = tpu.matmul %201, %202, %cst_121 {dimension_numbers = #tpu.dot_dimension_numbers<[1], [0], [0], [1], [0, 0, 1, 1], [], []>} : vector<16x200xbf16>, vector<200x16xbf16>, vector<16x16xf32> -> vector<16x16xf32>
    %c0_122 = arith.constant 0 : index
    %c0_123 = arith.constant 0 : index
    %204 = vector.load %arg21[%c0_122, %c0_123] : memref<1x16xf32, #tpu.memory_space<vmem>>, vector<1x16xf32>
    %205 = vector.broadcast %204 : vector<1x16xf32> to vector<16x16xf32>
    %206 = arith.addf %203, %205 : vector<16x16xf32>
    %207 = vector.extract_strided_slice %206 {offsets = [0, 0], sizes = [16, 8], strides = [1, 1]} : vector<16x16xf32> to vector<16x8xf32>
    %208 = vector.extract_strided_slice %206 {offsets = [0, 8], sizes = [16, 8], strides = [1, 1]} : vector<16x16xf32> to vector<16x8xf32>
    %cst_124 = arith.constant -3.000000e+01 : f32
    %cst_125 = arith.constant 3.000000e+01 : f32
    %209 = vector.broadcast %cst_124 : f32 to vector<16x8xf32>
    %210 = arith.maximumf %209, %208 : vector<16x8xf32>
    %211 = vector.broadcast %cst_125 : f32 to vector<16x8xf32>
    %212 = arith.minimumf %211, %210 : vector<16x8xf32>
    %cst_126 = arith.constant 5.000000e-01 : f32
    %213 = vector.broadcast %cst_126 : f32 to vector<16x8xf32>
    %214 = arith.mulf %213, %212 : vector<16x8xf32>
    %215 = math.exp %214 : vector<16x8xf32>
    %216 = vector.shape_cast %212 : vector<16x8xf32> to vector<2x8x8xf32>
    %c0_127 = arith.constant 0 : index
    %c0_128 = arith.constant 0 : index
    %217 = vector.load %arg12[%c0_127, %c0_128] : memref<8x200xbf16, #tpu.memory_space<vmem>>, vector<8x200xbf16>
    %cst_129 = arith.constant dense<0.000000e+00> : vector<16x200xf32>
    %218 = tpu.matmul %150, %217, %cst_129 {dimension_numbers = #tpu.dot_dimension_numbers<[1], [0], [0], [1], [0, 0, 1, 1], [], []>} : vector<16x8xbf16>, vector<8x200xbf16>, vector<16x200xf32> -> vector<16x200xf32>
    %c14 = arith.constant 14 : index
    %c0_130 = arith.constant 0 : index
    %219 = vector.load %arg15[%c14, %c0_130] : memref<18x200xf32, #tpu.memory_space<vmem>>, vector<1x200xf32>
    %220 = vector.broadcast %219 : vector<1x200xf32> to vector<16x200xf32>
    %221 = arith.addf %218, %220 : vector<16x200xf32>
    %cst_131 = arith.constant 0.000000e+00 : f32
    %222 = vector.broadcast %cst_131 : f32 to vector<16x200xf32>
    %223 = arith.maximumf %221, %222 : vector<16x200xf32>
    %224 = arith.truncf %223 : vector<16x200xf32> to vector<16x200xbf16>
    %c7 = arith.constant 7 : index
    %c0_132 = arith.constant 0 : index
    %c0_133 = arith.constant 0 : index
    %225 = vector.load %arg14[%c7, %c0_132, %c0_133] : memref<9x200x200xbf16, #tpu.memory_space<vmem>>, vector<1x200x200xbf16>
    %226 = vector.shape_cast %225 : vector<1x200x200xbf16> to vector<200x200xbf16>
    %cst_134 = arith.constant dense<0.000000e+00> : vector<16x200xf32>
    %227 = tpu.matmul %224, %226, %cst_134 {dimension_numbers = #tpu.dot_dimension_numbers<[1], [0], [0], [1], [0, 0, 1, 1], [], []>} : vector<16x200xbf16>, vector<200x200xbf16>, vector<16x200xf32> -> vector<16x200xf32>
    %c15 = arith.constant 15 : index
    %c0_135 = arith.constant 0 : index
    %228 = vector.load %arg15[%c15, %c0_135] : memref<18x200xf32, #tpu.memory_space<vmem>>, vector<1x200xf32>
    %229 = vector.broadcast %228 : vector<1x200xf32> to vector<16x200xf32>
    %230 = arith.addf %227, %229 : vector<16x200xf32>
    %cst_136 = arith.constant 0.000000e+00 : f32
    %231 = vector.broadcast %cst_136 : f32 to vector<16x200xf32>
    %232 = arith.maximumf %230, %231 : vector<16x200xf32>
    %233 = arith.truncf %232 : vector<16x200xf32> to vector<16x200xbf16>
    %c0_137 = arith.constant 0 : index
    %c0_138 = arith.constant 0 : index
    %234 = vector.load %arg22[%c0_137, %c0_138] : memref<200x16xbf16, #tpu.memory_space<vmem>>, vector<200x16xbf16>
    %cst_139 = arith.constant dense<0.000000e+00> : vector<16x16xf32>
    %235 = tpu.matmul %233, %234, %cst_139 {dimension_numbers = #tpu.dot_dimension_numbers<[1], [0], [0], [1], [0, 0, 1, 1], [], []>} : vector<16x200xbf16>, vector<200x16xbf16>, vector<16x16xf32> -> vector<16x16xf32>
    %c0_140 = arith.constant 0 : index
    %c0_141 = arith.constant 0 : index
    %236 = vector.load %arg23[%c0_140, %c0_141] : memref<1x16xf32, #tpu.memory_space<vmem>>, vector<1x16xf32>
    %237 = vector.broadcast %236 : vector<1x16xf32> to vector<16x16xf32>
    %238 = arith.addf %235, %237 : vector<16x16xf32>
    %239 = vector.shape_cast %238 : vector<16x16xf32> to vector<2x8x16xf32>
    %240 = vector.shape_cast %1 : vector<8x16xf32> to vector<1x8x16xf32>
    %241 = vector.broadcast %240 : vector<1x8x16xf32> to vector<2x8x16xf32>
    %242 = arith.mulf %241, %239 : vector<2x8x16xf32>
    %cst_142 = arith.constant 0.000000e+00 : f32
    %243 = vector.broadcast %cst_142 : f32 to vector<2x8x16xf32>
    %244 = arith.maximumf %243, %239 : vector<2x8x16xf32>
    %245 = vector.broadcast %cst_142 : f32 to vector<2x8x16xf32>
    %246 = arith.subf %245, %239 : vector<2x8x16xf32>
    %247 = arith.cmpf one, %246, %246 : vector<2x8x16xf32>
    %248 = vector.broadcast %cst_142 : f32 to vector<2x8x16xf32>
    %249 = arith.addf %248, %239 : vector<2x8x16xf32>
    %250 = math.absf %246 : vector<2x8x16xf32>
    %cst_143 = arith.constant 0.000000e+00 : f32
    %251 = vector.broadcast %cst_143 : f32 to vector<2x8x16xf32>
    %252 = arith.subf %251, %250 : vector<2x8x16xf32>
    %253 = math.exp %252 : vector<2x8x16xf32>
    %254 = math.log1p %253 : vector<2x8x16xf32>
    %255 = arith.addf %244, %254 : vector<2x8x16xf32>
    %256 = arith.select %247, %249, %255 : vector<2x8x16xi1>, vector<2x8x16xf32>
    %257 = arith.subf %242, %256 : vector<2x8x16xf32>
    %cst_144 = arith.constant dense<0.000000e+00> : vector<2x8xf32>
    %258 = vector.multi_reduction <add>, %257, %cst_144 [2] : vector<2x8x16xf32> to vector<2x8xf32>
    %259 = vector.shape_cast %258 : vector<2x8xf32> to vector<2x8x1xf32>
    %260 = arith.addf %259, %103 : vector<2x8x1xf32>
    %c1_145 = arith.constant 1 : index
    %c0_146 = arith.constant 0 : index
    %c0_147 = arith.constant 0 : index
    %261 = vector.load %arg13[%c1_145, %c0_146, %c0_147] : memref<3x50x200xbf16, #tpu.memory_space<vmem>>, vector<1x50x200xbf16>
    %262 = vector.shape_cast %261 : vector<1x50x200xbf16> to vector<50x200xbf16>
    %cst_148 = arith.constant dense<0.000000e+00> : vector<16x200xf32>
    %263 = tpu.matmul %174, %262, %cst_148 {dimension_numbers = #tpu.dot_dimension_numbers<[1], [0], [0], [1], [0, 0, 1, 1], [], []>} : vector<16x50xbf16>, vector<50x200xbf16>, vector<16x200xf32> -> vector<16x200xf32>
    %c0_149 = arith.constant 0 : index
    %c0_150 = arith.constant 0 : index
    %c0_151 = arith.constant 0 : index
    %c0_152 = arith.constant 0 : index
    %264 = vector.load %arg4[%c0_149, %c0_150, %c0_151, %c0_152] : memref<3x2x8x8xf32, #tpu.memory_space<vmem>>, vector<3x2x8x8xf32>
    %265 = vector.extract_strided_slice %264 {offsets = [0, 0, 0, 0], sizes = [1, 2, 8, 8], strides = [1, 1, 1, 1]} : vector<3x2x8x8xf32> to vector<1x2x8x8xf32>
    %266 = vector.shape_cast %265 : vector<1x2x8x8xf32> to vector<2x8x8xf32>
    %267 = vector.shape_cast %266 : vector<2x8x8xf32> to vector<16x8xf32>
    %268 = arith.mulf %215, %267 : vector<16x8xf32>
    %269 = arith.addf %207, %268 : vector<16x8xf32>
    %270 = arith.truncf %269 : vector<16x8xf32> to vector<16x8xbf16>
    %c0_153 = arith.constant 0 : index
    %c0_154 = arith.constant 0 : index
    %271 = vector.load %arg8[%c0_153, %c0_154] : memref<8x200xbf16, #tpu.memory_space<vmem>>, vector<8x200xbf16>
    %cst_155 = arith.constant dense<0.000000e+00> : vector<16x200xf32>
    %272 = tpu.matmul %270, %271, %cst_155 {dimension_numbers = #tpu.dot_dimension_numbers<[1], [0], [0], [1], [0, 0, 1, 1], [], []>} : vector<16x8xbf16>, vector<8x200xbf16>, vector<16x200xf32> -> vector<16x200xf32>
    %c6_156 = arith.constant 6 : index
    %c0_157 = arith.constant 0 : index
    %273 = vector.load %arg15[%c6_156, %c0_157] : memref<18x200xf32, #tpu.memory_space<vmem>>, vector<1x200xf32>
    %274 = vector.broadcast %273 : vector<1x200xf32> to vector<16x200xf32>
    %275 = arith.addf %272, %274 : vector<16x200xf32>
    %cst_158 = arith.constant 0.000000e+00 : f32
    %276 = vector.broadcast %cst_158 : f32 to vector<16x200xf32>
    %277 = arith.maximumf %275, %276 : vector<16x200xf32>
    %278 = arith.truncf %277 : vector<16x200xf32> to vector<16x200xbf16>
    %c3_159 = arith.constant 3 : index
    %c0_160 = arith.constant 0 : index
    %c0_161 = arith.constant 0 : index
    %279 = vector.load %arg14[%c3_159, %c0_160, %c0_161] : memref<9x200x200xbf16, #tpu.memory_space<vmem>>, vector<1x200x200xbf16>
    %280 = vector.shape_cast %279 : vector<1x200x200xbf16> to vector<200x200xbf16>
    %cst_162 = arith.constant dense<0.000000e+00> : vector<16x200xf32>
    %281 = tpu.matmul %278, %280, %cst_162 {dimension_numbers = #tpu.dot_dimension_numbers<[1], [0], [0], [1], [0, 0, 1, 1], [], []>} : vector<16x200xbf16>, vector<200x200xbf16>, vector<16x200xf32> -> vector<16x200xf32>
    %c7_163 = arith.constant 7 : index
    %c0_164 = arith.constant 0 : index
    %282 = vector.load %arg15[%c7_163, %c0_164] : memref<18x200xf32, #tpu.memory_space<vmem>>, vector<1x200xf32>
    %283 = vector.broadcast %282 : vector<1x200xf32> to vector<16x200xf32>
    %284 = arith.addf %281, %283 : vector<16x200xf32>
    %cst_165 = arith.constant 0.000000e+00 : f32
    %285 = vector.broadcast %cst_165 : f32 to vector<16x200xf32>
    %286 = arith.maximumf %284, %285 : vector<16x200xf32>
    %287 = arith.truncf %286 : vector<16x200xf32> to vector<16x200xbf16>
    %c3_166 = arith.constant 3 : index
    %c0_167 = arith.constant 0 : index
    %c0_168 = arith.constant 0 : index
    %288 = vector.load %arg16[%c3_166, %c0_167, %c0_168] : memref<4x200x50xbf16, #tpu.memory_space<vmem>>, vector<1x200x50xbf16>
    %289 = vector.shape_cast %288 : vector<1x200x50xbf16> to vector<200x50xbf16>
    %cst_169 = arith.constant dense<0.000000e+00> : vector<16x50xf32>
    %290 = tpu.matmul %287, %289, %cst_169 {dimension_numbers = #tpu.dot_dimension_numbers<[1], [0], [0], [1], [0, 0, 1, 1], [], []>} : vector<16x200xbf16>, vector<200x50xbf16>, vector<16x50xf32> -> vector<16x50xf32>
    %c3_170 = arith.constant 3 : index
    %c0_171 = arith.constant 0 : index
    %291 = vector.load %arg17[%c3_170, %c0_171] : memref<4x50xf32, #tpu.memory_space<vmem>>, vector<1x50xf32>
    %292 = vector.broadcast %291 : vector<1x50xf32> to vector<16x50xf32>
    %293 = arith.addf %290, %292 : vector<16x50xf32>
    %294 = arith.truncf %293 : vector<16x50xf32> to vector<16x50xbf16>
    %c2_172 = arith.constant 2 : index
    %c0_173 = arith.constant 0 : index
    %c0_174 = arith.constant 0 : index
    %295 = vector.load %arg13[%c2_172, %c0_173, %c0_174] : memref<3x50x200xbf16, #tpu.memory_space<vmem>>, vector<1x50x200xbf16>
    %296 = vector.shape_cast %295 : vector<1x50x200xbf16> to vector<50x200xbf16>
    %cst_175 = arith.constant dense<0.000000e+00> : vector<16x200xf32>
    %297 = tpu.matmul %294, %296, %cst_175 {dimension_numbers = #tpu.dot_dimension_numbers<[1], [0], [0], [1], [0, 0, 1, 1], [], []>} : vector<16x50xbf16>, vector<50x200xbf16>, vector<16x200xf32> -> vector<16x200xf32>
    %298 = arith.addf %263, %297 : vector<16x200xf32>
    %c16 = arith.constant 16 : index
    %c0_176 = arith.constant 0 : index
    %299 = vector.load %arg15[%c16, %c0_176] : memref<18x200xf32, #tpu.memory_space<vmem>>, vector<1x200xf32>
    %300 = vector.broadcast %299 : vector<1x200xf32> to vector<16x200xf32>
    %301 = arith.addf %298, %300 : vector<16x200xf32>
    %cst_177 = arith.constant 0.000000e+00 : f32
    %302 = vector.broadcast %cst_177 : f32 to vector<16x200xf32>
    %303 = arith.maximumf %301, %302 : vector<16x200xf32>
    %304 = arith.truncf %303 : vector<16x200xf32> to vector<16x200xbf16>
    %c8_178 = arith.constant 8 : index
    %c0_179 = arith.constant 0 : index
    %c0_180 = arith.constant 0 : index
    %305 = vector.load %arg14[%c8_178, %c0_179, %c0_180] : memref<9x200x200xbf16, #tpu.memory_space<vmem>>, vector<1x200x200xbf16>
    %306 = vector.shape_cast %305 : vector<1x200x200xbf16> to vector<200x200xbf16>
    %cst_181 = arith.constant dense<0.000000e+00> : vector<16x200xf32>
    %307 = tpu.matmul %304, %306, %cst_181 {dimension_numbers = #tpu.dot_dimension_numbers<[1], [0], [0], [1], [0, 0, 1, 1], [], []>} : vector<16x200xbf16>, vector<200x200xbf16>, vector<16x200xf32> -> vector<16x200xf32>
    %c17 = arith.constant 17 : index
    %c0_182 = arith.constant 0 : index
    %308 = vector.load %arg15[%c17, %c0_182] : memref<18x200xf32, #tpu.memory_space<vmem>>, vector<1x200xf32>
    %309 = vector.broadcast %308 : vector<1x200xf32> to vector<16x200xf32>
    %310 = arith.addf %307, %309 : vector<16x200xf32>
    %cst_183 = arith.constant 0.000000e+00 : f32
    %311 = vector.broadcast %cst_183 : f32 to vector<16x200xf32>
    %312 = arith.maximumf %310, %311 : vector<16x200xf32>
    %313 = arith.truncf %312 : vector<16x200xf32> to vector<16x200xbf16>
    %c0_184 = arith.constant 0 : index
    %c0_185 = arith.constant 0 : index
    %314 = vector.load %arg24[%c0_184, %c0_185] : memref<200x16xbf16, #tpu.memory_space<vmem>>, vector<200x16xbf16>
    %cst_186 = arith.constant dense<0.000000e+00> : vector<16x16xf32>
    %315 = tpu.matmul %313, %314, %cst_186 {dimension_numbers = #tpu.dot_dimension_numbers<[1], [0], [0], [1], [0, 0, 1, 1], [], []>} : vector<16x200xbf16>, vector<200x16xbf16>, vector<16x16xf32> -> vector<16x16xf32>
    %c0_187 = arith.constant 0 : index
    %c0_188 = arith.constant 0 : index
    %316 = vector.load %arg25[%c0_187, %c0_188] : memref<1x16xf32, #tpu.memory_space<vmem>>, vector<1x16xf32>
    %317 = vector.broadcast %316 : vector<1x16xf32> to vector<16x16xf32>
    %318 = arith.addf %315, %317 : vector<16x16xf32>
    %319 = vector.shape_cast %318 : vector<16x16xf32> to vector<2x8x16xf32>
    %320 = vector.shape_cast %0 : vector<8x16xf32> to vector<1x8x16xf32>
    %321 = vector.broadcast %320 : vector<1x8x16xf32> to vector<2x8x16xf32>
    %322 = arith.mulf %321, %319 : vector<2x8x16xf32>
    %cst_189 = arith.constant 0.000000e+00 : f32
    %323 = vector.broadcast %cst_189 : f32 to vector<2x8x16xf32>
    %324 = arith.maximumf %323, %319 : vector<2x8x16xf32>
    %325 = vector.broadcast %cst_189 : f32 to vector<2x8x16xf32>
    %326 = arith.subf %325, %319 : vector<2x8x16xf32>
    %327 = arith.cmpf one, %326, %326 : vector<2x8x16xf32>
    %328 = vector.broadcast %cst_189 : f32 to vector<2x8x16xf32>
    %329 = arith.addf %328, %319 : vector<2x8x16xf32>
    %330 = math.absf %326 : vector<2x8x16xf32>
    %cst_190 = arith.constant 0.000000e+00 : f32
    %331 = vector.broadcast %cst_190 : f32 to vector<2x8x16xf32>
    %332 = arith.subf %331, %330 : vector<2x8x16xf32>
    %333 = math.exp %332 : vector<2x8x16xf32>
    %334 = math.log1p %333 : vector<2x8x16xf32>
    %335 = arith.addf %324, %334 : vector<2x8x16xf32>
    %336 = arith.select %327, %329, %335 : vector<2x8x16xi1>, vector<2x8x16xf32>
    %337 = arith.subf %322, %336 : vector<2x8x16xf32>
    %cst_191 = arith.constant dense<0.000000e+00> : vector<2x8xf32>
    %338 = vector.multi_reduction <add>, %337, %cst_191 [2] : vector<2x8x16xf32> to vector<2x8xf32>
    %339 = vector.shape_cast %338 : vector<2x8xf32> to vector<2x8x1xf32>
    %340 = vector.shape_cast %269 : vector<16x8xf32> to vector<2x8x8xf32>
    %cst_192 = arith.constant 1.83787704 : f32
    %341 = vector.broadcast %cst_192 : f32 to vector<2x8x8xf32>
    %342 = arith.addf %341, %216 : vector<2x8x8xf32>
    %343 = arith.mulf %266, %266 : vector<2x8x8xf32>
    %344 = arith.addf %342, %343 : vector<2x8x8xf32>
    %cst_193 = arith.constant -5.000000e-01 : f32
    %345 = vector.broadcast %cst_193 : f32 to vector<2x8x8xf32>
    %346 = arith.mulf %345, %344 : vector<2x8x8xf32>
    %cst_194 = arith.constant dense<0.000000e+00> : vector<2x8xf32>
    %347 = vector.multi_reduction <add>, %346, %cst_194 [2] : vector<2x8x8xf32> to vector<2x8xf32>
    %348 = vector.shape_cast %347 : vector<2x8xf32> to vector<2x8x1xf32>
    %349 = arith.mulf %340, %340 : vector<2x8x8xf32>
    %cst_195 = arith.constant 1.83787704 : f32
    %350 = vector.broadcast %cst_195 : f32 to vector<2x8x8xf32>
    %351 = arith.addf %350, %349 : vector<2x8x8xf32>
    %cst_196 = arith.constant -5.000000e-01 : f32
    %352 = vector.broadcast %cst_196 : f32 to vector<2x8x8xf32>
    %353 = arith.mulf %352, %351 : vector<2x8x8xf32>
    %cst_197 = arith.constant dense<0.000000e+00> : vector<2x8xf32>
    %354 = vector.multi_reduction <add>, %353, %cst_197 [2] : vector<2x8x8xf32> to vector<2x8xf32>
    %355 = vector.shape_cast %354 : vector<2x8xf32> to vector<2x8x1xf32>
    %356 = arith.addf %339, %260 : vector<2x8x1xf32>
    %357 = arith.addf %356, %355 : vector<2x8x1xf32>
    %358 = arith.subf %357, %348 : vector<2x8x1xf32>
    %cst_198 = arith.constant 1.000000e+00 : f32
    %359 = vector.broadcast %cst_198 : f32 to vector<2x8x1xf32>
    %360 = vector.extract_strided_slice %264 {offsets = [1, 0, 0, 0], sizes = [1, 2, 8, 8], strides = [1, 1, 1, 1]} : vector<3x2x8x8xf32> to vector<1x2x8x8xf32>
    %361 = vector.shape_cast %360 : vector<1x2x8x8xf32> to vector<2x8x8xf32>
    %362 = vector.shape_cast %361 : vector<2x8x8xf32> to vector<16x8xf32>
    %363 = arith.mulf %215, %362 : vector<16x8xf32>
    %364 = arith.addf %207, %363 : vector<16x8xf32>
    %365 = arith.truncf %364 : vector<16x8xf32> to vector<16x8xbf16>
    %c0_199 = arith.constant 0 : index
    %c0_200 = arith.constant 0 : index
    %366 = vector.load %arg8[%c0_199, %c0_200] : memref<8x200xbf16, #tpu.memory_space<vmem>>, vector<8x200xbf16>
    %cst_201 = arith.constant dense<0.000000e+00> : vector<16x200xf32>
    %367 = tpu.matmul %365, %366, %cst_201 {dimension_numbers = #tpu.dot_dimension_numbers<[1], [0], [0], [1], [0, 0, 1, 1], [], []>} : vector<16x8xbf16>, vector<8x200xbf16>, vector<16x200xf32> -> vector<16x200xf32>
    %c6_202 = arith.constant 6 : index
    %c0_203 = arith.constant 0 : index
    %368 = vector.load %arg15[%c6_202, %c0_203] : memref<18x200xf32, #tpu.memory_space<vmem>>, vector<1x200xf32>
    %369 = vector.broadcast %368 : vector<1x200xf32> to vector<16x200xf32>
    %370 = arith.addf %367, %369 : vector<16x200xf32>
    %cst_204 = arith.constant 0.000000e+00 : f32
    %371 = vector.broadcast %cst_204 : f32 to vector<16x200xf32>
    %372 = arith.maximumf %370, %371 : vector<16x200xf32>
    %373 = arith.truncf %372 : vector<16x200xf32> to vector<16x200xbf16>
    %c3_205 = arith.constant 3 : index
    %c0_206 = arith.constant 0 : index
    %c0_207 = arith.constant 0 : index
    %374 = vector.load %arg14[%c3_205, %c0_206, %c0_207] : memref<9x200x200xbf16, #tpu.memory_space<vmem>>, vector<1x200x200xbf16>
    %375 = vector.shape_cast %374 : vector<1x200x200xbf16> to vector<200x200xbf16>
    %cst_208 = arith.constant dense<0.000000e+00> : vector<16x200xf32>
    %376 = tpu.matmul %373, %375, %cst_208 {dimension_numbers = #tpu.dot_dimension_numbers<[1], [0], [0], [1], [0, 0, 1, 1], [], []>} : vector<16x200xbf16>, vector<200x200xbf16>, vector<16x200xf32> -> vector<16x200xf32>
    %c7_209 = arith.constant 7 : index
    %c0_210 = arith.constant 0 : index
    %377 = vector.load %arg15[%c7_209, %c0_210] : memref<18x200xf32, #tpu.memory_space<vmem>>, vector<1x200xf32>
    %378 = vector.broadcast %377 : vector<1x200xf32> to vector<16x200xf32>
    %379 = arith.addf %376, %378 : vector<16x200xf32>
    %cst_211 = arith.constant 0.000000e+00 : f32
    %380 = vector.broadcast %cst_211 : f32 to vector<16x200xf32>
    %381 = arith.maximumf %379, %380 : vector<16x200xf32>
    %382 = arith.truncf %381 : vector<16x200xf32> to vector<16x200xbf16>
    %c3_212 = arith.constant 3 : index
    %c0_213 = arith.constant 0 : index
    %c0_214 = arith.constant 0 : index
    %383 = vector.load %arg16[%c3_212, %c0_213, %c0_214] : memref<4x200x50xbf16, #tpu.memory_space<vmem>>, vector<1x200x50xbf16>
    %384 = vector.shape_cast %383 : vector<1x200x50xbf16> to vector<200x50xbf16>
    %cst_215 = arith.constant dense<0.000000e+00> : vector<16x50xf32>
    %385 = tpu.matmul %382, %384, %cst_215 {dimension_numbers = #tpu.dot_dimension_numbers<[1], [0], [0], [1], [0, 0, 1, 1], [], []>} : vector<16x200xbf16>, vector<200x50xbf16>, vector<16x50xf32> -> vector<16x50xf32>
    %c3_216 = arith.constant 3 : index
    %c0_217 = arith.constant 0 : index
    %386 = vector.load %arg17[%c3_216, %c0_217] : memref<4x50xf32, #tpu.memory_space<vmem>>, vector<1x50xf32>
    %387 = vector.broadcast %386 : vector<1x50xf32> to vector<16x50xf32>
    %388 = arith.addf %385, %387 : vector<16x50xf32>
    %389 = arith.truncf %388 : vector<16x50xf32> to vector<16x50xbf16>
    %c2_218 = arith.constant 2 : index
    %c0_219 = arith.constant 0 : index
    %c0_220 = arith.constant 0 : index
    %390 = vector.load %arg13[%c2_218, %c0_219, %c0_220] : memref<3x50x200xbf16, #tpu.memory_space<vmem>>, vector<1x50x200xbf16>
    %391 = vector.shape_cast %390 : vector<1x50x200xbf16> to vector<50x200xbf16>
    %cst_221 = arith.constant dense<0.000000e+00> : vector<16x200xf32>
    %392 = tpu.matmul %389, %391, %cst_221 {dimension_numbers = #tpu.dot_dimension_numbers<[1], [0], [0], [1], [0, 0, 1, 1], [], []>} : vector<16x50xbf16>, vector<50x200xbf16>, vector<16x200xf32> -> vector<16x200xf32>
    %393 = arith.addf %263, %392 : vector<16x200xf32>
    %c16_222 = arith.constant 16 : index
    %c0_223 = arith.constant 0 : index
    %394 = vector.load %arg15[%c16_222, %c0_223] : memref<18x200xf32, #tpu.memory_space<vmem>>, vector<1x200xf32>
    %395 = vector.broadcast %394 : vector<1x200xf32> to vector<16x200xf32>
    %396 = arith.addf %393, %395 : vector<16x200xf32>
    %cst_224 = arith.constant 0.000000e+00 : f32
    %397 = vector.broadcast %cst_224 : f32 to vector<16x200xf32>
    %398 = arith.maximumf %396, %397 : vector<16x200xf32>
    %399 = arith.truncf %398 : vector<16x200xf32> to vector<16x200xbf16>
    %c8_225 = arith.constant 8 : index
    %c0_226 = arith.constant 0 : index
    %c0_227 = arith.constant 0 : index
    %400 = vector.load %arg14[%c8_225, %c0_226, %c0_227] : memref<9x200x200xbf16, #tpu.memory_space<vmem>>, vector<1x200x200xbf16>
    %401 = vector.shape_cast %400 : vector<1x200x200xbf16> to vector<200x200xbf16>
    %cst_228 = arith.constant dense<0.000000e+00> : vector<16x200xf32>
    %402 = tpu.matmul %399, %401, %cst_228 {dimension_numbers = #tpu.dot_dimension_numbers<[1], [0], [0], [1], [0, 0, 1, 1], [], []>} : vector<16x200xbf16>, vector<200x200xbf16>, vector<16x200xf32> -> vector<16x200xf32>
    %c17_229 = arith.constant 17 : index
    %c0_230 = arith.constant 0 : index
    %403 = vector.load %arg15[%c17_229, %c0_230] : memref<18x200xf32, #tpu.memory_space<vmem>>, vector<1x200xf32>
    %404 = vector.broadcast %403 : vector<1x200xf32> to vector<16x200xf32>
    %405 = arith.addf %402, %404 : vector<16x200xf32>
    %cst_231 = arith.constant 0.000000e+00 : f32
    %406 = vector.broadcast %cst_231 : f32 to vector<16x200xf32>
    %407 = arith.maximumf %405, %406 : vector<16x200xf32>
    %408 = arith.truncf %407 : vector<16x200xf32> to vector<16x200xbf16>
    %c0_232 = arith.constant 0 : index
    %c0_233 = arith.constant 0 : index
    %409 = vector.load %arg24[%c0_232, %c0_233] : memref<200x16xbf16, #tpu.memory_space<vmem>>, vector<200x16xbf16>
    %cst_234 = arith.constant dense<0.000000e+00> : vector<16x16xf32>
    %410 = tpu.matmul %408, %409, %cst_234 {dimension_numbers = #tpu.dot_dimension_numbers<[1], [0], [0], [1], [0, 0, 1, 1], [], []>} : vector<16x200xbf16>, vector<200x16xbf16>, vector<16x16xf32> -> vector<16x16xf32>
    %c0_235 = arith.constant 0 : index
    %c0_236 = arith.constant 0 : index
    %411 = vector.load %arg25[%c0_235, %c0_236] : memref<1x16xf32, #tpu.memory_space<vmem>>, vector<1x16xf32>
    %412 = vector.broadcast %411 : vector<1x16xf32> to vector<16x16xf32>
    %413 = arith.addf %410, %412 : vector<16x16xf32>
    %414 = vector.shape_cast %413 : vector<16x16xf32> to vector<2x8x16xf32>
    %415 = vector.shape_cast %0 : vector<8x16xf32> to vector<1x8x16xf32>
    %416 = vector.broadcast %415 : vector<1x8x16xf32> to vector<2x8x16xf32>
    %417 = arith.mulf %416, %414 : vector<2x8x16xf32>
    %cst_237 = arith.constant 0.000000e+00 : f32
    %418 = vector.broadcast %cst_237 : f32 to vector<2x8x16xf32>
    %419 = arith.maximumf %418, %414 : vector<2x8x16xf32>
    %420 = vector.broadcast %cst_237 : f32 to vector<2x8x16xf32>
    %421 = arith.subf %420, %414 : vector<2x8x16xf32>
    %422 = arith.cmpf one, %421, %421 : vector<2x8x16xf32>
    %423 = vector.broadcast %cst_237 : f32 to vector<2x8x16xf32>
    %424 = arith.addf %423, %414 : vector<2x8x16xf32>
    %425 = math.absf %421 : vector<2x8x16xf32>
    %cst_238 = arith.constant 0.000000e+00 : f32
    %426 = vector.broadcast %cst_238 : f32 to vector<2x8x16xf32>
    %427 = arith.subf %426, %425 : vector<2x8x16xf32>
    %428 = math.exp %427 : vector<2x8x16xf32>
    %429 = math.log1p %428 : vector<2x8x16xf32>
    %430 = arith.addf %419, %429 : vector<2x8x16xf32>
    %431 = arith.select %422, %424, %430 : vector<2x8x16xi1>, vector<2x8x16xf32>
    %432 = arith.subf %417, %431 : vector<2x8x16xf32>
    %cst_239 = arith.constant dense<0.000000e+00> : vector<2x8xf32>
    %433 = vector.multi_reduction <add>, %432, %cst_239 [2] : vector<2x8x16xf32> to vector<2x8xf32>
    %434 = vector.shape_cast %433 : vector<2x8xf32> to vector<2x8x1xf32>
    %435 = vector.shape_cast %364 : vector<16x8xf32> to vector<2x8x8xf32>
    %cst_240 = arith.constant 1.83787704 : f32
    %436 = vector.broadcast %cst_240 : f32 to vector<2x8x8xf32>
    %437 = arith.addf %436, %216 : vector<2x8x8xf32>
    %438 = arith.mulf %361, %361 : vector<2x8x8xf32>
    %439 = arith.addf %437, %438 : vector<2x8x8xf32>
    %cst_241 = arith.constant -5.000000e-01 : f32
    %440 = vector.broadcast %cst_241 : f32 to vector<2x8x8xf32>
    %441 = arith.mulf %440, %439 : vector<2x8x8xf32>
    %cst_242 = arith.constant dense<0.000000e+00> : vector<2x8xf32>
    %442 = vector.multi_reduction <add>, %441, %cst_242 [2] : vector<2x8x8xf32> to vector<2x8xf32>
    %443 = vector.shape_cast %442 : vector<2x8xf32> to vector<2x8x1xf32>
    %444 = arith.mulf %435, %435 : vector<2x8x8xf32>
    %cst_243 = arith.constant 1.83787704 : f32
    %445 = vector.broadcast %cst_243 : f32 to vector<2x8x8xf32>
    %446 = arith.addf %445, %444 : vector<2x8x8xf32>
    %cst_244 = arith.constant -5.000000e-01 : f32
    %447 = vector.broadcast %cst_244 : f32 to vector<2x8x8xf32>
    %448 = arith.mulf %447, %446 : vector<2x8x8xf32>
    %cst_245 = arith.constant dense<0.000000e+00> : vector<2x8xf32>
    %449 = vector.multi_reduction <add>, %448, %cst_245 [2] : vector<2x8x8xf32> to vector<2x8xf32>
    %450 = vector.shape_cast %449 : vector<2x8xf32> to vector<2x8x1xf32>
    %451 = arith.addf %434, %260 : vector<2x8x1xf32>
    %452 = arith.addf %451, %450 : vector<2x8x1xf32>
    %453 = arith.subf %452, %443 : vector<2x8x1xf32>
    %454 = arith.maximumf %358, %453 : vector<2x8x1xf32>
    %455 = arith.subf %358, %454 : vector<2x8x1xf32>
    %456 = math.exp %455 : vector<2x8x1xf32>
    %457 = arith.mulf %359, %456 : vector<2x8x1xf32>
    %458 = arith.subf %453, %454 : vector<2x8x1xf32>
    %459 = math.exp %458 : vector<2x8x1xf32>
    %460 = arith.addf %457, %459 : vector<2x8x1xf32>
    %461 = vector.extract_strided_slice %264 {offsets = [2, 0, 0, 0], sizes = [1, 2, 8, 8], strides = [1, 1, 1, 1]} : vector<3x2x8x8xf32> to vector<1x2x8x8xf32>
    %462 = vector.shape_cast %461 : vector<1x2x8x8xf32> to vector<2x8x8xf32>
    %463 = vector.shape_cast %462 : vector<2x8x8xf32> to vector<16x8xf32>
    %464 = arith.mulf %215, %463 : vector<16x8xf32>
    %465 = arith.addf %207, %464 : vector<16x8xf32>
    %466 = arith.truncf %465 : vector<16x8xf32> to vector<16x8xbf16>
    %c0_246 = arith.constant 0 : index
    %c0_247 = arith.constant 0 : index
    %467 = vector.load %arg8[%c0_246, %c0_247] : memref<8x200xbf16, #tpu.memory_space<vmem>>, vector<8x200xbf16>
    %cst_248 = arith.constant dense<0.000000e+00> : vector<16x200xf32>
    %468 = tpu.matmul %466, %467, %cst_248 {dimension_numbers = #tpu.dot_dimension_numbers<[1], [0], [0], [1], [0, 0, 1, 1], [], []>} : vector<16x8xbf16>, vector<8x200xbf16>, vector<16x200xf32> -> vector<16x200xf32>
    %c6_249 = arith.constant 6 : index
    %c0_250 = arith.constant 0 : index
    %469 = vector.load %arg15[%c6_249, %c0_250] : memref<18x200xf32, #tpu.memory_space<vmem>>, vector<1x200xf32>
    %470 = vector.broadcast %469 : vector<1x200xf32> to vector<16x200xf32>
    %471 = arith.addf %468, %470 : vector<16x200xf32>
    %cst_251 = arith.constant 0.000000e+00 : f32
    %472 = vector.broadcast %cst_251 : f32 to vector<16x200xf32>
    %473 = arith.maximumf %471, %472 : vector<16x200xf32>
    %474 = arith.truncf %473 : vector<16x200xf32> to vector<16x200xbf16>
    %c3_252 = arith.constant 3 : index
    %c0_253 = arith.constant 0 : index
    %c0_254 = arith.constant 0 : index
    %475 = vector.load %arg14[%c3_252, %c0_253, %c0_254] : memref<9x200x200xbf16, #tpu.memory_space<vmem>>, vector<1x200x200xbf16>
    %476 = vector.shape_cast %475 : vector<1x200x200xbf16> to vector<200x200xbf16>
    %cst_255 = arith.constant dense<0.000000e+00> : vector<16x200xf32>
    %477 = tpu.matmul %474, %476, %cst_255 {dimension_numbers = #tpu.dot_dimension_numbers<[1], [0], [0], [1], [0, 0, 1, 1], [], []>} : vector<16x200xbf16>, vector<200x200xbf16>, vector<16x200xf32> -> vector<16x200xf32>
    %c7_256 = arith.constant 7 : index
    %c0_257 = arith.constant 0 : index
    %478 = vector.load %arg15[%c7_256, %c0_257] : memref<18x200xf32, #tpu.memory_space<vmem>>, vector<1x200xf32>
    %479 = vector.broadcast %478 : vector<1x200xf32> to vector<16x200xf32>
    %480 = arith.addf %477, %479 : vector<16x200xf32>
    %cst_258 = arith.constant 0.000000e+00 : f32
    %481 = vector.broadcast %cst_258 : f32 to vector<16x200xf32>
    %482 = arith.maximumf %480, %481 : vector<16x200xf32>
    %483 = arith.truncf %482 : vector<16x200xf32> to vector<16x200xbf16>
    %c3_259 = arith.constant 3 : index
    %c0_260 = arith.constant 0 : index
    %c0_261 = arith.constant 0 : index
    %484 = vector.load %arg16[%c3_259, %c0_260, %c0_261] : memref<4x200x50xbf16, #tpu.memory_space<vmem>>, vector<1x200x50xbf16>
    %485 = vector.shape_cast %484 : vector<1x200x50xbf16> to vector<200x50xbf16>
    %cst_262 = arith.constant dense<0.000000e+00> : vector<16x50xf32>
    %486 = tpu.matmul %483, %485, %cst_262 {dimension_numbers = #tpu.dot_dimension_numbers<[1], [0], [0], [1], [0, 0, 1, 1], [], []>} : vector<16x200xbf16>, vector<200x50xbf16>, vector<16x50xf32> -> vector<16x50xf32>
    %c3_263 = arith.constant 3 : index
    %c0_264 = arith.constant 0 : index
    %487 = vector.load %arg17[%c3_263, %c0_264] : memref<4x50xf32, #tpu.memory_space<vmem>>, vector<1x50xf32>
    %488 = vector.broadcast %487 : vector<1x50xf32> to vector<16x50xf32>
    %489 = arith.addf %486, %488 : vector<16x50xf32>
    %490 = arith.truncf %489 : vector<16x50xf32> to vector<16x50xbf16>
    %c2_265 = arith.constant 2 : index
    %c0_266 = arith.constant 0 : index
    %c0_267 = arith.constant 0 : index
    %491 = vector.load %arg13[%c2_265, %c0_266, %c0_267] : memref<3x50x200xbf16, #tpu.memory_space<vmem>>, vector<1x50x200xbf16>
    %492 = vector.shape_cast %491 : vector<1x50x200xbf16> to vector<50x200xbf16>
    %cst_268 = arith.constant dense<0.000000e+00> : vector<16x200xf32>
    %493 = tpu.matmul %490, %492, %cst_268 {dimension_numbers = #tpu.dot_dimension_numbers<[1], [0], [0], [1], [0, 0, 1, 1], [], []>} : vector<16x50xbf16>, vector<50x200xbf16>, vector<16x200xf32> -> vector<16x200xf32>
    %494 = arith.addf %263, %493 : vector<16x200xf32>
    %c16_269 = arith.constant 16 : index
    %c0_270 = arith.constant 0 : index
    %495 = vector.load %arg15[%c16_269, %c0_270] : memref<18x200xf32, #tpu.memory_space<vmem>>, vector<1x200xf32>
    %496 = vector.broadcast %495 : vector<1x200xf32> to vector<16x200xf32>
    %497 = arith.addf %494, %496 : vector<16x200xf32>
    %cst_271 = arith.constant 0.000000e+00 : f32
    %498 = vector.broadcast %cst_271 : f32 to vector<16x200xf32>
    %499 = arith.maximumf %497, %498 : vector<16x200xf32>
    %500 = arith.truncf %499 : vector<16x200xf32> to vector<16x200xbf16>
    %c8_272 = arith.constant 8 : index
    %c0_273 = arith.constant 0 : index
    %c0_274 = arith.constant 0 : index
    %501 = vector.load %arg14[%c8_272, %c0_273, %c0_274] : memref<9x200x200xbf16, #tpu.memory_space<vmem>>, vector<1x200x200xbf16>
    %502 = vector.shape_cast %501 : vector<1x200x200xbf16> to vector<200x200xbf16>
    %cst_275 = arith.constant dense<0.000000e+00> : vector<16x200xf32>
    %503 = tpu.matmul %500, %502, %cst_275 {dimension_numbers = #tpu.dot_dimension_numbers<[1], [0], [0], [1], [0, 0, 1, 1], [], []>} : vector<16x200xbf16>, vector<200x200xbf16>, vector<16x200xf32> -> vector<16x200xf32>
    %c17_276 = arith.constant 17 : index
    %c0_277 = arith.constant 0 : index
    %504 = vector.load %arg15[%c17_276, %c0_277] : memref<18x200xf32, #tpu.memory_space<vmem>>, vector<1x200xf32>
    %505 = vector.broadcast %504 : vector<1x200xf32> to vector<16x200xf32>
    %506 = arith.addf %503, %505 : vector<16x200xf32>
    %cst_278 = arith.constant 0.000000e+00 : f32
    %507 = vector.broadcast %cst_278 : f32 to vector<16x200xf32>
    %508 = arith.maximumf %506, %507 : vector<16x200xf32>
    %509 = arith.truncf %508 : vector<16x200xf32> to vector<16x200xbf16>
    %c0_279 = arith.constant 0 : index
    %c0_280 = arith.constant 0 : index
    %510 = vector.load %arg24[%c0_279, %c0_280] : memref<200x16xbf16, #tpu.memory_space<vmem>>, vector<200x16xbf16>
    %cst_281 = arith.constant dense<0.000000e+00> : vector<16x16xf32>
    %511 = tpu.matmul %509, %510, %cst_281 {dimension_numbers = #tpu.dot_dimension_numbers<[1], [0], [0], [1], [0, 0, 1, 1], [], []>} : vector<16x200xbf16>, vector<200x16xbf16>, vector<16x16xf32> -> vector<16x16xf32>
    %c0_282 = arith.constant 0 : index
    %c0_283 = arith.constant 0 : index
    %512 = vector.load %arg25[%c0_282, %c0_283] : memref<1x16xf32, #tpu.memory_space<vmem>>, vector<1x16xf32>
    %513 = vector.broadcast %512 : vector<1x16xf32> to vector<16x16xf32>
    %514 = arith.addf %511, %513 : vector<16x16xf32>
    %515 = vector.shape_cast %514 : vector<16x16xf32> to vector<2x8x16xf32>
    %516 = vector.shape_cast %0 : vector<8x16xf32> to vector<1x8x16xf32>
    %517 = vector.broadcast %516 : vector<1x8x16xf32> to vector<2x8x16xf32>
    %518 = arith.mulf %517, %515 : vector<2x8x16xf32>
    %cst_284 = arith.constant 0.000000e+00 : f32
    %519 = vector.broadcast %cst_284 : f32 to vector<2x8x16xf32>
    %520 = arith.maximumf %519, %515 : vector<2x8x16xf32>
    %521 = vector.broadcast %cst_284 : f32 to vector<2x8x16xf32>
    %522 = arith.subf %521, %515 : vector<2x8x16xf32>
    %523 = arith.cmpf one, %522, %522 : vector<2x8x16xf32>
    %524 = vector.broadcast %cst_284 : f32 to vector<2x8x16xf32>
    %525 = arith.addf %524, %515 : vector<2x8x16xf32>
    %526 = math.absf %522 : vector<2x8x16xf32>
    %cst_285 = arith.constant 0.000000e+00 : f32
    %527 = vector.broadcast %cst_285 : f32 to vector<2x8x16xf32>
    %528 = arith.subf %527, %526 : vector<2x8x16xf32>
    %529 = math.exp %528 : vector<2x8x16xf32>
    %530 = math.log1p %529 : vector<2x8x16xf32>
    %531 = arith.addf %520, %530 : vector<2x8x16xf32>
    %532 = arith.select %523, %525, %531 : vector<2x8x16xi1>, vector<2x8x16xf32>
    %533 = arith.subf %518, %532 : vector<2x8x16xf32>
    %cst_286 = arith.constant dense<0.000000e+00> : vector<2x8xf32>
    %534 = vector.multi_reduction <add>, %533, %cst_286 [2] : vector<2x8x16xf32> to vector<2x8xf32>
    %535 = vector.shape_cast %534 : vector<2x8xf32> to vector<2x8x1xf32>
    %536 = vector.shape_cast %465 : vector<16x8xf32> to vector<2x8x8xf32>
    %cst_287 = arith.constant 1.83787704 : f32
    %537 = vector.broadcast %cst_287 : f32 to vector<2x8x8xf32>
    %538 = arith.addf %537, %216 : vector<2x8x8xf32>
    %539 = arith.mulf %462, %462 : vector<2x8x8xf32>
    %540 = arith.addf %538, %539 : vector<2x8x8xf32>
    %cst_288 = arith.constant -5.000000e-01 : f32
    %541 = vector.broadcast %cst_288 : f32 to vector<2x8x8xf32>
    %542 = arith.mulf %541, %540 : vector<2x8x8xf32>
    %cst_289 = arith.constant dense<0.000000e+00> : vector<2x8xf32>
    %543 = vector.multi_reduction <add>, %542, %cst_289 [2] : vector<2x8x8xf32> to vector<2x8xf32>
    %544 = vector.shape_cast %543 : vector<2x8xf32> to vector<2x8x1xf32>
    %545 = arith.mulf %536, %536 : vector<2x8x8xf32>
    %cst_290 = arith.constant 1.83787704 : f32
    %546 = vector.broadcast %cst_290 : f32 to vector<2x8x8xf32>
    %547 = arith.addf %546, %545 : vector<2x8x8xf32>
    %cst_291 = arith.constant -5.000000e-01 : f32
    %548 = vector.broadcast %cst_291 : f32 to vector<2x8x8xf32>
    %549 = arith.mulf %548, %547 : vector<2x8x8xf32>
    %cst_292 = arith.constant dense<0.000000e+00> : vector<2x8xf32>
    %550 = vector.multi_reduction <add>, %549, %cst_292 [2] : vector<2x8x8xf32> to vector<2x8xf32>
    %551 = vector.shape_cast %550 : vector<2x8xf32> to vector<2x8x1xf32>
    %552 = arith.addf %535, %260 : vector<2x8x1xf32>
    %553 = arith.addf %552, %551 : vector<2x8x1xf32>
    %554 = arith.subf %553, %544 : vector<2x8x1xf32>
    %555 = arith.maximumf %454, %554 : vector<2x8x1xf32>
    %556 = arith.subf %454, %555 : vector<2x8x1xf32>
    %557 = math.exp %556 : vector<2x8x1xf32>
    %558 = arith.mulf %460, %557 : vector<2x8x1xf32>
    %559 = arith.subf %554, %555 : vector<2x8x1xf32>
    %560 = math.exp %559 : vector<2x8x1xf32>
    %561 = arith.addf %558, %560 : vector<2x8x1xf32>
    %562 = math.log %561 : vector<2x8x1xf32>
    %563 = arith.addf %555, %562 : vector<2x8x1xf32>
    %cst_293 = arith.constant 1.09861231 : f32
    %564 = vector.broadcast %cst_293 : f32 to vector<2x8x1xf32>
    %565 = arith.subf %563, %564 : vector<2x8x1xf32>
    %566 = vector.extract_strided_slice %565 {offsets = [0, 0, 0], sizes = [1, 8, 1], strides = [1, 1, 1]} : vector<2x8x1xf32> to vector<1x8x1xf32>
    %567 = vector.shape_cast %566 : vector<1x8x1xf32> to vector<8x1xf32>
    %568 = vector.extract_strided_slice %96 {offsets = [0, 0, 0], sizes = [1, 8, 1], strides = [1, 1, 1]} : vector<2x8x1xf32> to vector<1x8x1xf32>
    %569 = vector.shape_cast %568 : vector<1x8x1xf32> to vector<8x1xf32>
    %570 = arith.subf %567, %569 : vector<8x1xf32>
    %571 = vector.extract_strided_slice %565 {offsets = [1, 0, 0], sizes = [1, 8, 1], strides = [1, 1, 1]} : vector<2x8x1xf32> to vector<1x8x1xf32>
    %572 = vector.shape_cast %571 : vector<1x8x1xf32> to vector<8x1xf32>
    %573 = vector.extract_strided_slice %96 {offsets = [1, 0, 0], sizes = [1, 8, 1], strides = [1, 1, 1]} : vector<2x8x1xf32> to vector<1x8x1xf32>
    %574 = vector.shape_cast %573 : vector<1x8x1xf32> to vector<8x1xf32>
    %575 = arith.subf %572, %574 : vector<8x1xf32>
    %576 = arith.addf %570, %575 : vector<8x1xf32>
    %cst_294 = arith.constant 5.000000e-01 : f32
    %577 = vector.broadcast %cst_294 : f32 to vector<8x1xf32>
    %578 = arith.mulf %576, %577 : vector<8x1xf32>
    %c0_295 = arith.constant 0 : index
    %c0_296 = arith.constant 0 : index
    %579 = vector.load %arg26[%c0_295, %c0_296] : memref<8x1xf32, #tpu.memory_space<vmem>>, vector<8x1xf32>
    tpu.vector_store %arg26[%c0_295, %c0_296], %578 {strides = array<i32>} : memref<8x1xf32, #tpu.memory_space<vmem>>, vector<8x1xf32>,
    return
  }
  func.func @transform_0(%arg0: i32) -> (i32, i32) {
    %c0_i32 = arith.constant 0 : i32
    %c0_i32_0 = arith.constant 0 : i32
    return %arg0, %c0_i32 : i32, i32
  }
  func.func @transform_1(%arg0: i32) -> (i32, i32) {
    %c0_i32 = arith.constant 0 : i32
    %c0_i32_0 = arith.constant 0 : i32
    return %arg0, %c0_i32 : i32, i32
  }
  func.func @transform_2(%arg0: i32) -> (i32, i32, i32) {
    %c0_i32 = arith.constant 0 : i32
    %c0_i32_0 = arith.constant 0 : i32
    %c0_i32_1 = arith.constant 0 : i32
    return %c0_i32, %arg0, %c0_i32_0 : i32, i32, i32
  }
  func.func @transform_3(%arg0: i32) -> (i32, i32, i32, i32) {
    %c0_i32 = arith.constant 0 : i32
    %c0_i32_0 = arith.constant 0 : i32
    %c0_i32_1 = arith.constant 0 : i32
    %c0_i32_2 = arith.constant 0 : i32
    return %c0_i32, %c0_i32_0, %arg0, %c0_i32_1 : i32, i32, i32, i32
  }
  func.func @transform_4(%arg0: i32) -> (i32, i32) {
    %c0_i32 = arith.constant 0 : i32
    %c0_i32_0 = arith.constant 0 : i32
    %c0_i32_1 = arith.constant 0 : i32
    return %c0_i32, %c0_i32_0 : i32, i32
  }
  func.func @transform_5(%arg0: i32) -> (i32, i32) {
    %c0_i32 = arith.constant 0 : i32
    %c0_i32_0 = arith.constant 0 : i32
    %c0_i32_1 = arith.constant 0 : i32
    return %c0_i32, %c0_i32_0 : i32, i32
  }
  func.func @transform_6(%arg0: i32) -> (i32, i32) {
    %c0_i32 = arith.constant 0 : i32
    %c0_i32_0 = arith.constant 0 : i32
    %c0_i32_1 = arith.constant 0 : i32
    return %c0_i32, %c0_i32_0 : i32, i32
  }
  func.func @transform_7(%arg0: i32) -> (i32, i32) {
    %c0_i32 = arith.constant 0 : i32
    %c0_i32_0 = arith.constant 0 : i32
    %c0_i32_1 = arith.constant 0 : i32
    return %c0_i32, %c0_i32_0 : i32, i32
  }
  func.func @transform_8(%arg0: i32) -> (i32, i32) {
    %c0_i32 = arith.constant 0 : i32
    %c0_i32_0 = arith.constant 0 : i32
    %c0_i32_1 = arith.constant 0 : i32
    return %c0_i32, %c0_i32_0 : i32, i32
  }
  func.func @transform_9(%arg0: i32) -> (i32, i32) {
    %c0_i32 = arith.constant 0 : i32
    %c0_i32_0 = arith.constant 0 : i32
    %c0_i32_1 = arith.constant 0 : i32
    return %c0_i32, %c0_i32_0 : i32, i32
  }
  func.func @transform_10(%arg0: i32) -> (i32, i32) {
    %c0_i32 = arith.constant 0 : i32
    %c0_i32_0 = arith.constant 0 : i32
    %c0_i32_1 = arith.constant 0 : i32
    return %c0_i32, %c0_i32_0 : i32, i32
  }
  func.func @transform_11(%arg0: i32) -> (i32, i32) {
    %c0_i32 = arith.constant 0 : i32
    %c0_i32_0 = arith.constant 0 : i32
    %c0_i32_1 = arith.constant 0 : i32
    return %c0_i32, %c0_i32_0 : i32, i32
  }
  func.func @transform_12(%arg0: i32) -> (i32, i32, i32) {
    %c0_i32 = arith.constant 0 : i32
    %c0_i32_0 = arith.constant 0 : i32
    %c0_i32_1 = arith.constant 0 : i32
    %c0_i32_2 = arith.constant 0 : i32
    return %c0_i32, %c0_i32_0, %c0_i32_1 : i32, i32, i32
  }
  func.func @transform_13(%arg0: i32) -> (i32, i32, i32) {
    %c0_i32 = arith.constant 0 : i32
    %c0_i32_0 = arith.constant 0 : i32
    %c0_i32_1 = arith.constant 0 : i32
    %c0_i32_2 = arith.constant 0 : i32
    return %c0_i32, %c0_i32_0, %c0_i32_1 : i32, i32, i32
  }
  func.func @transform_14(%arg0: i32) -> (i32, i32) {
    %c0_i32 = arith.constant 0 : i32
    %c0_i32_0 = arith.constant 0 : i32
    %c0_i32_1 = arith.constant 0 : i32
    return %c0_i32, %c0_i32_0 : i32, i32
  }
  func.func @transform_15(%arg0: i32) -> (i32, i32, i32) {
    %c0_i32 = arith.constant 0 : i32
    %c0_i32_0 = arith.constant 0 : i32
    %c0_i32_1 = arith.constant 0 : i32
    %c0_i32_2 = arith.constant 0 : i32
    return %c0_i32, %c0_i32_0, %c0_i32_1 : i32, i32, i32
  }
  func.func @transform_16(%arg0: i32) -> (i32, i32) {
    %c0_i32 = arith.constant 0 : i32
    %c0_i32_0 = arith.constant 0 : i32
    %c0_i32_1 = arith.constant 0 : i32
    return %c0_i32, %c0_i32_0 : i32, i32
  }
  func.func @transform_17(%arg0: i32) -> (i32, i32, i32) {
    %c0_i32 = arith.constant 0 : i32
    %c0_i32_0 = arith.constant 0 : i32
    %c0_i32_1 = arith.constant 0 : i32
    %c0_i32_2 = arith.constant 0 : i32
    return %c0_i32, %c0_i32_0, %c0_i32_1 : i32, i32, i32
  }
  func.func @transform_18(%arg0: i32) -> (i32, i32) {
    %c0_i32 = arith.constant 0 : i32
    %c0_i32_0 = arith.constant 0 : i32
    %c0_i32_1 = arith.constant 0 : i32
    return %c0_i32, %c0_i32_0 : i32, i32
  }
  func.func @transform_19(%arg0: i32) -> (i32, i32) {
    %c0_i32 = arith.constant 0 : i32
    %c0_i32_0 = arith.constant 0 : i32
    %c0_i32_1 = arith.constant 0 : i32
    return %c0_i32, %c0_i32_0 : i32, i32
  }
  func.func @transform_20(%arg0: i32) -> (i32, i32) {
    %c0_i32 = arith.constant 0 : i32
    %c0_i32_0 = arith.constant 0 : i32
    %c0_i32_1 = arith.constant 0 : i32
    return %c0_i32, %c0_i32_0 : i32, i32
  }
  func.func @transform_21(%arg0: i32) -> (i32, i32) {
    %c0_i32 = arith.constant 0 : i32
    %c0_i32_0 = arith.constant 0 : i32
    %c0_i32_1 = arith.constant 0 : i32
    return %c0_i32, %c0_i32_0 : i32, i32
  }
  func.func @transform_22(%arg0: i32) -> (i32, i32) {
    %c0_i32 = arith.constant 0 : i32
    %c0_i32_0 = arith.constant 0 : i32
    %c0_i32_1 = arith.constant 0 : i32
    return %c0_i32, %c0_i32_0 : i32, i32
  }
  func.func @transform_23(%arg0: i32) -> (i32, i32) {
    %c0_i32 = arith.constant 0 : i32
    %c0_i32_0 = arith.constant 0 : i32
    %c0_i32_1 = arith.constant 0 : i32
    return %c0_i32, %c0_i32_0 : i32, i32
  }
  func.func @transform_24(%arg0: i32) -> (i32, i32) {
    %c0_i32 = arith.constant 0 : i32
    %c0_i32_0 = arith.constant 0 : i32
    %c0_i32_1 = arith.constant 0 : i32
    return %c0_i32, %c0_i32_0 : i32, i32
  }
  func.func @transform_25(%arg0: i32) -> (i32, i32) {
    %c0_i32 = arith.constant 0 : i32
    %c0_i32_0 = arith.constant 0 : i32
    return %arg0, %c0_i32 : i32, i32
  }
}

</mosaic_0001>

<llo_original>
// kernel: tpu_custom_call.1
$region0: #{tpu_custom_call.1}
  #allocation0 [shape = 'u32[]', space=smem, size = 0x4, offset = 0x4, fixed_abs, tag = 'smem constant byte address 0x4 - core index']
  #allocation1 [shape = 'u32[72,128]{1,0:T(1,128)}', space=vmem, size = 0x9000, scoped, tag = 'internal scratch']
  %s0 = inlined_call_operand.vmem [shape: f32[16,16], index: 0, kind: input, shape index: {}]
  %s1 = inlined_call_operand.vmem [shape: f32[16,16], index: 1, kind: input, shape index: {}]
  %s2 = inlined_call_operand.vmem [shape: f32[2,16,8], index: 2, kind: input, shape index: {}]
  %s3 = inlined_call_operand.vmem [shape: f32[3,2,16,8], index: 3, kind: input, shape index: {}]
  %s4 = inlined_call_operand.vmem [shape: bf16[16,200], index: 4, kind: input, shape index: {}]
  %s5 = inlined_call_operand.vmem [shape: bf16[16,200], index: 5, kind: input, shape index: {}]
  %s6 = inlined_call_operand.vmem [shape: bf16[8,200], index: 6, kind: input, shape index: {}]
  %s7 = inlined_call_operand.vmem [shape: bf16[8,200], index: 7, kind: input, shape index: {}]
  %s8 = inlined_call_operand.vmem [shape: bf16[16,200], index: 8, kind: input, shape index: {}]
  %s9 = inlined_call_operand.vmem [shape: bf16[16,200], index: 9, kind: input, shape index: {}]
  %s10 = inlined_call_operand.vmem [shape: bf16[100,200], index: 10, kind: input, shape index: {}]
  %s11 = inlined_call_operand.vmem [shape: bf16[8,200], index: 11, kind: input, shape index: {}]
  %s12 = inlined_call_operand.vmem [shape: bf16[3,50,200], index: 12, kind: input, shape index: {}]
  %s13 = inlined_call_operand.hbm [shape: bf16[9,200,200], index: 13, kind: input, shape index: {}]
  %s14 = inlined_call_operand.vmem [shape: f32[18,200], index: 14, kind: input, shape index: {}]
  %s15 = inlined_call_operand.vmem [shape: bf16[4,200,50], index: 15, kind: input, shape index: {}]
  %s16 = inlined_call_operand.vmem [shape: f32[4,50], index: 16, kind: input, shape index: {}]
  %s17 = inlined_call_operand.vmem [shape: bf16[2,200,16], index: 17, kind: input, shape index: {}]
  %s18 = inlined_call_operand.vmem [shape: f32[2,16], index: 18, kind: input, shape index: {}]
  %s19 = inlined_call_operand.vmem [shape: bf16[200,16], index: 19, kind: input, shape index: {}]
  %s20 = inlined_call_operand.vmem [shape: f32[1,16], index: 20, kind: input, shape index: {}]
  %s21 = inlined_call_operand.vmem [shape: bf16[200,16], index: 21, kind: input, shape index: {}]
  %s22 = inlined_call_operand.vmem [shape: f32[1,16], index: 22, kind: input, shape index: {}]
  %s23 = inlined_call_operand.vmem [shape: bf16[200,16], index: 23, kind: input, shape index: {}]
  %s24 = inlined_call_operand.vmem [shape: f32[1,16], index: 24, kind: input, shape index: {}]
  %s25 = inlined_call_operand.vmem [shape: f32[16,1], index: 25, kind: output, shape index: {}]
  %s26 = sld [smem:[#allocation0]]
  $region213: #{tpu_custom_call.1} parent=0
    _
  %s28 = ssub.s32 1, %s26
  %s29 = scalar_select 0, %s28, %s26
  $region1: #{tpu_custom_call.1} parent=0
    #allocation2 [shape = 'u8[16384]{0}', space=vmem, size = 0x4000, scoped, tag = 'input window, operand 2']
    #allocation3 [shape = 'u8[49152]{0}', space=vmem, size = 0xc000, scoped, tag = 'input window, operand 3']
    #allocation4 [shape = 'u8[921600]{0}', space=vmem, size = 0xe1000, scoped, tag = 'input window, operand 13, single buffered']
    #allocation5 [shape = 's32[2]{0}', space=sflag, size = 0x8, scoped, tag = 'scoped memory for tpu_custom_call.1']
    %30 = vsyncpa [#allocation5], 0
    loop: start=0, step=1, limit=4
    $region2: #{tpu_custom_call.1} parent=1 // loop_pre_header
      _
    $region3: #{tpu_custom_call.1} parent=1 // loop_header
      %s32 = sphi 0, %s36
      %p33 = scmp.ge.s32.totalorder %s32, 4
      %s42 = sphi 0, %s44
      %s45 = sphi 0, %s42
      %s46 = sphi 0, %s45
      %s62 = sphi 0, %s46
      %s68 = sphi 0, %s70
      %s71 = sphi 0, %s68
      %s72 = sphi 0, %s71
      %s88 = sphi 0, %s72
      %s94 = sphi 0, %s96
      %s97 = sphi 0, %s94
      %s98 = sphi 0, %s97
      %s114 = sphi 0, %s98
      %s120 = sphi 0, %s122
      %s123 = sphi 0, %s120
      %s124 = sphi 0, %s123
      %s140 = sphi 0, %s124
      %s144 = sphi 0, %s144
      %s146 = sphi 0, %s144
      %s147 = sphi 0, %s146
      %s161 = sphi 0, %s147
      %s165 = sphi 0, %s165
      %s167 = sphi 0, %s165
      %s168 = sphi 0, %s167
      %s182 = sphi 0, %s168
      %s186 = sphi 0, %s186
      %s188 = sphi 0, %s186
      %s189 = sphi 0, %s188
      %s203 = sphi 0, %s189
      %s207 = sphi 0, %s207
      %s209 = sphi 0, %s207
      %s210 = sphi 0, %s209
      %s224 = sphi 0, %s210
      %s228 = sphi 0, %s228
      %s230 = sphi 0, %s228
      %s231 = sphi 0, %s230
      %s245 = sphi 0, %s231
      %s249 = sphi 0, %s249
      %s251 = sphi 0, %s249
      %s252 = sphi 0, %s251
      %s266 = sphi 0, %s252
      %s270 = sphi 0, %s270
      %s272 = sphi 0, %s270
      %s273 = sphi 0, %s272
      %s287 = sphi 0, %s273
      %s291 = sphi 0, %s291
      %s293 = sphi 0, %s291
      %s294 = sphi 0, %s293
      %s308 = sphi 0, %s294
      %s312 = sphi 0, %s312
      %s314 = sphi 0, %s312
      %s315 = sphi 0, %s314
      %s329 = sphi 0, %s315
      %s333 = sphi 0, %s333
      %s335 = sphi 0, %s333
      %s336 = sphi 0, %s335
      %s350 = sphi 0, %s336
      %s354 = sphi 0, %s354
      %s356 = sphi 0, %s354
      %s357 = sphi 0, %s356
      %s371 = sphi 0, %s357
      %s375 = sphi 0, %s375
      %s377 = sphi 0, %s375
      %s378 = sphi 0, %s377
      %s392 = sphi 0, %s378
      %s396 = sphi 0, %s396
      %s398 = sphi 0, %s396
      %s399 = sphi 0, %s398
      %s413 = sphi 0, %s399
      %s417 = sphi 0, %s417
      %s419 = sphi 0, %s417
      %s420 = sphi 0, %s419
      %s434 = sphi 0, %s420
      %s438 = sphi 0, %s438
      %s440 = sphi 0, %s438
      %s441 = sphi 0, %s440
      %s455 = sphi 0, %s441
      %s459 = sphi 0, %s459
      %s461 = sphi 0, %s459
      %s462 = sphi 0, %s461
      %s476 = sphi 0, %s462
      %s480 = sphi 0, %s480
      %s482 = sphi 0, %s480
      %s483 = sphi 0, %s482
      %s497 = sphi 0, %s483
      %s501 = sphi 0, %s501
      %s503 = sphi 0, %s501
      %s504 = sphi 0, %s503
      %s518 = sphi 0, %s504
      %s522 = sphi 0, %s522
      %s524 = sphi 0, %s522
      %s525 = sphi 0, %s524
      %s539 = sphi 0, %s525
      %s543 = sphi 0, %s543
      %s545 = sphi 0, %s543
      %s546 = sphi 0, %s545
      %s560 = sphi 0, %s546
      %s564 = sphi 0, %s564
      %s566 = sphi 0, %s564
      %s567 = sphi 0, %s566
      %s581 = sphi 0, %s567
      %s587 = sphi 0, %s589
      %s590 = sphi 0, %s587
      %s591 = sphi 0, %s590
      %s607 = sphi 0, %s591
    $region4: #{tpu_custom_call.1} parent=1 // loop_header_branch
      %35 = sbr.rel (%p33) target = $region8
    $region5: #{tpu_custom_call.1} parent=1 // loop_body
      %s37 = ssub.s32 %s32, 1
      %s38 = ssub.s32 %s32, 2
      %s39 = sadd.s32 %s32, 1
      %s40 = ssub.s32 %s32, %s39
      %p41 = scmp.eq.s32.totalorder %s40, 0
      %s43 = sadd.s32 %s42, 1
      %s44 = scalar_select %p41, %s42, %s43
      %p47 = pneg %p41
      %p48 = scmp.eq.s32.totalorder %s32, 1
      %p49 = por %p47, %p48
      %p50 = scmp.ne.s32.totalorder %s42, %s45
      %p51 = scmp.eq.s32.totalorder %s32, 0
      %p52 = por %p50, %p51
      %p53 = scmp.ne.s32.totalorder %s42, %s45
      %p54 = scmp.eq.s32.totalorder %s37, 1
      %p55 = por %p53, %p54
      %p56 = scmp.ne.s32.totalorder %s45, %s46
      %p57 = scmp.eq.s32.totalorder %s37, 0
      %p58 = por %p56, %p57
      %p59 = scmp.ne.s32.totalorder %s45, %s46
      %p60 = scmp.eq.s32.totalorder %s38, 1
      %p61 = por %p59, %p60
      %p63 = scmp.ne.s32.totalorder %s46, %s62
      %p64 = scmp.eq.s32.totalorder %s38, 0
      %p65 = por %p63, %p64
      %s66 = ssub.s32 %s32, %s39
      %p67 = scmp.eq.s32.totalorder %s66, 0
      %s69 = sadd.s32 %s68, 1
      %s70 = scalar_select %p67, %s68, %s69
      %p73 = pneg %p67
      %p74 = scmp.eq.s32.totalorder %s32, 1
      %p75 = por %p73, %p74
      %p76 = scmp.ne.s32.totalorder %s68, %s71
      %p77 = scmp.eq.s32.totalorder %s32, 0
      %p78 = por %p76, %p77
      %p79 = scmp.ne.s32.totalorder %s68, %s71
      %p80 = scmp.eq.s32.totalorder %s37, 1
      %p81 = por %p79, %p80
      %p82 = scmp.ne.s32.totalorder %s71, %s72
      %p83 = scmp.eq.s32.totalorder %s37, 0
      %p84 = por %p82, %p83
      %p85 = scmp.ne.s32.totalorder %s71, %s72
      %p86 = scmp.eq.s32.totalorder %s38, 1
      %p87 = por %p85, %p86
      %p89 = scmp.ne.s32.totalorder %s72, %s88
      %p90 = scmp.eq.s32.totalorder %s38, 0
      %p91 = por %p89, %p90
      %s92 = ssub.s32 %s32, %s39
      %p93 = scmp.eq.s32.totalorder %s92, 0
      %s95 = sadd.s32 %s94, 1
      %s96 = scalar_select %p93, %s94, %s95
      %p99 = pneg %p93
      %p100 = scmp.eq.s32.totalorder %s32, 1
      %p101 = por %p99, %p100
      %p102 = scmp.ne.s32.totalorder %s94, %s97
      %p103 = scmp.eq.s32.totalorder %s32, 0
      %p104 = por %p102, %p103
      %p105 = scmp.ne.s32.totalorder %s94, %s97
      %p106 = scmp.eq.s32.totalorder %s37, 1
      %p107 = por %p105, %p106
      %p108 = scmp.ne.s32.totalorder %s97, %s98
      %p109 = scmp.eq.s32.totalorder %s37, 0
      %p110 = por %p108, %p109
      %p111 = scmp.ne.s32.totalorder %s97, %s98
      %p112 = scmp.eq.s32.totalorder %s38, 1
      %p113 = por %p111, %p112
      %p115 = scmp.ne.s32.totalorder %s98, %s114
      %p116 = scmp.eq.s32.totalorder %s38, 0
      %p117 = por %p115, %p116
      %s118 = ssub.s32 %s32, %s39
      %p119 = scmp.eq.s32.totalorder %s118, 0
      %s121 = sadd.s32 %s120, 1
      %s122 = scalar_select %p119, %s120, %s121
      %p125 = pneg %p119
      %p126 = scmp.eq.s32.totalorder %s32, 1
      %p127 = por %p125, %p126
      %p128 = scmp.ne.s32.totalorder %s120, %s123
      %p129 = scmp.eq.s32.totalorder %s32, 0
      %p130 = por %p128, %p129
      %p131 = scmp.ne.s32.totalorder %s120, %s123
      %p132 = scmp.eq.s32.totalorder %s37, 1
      %p133 = por %p131, %p132
      %p134 = scmp.ne.s32.totalorder %s123, %s124
      %p135 = scmp.eq.s32.totalorder %s37, 0
      %p136 = por %p134, %p135
      %p137 = scmp.ne.s32.totalorder %s123, %s124
      %p138 = scmp.eq.s32.totalorder %s38, 1
      %p139 = por %p137, %p138
      %p141 = scmp.ne.s32.totalorder %s124, %s140
      %p142 = scmp.eq.s32.totalorder %s38, 0
      %p143 = por %p141, %p142
      %s145 = sadd.s32 %s144, 1
      %p148 = scmp.eq.s32.totalorder %s32, 1
      %p149 = scmp.ne.s32.totalorder %s144, %s146
      %p150 = scmp.eq.s32.totalorder %s32, 0
      %p151 = por %p149, %p150
      %p152 = scmp.ne.s32.totalorder %s144, %s146
      %p153 = scmp.eq.s32.totalorder %s37, 1
      %p154 = por %p152, %p153
      %p155 = scmp.ne.s32.totalorder %s146, %s147
      %p156 = scmp.eq.s32.totalorder %s37, 0
      %p157 = por %p155, %p156
      %p158 = scmp.ne.s32.totalorder %s146, %s147
      %p159 = scmp.eq.s32.totalorder %s38, 1
      %p160 = por %p158, %p159
      %p162 = scmp.ne.s32.totalorder %s147, %s161
      %p163 = scmp.eq.s32.totalorder %s38, 0
      %p164 = por %p162, %p163
      %s166 = sadd.s32 %s165, 1
      %p169 = scmp.eq.s32.totalorder %s32, 1
      %p170 = scmp.ne.s32.totalorder %s165, %s167
      %p171 = scmp.eq.s32.totalorder %s32, 0
      %p172 = por %p170, %p171
      %p173 = scmp.ne.s32.totalorder %s165, %s167
      %p174 = scmp.eq.s32.totalorder %s37, 1
      %p175 = por %p173, %p174
      %p176 = scmp.ne.s32.totalorder %s167, %s168
      %p177 = scmp.eq.s32.totalorder %s37, 0
      %p178 = por %p176, %p177
      %p179 = scmp.ne.s32.totalorder %s167, %s168
      %p180 = scmp.eq.s32.totalorder %s38, 1
      %p181 = por %p179, %p180
      %p183 = scmp.ne.s32.totalorder %s168, %s182
      %p184 = scmp.eq.s32.totalorder %s38, 0
      %p185 = por %p183, %p184
      %s187 = sadd.s32 %s186, 1
      %p190 = scmp.eq.s32.totalorder %s32, 1
      %p191 = scmp.ne.s32.totalorder %s186, %s188
      %p192 = scmp.eq.s32.totalorder %s32, 0
      %p193 = por %p191, %p192
      %p194 = scmp.ne.s32.totalorder %s186, %s188
      %p195 = scmp.eq.s32.totalorder %s37, 1
      %p196 = por %p194, %p195
      %p197 = scmp.ne.s32.totalorder %s188, %s189
      %p198 = scmp.eq.s32.totalorder %s37, 0
      %p199 = por %p197, %p198
      %p200 = scmp.ne.s32.totalorder %s188, %s189
      %p201 = scmp.eq.s32.totalorder %s38, 1
      %p202 = por %p200, %p201
      %p204 = scmp.ne.s32.totalorder %s189, %s203
      %p205 = scmp.eq.s32.totalorder %s38, 0
      %p206 = por %p204, %p205
      %s208 = sadd.s32 %s207, 1
      %p211 = scmp.eq.s32.totalorder %s32, 1
      %p212 = scmp.ne.s32.totalorder %s207, %s209
      %p213 = scmp.eq.s32.totalorder %s32, 0
      %p214 = por %p212, %p213
      %p215 = scmp.ne.s32.totalorder %s207, %s209
      %p216 = scmp.eq.s32.totalorder %s37, 1
      %p217 = por %p215, %p216
      %p218 = scmp.ne.s32.totalorder %s209, %s210
      %p219 = scmp.eq.s32.totalorder %s37, 0
      %p220 = por %p218, %p219
      %p221 = scmp.ne.s32.totalorder %s209, %s210
      %p222 = scmp.eq.s32.totalorder %s38, 1
      %p223 = por %p221, %p222
      %p225 = scmp.ne.s32.totalorder %s210, %s224
      %p226 = scmp.eq.s32.totalorder %s38, 0
      %p227 = por %p225, %p226
      %s229 = sadd.s32 %s228, 1
      %p232 = scmp.eq.s32.totalorder %s32, 1
      %p233 = scmp.ne.s32.totalorder %s228, %s230
      %p234 = scmp.eq.s32.totalorder %s32, 0
      %p235 = por %p233, %p234
      %p236 = scmp.ne.s32.totalorder %s228, %s230
      %p237 = scmp.eq.s32.totalorder %s37, 1
      %p238 = por %p236, %p237
      %p239 = scmp.ne.s32.totalorder %s230, %s231
      %p240 = scmp.eq.s32.totalorder %s37, 0
      %p241 = por %p239, %p240
      %p242 = scmp.ne.s32.totalorder %s230, %s231
      %p243 = scmp.eq.s32.totalorder %s38, 1
      %p244 = por %p242, %p243
      %p246 = scmp.ne.s32.totalorder %s231, %s245
      %p247 = scmp.eq.s32.totalorder %s38, 0
      %p248 = por %p246, %p247
      %s250 = sadd.s32 %s249, 1
      %p253 = scmp.eq.s32.totalorder %s32, 1
      %p254 = scmp.ne.s32.totalorder %s249, %s251
      %p255 = scmp.eq.s32.totalorder %s32, 0
      %p256 = por %p254, %p255
      %p257 = scmp.ne.s32.totalorder %s249, %s251
      %p258 = scmp.eq.s32.totalorder %s37, 1
      %p259 = por %p257, %p258
      %p260 = scmp.ne.s32.totalorder %s251, %s252
      %p261 = scmp.eq.s32.totalorder %s37, 0
      %p262 = por %p260, %p261
      %p263 = scmp.ne.s32.totalorder %s251, %s252
      %p264 = scmp.eq.s32.totalorder %s38, 1
      %p265 = por %p263, %p264
      %p267 = scmp.ne.s32.totalorder %s252, %s266
      %p268 = scmp.eq.s32.totalorder %s38, 0
      %p269 = por %p267, %p268
      %s271 = sadd.s32 %s270, 1
      %p274 = scmp.eq.s32.totalorder %s32, 1
      %p275 = scmp.ne.s32.totalorder %s270, %s272
      %p276 = scmp.eq.s32.totalorder %s32, 0
      %p277 = por %p275, %p276
      %p278 = scmp.ne.s32.totalorder %s270, %s272
      %p279 = scmp.eq.s32.totalorder %s37, 1
      %p280 = por %p278, %p279
      %p281 = scmp.ne.s32.totalorder %s272, %s273
      %p282 = scmp.eq.s32.totalorder %s37, 0
      %p283 = por %p281, %p282
      %p284 = scmp.ne.s32.totalorder %s272, %s273
      %p285 = scmp.eq.s32.totalorder %s38, 1
      %p286 = por %p284, %p285
      %p288 = scmp.ne.s32.totalorder %s273, %s287
      %p289 = scmp.eq.s32.totalorder %s38, 0
      %p290 = por %p288, %p289
      %s292 = sadd.s32 %s291, 1
      %p295 = scmp.eq.s32.totalorder %s32, 1
      %p296 = scmp.ne.s32.totalorder %s291, %s293
      %p297 = scmp.eq.s32.totalorder %s32, 0
      %p298 = por %p296, %p297
      %p299 = scmp.ne.s32.totalorder %s291, %s293
      %p300 = scmp.eq.s32.totalorder %s37, 1
      %p301 = por %p299, %p300
      %p302 = scmp.ne.s32.totalorder %s293, %s294
      %p303 = scmp.eq.s32.totalorder %s37, 0
      %p304 = por %p302, %p303
      %p305 = scmp.ne.s32.totalorder %s293, %s294
      %p306 = scmp.eq.s32.totalorder %s38, 1
      %p307 = por %p305, %p306
      %p309 = scmp.ne.s32.totalorder %s294, %s308
      %p310 = scmp.eq.s32.totalorder %s38, 0
      %p311 = por %p309, %p310
      %s313 = sadd.s32 %s312, 1
      %p316 = scmp.eq.s32.totalorder %s32, 1
      %p317 = scmp.ne.s32.totalorder %s312, %s314
      %p318 = scmp.eq.s32.totalorder %s32, 0
      %p319 = por %p317, %p318
      %p320 = scmp.ne.s32.totalorder %s312, %s314
      %p321 = scmp.eq.s32.totalorder %s37, 1
      %p322 = por %p320, %p321
      %p323 = scmp.ne.s32.totalorder %s314, %s315
      %p324 = scmp.eq.s32.totalorder %s37, 0
      %p325 = por %p323, %p324
      %p326 = scmp.ne.s32.totalorder %s314, %s315
      %p327 = scmp.eq.s32.totalorder %s38, 1
      %p328 = por %p326, %p327
      %p330 = scmp.ne.s32.totalorder %s315, %s329
      %p331 = scmp.eq.s32.totalorder %s38, 0
      %p332 = por %p330, %p331
      %s334 = sadd.s32 %s333, 1
      %p337 = scmp.eq.s32.totalorder %s32, 1
      %p338 = scmp.ne.s32.totalorder %s333, %s335
      %p339 = scmp.eq.s32.totalorder %s32, 0
      %p340 = por %p338, %p339
      %p341 = scmp.ne.s32.totalorder %s333, %s335
      %p342 = scmp.eq.s32.totalorder %s37, 1
      %p343 = por %p341, %p342
      %p344 = scmp.ne.s32.totalorder %s335, %s336
      %p345 = scmp.eq.s32.totalorder %s37, 0
      %p346 = por %p344, %p345
      %p347 = scmp.ne.s32.totalorder %s335, %s336
      %p348 = scmp.eq.s32.totalorder %s38, 1
      %p349 = por %p347, %p348
      %p351 = scmp.ne.s32.totalorder %s336, %s350
      %p352 = scmp.eq.s32.totalorder %s38, 0
      %p353 = por %p351, %p352
      %s355 = sadd.s32 %s354, 1
      %p358 = scmp.eq.s32.totalorder %s32, 1
      %p359 = scmp.ne.s32.totalorder %s354, %s356
      %p360 = scmp.eq.s32.totalorder %s32, 0
      %p361 = por %p359, %p360
      %p362 = scmp.ne.s32.totalorder %s354, %s356
      %p363 = scmp.eq.s32.totalorder %s37, 1
      %p364 = por %p362, %p363
      %p365 = scmp.ne.s32.totalorder %s356, %s357
      %p366 = scmp.eq.s32.totalorder %s37, 0
      %p367 = por %p365, %p366
      %p368 = scmp.ne.s32.totalorder %s356, %s357
      %p369 = scmp.eq.s32.totalorder %s38, 1
      %p370 = por %p368, %p369
      %p372 = scmp.ne.s32.totalorder %s357, %s371
      %p373 = scmp.eq.s32.totalorder %s38, 0
      %p374 = por %p372, %p373
      %s376 = sadd.s32 %s375, 1
      %p379 = scmp.eq.s32.totalorder %s32, 1
      %p380 = scmp.ne.s32.totalorder %s375, %s377
      %p381 = scmp.eq.s32.totalorder %s32, 0
      %p382 = por %p380, %p381
      %p383 = scmp.ne.s32.totalorder %s375, %s377
      %p384 = scmp.eq.s32.totalorder %s37, 1
      %p385 = por %p383, %p384
      %p386 = scmp.ne.s32.totalorder %s377, %s378
      %p387 = scmp.eq.s32.totalorder %s37, 0
      %p388 = por %p386, %p387
      %p389 = scmp.ne.s32.totalorder %s377, %s378
      %p390 = scmp.eq.s32.totalorder %s38, 1
      %p391 = por %p389, %p390
      %p393 = scmp.ne.s32.totalorder %s378, %s392
      %p394 = scmp.eq.s32.totalorder %s38, 0
      %p395 = por %p393, %p394
      %s397 = sadd.s32 %s396, 1
      %p400 = scmp.eq.s32.totalorder %s32, 1
      %p401 = scmp.ne.s32.totalorder %s396, %s398
      %p402 = scmp.eq.s32.totalorder %s32, 0
      %p403 = por %p401, %p402
      %p404 = scmp.ne.s32.totalorder %s396, %s398
      %p405 = scmp.eq.s32.totalorder %s37, 1
      %p406 = por %p404, %p405
      %p407 = scmp.ne.s32.totalorder %s398, %s399
      %p408 = scmp.eq.s32.totalorder %s37, 0
      %p409 = por %p407, %p408
      %p410 = scmp.ne.s32.totalorder %s398, %s399
      %p411 = scmp.eq.s32.totalorder %s38, 1
      %p412 = por %p410, %p411
      %p414 = scmp.ne.s32.totalorder %s399, %s413
      %p415 = scmp.eq.s32.totalorder %s38, 0
      %p416 = por %p414, %p415
      %s418 = sadd.s32 %s417, 1
      %p421 = scmp.eq.s32.totalorder %s32, 1
      %p422 = scmp.ne.s32.totalorder %s417, %s419
      %p423 = scmp.eq.s32.totalorder %s32, 0
      %p424 = por %p422, %p423
      %p425 = scmp.ne.s32.totalorder %s417, %s419
      %p426 = scmp.eq.s32.totalorder %s37, 1
      %p427 = por %p425, %p426
      %p428 = scmp.ne.s32.totalorder %s419, %s420
      %p429 = scmp.eq.s32.totalorder %s37, 0
      %p430 = por %p428, %p429
      %p431 = scmp.ne.s32.totalorder %s419, %s420
      %p432 = scmp.eq.s32.totalorder %s38, 1
      %p433 = por %p431, %p432
      %p435 = scmp.ne.s32.totalorder %s420, %s434
      %p436 = scmp.eq.s32.totalorder %s38, 0
      %p437 = por %p435, %p436
      %s439 = sadd.s32 %s438, 1
      %p442 = scmp.eq.s32.totalorder %s32, 1
      %p443 = scmp.ne.s32.totalorder %s438, %s440
      %p444 = scmp.eq.s32.totalorder %s32, 0
      %p445 = por %p443, %p444
      %p446 = scmp.ne.s32.totalorder %s438, %s440
      %p447 = scmp.eq.s32.totalorder %s37, 1
      %p448 = por %p446, %p447
      %p449 = scmp.ne.s32.totalorder %s440, %s441
      %p450 = scmp.eq.s32.totalorder %s37, 0
      %p451 = por %p449, %p450
      %p452 = scmp.ne.s32.totalorder %s440, %s441
      %p453 = scmp.eq.s32.totalorder %s38, 1
      %p454 = por %p452, %p453
      %p456 = scmp.ne.s32.totalorder %s441, %s455
      %p457 = scmp.eq.s32.totalorder %s38, 0
      %p458 = por %p456, %p457
      %s460 = sadd.s32 %s459, 1
      %p463 = scmp.eq.s32.totalorder %s32, 1
      %p464 = scmp.ne.s32.totalorder %s459, %s461
      %p465 = scmp.eq.s32.totalorder %s32, 0
      %p466 = por %p464, %p465
      %p467 = scmp.ne.s32.totalorder %s459, %s461
      %p468 = scmp.eq.s32.totalorder %s37, 1
      %p469 = por %p467, %p468
      %p470 = scmp.ne.s32.totalorder %s461, %s462
      %p471 = scmp.eq.s32.totalorder %s37, 0
      %p472 = por %p470, %p471
      %p473 = scmp.ne.s32.totalorder %s461, %s462
      %p474 = scmp.eq.s32.totalorder %s38, 1
      %p475 = por %p473, %p474
      %p477 = scmp.ne.s32.totalorder %s462, %s476
      %p478 = scmp.eq.s32.totalorder %s38, 0
      %p479 = por %p477, %p478
      %s481 = sadd.s32 %s480, 1
      %p484 = scmp.eq.s32.totalorder %s32, 1
      %p485 = scmp.ne.s32.totalorder %s480, %s482
      %p486 = scmp.eq.s32.totalorder %s32, 0
      %p487 = por %p485, %p486
      %p488 = scmp.ne.s32.totalorder %s480, %s482
      %p489 = scmp.eq.s32.totalorder %s37, 1
      %p490 = por %p488, %p489
      %p491 = scmp.ne.s32.totalorder %s482, %s483
      %p492 = scmp.eq.s32.totalorder %s37, 0
      %p493 = por %p491, %p492
      %p494 = scmp.ne.s32.totalorder %s482, %s483
      %p495 = scmp.eq.s32.totalorder %s38, 1
      %p496 = por %p494, %p495
      %p498 = scmp.ne.s32.totalorder %s483, %s497
      %p499 = scmp.eq.s32.totalorder %s38, 0
      %p500 = por %p498, %p499
      %s502 = sadd.s32 %s501, 1
      %p505 = scmp.eq.s32.totalorder %s32, 1
      %p506 = scmp.ne.s32.totalorder %s501, %s503
      %p507 = scmp.eq.s32.totalorder %s32, 0
      %p508 = por %p506, %p507
      %p509 = scmp.ne.s32.totalorder %s501, %s503
      %p510 = scmp.eq.s32.totalorder %s37, 1
      %p511 = por %p509, %p510
      %p512 = scmp.ne.s32.totalorder %s503, %s504
      %p513 = scmp.eq.s32.totalorder %s37, 0
      %p514 = por %p512, %p513
      %p515 = scmp.ne.s32.totalorder %s503, %s504
      %p516 = scmp.eq.s32.totalorder %s38, 1
      %p517 = por %p515, %p516
      %p519 = scmp.ne.s32.totalorder %s504, %s518
      %p520 = scmp.eq.s32.totalorder %s38, 0
      %p521 = por %p519, %p520
      %s523 = sadd.s32 %s522, 1
      %p526 = scmp.eq.s32.totalorder %s32, 1
      %p527 = scmp.ne.s32.totalorder %s522, %s524
      %p528 = scmp.eq.s32.totalorder %s32, 0
      %p529 = por %p527, %p528
      %p530 = scmp.ne.s32.totalorder %s522, %s524
      %p531 = scmp.eq.s32.totalorder %s37, 1
      %p532 = por %p530, %p531
      %p533 = scmp.ne.s32.totalorder %s524, %s525
      %p534 = scmp.eq.s32.totalorder %s37, 0
      %p535 = por %p533, %p534
      %p536 = scmp.ne.s32.totalorder %s524, %s525
      %p537 = scmp.eq.s32.totalorder %s38, 1
      %p538 = por %p536, %p537
      %p540 = scmp.ne.s32.totalorder %s525, %s539
      %p541 = scmp.eq.s32.totalorder %s38, 0
      %p542 = por %p540, %p541
      %s544 = sadd.s32 %s543, 1
      %p547 = scmp.eq.s32.totalorder %s32, 1
      %p548 = scmp.ne.s32.totalorder %s543, %s545
      %p549 = scmp.eq.s32.totalorder %s32, 0
      %p550 = por %p548, %p549
      %p551 = scmp.ne.s32.totalorder %s543, %s545
      %p552 = scmp.eq.s32.totalorder %s37, 1
      %p553 = por %p551, %p552
      %p554 = scmp.ne.s32.totalorder %s545, %s546
      %p555 = scmp.eq.s32.totalorder %s37, 0
      %p556 = por %p554, %p555
      %p557 = scmp.ne.s32.totalorder %s545, %s546
      %p558 = scmp.eq.s32.totalorder %s38, 1
      %p559 = por %p557, %p558
      %p561 = scmp.ne.s32.totalorder %s546, %s560
      %p562 = scmp.eq.s32.totalorder %s38, 0
      %p563 = por %p561, %p562
      %s565 = sadd.s32 %s564, 1
      %p568 = scmp.eq.s32.totalorder %s32, 1
      %p569 = scmp.ne.s32.totalorder %s564, %s566
      %p570 = scmp.eq.s32.totalorder %s32, 0
      %p571 = por %p569, %p570
      %p572 = scmp.ne.s32.totalorder %s564, %s566
      %p573 = scmp.eq.s32.totalorder %s37, 1
      %p574 = por %p572, %p573
      %p575 = scmp.ne.s32.totalorder %s566, %s567
      %p576 = scmp.eq.s32.totalorder %s37, 0
      %p577 = por %p575, %p576
      %p578 = scmp.ne.s32.totalorder %s566, %s567
      %p579 = scmp.eq.s32.totalorder %s38, 1
      %p580 = por %p578, %p579
      %p582 = scmp.ne.s32.totalorder %s567, %s581
      %p583 = scmp.eq.s32.totalorder %s38, 0
      %p584 = por %p582, %p583
      %s585 = ssub.s32 %s32, %s39
      %p586 = scmp.eq.s32.totalorder %s585, 0
      %s588 = sadd.s32 %s587, 1
      %s589 = scalar_select %p586, %s587, %s588
      %p592 = pneg %p586
      %p593 = scmp.eq.s32.totalorder %s32, 1
      %p594 = por %p592, %p593
      %p595 = scmp.ne.s32.totalorder %s587, %s590
      %p596 = scmp.eq.s32.totalorder %s32, 0
      %p597 = por %p595, %p596
      %p598 = scmp.ne.s32.totalorder %s587, %s590
      %p599 = scmp.eq.s32.totalorder %s37, 1
      %p600 = por %p598, %p599
      %p601 = scmp.ne.s32.totalorder %s590, %s591
      %p602 = scmp.eq.s32.totalorder %s37, 0
      %p603 = por %p601, %p602
      %p604 = scmp.ne.s32.totalorder %s590, %s591
      %p605 = scmp.eq.s32.totalorder %s38, 1
      %p606 = por %p604, %p605
      %p608 = scmp.ne.s32.totalorder %s591, %s607
      %p609 = scmp.eq.s32.totalorder %s38, 0
      %p610 = por %p608, %p609
      %p611 = scmp.le.s32.totalorder 1, %s32
      %p612 = scmp.lt.s32.totalorder %s32, 3
      %p613 = pnand %p611, %p612
      %p614 = pneg %p613
      // Predicated region
      $region9: #{tpu_custom_call.1} parent=5 // pred_check
        _
      $region10: #{tpu_custom_call.1} parent=5 // pred_check_branch
        %616 = sbr.rel (%p613) target = $region12
      $region11: #{tpu_custom_call.1} parent=5 // pred_region
        %s617 = ssub.s32 %s32, 1
        // Predicated region
        $region13: #{tpu_custom_call.1} parent=11 // pred_check
          %p618 = pneg %p157
        $region14: #{tpu_custom_call.1} parent=11 // pred_check_branch
          %620 = sbr.rel (%p618) target = $region16
        $region15: #{tpu_custom_call.1} parent=11 // pred_region
          _
        $region16: #{tpu_custom_call.1} parent=11 // pred_fallthru
          _
        // Predicated region
        $region17: #{tpu_custom_call.1} parent=11 // pred_check
          %p621 = pneg %p178
        $region18: #{tpu_custom_call.1} parent=11 // pred_check_branch
          %623 = sbr.rel (%p621) target = $region20
        $region19: #{tpu_custom_call.1} parent=11 // pred_region
          _
        $region20: #{tpu_custom_call.1} parent=11 // pred_fallthru
          _
        // Predicated region
        $region21: #{tpu_custom_call.1} parent=11 // pred_check
          %p624 = pneg %p199
        $region22: #{tpu_custom_call.1} parent=11 // pred_check_branch
          %626 = sbr.rel (%p624) target = $region24
        $region23: #{tpu_custom_call.1} parent=11 // pred_region
          _
        $region24: #{tpu_custom_call.1} parent=11 // pred_fallthru
          _
        // Predicated region
        $region25: #{tpu_custom_call.1} parent=11 // pred_check
          %p627 = pneg %p220
        $region26: #{tpu_custom_call.1} parent=11 // pred_check_branch
          %629 = sbr.rel (%p627) target = $region28
        $region27: #{tpu_custom_call.1} parent=11 // pred_region
          _
        $region28: #{tpu_custom_call.1} parent=11 // pred_fallthru
          _
        // Predicated region
        $region29: #{tpu_custom_call.1} parent=11 // pred_check
          %p630 = pneg %p241
        $region30: #{tpu_custom_call.1} parent=11 // pred_check_branch
          %632 = sbr.rel (%p630) target = $region32
        $region31: #{tpu_custom_call.1} parent=11 // pred_region
          _
        $region32: #{tpu_custom_call.1} parent=11 // pred_fallthru
          _
        // Predicated region
        $region33: #{tpu_custom_call.1} parent=11 // pred_check
          %p633 = pneg %p262
        $region34: #{tpu_custom_call.1} parent=11 // pred_check_branch
          %635 = sbr.rel (%p633) target = $region36
        $region35: #{tpu_custom_call.1} parent=11 // pred_region
          _
        $region36: #{tpu_custom_call.1} parent=11 // pred_fallthru
          _
        // Predicated region
        $region37: #{tpu_custom_call.1} parent=11 // pred_check
          %p636 = pneg %p283
        $region38: #{tpu_custom_call.1} parent=11 // pred_check_branch
          %638 = sbr.rel (%p636) target = $region40
        $region39: #{tpu_custom_call.1} parent=11 // pred_region
          _
        $region40: #{tpu_custom_call.1} parent=11 // pred_fallthru
          _
        // Predicated region
        $region41: #{tpu_custom_call.1} parent=11 // pred_check
          %p639 = pneg %p304
        $region42: #{tpu_custom_call.1} parent=11 // pred_check_branch
          %641 = sbr.rel (%p639) target = $region44
        $region43: #{tpu_custom_call.1} parent=11 // pred_region
          _
        $region44: #{tpu_custom_call.1} parent=11 // pred_fallthru
          _
        // Predicated region
        $region45: #{tpu_custom_call.1} parent=11 // pred_check
          %p642 = pneg %p325
        $region46: #{tpu_custom_call.1} parent=11 // pred_check_branch
          %644 = sbr.rel (%p642) target = $region48
        $region47: #{tpu_custom_call.1} parent=11 // pred_region
          _
        $region48: #{tpu_custom_call.1} parent=11 // pred_fallthru
          _
        // Predicated region
        $region49: #{tpu_custom_call.1} parent=11 // pred_check
          %p645 = pneg %p346
        $region50: #{tpu_custom_call.1} parent=11 // pred_check_branch
          %647 = sbr.rel (%p645) target = $region52
        $region51: #{tpu_custom_call.1} parent=11 // pred_region
          %649 = vsyncadd [#allocation5], 0
          %s650 = sshll.u32 %s13, 4
          %s651 = int_to_ptr.hbm [resolvable:$true] %s650
          %s652 = sshll.u32 [#allocation4], 4
          %s653 = int_to_ptr.vmem [resolvable:$true] %s652
          %658 = dma.hbm_to_vmem [thread:$0]  %s651, 28800, %s653, [#allocation5], 128, 128, 8
        $region52: #{tpu_custom_call.1} parent=11 // pred_fallthru
          _
        // Predicated region
        $region53: #{tpu_custom_call.1} parent=11 // pred_check
          %p659 = pneg %p367
        $region54: #{tpu_custom_call.1} parent=11 // pred_check_branch
          %661 = sbr.rel (%p659) target = $region56
        $region55: #{tpu_custom_call.1} parent=11 // pred_region
          _
        $region56: #{tpu_custom_call.1} parent=11 // pred_fallthru
          _
        // Predicated region
        $region57: #{tpu_custom_call.1} parent=11 // pred_check
          %p662 = pneg %p388
        $region58: #{tpu_custom_call.1} parent=11 // pred_check_branch
          %664 = sbr.rel (%p662) target = $region60
        $region59: #{tpu_custom_call.1} parent=11 // pred_region
          _
        $region60: #{tpu_custom_call.1} parent=11 // pred_fallthru
          _
        // Predicated region
        $region61: #{tpu_custom_call.1} parent=11 // pred_check
          %p665 = pneg %p409
        $region62: #{tpu_custom_call.1} parent=11 // pred_check_branch
          %667 = sbr.rel (%p665) target = $region64
        $region63: #{tpu_custom_call.1} parent=11 // pred_region
          _
        $region64: #{tpu_custom_call.1} parent=11 // pred_fallthru
          _
        // Predicated region
        $region65: #{tpu_custom_call.1} parent=11 // pred_check
          %p668 = pneg %p430
        $region66: #{tpu_custom_call.1} parent=11 // pred_check_branch
          %670 = sbr.rel (%p668) target = $region68
        $region67: #{tpu_custom_call.1} parent=11 // pred_region
          _
        $region68: #{tpu_custom_call.1} parent=11 // pred_fallthru
          _
        // Predicated region
        $region69: #{tpu_custom_call.1} parent=11 // pred_check
          %p671 = pneg %p451
        $region70: #{tpu_custom_call.1} parent=11 // pred_check_branch
          %673 = sbr.rel (%p671) target = $region72
        $region71: #{tpu_custom_call.1} parent=11 // pred_region
          _
        $region72: #{tpu_custom_call.1} parent=11 // pred_fallthru
          _
        // Predicated region
        $region73: #{tpu_custom_call.1} parent=11 // pred_check
          %p674 = pneg %p472
        $region74: #{tpu_custom_call.1} parent=11 // pred_check_branch
          %676 = sbr.rel (%p674) target = $region76
        $region75: #{tpu_custom_call.1} parent=11 // pred_region
          _
        $region76: #{tpu_custom_call.1} parent=11 // pred_fallthru
          _
        // Predicated region
        $region77: #{tpu_custom_call.1} parent=11 // pred_check
          %p677 = pneg %p493
        $region78: #{tpu_custom_call.1} parent=11 // pred_check_branch
          %679 = sbr.rel (%p677) target = $region80
        $region79: #{tpu_custom_call.1} parent=11 // pred_region
          _
        $region80: #{tpu_custom_call.1} parent=11 // pred_fallthru
          _
        // Predicated region
        $region81: #{tpu_custom_call.1} parent=11 // pred_check
          %p680 = pneg %p514
        $region82: #{tpu_custom_call.1} parent=11 // pred_check_branch
          %682 = sbr.rel (%p680) target = $region84
        $region83: #{tpu_custom_call.1} parent=11 // pred_region
          _
        $region84: #{tpu_custom_call.1} parent=11 // pred_fallthru
          _
        // Predicated region
        $region85: #{tpu_custom_call.1} parent=11 // pred_check
          %p683 = pneg %p535
        $region86: #{tpu_custom_call.1} parent=11 // pred_check_branch
          %685 = sbr.rel (%p683) target = $region88
        $region87: #{tpu_custom_call.1} parent=11 // pred_region
          _
        $region88: #{tpu_custom_call.1} parent=11 // pred_fallthru
          _
        // Predicated region
        $region89: #{tpu_custom_call.1} parent=11 // pred_check
          %p686 = pneg %p556
        $region90: #{tpu_custom_call.1} parent=11 // pred_check_branch
          %688 = sbr.rel (%p686) target = $region92
        $region91: #{tpu_custom_call.1} parent=11 // pred_region
          _
        $region92: #{tpu_custom_call.1} parent=11 // pred_fallthru
          _
        // Predicated region
        $region93: #{tpu_custom_call.1} parent=11 // pred_check
          %p689 = pneg %p577
        $region94: #{tpu_custom_call.1} parent=11 // pred_check_branch
          %691 = sbr.rel (%p689) target = $region96
        $region95: #{tpu_custom_call.1} parent=11 // pred_region
          _
        $region96: #{tpu_custom_call.1} parent=11 // pred_fallthru
          _
      $region12: #{tpu_custom_call.1} parent=5 // pred_fallthru
        _
      %p692 = scmp.lt.s32.totalorder %s32, 2
      // Predicated region
      $region97: #{tpu_custom_call.1} parent=5 // pred_check
        %p693 = pneg %p692
      $region98: #{tpu_custom_call.1} parent=5 // pred_check_branch
        %695 = sbr.rel (%p693) target = $region100
      $region99: #{tpu_custom_call.1} parent=5 // pred_region
        // Predicated region
        $region101: #{tpu_custom_call.1} parent=99 // pred_check
          %p696 = pneg %p52
        $region102: #{tpu_custom_call.1} parent=99 // pred_check_branch
          %698 = sbr.rel (%p696) target = $region104
        $region103: #{tpu_custom_call.1} parent=99 // pred_region
          %p699 = scmp.lt.s32.totalorder %s32, 1
          %s700 = scalar_select %p699, %s32, 1
          %s701 = smul.addr %s700, 8
          %s702 = scalar_lea.vmem %s0, %s701
        $region104: #{tpu_custom_call.1} parent=99 // pred_fallthru
          _
        // Predicated region
        $region105: #{tpu_custom_call.1} parent=99 // pred_check
          %p703 = pneg %p78
        $region106: #{tpu_custom_call.1} parent=99 // pred_check_branch
          %705 = sbr.rel (%p703) target = $region108
        $region107: #{tpu_custom_call.1} parent=99 // pred_region
          %p706 = scmp.lt.s32.totalorder %s32, 1
          %s707 = scalar_select %p706, %s32, 1
          %s708 = smul.addr %s707, 8
          %s709 = scalar_lea.vmem %s1, %s708
        $region108: #{tpu_custom_call.1} parent=99 // pred_fallthru
          _
        // Predicated region
        $region109: #{tpu_custom_call.1} parent=99 // pred_check
          %p710 = pneg %p104
        $region110: #{tpu_custom_call.1} parent=99 // pred_check_branch
          %712 = sbr.rel (%p710) target = $region112
        $region111: #{tpu_custom_call.1} parent=99 // pred_region
          %s713 = sand.u32 %s94, 1
          %s714 = sand.u32 %s94, 1
          %s715 = smul.addr %s714, 16
          %s716 = scalar_lea.vmem [#allocation2], %s715
          %s717 = smul.addr %s32, 8
          %s718 = scalar_lea.vmem %s2, %s717
          // Predicated region
          $region113: #{tpu_custom_call.1} parent=111 // pred_check
            _
          $region114: #{tpu_custom_call.1} parent=111 // pred_check_branch
            %720 = sbr.rel (0) target = $region116
          $region115: #{tpu_custom_call.1} parent=111 // pred_region
            // Predicated region
            $region117: #{tpu_custom_call.1} parent=115 // pred_check
              _
            $region118: #{tpu_custom_call.1} parent=115 // pred_check_branch
              %722 = sbr.rel (0) target = $region120
            $region119: #{tpu_custom_call.1} parent=115 // pred_region
              // Predicated region
              $region132: #{tpu_custom_call.1} parent=119 // pred_check
                _
              $region133: #{tpu_custom_call.1} parent=119 // pred_check_branch
                %740 = sbr.rel (0) target = $region135
              $region134: #{tpu_custom_call.1} parent=119 // pred_region
                loop: start=0, step=1, limit=1
                $region136: #{tpu_custom_call.1} parent=134 // loop_pre_header
                  _
                $region137: #{tpu_custom_call.1} parent=134 // loop_header
                  %s742 = sphi 0, %s746
                  %p743 = scmp.ge.s32.totalorder %s742, 1
                  %s747 = sphi %s718, %s718
                  %s748 = sphi %s716, %s716
                $region138: #{tpu_custom_call.1} parent=134 // loop_header_branch
                  %745 = sbr.rel (%p743) target = $region142
                $region139: #{tpu_custom_call.1} parent=134 // loop_body
                  %v749 = vld [vmem:[%s747] sm:$0xff]
                  %750 = vst [vmem:[%s748] sm:$0xff] %v749
                  %v751 = vld [vmem:[%s747 + $0x10] sm:$0xff]
                  %752 = vst [vmem:[%s748 + $0x8] sm:$0xff] %v751
                $region140: #{tpu_custom_call.1} parent=134 // loop_footer
                  %s746 = sadd.s32 1, %s742
                $region141: #{tpu_custom_call.1} parent=134 // loop_footer_branch
                  %741 = sbr.rel target = $region137
                $region142: #{tpu_custom_call.1} parent=134 // loop_exit
                  _
              $region135: #{tpu_custom_call.1} parent=119 // pred_fallthru
                _
              // Predicated region
              $region143: #{tpu_custom_call.1} parent=119 // pred_check
                _
              $region144: #{tpu_custom_call.1} parent=119 // pred_check_branch
                %754 = sbr.rel target = $region146
              $region145: #{tpu_custom_call.1} parent=119 // pred_region
                _
              $region146: #{tpu_custom_call.1} parent=119 // pred_fallthru
                _
            $region120: #{tpu_custom_call.1} parent=115 // pred_fallthru
              _
            // Predicated region
            $region121: #{tpu_custom_call.1} parent=115 // pred_check
              _
            $region122: #{tpu_custom_call.1} parent=115 // pred_check_branch
              %724 = sbr.rel target = $region124
            $region123: #{tpu_custom_call.1} parent=115 // pred_region
              %s726 = ssub.s32 256, 1
              loop: start=0, step=1, limit=1
              $region125: #{tpu_custom_call.1} parent=123 // loop_pre_header
                _
              $region126: #{tpu_custom_call.1} parent=123 // loop_header
                %s728 = sphi 0, %s732
                %p729 = scmp.ge.s32.totalorder %s728, 1
                %s733 = sphi %s718, %s718
                %s734 = sphi %s716, %s716
              $region127: #{tpu_custom_call.1} parent=123 // loop_header_branch
                %731 = sbr.rel (%p729) target = $region131
              $region128: #{tpu_custom_call.1} parent=123 // loop_body
                %v735 = vld [vmem:[%s733] sm:%s726]
                %736 = vst [vmem:[%s734] sm:%s726] %v735
                %v737 = vld [vmem:[%s733 + $0x10] sm:%s726]
                %738 = vst [vmem:[%s734 + $0x8] sm:%s726] %v737
              $region129: #{tpu_custom_call.1} parent=123 // loop_footer
                %s732 = sadd.s32 1, %s728
              $region130: #{tpu_custom_call.1} parent=123 // loop_footer_branch
                %727 = sbr.rel target = $region126
              $region131: #{tpu_custom_call.1} parent=123 // loop_exit
                _
            $region124: #{tpu_custom_call.1} parent=115 // pred_fallthru
              _
          $region116: #{tpu_custom_call.1} parent=111 // pred_fallthru
            _
          %755 = vnop
        $region112: #{tpu_custom_call.1} parent=99 // pred_fallthru
          _
        // Predicated region
        $region147: #{tpu_custom_call.1} parent=99 // pred_check
          %p756 = pneg %p130
        $region148: #{tpu_custom_call.1} parent=99 // pred_check_branch
          %758 = sbr.rel (%p756) target = $region150
        $region149: #{tpu_custom_call.1} parent=99 // pred_region
          %s759 = sand.u32 %s120, 1
          %s760 = sand.u32 %s120, 1
          %s761 = smul.addr %s760, 48
          %s762 = scalar_lea.vmem [#allocation3], %s761
          %s763 = smul.addr %s32, 8
          %s764 = scalar_lea.vmem %s3, %s763
          // Predicated region
          $region151: #{tpu_custom_call.1} parent=149 // pred_check
            _
          $region152: #{tpu_custom_call.1} parent=149 // pred_check_branch
            %766 = sbr.rel (0) target = $region154
          $region153: #{tpu_custom_call.1} parent=149 // pred_region
            // Predicated region
            $region155: #{tpu_custom_call.1} parent=153 // pred_check
              _
            $region156: #{tpu_custom_call.1} parent=153 // pred_check_branch
              %768 = sbr.rel (0) target = $region158
            $region157: #{tpu_custom_call.1} parent=153 // pred_region
              // Predicated region
              $region170: #{tpu_custom_call.1} parent=157 // pred_check
                _
              $region171: #{tpu_custom_call.1} parent=157 // pred_check_branch
                %794 = sbr.rel (0) target = $region173
              $region172: #{tpu_custom_call.1} parent=157 // pred_region
                loop: start=0, step=1, limit=1
                $region174: #{tpu_custom_call.1} parent=172 // loop_pre_header
                  _
                $region175: #{tpu_custom_call.1} parent=172 // loop_header
                  %s796 = sphi 0, %s800
                  %p797 = scmp.ge.s32.totalorder %s796, 1
                  %s801 = sphi %s764, %s764
                  %s802 = sphi %s762, %s762
                $region176: #{tpu_custom_call.1} parent=172 // loop_header_branch
                  %799 = sbr.rel (%p797) target = $region180
                $region177: #{tpu_custom_call.1} parent=172 // loop_body
                  %v803 = vld [vmem:[%s801] sm:$0xff]
                  %804 = vst [vmem:[%s802] sm:$0xff] %v803
                  %v805 = vld [vmem:[%s801 + $0x10] sm:$0xff]
                  %806 = vst [vmem:[%s802 + $0x8] sm:$0xff] %v805
                  %v807 = vld [vmem:[%s801 + $0x20] sm:$0xff]
                  %808 = vst [vmem:[%s802 + $0x10] sm:$0xff] %v807
                  %v809 = vld [vmem:[%s801 + $0x30] sm:$0xff]
                  %810 = vst [vmem:[%s802 + $0x18] sm:$0xff] %v809
                  %v811 = vld [vmem:[%s801 + $0x40] sm:$0xff]
                  %812 = vst [vmem:[%s802 + $0x20] sm:$0xff] %v811
                  %v813 = vld [vmem:[%s801 + $0x50] sm:$0xff]
                  %814 = vst [vmem:[%s802 + $0x28] sm:$0xff] %v813
                $region178: #{tpu_custom_call.1} parent=172 // loop_footer
                  %s800 = sadd.s32 1, %s796
                $region179: #{tpu_custom_call.1} parent=172 // loop_footer_branch
                  %795 = sbr.rel target = $region175
                $region180: #{tpu_custom_call.1} parent=172 // loop_exit
                  _
              $region173: #{tpu_custom_call.1} parent=157 // pred_fallthru
                _
              // Predicated region
              $region181: #{tpu_custom_call.1} parent=157 // pred_check
                _
              $region182: #{tpu_custom_call.1} parent=157 // pred_check_branch
                %816 = sbr.rel target = $region184
              $region183: #{tpu_custom_call.1} parent=157 // pred_region
                _
              $region184: #{tpu_custom_call.1} parent=157 // pred_fallthru
                _
            $region158: #{tpu_custom_call.1} parent=153 // pred_fallthru
              _
            // Predicated region
            $region159: #{tpu_custom_call.1} parent=153 // pred_check
              _
            $region160: #{tpu_custom_call.1} parent=153 // pred_check_branch
              %770 = sbr.rel target = $region162
            $region161: #{tpu_custom_call.1} parent=153 // pred_region
              %s772 = ssub.s32 256, 1
              loop: start=0, step=1, limit=1
              $region163: #{tpu_custom_call.1} parent=161 // loop_pre_header
                _
              $region164: #{tpu_custom_call.1} parent=161 // loop_header
                %s774 = sphi 0, %s778
                %p775 = scmp.ge.s32.totalorder %s774, 1
                %s779 = sphi %s764, %s764
                %s780 = sphi %s762, %s762
              $region165: #{tpu_custom_call.1} parent=161 // loop_header_branch
                %777 = sbr.rel (%p775) target = $region169
              $region166: #{tpu_custom_call.1} parent=161 // loop_body
                %v781 = vld [vmem:[%s779] sm:%s772]
                %782 = vst [vmem:[%s780] sm:%s772] %v781
                %v783 = vld [vmem:[%s779 + $0x10] sm:%s772]
                %784 = vst [vmem:[%s780 + $0x8] sm:%s772] %v783
                %v785 = vld [vmem:[%s779 + $0x20] sm:%s772]
                %786 = vst [vmem:[%s780 + $0x10] sm:%s772] %v785
                %v787 = vld [vmem:[%s779 + $0x30] sm:%s772]
                %788 = vst [vmem:[%s780 + $0x18] sm:%s772] %v787
                %v789 = vld [vmem:[%s779 + $0x40] sm:%s772]
                %790 = vst [vmem:[%s780 + $0x20] sm:%s772] %v789
                %v791 = vld [vmem:[%s779 + $0x50] sm:%s772]
                %792 = vst [vmem:[%s780 + $0x28] sm:%s772] %v791
              $region167: #{tpu_custom_call.1} parent=161 // loop_footer
                %s778 = sadd.s32 1, %s774
              $region168: #{tpu_custom_call.1} parent=161 // loop_footer_branch
                %773 = sbr.rel target = $region164
              $region169: #{tpu_custom_call.1} parent=161 // loop_exit
                _
            $region162: #{tpu_custom_call.1} parent=153 // pred_fallthru
              _
          $region154: #{tpu_custom_call.1} parent=149 // pred_fallthru
            _
          %817 = vnop
        $region150: #{tpu_custom_call.1} parent=99 // pred_fallthru
          _
      $region100: #{tpu_custom_call.1} parent=5 // pred_fallthru
        _
      %p818 = scmp.le.s32.totalorder 1, %s32
      %p819 = scmp.lt.s32.totalorder %s32, 3
      %p820 = pnand %p818, %p819
      %p821 = pneg %p820
      // Predicated region
      $region185: #{tpu_custom_call.1} parent=5 // pred_check
        _
      $region186: #{tpu_custom_call.1} parent=5 // pred_check_branch
        %823 = sbr.rel (%p820) target = $region188
      $region187: #{tpu_custom_call.1} parent=5 // pred_region
        %s824 = ssub.s32 %s32, 1
        %s825 = sand.u32 %s97, 1
        %s826 = sand.u32 %s97, 1
        %s827 = smul.addr %s826, 16
        %s828 = scalar_lea.vmem [#allocation2], %s827
        // Predicated region
        $region189: #{tpu_custom_call.1} parent=187 // pred_check
          %p829 = pneg %p110
        $region190: #{tpu_custom_call.1} parent=187 // pred_check_branch
          %831 = sbr.rel (%p829) target = $region192
        $region191: #{tpu_custom_call.1} parent=187 // pred_region
          _
        $region192: #{tpu_custom_call.1} parent=187 // pred_fallthru
          _
        %s832 = sand.u32 %s123, 1
        %s833 = sand.u32 %s123, 1
        %s834 = smul.addr %s833, 48
        %s835 = scalar_lea.vmem [#allocation3], %s834
        // Predicated region
        $region193: #{tpu_custom_call.1} parent=187 // pred_check
          %p836 = pneg %p136
        $region194: #{tpu_custom_call.1} parent=187 // pred_check_branch
          %838 = sbr.rel (%p836) target = $region196
        $region195: #{tpu_custom_call.1} parent=187 // pred_region
          _
        $region196: #{tpu_custom_call.1} parent=187 // pred_fallthru
          _
        // Predicated region
        $region197: #{tpu_custom_call.1} parent=187 // pred_check
          %p839 = pneg %p346
        $region198: #{tpu_custom_call.1} parent=187 // pred_check_branch
          %841 = sbr.rel (%p839) target = $region200
        $region199: #{tpu_custom_call.1} parent=187 // pred_region
          %843 = dma.done [#allocation5], 28800
        $region200: #{tpu_custom_call.1} parent=187 // pred_fallthru
          _
        %p844 = scmp.lt.s32.totalorder %s37, 1
        %s845 = scalar_select %p844, %s37, 1
        %s846 = smul.addr %s845, 8
        %s847 = scalar_lea.vmem %s0, %s846
        %p848 = pneg %p58
        %p849 = pneg %p55
        %p850 = scmp.lt.s32.totalorder %s37, 1
        %s851 = scalar_select %p850, %s37, 1
        %s852 = smul.addr %s851, 8
        %s853 = scalar_lea.vmem %s1, %s852
        %p854 = pneg %p84
        %p855 = pneg %p81
        %s856 = sand.u32 %s97, 1
        %s857 = sand.u32 %s97, 1
        %s858 = smul.addr %s857, 16
        %s859 = scalar_lea.vmem [#allocation2], %s858
        %p860 = pneg %p110
        %p861 = pneg %p107
        %s862 = sand.u32 %s123, 1
        %s863 = sand.u32 %s123, 1
        %s864 = smul.addr %s863, 48
        %s865 = scalar_lea.vmem [#allocation3], %s864
        %p866 = pneg %p136
        %p867 = pneg %p133
        %p868 = pneg %p157
        %p869 = pneg %p154
        %p870 = pneg %p178
        %p871 = pneg %p175
        %p872 = pneg %p199
        %p873 = pneg %p196
        %p874 = pneg %p220
        %p875 = pneg %p217
        %p876 = pneg %p241
        %p877 = pneg %p238
        %p878 = pneg %p262
        %p879 = pneg %p259
        %p880 = pneg %p283
        %p881 = pneg %p280
        %p882 = pneg %p304
        %p883 = pneg %p301
        %p884 = pneg %p325
        %p885 = pneg %p322
        %p886 = pneg %p346
        %p887 = pneg %p343
        %p888 = pneg %p367
        %p889 = pneg %p364
        %p890 = pneg %p388
        %p891 = pneg %p385
        %p892 = pneg %p409
        %p893 = pneg %p406
        %p894 = pneg %p430
        %p895 = pneg %p427
        %p896 = pneg %p451
        %p897 = pneg %p448
        %p898 = pneg %p472
        %p899 = pneg %p469
        %p900 = pneg %p493
        %p901 = pneg %p490
        %p902 = pneg %p514
        %p903 = pneg %p511
        %p904 = pneg %p535
        %p905 = pneg %p532
        %p906 = pneg %p556
        %p907 = pneg %p553
        %p908 = pneg %p577
        %p909 = pneg %p574
        %p910 = pneg %p603
        %p911 = pneg %p600
        %p912 = scmp.lt.s32.totalorder %s37, 1
        %s913 = scalar_select %p912, %s37, 1
        %s914 = smul.addr %s913, 8
        %s915 = scalar_lea.vmem %s25, %s914
        %p916 = scmp.lt.s32.totalorder %s37, 1
        %s917 = scalar_select %p916, %s37, 1
        %s918 = smul.addr %s917, 8
        %s919 = scalar_lea.vmem %s0, %s918
        %p920 = scmp.lt.s32.totalorder %s37, 1
        %s921 = scalar_select %p920, %s37, 1
        %s922 = smul.addr %s921, 8
        %s923 = scalar_lea.vmem %s1, %s922
        %p924 = scmp.lt.s32.totalorder %s37, 1
        %s925 = scalar_select %p924, %s37, 1
        %s926 = smul.addr %s925, 8
        %s927 = scalar_lea.vmem %s25, %s926
        %v929 = vld [vmem:[%s919] sm:$0xff]
        %v930 = vld [vmem:[%s923] sm:$0xff]
        %v931 = vpack.c.bf16 %v929, %v929
        %v932 = vpack.c.bf16 %v930, %v930
        %v933 = vld [vmem:[%s8] sm:$0xff]
        %v934 = vld [vmem:[%s8 + $0x8] sm:$0xff]
        %s935 = scalar_lea.vmem %s14, 16
        %v936 = vld [vmem:[%s935] ss:$8 sm:$0x3]
        %v938 = vperm.slane %v936, 0
        %v939 = vperm.slane %v936, 1
        %v944 = vunpack.c.l.b16 %v933
        %v945 = vunpack.c.h.b16 %v933
        %v946 = vunpack.c.l.b16 %v934
        %v947 = vunpack.c.h.b16 %v934
        %v948 = vpack.c.b16 %v946, %v944
        %v949 = vpack.c.b16 %v947, %v945
        %vm952 = vcmask 130048
        %v954 = vsel %vm952, %v931, 0
        %956 = vmatpush.bf16.msra.mxu0 0
        %957 = vmatpush.bf16.msra.mxu0 0
        %958 = vmatpush.bf16.msra.mxu0 0
        %959 = vmatpush.bf16.msra.mxu0 0
        %960 = vmatpush.bf16.msra.mxu0 0
        %961 = vmatpush.bf16.msra.mxu0 0
        %962 = vmatpush.bf16.msra.mxu0 0
        %963 = vmatpush.bf16.msra.mxu0 %v948
        %964 = vmatmul.bf16.gmra.mxu0 %v954
        %v965 = vpop.f32.mrf.mxu0
        %v966 = vadd.f32 %v938, %v965
        %v967 = vpop.f32.mrf.mxu0
        %968 = vdwg.mxu0
        %969 = vmatpush.bf16.msra.mxu0 0
        %970 = vmatpush.bf16.msra.mxu0 0
        %971 = vmatpush.bf16.msra.mxu0 0
        %972 = vmatpush.bf16.msra.mxu0 0
        %973 = vmatpush.bf16.msra.mxu0 0
        %974 = vmatpush.bf16.msra.mxu0 0
        %975 = vmatpush.bf16.msra.mxu0 0
        %976 = vmatpush.bf16.msra.mxu0 %v949
        %977 = vmatmul.bf16.gmra.mxu0 %v954
        %v978 = vpop.f32.mrf.mxu0
        %v979 = vadd.f32 %v939, %v978
        %v980 = vpop.f32.mrf.mxu0
        %981 = vdwg.mxu0
        %v982 = vmax.f32 %v966, 0.0
        %v983 = vmax.f32 %v979, 0.0
        %v984 = vpack.c.bf16 %v982, %v982
        %v985 = vpack.c.bf16 %v983, %v983
        %s986 = scalar_lea.vmem [#allocation4], 800
        %v987 = vld [vmem:[%s986] sm:$0xff]
        %v988 = vld [vmem:[%s986 + $0x8] sm:$0xff]
        %v989 = vld [vmem:[%s986 + $0x10] sm:$0xff]
        %v990 = vld [vmem:[%s986 + $0x18] sm:$0xff]
        %v991 = vld [vmem:[%s986 + $0x20] sm:$0xff]
        %v992 = vld [vmem:[%s986 + $0x28] sm:$0xff]
        %v993 = vld [vmem:[%s986 + $0x30] sm:$0xff]
        %v994 = vld [vmem:[%s986 + $0x38] sm:$0xff]
        %v995 = vld [vmem:[%s986 + $0x40] sm:$0xff]
        %v996 = vld [vmem:[%s986 + $0x48] sm:$0xff]
        %v997 = vld [vmem:[%s986 + $0x50] sm:$0xff]
        %v998 = vld [vmem:[%s986 + $0x58] sm:$0xff]
        %v999 = vld [vmem:[%s986 + $0x60] sm:$0xff]
        %v1000 = vld [vmem:[%s986 + $0x68] sm:$0xff]
        %v1001 = vld [vmem:[%s986 + $0x70] sm:$0xff]
        %v1002 = vld [vmem:[%s986 + $0x78] sm:$0xff]
        %v1003 = vld [vmem:[%s986 + $0x80] sm:$0xff]
        %v1004 = vld [vmem:[%s986 + $0x88] sm:$0xff]
        %v1005 = vld [vmem:[%s986 + $0x90] sm:$0xff]
        %v1006 = vld [vmem:[%s986 + $0x98] sm:$0xff]
        %v1007 = vld [vmem:[%s986 + $0xa0] sm:$0xff]
        %v1008 = vld [vmem:[%s986 + $0xa8] sm:$0xff]
        %v1009 = vld [vmem:[%s986 + $0xb0] sm:$0xff]
        %v1010 = vld [vmem:[%s986 + $0xb8] sm:$0xff]
        %v1011 = vld [vmem:[%s986 + $0xc0] sm:$0xff]
        %s1012 = scalar_lea.vmem %s14, 17
        %v1013 = vld [vmem:[%s1012] ss:$8 sm:$0x3]
        %v1015 = vperm.slane %v1013, 0
        %v1016 = vperm.slane %v1013, 1
        %v1044 = vunpack.c.l.b16 %v987
        %v1045 = vunpack.c.h.b16 %v987
        %v1046 = vunpack.c.l.b16 %v988
        %v1047 = vunpack.c.h.b16 %v988
        %v1048 = vunpack.c.l.b16 %v989
        %v1049 = vunpack.c.h.b16 %v989
        %v1050 = vunpack.c.l.b16 %v990
        %v1051 = vunpack.c.h.b16 %v990
        %v1052 = vunpack.c.l.b16 %v991
        %v1053 = vunpack.c.h.b16 %v991
        %v1054 = vunpack.c.l.b16 %v992
        %v1055 = vunpack.c.h.b16 %v992
        %v1056 = vunpack.c.l.b16 %v993
        %v1057 = vunpack.c.h.b16 %v993
        %v1058 = vunpack.c.l.b16 %v994
        %v1059 = vunpack.c.h.b16 %v994
        %v1060 = vunpack.c.l.b16 %v995
        %v1061 = vunpack.c.h.b16 %v995
        %v1062 = vunpack.c.l.b16 %v996
        %v1063 = vunpack.c.h.b16 %v996
        %v1064 = vunpack.c.l.b16 %v997
        %v1065 = vunpack.c.h.b16 %v997
        %v1066 = vunpack.c.l.b16 %v998
        %v1067 = vunpack.c.h.b16 %v998
        %v1068 = vunpack.c.l.b16 %v999
        %v1069 = vunpack.c.h.b16 %v999
        %v1070 = vunpack.c.l.b16 %v1000
        %v1071 = vunpack.c.h.b16 %v1000
        %v1072 = vunpack.c.l.b16 %v1001
        %v1073 = vunpack.c.h.b16 %v1001
        %v1074 = vunpack.c.l.b16 %v1002
        %v1075 = vunpack.c.h.b16 %v1002
        %v1076 = vunpack.c.l.b16 %v1003
        %v1077 = vunpack.c.h.b16 %v1003
        %v1078 = vunpack.c.l.b16 %v1004
        %v1079 = vunpack.c.h.b16 %v1004
        %v1080 = vunpack.c.l.b16 %v1005
        %v1081 = vunpack.c.h.b16 %v1005
        %v1082 = vunpack.c.l.b16 %v1006
        %v1083 = vunpack.c.h.b16 %v1006
        %v1084 = vunpack.c.l.b16 %v1007
        %v1085 = vunpack.c.h.b16 %v1007
        %v1086 = vunpack.c.l.b16 %v1008
        %v1087 = vunpack.c.h.b16 %v1008
        %v1088 = vunpack.c.l.b16 %v1009
        %v1089 = vunpack.c.h.b16 %v1009
        %v1090 = vunpack.c.l.b16 %v1010
        %v1091 = vunpack.c.h.b16 %v1010
        %v1092 = vunpack.c.l.b16 %v1011
        %v1093 = vunpack.c.h.b16 %v1011
        %v1094 = vpack.c.b16 %v1046, %v1044
        %v1095 = vpack.c.b16 %v1047, %v1045
        %v1096 = vpack.c.b16 %v1050, %v1048
        %v1097 = vpack.c.b16 %v1051, %v1049
        %v1098 = vpack.c.b16 %v1054, %v1052
        %v1099 = vpack.c.b16 %v1055, %v1053
        %v1100 = vpack.c.b16 %v1058, %v1056
        %v1101 = vpack.c.b16 %v1059, %v1057
        %v1102 = vpack.c.b16 %v1062, %v1060
        %v1103 = vpack.c.b16 %v1063, %v1061
        %v1104 = vpack.c.b16 %v1066, %v1064
        %v1105 = vpack.c.b16 %v1067, %v1065
        %v1106 = vpack.c.b16 %v1070, %v1068
        %v1107 = vpack.c.b16 %v1071, %v1069
        %v1108 = vpack.c.b16 %v1074, %v1072
        %v1109 = vpack.c.b16 %v1075, %v1073
        %v1110 = vpack.c.b16 %v1078, %v1076
        %v1111 = vpack.c.b16 %v1079, %v1077
        %v1112 = vpack.c.b16 %v1082, %v1080
        %v1113 = vpack.c.b16 %v1083, %v1081
        %v1114 = vpack.c.b16 %v1086, %v1084
        %v1115 = vpack.c.b16 %v1087, %v1085
        %v1116 = vpack.c.b16 %v1090, %v1088
        %v1117 = vpack.c.b16 %v1091, %v1089
        %v1118 = vpack.c.b16 %v1092, %v1092
        %v1119 = vpack.c.b16 %v1093, %v1093
        %vm1144 = vcmask 588800
        %v1146 = vsel %vm1144, %v985, 0
        %vm1148 = vcmask 1043456
        %v1150 = vsel %vm1148, %v1118, 0
        %v1153 = vsel %vm1148, %v1119, 0
        %1155 = vmatpush.bf16.msra.mxu0 %v1108
        %1156 = vmatpush.bf16.msra.mxu0 %v1106
        %1157 = vmatpush.bf16.msra.mxu0 %v1104
        %1158 = vmatpush.bf16.msra.mxu0 %v1102
        %1159 = vmatpush.bf16.msra.mxu0 %v1100
        %1160 = vmatpush.bf16.msra.mxu0 %v1098
        %1161 = vmatpush.bf16.msra.mxu0 %v1096
        %1162 = vmatpush.bf16.msra.mxu0 %v1094
        %1163 = vmatmul.bf16.gmra.mxu0 %v984
        %v1164 = vpop.f32.mrf.mxu0
        %v1165 = vadd.f32 %v1015, %v1164
        %v1166 = vpop.f32.mrf.mxu0
        %1167 = vdwg.mxu0
        %1168 = vmatpush.bf16.msra.mxu0 0
        %1169 = vmatpush.bf16.msra.mxu0 0
        %1170 = vmatpush.bf16.msra.mxu0 0
        %1171 = vmatpush.bf16.msra.mxu0 %v1150
        %1172 = vmatpush.bf16.msra.mxu0 %v1116
        %1173 = vmatpush.bf16.msra.mxu0 %v1114
        %1174 = vmatpush.bf16.msra.mxu0 %v1112
        %1175 = vmatpush.bf16.msra.mxu0 %v1110
        %1176 = vmatmul.bf16.gmra.mxu0 %v1146
        %v1177 = vpop.f32.mrf.mxu0
        %v1178 = vadd.f32 %v1165, %v1177
        %v1179 = vpop.f32.mrf.mxu0
        %1180 = vdwg.mxu0
        %1181 = vmatpush.bf16.msra.mxu0 %v1109
        %1182 = vmatpush.bf16.msra.mxu0 %v1107
        %1183 = vmatpush.bf16.msra.mxu0 %v1105
        %1184 = vmatpush.bf16.msra.mxu0 %v1103
        %1185 = vmatpush.bf16.msra.mxu0 %v1101
        %1186 = vmatpush.bf16.msra.mxu0 %v1099
        %1187 = vmatpush.bf16.msra.mxu0 %v1097
        %1188 = vmatpush.bf16.msra.mxu0 %v1095
        %1189 = vmatmul.bf16.gmra.mxu0 %v984
        %v1190 = vpop.f32.mrf.mxu0
        %v1191 = vadd.f32 %v1016, %v1190
        %v1192 = vpop.f32.mrf.mxu0
        %1193 = vdwg.mxu0
        %1194 = vmatpush.bf16.msra.mxu0 0
        %1195 = vmatpush.bf16.msra.mxu0 0
        %1196 = vmatpush.bf16.msra.mxu0 0
        %1197 = vmatpush.bf16.msra.mxu0 %v1153
        %1198 = vmatpush.bf16.msra.mxu0 %v1117
        %1199 = vmatpush.bf16.msra.mxu0 %v1115
        %1200 = vmatpush.bf16.msra.mxu0 %v1113
        %1201 = vmatpush.bf16.msra.mxu0 %v1111
        %1202 = vmatmul.bf16.gmra.mxu0 %v1146
        %v1203 = vpop.f32.mrf.mxu0
        %v1204 = vadd.f32 %v1191, %v1203
        %v1205 = vpop.f32.mrf.mxu0
        %1206 = vdwg.mxu0
        %v1207 = vmax.f32 %v1178, 0.0
        %v1208 = vmax.f32 %v1204, 0.0
        %v1209 = vpack.c.bf16 %v1207, %v1207
        %v1210 = vpack.c.bf16 %v1208, %v1208
        %v1211 = vld [vmem:[%s17] sm:$0xf]
        %v1212 = vld [vmem:[%s17 + $0x4] sm:$0xf]
        %v1213 = vld [vmem:[%s17 + $0x8] sm:$0xf]
        %v1214 = vld [vmem:[%s17 + $0xc] sm:$0xf]
        %v1215 = vld [vmem:[%s17 + $0x10] sm:$0xf]
        %v1216 = vld [vmem:[%s17 + $0x14] sm:$0xf]
        %v1217 = vld [vmem:[%s17 + $0x18] sm:$0xf]
        %v1218 = vld [vmem:[%s17 + $0x1c] sm:$0xf]
        %v1219 = vld [vmem:[%s17 + $0x20] sm:$0xf]
        %v1220 = vld [vmem:[%s17 + $0x24] sm:$0xf]
        %v1221 = vld [vmem:[%s17 + $0x28] sm:$0xf]
        %v1222 = vld [vmem:[%s17 + $0x2c] sm:$0xf]
        %v1223 = vld [vmem:[%s17 + $0x30] sm:$0xf]
        %v1224 = vld [vmem:[%s17 + $0x34] sm:$0xf]
        %v1225 = vld [vmem:[%s17 + $0x38] sm:$0xf]
        %v1226 = vld [vmem:[%s17 + $0x3c] sm:$0xf]
        %v1227 = vld [vmem:[%s17 + $0x40] sm:$0xf]
        %v1228 = vld [vmem:[%s17 + $0x44] sm:$0xf]
        %v1229 = vld [vmem:[%s17 + $0x48] sm:$0xf]
        %v1230 = vld [vmem:[%s17 + $0x4c] sm:$0xf]
        %v1231 = vld [vmem:[%s17 + $0x50] sm:$0xf]
        %v1232 = vld [vmem:[%s17 + $0x54] sm:$0xf]
        %v1233 = vld [vmem:[%s17 + $0x58] sm:$0xf]
        %v1234 = vld [vmem:[%s17 + $0x5c] sm:$0xf]
        %v1235 = vld [vmem:[%s17 + $0x60] sm:$0xf]
        %v1236 = vld [vmem:[%s18] sm:$0x1]
        %v1237 = vperm.slane %v1236, 0
        %v1263 = vunpack.c.l.b16 %v1211
        %v1264 = vunpack.c.l.b16 %v1212
        %v1265 = vunpack.c.l.b16 %v1213
        %v1266 = vunpack.c.l.b16 %v1214
        %v1267 = vunpack.c.l.b16 %v1215
        %v1268 = vunpack.c.l.b16 %v1216
        %v1269 = vunpack.c.l.b16 %v1217
        %v1270 = vunpack.c.l.b16 %v1218
        %v1271 = vunpack.c.l.b16 %v1219
        %v1272 = vunpack.c.l.b16 %v1220
        %v1273 = vunpack.c.l.b16 %v1221
        %v1274 = vunpack.c.l.b16 %v1222
        %v1275 = vunpack.c.l.b16 %v1223
        %v1276 = vunpack.c.l.b16 %v1224
        %v1277 = vunpack.c.l.b16 %v1225
        %v1278 = vunpack.c.l.b16 %v1226
        %v1279 = vunpack.c.l.b16 %v1227
        %v1280 = vunpack.c.l.b16 %v1228
        %v1281 = vunpack.c.l.b16 %v1229
        %v1282 = vunpack.c.l.b16 %v1230
        %v1283 = vunpack.c.l.b16 %v1231
        %v1284 = vunpack.c.l.b16 %v1232
        %v1285 = vunpack.c.l.b16 %v1233
        %v1286 = vunpack.c.l.b16 %v1234
        %v1287 = vunpack.c.l.b16 %v1235
        %v1288 = vpack.c.b16 %v1264, %v1263
        %v1289 = vpack.c.b16 %v1266, %v1265
        %v1290 = vpack.c.b16 %v1268, %v1267
        %v1291 = vpack.c.b16 %v1270, %v1269
        %v1292 = vpack.c.b16 %v1272, %v1271
        %v1293 = vpack.c.b16 %v1274, %v1273
        %v1294 = vpack.c.b16 %v1276, %v1275
        %v1295 = vpack.c.b16 %v1278, %v1277
        %v1296 = vpack.c.b16 %v1280, %v1279
        %v1297 = vpack.c.b16 %v1282, %v1281
        %v1298 = vpack.c.b16 %v1284, %v1283
        %v1299 = vpack.c.b16 %v1286, %v1285
        %v1300 = vpack.c.b16 %v1287, %v1287
        %v1314 = vsel %vm1144, %v1210, 0
        %v1317 = vsel %vm1148, %v1300, 0
        %1319 = vmatpush.bf16.msra.mxu0 %v1295
        %1320 = vmatpush.bf16.msra.mxu0 %v1294
        %1321 = vmatpush.bf16.msra.mxu0 %v1293
        %1322 = vmatpush.bf16.msra.mxu0 %v1292
        %1323 = vmatpush.bf16.msra.mxu0 %v1291
        %1324 = vmatpush.bf16.msra.mxu0 %v1290
        %1325 = vmatpush.bf16.msra.mxu0 %v1289
        %1326 = vmatpush.bf16.msra.mxu0 %v1288
        %1327 = vmatmul.bf16.gmra.mxu0 %v1209
        %v1328 = vpop.f32.mrf.mxu0
        %v1329 = vadd.f32 %v1237, %v1328
        %v1330 = vpop.f32.mrf.mxu0
        %1331 = vdwg.mxu0
        %1332 = vmatpush.bf16.msra.mxu0 0
        %1333 = vmatpush.bf16.msra.mxu0 0
        %1334 = vmatpush.bf16.msra.mxu0 0
        %1335 = vmatpush.bf16.msra.mxu0 %v1317
        %1336 = vmatpush.bf16.msra.mxu0 %v1299
        %1337 = vmatpush.bf16.msra.mxu0 %v1298
        %1338 = vmatpush.bf16.msra.mxu0 %v1297
        %1339 = vmatpush.bf16.msra.mxu0 %v1296
        %1340 = vmatmul.bf16.gmra.mxu0 %v1314
        %v1341 = vpop.f32.mrf.mxu0
        %v1342 = vadd.f32 %v1329, %v1341
        %v1343 = vpop.f32.mrf.mxu0
        %1344 = vdwg.mxu0
        %v1345 = vmax.f32 %v1342, -30.0
        %v1346 = vmin.f32 %v1345, 30.0
        %v1347 = vld [vmem:[%s9] sm:$0xff]
        %v1348 = vld [vmem:[%s9 + $0x8] sm:$0xff]
        %s1349 = scalar_lea.vmem %s14, 18
        %v1350 = vld [vmem:[%s1349] ss:$8 sm:$0x3]
        %v1352 = vperm.slane %v1350, 0
        %v1353 = vperm.slane %v1350, 1
        %v1358 = vunpack.c.l.b16 %v1347
        %v1359 = vunpack.c.h.b16 %v1347
        %v1360 = vunpack.c.l.b16 %v1348
        %v1361 = vunpack.c.h.b16 %v1348
        %v1362 = vpack.c.b16 %v1360, %v1358
        %v1363 = vpack.c.b16 %v1361, %v1359
        %v1367 = vsel %vm952, %v932, 0
        %1369 = vmatpush.bf16.msra.mxu0 0
        %1370 = vmatpush.bf16.msra.mxu0 0
        %1371 = vmatpush.bf16.msra.mxu0 0
        %1372 = vmatpush.bf16.msra.mxu0 0
        %1373 = vmatpush.bf16.msra.mxu0 0
        %1374 = vmatpush.bf16.msra.mxu0 0
        %1375 = vmatpush.bf16.msra.mxu0 0
        %1376 = vmatpush.bf16.msra.mxu0 %v1362
        %1377 = vmatmul.bf16.gmra.mxu0 %v1367
        %v1378 = vpop.f32.mrf.mxu0
        %v1379 = vadd.f32 %v1352, %v1378
        %v1380 = vpop.f32.mrf.mxu0
        %1381 = vdwg.mxu0
        %1382 = vmatpush.bf16.msra.mxu0 0
        %1383 = vmatpush.bf16.msra.mxu0 0
        %1384 = vmatpush.bf16.msra.mxu0 0
        %1385 = vmatpush.bf16.msra.mxu0 0
        %1386 = vmatpush.bf16.msra.mxu0 0
        %1387 = vmatpush.bf16.msra.mxu0 0
        %1388 = vmatpush.bf16.msra.mxu0 0
        %1389 = vmatpush.bf16.msra.mxu0 %v1363
        %1390 = vmatmul.bf16.gmra.mxu0 %v1367
        %v1391 = vpop.f32.mrf.mxu0
        %v1392 = vadd.f32 %v1353, %v1391
        %v1393 = vpop.f32.mrf.mxu0
        %1394 = vdwg.mxu0
        %v1395 = vmax.f32 %v1379, 0.0
        %v1396 = vmax.f32 %v1392, 0.0
        %v1397 = vpack.c.bf16 %v1395, %v1395
        %v1398 = vpack.c.bf16 %v1396, %v1396
        %s1399 = scalar_lea.vmem [#allocation4], 1000
        %v1400 = vld [vmem:[%s1399] sm:$0xff]
        %v1401 = vld [vmem:[%s1399 + $0x8] sm:$0xff]
        %v1402 = vld [vmem:[%s1399 + $0x10] sm:$0xff]
        %v1403 = vld [vmem:[%s1399 + $0x18] sm:$0xff]
        %v1404 = vld [vmem:[%s1399 + $0x20] sm:$0xff]
        %v1405 = vld [vmem:[%s1399 + $0x28] sm:$0xff]
        %v1406 = vld [vmem:[%s1399 + $0x30] sm:$0xff]
        %v1407 = vld [vmem:[%s1399 + $0x38] sm:$0xff]
        %v1408 = vld [vmem:[%s1399 + $0x40] sm:$0xff]
        %v1409 = vld [vmem:[%s1399 + $0x48] sm:$0xff]
        %v1410 = vld [vmem:[%s1399 + $0x50] sm:$0xff]
        %v1411 = vld [vmem:[%s1399 + $0x58] sm:$0xff]
        %v1412 = vld [vmem:[%s1399 + $0x60] sm:$0xff]
        %v1413 = vld [vmem:[%s1399 + $0x68] sm:$0xff]
        %v1414 = vld [vmem:[%s1399 + $0x70] sm:$0xff]
        %v1415 = vld [vmem:[%s1399 + $0x78] sm:$0xff]
        %v1416 = vld [vmem:[%s1399 + $0x80] sm:$0xff]
        %v1417 = vld [vmem:[%s1399 + $0x88] sm:$0xff]
        %v1418 = vld [vmem:[%s1399 + $0x90] sm:$0xff]
        %v1419 = vld [vmem:[%s1399 + $0x98] sm:$0xff]
        %v1420 = vld [vmem:[%s1399 + $0xa0] sm:$0xff]
        %v1421 = vld [vmem:[%s1399 + $0xa8] sm:$0xff]
        %v1422 = vld [vmem:[%s1399 + $0xb0] sm:$0xff]
        %v1423 = vld [vmem:[%s1399 + $0xb8] sm:$0xff]
        %v1424 = vld [vmem:[%s1399 + $0xc0] sm:$0xff]
        %s1425 = scalar_lea.vmem %s14, 19
        %v1426 = vld [vmem:[%s1425] ss:$8 sm:$0x3]
        %v1428 = vperm.slane %v1426, 0
        %v1429 = vperm.slane %v1426, 1
        %v1457 = vunpack.c.l.b16 %v1400
        %v1458 = vunpack.c.h.b16 %v1400
        %v1459 = vunpack.c.l.b16 %v1401
        %v1460 = vunpack.c.h.b16 %v1401
        %v1461 = vunpack.c.l.b16 %v1402
        %v1462 = vunpack.c.h.b16 %v1402
        %v1463 = vunpack.c.l.b16 %v1403
        %v1464 = vunpack.c.h.b16 %v1403
        %v1465 = vunpack.c.l.b16 %v1404
        %v1466 = vunpack.c.h.b16 %v1404
        %v1467 = vunpack.c.l.b16 %v1405
        %v1468 = vunpack.c.h.b16 %v1405
        %v1469 = vunpack.c.l.b16 %v1406
        %v1470 = vunpack.c.h.b16 %v1406
        %v1471 = vunpack.c.l.b16 %v1407
        %v1472 = vunpack.c.h.b16 %v1407
        %v1473 = vunpack.c.l.b16 %v1408
        %v1474 = vunpack.c.h.b16 %v1408
        %v1475 = vunpack.c.l.b16 %v1409
        %v1476 = vunpack.c.h.b16 %v1409
        %v1477 = vunpack.c.l.b16 %v1410
        %v1478 = vunpack.c.h.b16 %v1410
        %v1479 = vunpack.c.l.b16 %v1411
        %v1480 = vunpack.c.h.b16 %v1411
        %v1481 = vunpack.c.l.b16 %v1412
        %v1482 = vunpack.c.h.b16 %v1412
        %v1483 = vunpack.c.l.b16 %v1413
        %v1484 = vunpack.c.h.b16 %v1413
        %v1485 = vunpack.c.l.b16 %v1414
        %v1486 = vunpack.c.h.b16 %v1414
        %v1487 = vunpack.c.l.b16 %v1415
        %v1488 = vunpack.c.h.b16 %v1415
        %v1489 = vunpack.c.l.b16 %v1416
        %v1490 = vunpack.c.h.b16 %v1416
        %v1491 = vunpack.c.l.b16 %v1417
        %v1492 = vunpack.c.h.b16 %v1417
        %v1493 = vunpack.c.l.b16 %v1418
        %v1494 = vunpack.c.h.b16 %v1418
        %v1495 = vunpack.c.l.b16 %v1419
        %v1496 = vunpack.c.h.b16 %v1419
        %v1497 = vunpack.c.l.b16 %v1420
        %v1498 = vunpack.c.h.b16 %v1420
        %v1499 = vunpack.c.l.b16 %v1421
        %v1500 = vunpack.c.h.b16 %v1421
        %v1501 = vunpack.c.l.b16 %v1422
        %v1502 = vunpack.c.h.b16 %v1422
        %v1503 = vunpack.c.l.b16 %v1423
        %v1504 = vunpack.c.h.b16 %v1423
        %v1505 = vunpack.c.l.b16 %v1424
        %v1506 = vunpack.c.h.b16 %v1424
        %v1507 = vpack.c.b16 %v1459, %v1457
        %v1508 = vpack.c.b16 %v1460, %v1458
        %v1509 = vpack.c.b16 %v1463, %v1461
        %v1510 = vpack.c.b16 %v1464, %v1462
        %v1511 = vpack.c.b16 %v1467, %v1465
        %v1512 = vpack.c.b16 %v1468, %v1466
        %v1513 = vpack.c.b16 %v1471, %v1469
        %v1514 = vpack.c.b16 %v1472, %v1470
        %v1515 = vpack.c.b16 %v1475, %v1473
        %v1516 = vpack.c.b16 %v1476, %v1474
        %v1517 = vpack.c.b16 %v1479, %v1477
        %v1518 = vpack.c.b16 %v1480, %v1478
        %v1519 = vpack.c.b16 %v1483, %v1481
        %v1520 = vpack.c.b16 %v1484, %v1482
        %v1521 = vpack.c.b16 %v1487, %v1485
        %v1522 = vpack.c.b16 %v1488, %v1486
        %v1523 = vpack.c.b16 %v1491, %v1489
        %v1524 = vpack.c.b16 %v1492, %v1490
        %v1525 = vpack.c.b16 %v1495, %v1493
        %v1526 = vpack.c.b16 %v1496, %v1494
        %v1527 = vpack.c.b16 %v1499, %v1497
        %v1528 = vpack.c.b16 %v1500, %v1498
        %v1529 = vpack.c.b16 %v1503, %v1501
        %v1530 = vpack.c.b16 %v1504, %v1502
        %v1531 = vpack.c.b16 %v1505, %v1505
        %v1532 = vpack.c.b16 %v1506, %v1506
        %v1558 = vsel %vm1144, %v1398, 0
        %v1561 = vsel %vm1148, %v1531, 0
        %v1564 = vsel %vm1148, %v1532, 0
        %1566 = vmatpush.bf16.msra.mxu0 %v1521
        %1567 = vmatpush.bf16.msra.mxu0 %v1519
        %1568 = vmatpush.bf16.msra.mxu0 %v1517
        %1569 = vmatpush.bf16.msra.mxu0 %v1515
        %1570 = vmatpush.bf16.msra.mxu0 %v1513
        %1571 = vmatpush.bf16.msra.mxu0 %v1511
        %1572 = vmatpush.bf16.msra.mxu0 %v1509
        %1573 = vmatpush.bf16.msra.mxu0 %v1507
        %1574 = vmatmul.bf16.gmra.mxu0 %v1397
        %v1575 = vpop.f32.mrf.mxu0
        %v1576 = vadd.f32 %v1428, %v1575
        %v1577 = vpop.f32.mrf.mxu0
        %1578 = vdwg.mxu0
        %1579 = vmatpush.bf16.msra.mxu0 0
        %1580 = vmatpush.bf16.msra.mxu0 0
        %1581 = vmatpush.bf16.msra.mxu0 0
        %1582 = vmatpush.bf16.msra.mxu0 %v1561
        %1583 = vmatpush.bf16.msra.mxu0 %v1529
        %1584 = vmatpush.bf16.msra.mxu0 %v1527
        %1585 = vmatpush.bf16.msra.mxu0 %v1525
        %1586 = vmatpush.bf16.msra.mxu0 %v1523
        %1587 = vmatmul.bf16.gmra.mxu0 %v1558
        %v1588 = vpop.f32.mrf.mxu0
        %v1589 = vadd.f32 %v1576, %v1588
        %v1590 = vpop.f32.mrf.mxu0
        %1591 = vdwg.mxu0
        %1592 = vmatpush.bf16.msra.mxu0 %v1522
        %1593 = vmatpush.bf16.msra.mxu0 %v1520
        %1594 = vmatpush.bf16.msra.mxu0 %v1518
        %1595 = vmatpush.bf16.msra.mxu0 %v1516
        %1596 = vmatpush.bf16.msra.mxu0 %v1514
        %1597 = vmatpush.bf16.msra.mxu0 %v1512
        %1598 = vmatpush.bf16.msra.mxu0 %v1510
        %1599 = vmatpush.bf16.msra.mxu0 %v1508
        %1600 = vmatmul.bf16.gmra.mxu0 %v1397
        %v1601 = vpop.f32.mrf.mxu0
        %v1602 = vadd.f32 %v1429, %v1601
        %v1603 = vpop.f32.mrf.mxu0
        %1604 = vdwg.mxu0
        %1605 = vmatpush.bf16.msra.mxu0 0
        %1606 = vmatpush.bf16.msra.mxu0 0
        %1607 = vmatpush.bf16.msra.mxu0 0
        %1608 = vmatpush.bf16.msra.mxu0 %v1564
        %1609 = vmatpush.bf16.msra.mxu0 %v1530
        %1610 = vmatpush.bf16.msra.mxu0 %v1528
        %1611 = vmatpush.bf16.msra.mxu0 %v1526
        %1612 = vmatpush.bf16.msra.mxu0 %v1524
        %1613 = vmatmul.bf16.gmra.mxu0 %v1558
        %v1614 = vpop.f32.mrf.mxu0
        %v1615 = vadd.f32 %v1602, %v1614
        %v1616 = vpop.f32.mrf.mxu0
        %1617 = vdwg.mxu0
        %v1618 = vmax.f32 %v1589, 0.0
        %v1619 = vmax.f32 %v1615, 0.0
        %v1620 = vpack.c.bf16 %v1618, %v1618
        %v1621 = vpack.c.bf16 %v1619, %v1619
        %s1622 = scalar_lea.vmem %s17, 100
        %v1623 = vld [vmem:[%s1622] sm:$0xf]
        %v1624 = vld [vmem:[%s1622 + $0x4] sm:$0xf]
        %v1625 = vld [vmem:[%s1622 + $0x8] sm:$0xf]
        %v1626 = vld [vmem:[%s1622 + $0xc] sm:$0xf]
        %v1627 = vld [vmem:[%s1622 + $0x10] sm:$0xf]
        %v1628 = vld [vmem:[%s1622 + $0x14] sm:$0xf]
        %v1629 = vld [vmem:[%s1622 + $0x18] sm:$0xf]
        %v1630 = vld [vmem:[%s1622 + $0x1c] sm:$0xf]
        %v1631 = vld [vmem:[%s1622 + $0x20] sm:$0xf]
        %v1632 = vld [vmem:[%s1622 + $0x24] sm:$0xf]
        %v1633 = vld [vmem:[%s1622 + $0x28] sm:$0xf]
        %v1634 = vld [vmem:[%s1622 + $0x2c] sm:$0xf]
        %v1635 = vld [vmem:[%s1622 + $0x30] sm:$0xf]
        %v1636 = vld [vmem:[%s1622 + $0x34] sm:$0xf]
        %v1637 = vld [vmem:[%s1622 + $0x38] sm:$0xf]
        %v1638 = vld [vmem:[%s1622 + $0x3c] sm:$0xf]
        %v1639 = vld [vmem:[%s1622 + $0x40] sm:$0xf]
        %v1640 = vld [vmem:[%s1622 + $0x44] sm:$0xf]
        %v1641 = vld [vmem:[%s1622 + $0x48] sm:$0xf]
        %v1642 = vld [vmem:[%s1622 + $0x4c] sm:$0xf]
        %v1643 = vld [vmem:[%s1622 + $0x50] sm:$0xf]
        %v1644 = vld [vmem:[%s1622 + $0x54] sm:$0xf]
        %v1645 = vld [vmem:[%s1622 + $0x58] sm:$0xf]
        %v1646 = vld [vmem:[%s1622 + $0x5c] sm:$0xf]
        %v1647 = vld [vmem:[%s1622 + $0x60] sm:$0xf]
        %v1648 = vld [vmem:[%s18 + $0x1] sm:$0x1]
        %v1649 = vperm.slane %v1648, 0
        %v1675 = vunpack.c.l.b16 %v1623
        %v1676 = vunpack.c.l.b16 %v1624
        %v1677 = vunpack.c.l.b16 %v1625
        %v1678 = vunpack.c.l.b16 %v1626
        %v1679 = vunpack.c.l.b16 %v1627
        %v1680 = vunpack.c.l.b16 %v1628
        %v1681 = vunpack.c.l.b16 %v1629
        %v1682 = vunpack.c.l.b16 %v1630
        %v1683 = vunpack.c.l.b16 %v1631
        %v1684 = vunpack.c.l.b16 %v1632
        %v1685 = vunpack.c.l.b16 %v1633
        %v1686 = vunpack.c.l.b16 %v1634
        %v1687 = vunpack.c.l.b16 %v1635
        %v1688 = vunpack.c.l.b16 %v1636
        %v1689 = vunpack.c.l.b16 %v1637
        %v1690 = vunpack.c.l.b16 %v1638
        %v1691 = vunpack.c.l.b16 %v1639
        %v1692 = vunpack.c.l.b16 %v1640
        %v1693 = vunpack.c.l.b16 %v1641
        %v1694 = vunpack.c.l.b16 %v1642
        %v1695 = vunpack.c.l.b16 %v1643
        %v1696 = vunpack.c.l.b16 %v1644
        %v1697 = vunpack.c.l.b16 %v1645
        %v1698 = vunpack.c.l.b16 %v1646
        %v1699 = vunpack.c.l.b16 %v1647
        %v1700 = vpack.c.b16 %v1676, %v1675
        %v1701 = vpack.c.b16 %v1678, %v1677
        %v1702 = vpack.c.b16 %v1680, %v1679
        %v1703 = vpack.c.b16 %v1682, %v1681
        %v1704 = vpack.c.b16 %v1684, %v1683
        %v1705 = vpack.c.b16 %v1686, %v1685
        %v1706 = vpack.c.b16 %v1688, %v1687
        %v1707 = vpack.c.b16 %v1690, %v1689
        %v1708 = vpack.c.b16 %v1692, %v1691
        %v1709 = vpack.c.b16 %v1694, %v1693
        %v1710 = vpack.c.b16 %v1696, %v1695
        %v1711 = vpack.c.b16 %v1698, %v1697
        %v1712 = vpack.c.b16 %v1699, %v1699
        %v1726 = vsel %vm1144, %v1621, 0
        %v1729 = vsel %vm1148, %v1712, 0
        %1731 = vmatpush.bf16.msra.mxu0 %v1707
        %1732 = vmatpush.bf16.msra.mxu0 %v1706
        %1733 = vmatpush.bf16.msra.mxu0 %v1705
        %1734 = vmatpush.bf16.msra.mxu0 %v1704
        %1735 = vmatpush.bf16.msra.mxu0 %v1703
        %1736 = vmatpush.bf16.msra.mxu0 %v1702
        %1737 = vmatpush.bf16.msra.mxu0 %v1701
        %1738 = vmatpush.bf16.msra.mxu0 %v1700
        %1739 = vmatmul.bf16.gmra.mxu0 %v1620
        %v1740 = vpop.f32.mrf.mxu0
        %v1741 = vadd.f32 %v1649, %v1740
        %v1742 = vpop.f32.mrf.mxu0
        %1743 = vdwg.mxu0
        %1744 = vmatpush.bf16.msra.mxu0 0
        %1745 = vmatpush.bf16.msra.mxu0 0
        %1746 = vmatpush.bf16.msra.mxu0 0
        %1747 = vmatpush.bf16.msra.mxu0 %v1729
        %1748 = vmatpush.bf16.msra.mxu0 %v1711
        %1749 = vmatpush.bf16.msra.mxu0 %v1710
        %1750 = vmatpush.bf16.msra.mxu0 %v1709
        %1751 = vmatpush.bf16.msra.mxu0 %v1708
        %1752 = vmatmul.bf16.gmra.mxu0 %v1726
        %v1753 = vpop.f32.mrf.mxu0
        %v1754 = vadd.f32 %v1741, %v1753
        %v1755 = vpop.f32.mrf.mxu0
        %1756 = vdwg.mxu0
        %v1757 = vmax.f32 %v1754, -30.0
        %v1758 = vmin.f32 %v1757, 30.0
        %v1759 = vsub.f32 0.0, %v1346
        %v1760 = vmul.f32 %v1759, 1.442695
        %v1761 = vpow.pop %v1760
        %v1762 = vsub.f32 0.0, %v1758
        %v1763 = vmul.f32 %v1762, 1.442695
        %v1764 = vpow.pop %v1763
        %v1765 = vadd.f32 %v1761, %v1764
        %v1766 = vrcp.pop %v1765
        %v1767 = vmul.f32 %v1765, %v1766
        %v1768 = vsub.f32 1.0, %v1767
        %v1769 = vmul.f32 %v1766, %v1768
        %v1770 = vadd.f32 %v1766, %v1769
        %vm1771 = vweird.f32 %v1765
        %vm1772 = vweird.f32 %v1766
        %vm1773 = vmor %vm1771, %vm1772
        %v1774 = vsel %vm1773, %v1766, %v1770
        %v1775 = vand.u32 2147483647, %v1765
        %vm1776 = vcmp.eq.f32.partialorder %v1775, 8.507059e+37
        %v1777 = vand.u32 %v1765, 2147483648
        %v1778 = vor.u32 1.1754944e-38, %v1777
        %v1779 = vsel %vm1776, %v1778, %v1774
        %v1780 = vmul.f32 1.0, %v1779
        %v1781 = vrsqrt.pop %v1765
        %v1782 = vmul.f32 %v1781, %v1765
        %v1783 = vmul.f32 %v1782, %v1781
        %v1784 = vmul.f32 0.5, %v1783
        %v1785 = vsub.f32 1.5, %v1784
        %v1786 = vmul.f32 %v1781, %v1785
        %vm1787 = vweird.f32 %v1765
        %vm1788 = vweird.f32 %v1781
        %vm1789 = vmor %vm1787, %vm1788
        %v1790 = vsel %vm1789, %v1781, %v1786
        %v1791 = vlog2.pop %v1765
        %v1792 = vmul.f32 %v1791, 0.6931472
        %v1793 = vsub.f32 0.0, %v1792
        %1795 = vrot.lane.b32.xlu0 %v1761, 120
        %v1796 = vpop.permute.xlu0 %1795
        %v1798 = vmul.f32 %v1342, %v1796
        %1800 = vrot.lane.b32.xlu0 %v1764, 120
        %v1801 = vpop.permute.xlu0 %1800
        %v1803 = vmul.f32 %v1754, %v1801
        %v1804 = vadd.f32 %v1798, %v1803
        %1806 = vrot.lane.b32.xlu0 %v1804, 8
        %v1807 = vpop.permute.xlu0 %1806
        %v1809 = vmul.f32 %v1780, %v1807
        %v1810 = vld [vmem:[%s828] sm:$0xff]
        %v1811 = vld [vmem:[%s828 + $0x8] sm:$0xff]
        %1814 = vrot.lane.b32.xlu0 %v1810, 8
        %v1815 = vpop.permute.xlu0 %1814
        %1816 = vrot.lane.b32.xlu0 %v1811, 8
        %v1817 = vpop.permute.xlu0 %1816
        %v1820 = vmul.f32 %v1790, %v1815
        %v1821 = vmul.f32 %v1790, %v1817
        %v1822 = vadd.f32 %v1809, %v1820
        %v1823 = vadd.f32 %v1809, %v1821
        %v1824 = vadd.f32 %v1793, 1.837877
        %v1825 = vmul.f32 %v1810, %v1810
        %v1826 = vmul.f32 %v1811, %v1811
        %1829 = vrot.lane.b32.xlu0 %v1825, 8
        %v1830 = vpop.permute.xlu0 %1829
        %1831 = vrot.lane.b32.xlu0 %v1826, 8
        %v1832 = vpop.permute.xlu0 %1831
        %v1835 = vadd.f32 %v1824, %v1830
        %v1836 = vadd.f32 %v1824, %v1832
        %v1837 = vmul.f32 %v1835, -0.5
        %v1838 = vmul.f32 %v1836, -0.5
        %1841 = vrot.lane.b32.xlu0 %v1837, 120
        %v1842 = vpop.permute.xlu0 %1841
        %1843 = vrot.lane.b32.xlu0 %v1838, 120
        %v1844 = vpop.permute.xlu0 %1843
        %vm1847 = vcmask 64512
        %v1848 = vsel %vm1847, %v1842, 0.0
        %1849 = vadd.xlane.f32.xlu0 %v1848
        %v1850 = vpop.xlane.xlu0 %1849
        %v1851 = vsel %vm1847, %v1844, 0.0
        %1852 = vadd.xlane.f32.xlu0 %v1851
        %v1853 = vpop.xlane.xlu0 %1852
        %v1854 = vmul.f32 %v1822, %v1822
        %v1855 = vmul.f32 %v1823, %v1823
        %v1856 = vadd.f32 %v1854, 1.837877
        %v1857 = vadd.f32 %v1855, 1.837877
        %v1858 = vmul.f32 %v1856, -0.5
        %v1859 = vmul.f32 %v1857, -0.5
        %1862 = vrot.lane.b32.xlu0 %v1858, 120
        %v1863 = vpop.permute.xlu0 %1862
        %1864 = vrot.lane.b32.xlu0 %v1859, 120
        %v1865 = vpop.permute.xlu0 %1864
        %v1868 = vsel %vm1847, %v1863, 0.0
        %1869 = vadd.xlane.f32.xlu0 %v1868
        %v1870 = vpop.xlane.xlu0 %1869
        %v1871 = vsel %vm1847, %v1865, 0.0
        %1872 = vadd.xlane.f32.xlu0 %v1871
        %v1873 = vpop.xlane.xlu0 %1872
        %v1874 = vld [vmem:[%s4] sm:$0xff]
        %v1875 = vld [vmem:[%s4 + $0x8] sm:$0xff]
        %v1876 = vld [vmem:[%s14] ss:$8 sm:$0x3]
        %v1878 = vperm.slane %v1876, 0
        %v1879 = vperm.slane %v1876, 1
        %v1884 = vunpack.c.l.b16 %v1874
        %v1885 = vunpack.c.h.b16 %v1874
        %v1886 = vunpack.c.l.b16 %v1875
        %v1887 = vunpack.c.h.b16 %v1875
        %v1888 = vpack.c.b16 %v1886, %v1884
        %v1889 = vpack.c.b16 %v1887, %v1885
        %1892 = vmatpush.bf16.msra.mxu0 0
        %1893 = vmatpush.bf16.msra.mxu0 0
        %1894 = vmatpush.bf16.msra.mxu0 0
        %1895 = vmatpush.bf16.msra.mxu0 0
        %1896 = vmatpush.bf16.msra.mxu0 0
        %1897 = vmatpush.bf16.msra.mxu0 0
        %1898 = vmatpush.bf16.msra.mxu0 0
        %1899 = vmatpush.bf16.msra.mxu0 %v1888
        %1900 = vmatmul.bf16.gmra.mxu0 %v954
        %v1901 = vpop.f32.mrf.mxu0
        %v1902 = vadd.f32 %v1878, %v1901
        %v1903 = vpop.f32.mrf.mxu0
        %1904 = vdwg.mxu0
        %1905 = vmatpush.bf16.msra.mxu0 0
        %1906 = vmatpush.bf16.msra.mxu0 0
        %1907 = vmatpush.bf16.msra.mxu0 0
        %1908 = vmatpush.bf16.msra.mxu0 0
        %1909 = vmatpush.bf16.msra.mxu0 0
        %1910 = vmatpush.bf16.msra.mxu0 0
        %1911 = vmatpush.bf16.msra.mxu0 0
        %1912 = vmatpush.bf16.msra.mxu0 %v1889
        %1913 = vmatmul.bf16.gmra.mxu0 %v954
        %v1914 = vpop.f32.mrf.mxu0
        %v1915 = vadd.f32 %v1879, %v1914
        %v1916 = vpop.f32.mrf.mxu0
        %1917 = vdwg.mxu0
        %v1918 = vmax.f32 %v1902, 0.0
        %v1919 = vmax.f32 %v1915, 0.0
        %v1920 = vpack.c.bf16 %v1918, %v1918
        %v1921 = vpack.c.bf16 %v1919, %v1919
        %v1922 = vld [vmem:[#allocation4] sm:$0xff]
        %v1923 = vld [vmem:[#allocation4 + $0x8] sm:$0xff]
        %v1924 = vld [vmem:[#allocation4 + $0x10] sm:$0xff]
        %v1925 = vld [vmem:[#allocation4 + $0x18] sm:$0xff]
        %v1926 = vld [vmem:[#allocation4 + $0x20] sm:$0xff]
        %v1927 = vld [vmem:[#allocation4 + $0x28] sm:$0xff]
        %v1928 = vld [vmem:[#allocation4 + $0x30] sm:$0xff]
        %v1929 = vld [vmem:[#allocation4 + $0x38] sm:$0xff]
        %v1930 = vld [vmem:[#allocation4 + $0x40] sm:$0xff]
        %v1931 = vld [vmem:[#allocation4 + $0x48] sm:$0xff]
        %v1932 = vld [vmem:[#allocation4 + $0x50] sm:$0xff]
        %v1933 = vld [vmem:[#allocation4 + $0x58] sm:$0xff]
        %v1934 = vld [vmem:[#allocation4 + $0x60] sm:$0xff]
        %v1935 = vld [vmem:[#allocation4 + $0x68] sm:$0xff]
        %v1936 = vld [vmem:[#allocation4 + $0x70] sm:$0xff]
        %v1937 = vld [vmem:[#allocation4 + $0x78] sm:$0xff]
        %v1938 = vld [vmem:[#allocation4 + $0x80] sm:$0xff]
        %v1939 = vld [vmem:[#allocation4 + $0x88] sm:$0xff]
        %v1940 = vld [vmem:[#allocation4 + $0x90] sm:$0xff]
        %v1941 = vld [vmem:[#allocation4 + $0x98] sm:$0xff]
        %v1942 = vld [vmem:[#allocation4 + $0xa0] sm:$0xff]
        %v1943 = vld [vmem:[#allocation4 + $0xa8] sm:$0xff]
        %v1944 = vld [vmem:[#allocation4 + $0xb0] sm:$0xff]
        %v1945 = vld [vmem:[#allocation4 + $0xb8] sm:$0xff]
        %v1946 = vld [vmem:[#allocation4 + $0xc0] sm:$0xff]
        %s1947 = scalar_lea.vmem %s14, 1
        %v1948 = vld [vmem:[%s1947] ss:$8 sm:$0x3]
        %v1950 = vperm.slane %v1948, 0
        %v1951 = vperm.slane %v1948, 1
        %v1979 = vunpack.c.l.b16 %v1922
        %v1980 = vunpack.c.h.b16 %v1922
        %v1981 = vunpack.c.l.b16 %v1923
        %v1982 = vunpack.c.h.b16 %v1923
        %v1983 = vunpack.c.l.b16 %v1924
        %v1984 = vunpack.c.h.b16 %v1924
        %v1985 = vunpack.c.l.b16 %v1925
        %v1986 = vunpack.c.h.b16 %v1925
        %v1987 = vunpack.c.l.b16 %v1926
        %v1988 = vunpack.c.h.b16 %v1926
        %v1989 = vunpack.c.l.b16 %v1927
        %v1990 = vunpack.c.h.b16 %v1927
        %v1991 = vunpack.c.l.b16 %v1928
        %v1992 = vunpack.c.h.b16 %v1928
        %v1993 = vunpack.c.l.b16 %v1929
        %v1994 = vunpack.c.h.b16 %v1929
        %v1995 = vunpack.c.l.b16 %v1930
        %v1996 = vunpack.c.h.b16 %v1930
        %v1997 = vunpack.c.l.b16 %v1931
        %v1998 = vunpack.c.h.b16 %v1931
        %v1999 = vunpack.c.l.b16 %v1932
        %v2000 = vunpack.c.h.b16 %v1932
        %v2001 = vunpack.c.l.b16 %v1933
        %v2002 = vunpack.c.h.b16 %v1933
        %v2003 = vunpack.c.l.b16 %v1934
        %v2004 = vunpack.c.h.b16 %v1934
        %v2005 = vunpack.c.l.b16 %v1935
        %v2006 = vunpack.c.h.b16 %v1935
        %v2007 = vunpack.c.l.b16 %v1936
        %v2008 = vunpack.c.h.b16 %v1936
        %v2009 = vunpack.c.l.b16 %v1937
        %v2010 = vunpack.c.h.b16 %v1937
        %v2011 = vunpack.c.l.b16 %v1938
        %v2012 = vunpack.c.h.b16 %v1938
        %v2013 = vunpack.c.l.b16 %v1939
        %v2014 = vunpack.c.h.b16 %v1939
        %v2015 = vunpack.c.l.b16 %v1940
        %v2016 = vunpack.c.h.b16 %v1940
        %v2017 = vunpack.c.l.b16 %v1941
        %v2018 = vunpack.c.h.b16 %v1941
        %v2019 = vunpack.c.l.b16 %v1942
        %v2020 = vunpack.c.h.b16 %v1942
        %v2021 = vunpack.c.l.b16 %v1943
        %v2022 = vunpack.c.h.b16 %v1943
        %v2023 = vunpack.c.l.b16 %v1944
        %v2024 = vunpack.c.h.b16 %v1944
        %v2025 = vunpack.c.l.b16 %v1945
        %v2026 = vunpack.c.h.b16 %v1945
        %v2027 = vunpack.c.l.b16 %v1946
        %v2028 = vunpack.c.h.b16 %v1946
        %v2029 = vpack.c.b16 %v1981, %v1979
        %v2030 = vpack.c.b16 %v1982, %v1980
        %v2031 = vpack.c.b16 %v1985, %v1983
        %v2032 = vpack.c.b16 %v1986, %v1984
        %v2033 = vpack.c.b16 %v1989, %v1987
        %v2034 = vpack.c.b16 %v1990, %v1988
        %v2035 = vpack.c.b16 %v1993, %v1991
        %v2036 = vpack.c.b16 %v1994, %v1992
        %v2037 = vpack.c.b16 %v1997, %v1995
        %v2038 = vpack.c.b16 %v1998, %v1996
        %v2039 = vpack.c.b16 %v2001, %v1999
        %v2040 = vpack.c.b16 %v2002, %v2000
        %v2041 = vpack.c.b16 %v2005, %v2003
        %v2042 = vpack.c.b16 %v2006, %v2004
        %v2043 = vpack.c.b16 %v2009, %v2007
        %v2044 = vpack.c.b16 %v2010, %v2008
        %v2045 = vpack.c.b16 %v2013, %v2011
        %v2046 = vpack.c.b16 %v2014, %v2012
        %v2047 = vpack.c.b16 %v2017, %v2015
        %v2048 = vpack.c.b16 %v2018, %v2016
        %v2049 = vpack.c.b16 %v2021, %v2019
        %v2050 = vpack.c.b16 %v2022, %v2020
        %v2051 = vpack.c.b16 %v2025, %v2023
        %v2052 = vpack.c.b16 %v2026, %v2024
        %v2053 = vpack.c.b16 %v2027, %v2027
        %v2054 = vpack.c.b16 %v2028, %v2028
        %v2080 = vsel %vm1144, %v1921, 0
        %v2083 = vsel %vm1148, %v2053, 0
        %v2086 = vsel %vm1148, %v2054, 0
        %2088 = vmatpush.bf16.msra.mxu0 %v2043
        %2089 = vmatpush.bf16.msra.mxu0 %v2041
        %2090 = vmatpush.bf16.msra.mxu0 %v2039
        %2091 = vmatpush.bf16.msra.mxu0 %v2037
        %2092 = vmatpush.bf16.msra.mxu0 %v2035
        %2093 = vmatpush.bf16.msra.mxu0 %v2033
        %2094 = vmatpush.bf16.msra.mxu0 %v2031
        %2095 = vmatpush.bf16.msra.mxu0 %v2029
        %2096 = vmatmul.bf16.gmra.mxu0 %v1920
        %v2097 = vpop.f32.mrf.mxu0
        %v2098 = vadd.f32 %v1950, %v2097
        %v2099 = vpop.f32.mrf.mxu0
        %2100 = vdwg.mxu0
        %2101 = vmatpush.bf16.msra.mxu0 0
        %2102 = vmatpush.bf16.msra.mxu0 0
        %2103 = vmatpush.bf16.msra.mxu0 0
        %2104 = vmatpush.bf16.msra.mxu0 %v2083
        %2105 = vmatpush.bf16.msra.mxu0 %v2051
        %2106 = vmatpush.bf16.msra.mxu0 %v2049
        %2107 = vmatpush.bf16.msra.mxu0 %v2047
        %2108 = vmatpush.bf16.msra.mxu0 %v2045
        %2109 = vmatmul.bf16.gmra.mxu0 %v2080
        %v2110 = vpop.f32.mrf.mxu0
        %v2111 = vadd.f32 %v2098, %v2110
        %v2112 = vpop.f32.mrf.mxu0
        %2113 = vdwg.mxu0
        %2114 = vmatpush.bf16.msra.mxu0 %v2044
        %2115 = vmatpush.bf16.msra.mxu0 %v2042
        %2116 = vmatpush.bf16.msra.mxu0 %v2040
        %2117 = vmatpush.bf16.msra.mxu0 %v2038
        %2118 = vmatpush.bf16.msra.mxu0 %v2036
        %2119 = vmatpush.bf16.msra.mxu0 %v2034
        %2120 = vmatpush.bf16.msra.mxu0 %v2032
        %2121 = vmatpush.bf16.msra.mxu0 %v2030
        %2122 = vmatmul.bf16.gmra.mxu0 %v1920
        %v2123 = vpop.f32.mrf.mxu0
        %v2124 = vadd.f32 %v1951, %v2123
        %v2125 = vpop.f32.mrf.mxu0
        %2126 = vdwg.mxu0
        %2127 = vmatpush.bf16.msra.mxu0 0
        %2128 = vmatpush.bf16.msra.mxu0 0
        %2129 = vmatpush.bf16.msra.mxu0 0
        %2130 = vmatpush.bf16.msra.mxu0 %v2086
        %2131 = vmatpush.bf16.msra.mxu0 %v2052
        %2132 = vmatpush.bf16.msra.mxu0 %v2050
        %2133 = vmatpush.bf16.msra.mxu0 %v2048
        %2134 = vmatpush.bf16.msra.mxu0 %v2046
        %2135 = vmatmul.bf16.gmra.mxu0 %v2080
        %v2136 = vpop.f32.mrf.mxu0
        %v2137 = vadd.f32 %v2124, %v2136
        %v2138 = vpop.f32.mrf.mxu0
        %2139 = vdwg.mxu0
        %v2140 = vmax.f32 %v2111, 0.0
        %v2141 = vmax.f32 %v2137, 0.0
        %v2142 = vpack.c.bf16 %v2140, %v2140
        %v2143 = vpack.c.bf16 %v2141, %v2141
        %v2144 = vld [vmem:[%s15] sm:$0xf]
        %v2145 = vld [vmem:[%s15 + $0x4] sm:$0xf]
        %v2146 = vld [vmem:[%s15 + $0x8] sm:$0xf]
        %v2147 = vld [vmem:[%s15 + $0xc] sm:$0xf]
        %v2148 = vld [vmem:[%s15 + $0x10] sm:$0xf]
        %v2149 = vld [vmem:[%s15 + $0x14] sm:$0xf]
        %v2150 = vld [vmem:[%s15 + $0x18] sm:$0xf]
        %v2151 = vld [vmem:[%s15 + $0x1c] sm:$0xf]
        %v2152 = vld [vmem:[%s15 + $0x20] sm:$0xf]
        %v2153 = vld [vmem:[%s15 + $0x24] sm:$0xf]
        %v2154 = vld [vmem:[%s15 + $0x28] sm:$0xf]
        %v2155 = vld [vmem:[%s15 + $0x2c] sm:$0xf]
        %v2156 = vld [vmem:[%s15 + $0x30] sm:$0xf]
        %v2157 = vld [vmem:[%s15 + $0x34] sm:$0xf]
        %v2158 = vld [vmem:[%s15 + $0x38] sm:$0xf]
        %v2159 = vld [vmem:[%s15 + $0x3c] sm:$0xf]
        %v2160 = vld [vmem:[%s15 + $0x40] sm:$0xf]
        %v2161 = vld [vmem:[%s15 + $0x44] sm:$0xf]
        %v2162 = vld [vmem:[%s15 + $0x48] sm:$0xf]
        %v2163 = vld [vmem:[%s15 + $0x4c] sm:$0xf]
        %v2164 = vld [vmem:[%s15 + $0x50] sm:$0xf]
        %v2165 = vld [vmem:[%s15 + $0x54] sm:$0xf]
        %v2166 = vld [vmem:[%s15 + $0x58] sm:$0xf]
        %v2167 = vld [vmem:[%s15 + $0x5c] sm:$0xf]
        %v2168 = vld [vmem:[%s15 + $0x60] sm:$0xf]
        %v2169 = vld [vmem:[%s16] sm:$0x1]
        %v2170 = vperm.slane %v2169, 0
        %v2196 = vunpack.c.l.b16 %v2144
        %v2197 = vunpack.c.l.b16 %v2145
        %v2198 = vunpack.c.l.b16 %v2146
        %v2199 = vunpack.c.l.b16 %v2147
        %v2200 = vunpack.c.l.b16 %v2148
        %v2201 = vunpack.c.l.b16 %v2149
        %v2202 = vunpack.c.l.b16 %v2150
        %v2203 = vunpack.c.l.b16 %v2151
        %v2204 = vunpack.c.l.b16 %v2152
        %v2205 = vunpack.c.l.b16 %v2153
        %v2206 = vunpack.c.l.b16 %v2154
        %v2207 = vunpack.c.l.b16 %v2155
        %v2208 = vunpack.c.l.b16 %v2156
        %v2209 = vunpack.c.l.b16 %v2157
        %v2210 = vunpack.c.l.b16 %v2158
        %v2211 = vunpack.c.l.b16 %v2159
        %v2212 = vunpack.c.l.b16 %v2160
        %v2213 = vunpack.c.l.b16 %v2161
        %v2214 = vunpack.c.l.b16 %v2162
        %v2215 = vunpack.c.l.b16 %v2163
        %v2216 = vunpack.c.l.b16 %v2164
        %v2217 = vunpack.c.l.b16 %v2165
        %v2218 = vunpack.c.l.b16 %v2166
        %v2219 = vunpack.c.l.b16 %v2167
        %v2220 = vunpack.c.l.b16 %v2168
        %v2221 = vpack.c.b16 %v2197, %v2196
        %v2222 = vpack.c.b16 %v2199, %v2198
        %v2223 = vpack.c.b16 %v2201, %v2200
        %v2224 = vpack.c.b16 %v2203, %v2202
        %v2225 = vpack.c.b16 %v2205, %v2204
        %v2226 = vpack.c.b16 %v2207, %v2206
        %v2227 = vpack.c.b16 %v2209, %v2208
        %v2228 = vpack.c.b16 %v2211, %v2210
        %v2229 = vpack.c.b16 %v2213, %v2212
        %v2230 = vpack.c.b16 %v2215, %v2214
        %v2231 = vpack.c.b16 %v2217, %v2216
        %v2232 = vpack.c.b16 %v2219, %v2218
        %v2233 = vpack.c.b16 %v2220, %v2220
        %v2247 = vsel %vm1144, %v2143, 0
        %v2250 = vsel %vm1148, %v2233, 0
        %2252 = vmatpush.bf16.msra.mxu0 %v2228
        %2253 = vmatpush.bf16.msra.mxu0 %v2227
        %2254 = vmatpush.bf16.msra.mxu0 %v2226
        %2255 = vmatpush.bf16.msra.mxu0 %v2225
        %2256 = vmatpush.bf16.msra.mxu0 %v2224
        %2257 = vmatpush.bf16.msra.mxu0 %v2223
        %2258 = vmatpush.bf16.msra.mxu0 %v2222
        %2259 = vmatpush.bf16.msra.mxu0 %v2221
        %2260 = vmatmul.bf16.gmra.mxu0 %v2142
        %v2261 = vpop.f32.mrf.mxu0
        %v2262 = vadd.f32 %v2170, %v2261
        %v2263 = vpop.f32.mrf.mxu0
        %2264 = vdwg.mxu0
        %2265 = vmatpush.bf16.msra.mxu0 0
        %2266 = vmatpush.bf16.msra.mxu0 0
        %2267 = vmatpush.bf16.msra.mxu0 0
        %2268 = vmatpush.bf16.msra.mxu0 %v2250
        %2269 = vmatpush.bf16.msra.mxu0 %v2232
        %2270 = vmatpush.bf16.msra.mxu0 %v2231
        %2271 = vmatpush.bf16.msra.mxu0 %v2230
        %2272 = vmatpush.bf16.msra.mxu0 %v2229
        %2273 = vmatmul.bf16.gmra.mxu0 %v2247
        %v2274 = vpop.f32.mrf.mxu0
        %v2275 = vadd.f32 %v2262, %v2274
        %v2276 = vpop.f32.mrf.mxu0
        %2277 = vdwg.mxu0
        %v2278 = vld [vmem:[%s5] sm:$0xff]
        %v2279 = vld [vmem:[%s5 + $0x8] sm:$0xff]
        %s2280 = scalar_lea.vmem %s14, 2
        %v2281 = vld [vmem:[%s2280] ss:$8 sm:$0x3]
        %v2283 = vperm.slane %v2281, 0
        %v2284 = vperm.slane %v2281, 1
        %v2289 = vunpack.c.l.b16 %v2278
        %v2290 = vunpack.c.h.b16 %v2278
        %v2291 = vunpack.c.l.b16 %v2279
        %v2292 = vunpack.c.h.b16 %v2279
        %v2293 = vpack.c.b16 %v2291, %v2289
        %v2294 = vpack.c.b16 %v2292, %v2290
        %2297 = vmatpush.bf16.msra.mxu0 0
        %2298 = vmatpush.bf16.msra.mxu0 0
        %2299 = vmatpush.bf16.msra.mxu0 0
        %2300 = vmatpush.bf16.msra.mxu0 0
        %2301 = vmatpush.bf16.msra.mxu0 0
        %2302 = vmatpush.bf16.msra.mxu0 0
        %2303 = vmatpush.bf16.msra.mxu0 0
        %2304 = vmatpush.bf16.msra.mxu0 %v2293
        %2305 = vmatmul.bf16.gmra.mxu0 %v1367
        %v2306 = vpop.f32.mrf.mxu0
        %v2307 = vadd.f32 %v2283, %v2306
        %v2308 = vpop.f32.mrf.mxu0
        %2309 = vdwg.mxu0
        %2310 = vmatpush.bf16.msra.mxu0 0
        %2311 = vmatpush.bf16.msra.mxu0 0
        %2312 = vmatpush.bf16.msra.mxu0 0
        %2313 = vmatpush.bf16.msra.mxu0 0
        %2314 = vmatpush.bf16.msra.mxu0 0
        %2315 = vmatpush.bf16.msra.mxu0 0
        %2316 = vmatpush.bf16.msra.mxu0 0
        %2317 = vmatpush.bf16.msra.mxu0 %v2294
        %2318 = vmatmul.bf16.gmra.mxu0 %v1367
        %v2319 = vpop.f32.mrf.mxu0
        %v2320 = vadd.f32 %v2284, %v2319
        %v2321 = vpop.f32.mrf.mxu0
        %2322 = vdwg.mxu0
        %v2323 = vmax.f32 %v2307, 0.0
        %v2324 = vmax.f32 %v2320, 0.0
        %v2325 = vpack.c.bf16 %v2323, %v2323
        %v2326 = vpack.c.bf16 %v2324, %v2324
        %s2327 = scalar_lea.vmem [#allocation4], 200
        %v2328 = vld [vmem:[%s2327] sm:$0xff]
        %v2329 = vld [vmem:[%s2327 + $0x8] sm:$0xff]
        %v2330 = vld [vmem:[%s2327 + $0x10] sm:$0xff]
        %v2331 = vld [vmem:[%s2327 + $0x18] sm:$0xff]
        %v2332 = vld [vmem:[%s2327 + $0x20] sm:$0xff]
        %v2333 = vld [vmem:[%s2327 + $0x28] sm:$0xff]
        %v2334 = vld [vmem:[%s2327 + $0x30] sm:$0xff]
        %v2335 = vld [vmem:[%s2327 + $0x38] sm:$0xff]
        %v2336 = vld [vmem:[%s2327 + $0x40] sm:$0xff]
        %v2337 = vld [vmem:[%s2327 + $0x48] sm:$0xff]
        %v2338 = vld [vmem:[%s2327 + $0x50] sm:$0xff]
        %v2339 = vld [vmem:[%s2327 + $0x58] sm:$0xff]
        %v2340 = vld [vmem:[%s2327 + $0x60] sm:$0xff]
        %v2341 = vld [vmem:[%s2327 + $0x68] sm:$0xff]
        %v2342 = vld [vmem:[%s2327 + $0x70] sm:$0xff]
        %v2343 = vld [vmem:[%s2327 + $0x78] sm:$0xff]
        %v2344 = vld [vmem:[%s2327 + $0x80] sm:$0xff]
        %v2345 = vld [vmem:[%s2327 + $0x88] sm:$0xff]
        %v2346 = vld [vmem:[%s2327 + $0x90] sm:$0xff]
        %v2347 = vld [vmem:[%s2327 + $0x98] sm:$0xff]
        %v2348 = vld [vmem:[%s2327 + $0xa0] sm:$0xff]
        %v2349 = vld [vmem:[%s2327 + $0xa8] sm:$0xff]
        %v2350 = vld [vmem:[%s2327 + $0xb0] sm:$0xff]
        %v2351 = vld [vmem:[%s2327 + $0xb8] sm:$0xff]
        %v2352 = vld [vmem:[%s2327 + $0xc0] sm:$0xff]
        %s2353 = scalar_lea.vmem %s14, 3
        %v2354 = vld [vmem:[%s2353] ss:$8 sm:$0x3]
        %v2356 = vperm.slane %v2354, 0
        %v2357 = vperm.slane %v2354, 1
        %v2385 = vunpack.c.l.b16 %v2328
        %v2386 = vunpack.c.h.b16 %v2328
        %v2387 = vunpack.c.l.b16 %v2329
        %v2388 = vunpack.c.h.b16 %v2329
        %v2389 = vunpack.c.l.b16 %v2330
        %v2390 = vunpack.c.h.b16 %v2330
        %v2391 = vunpack.c.l.b16 %v2331
        %v2392 = vunpack.c.h.b16 %v2331
        %v2393 = vunpack.c.l.b16 %v2332
        %v2394 = vunpack.c.h.b16 %v2332
        %v2395 = vunpack.c.l.b16 %v2333
        %v2396 = vunpack.c.h.b16 %v2333
        %v2397 = vunpack.c.l.b16 %v2334
        %v2398 = vunpack.c.h.b16 %v2334
        %v2399 = vunpack.c.l.b16 %v2335
        %v2400 = vunpack.c.h.b16 %v2335
        %v2401 = vunpack.c.l.b16 %v2336
        %v2402 = vunpack.c.h.b16 %v2336
        %v2403 = vunpack.c.l.b16 %v2337
        %v2404 = vunpack.c.h.b16 %v2337
        %v2405 = vunpack.c.l.b16 %v2338
        %v2406 = vunpack.c.h.b16 %v2338
        %v2407 = vunpack.c.l.b16 %v2339
        %v2408 = vunpack.c.h.b16 %v2339
        %v2409 = vunpack.c.l.b16 %v2340
        %v2410 = vunpack.c.h.b16 %v2340
        %v2411 = vunpack.c.l.b16 %v2341
        %v2412 = vunpack.c.h.b16 %v2341
        %v2413 = vunpack.c.l.b16 %v2342
        %v2414 = vunpack.c.h.b16 %v2342
        %v2415 = vunpack.c.l.b16 %v2343
        %v2416 = vunpack.c.h.b16 %v2343
        %v2417 = vunpack.c.l.b16 %v2344
        %v2418 = vunpack.c.h.b16 %v2344
        %v2419 = vunpack.c.l.b16 %v2345
        %v2420 = vunpack.c.h.b16 %v2345
        %v2421 = vunpack.c.l.b16 %v2346
        %v2422 = vunpack.c.h.b16 %v2346
        %v2423 = vunpack.c.l.b16 %v2347
        %v2424 = vunpack.c.h.b16 %v2347
        %v2425 = vunpack.c.l.b16 %v2348
        %v2426 = vunpack.c.h.b16 %v2348
        %v2427 = vunpack.c.l.b16 %v2349
        %v2428 = vunpack.c.h.b16 %v2349
        %v2429 = vunpack.c.l.b16 %v2350
        %v2430 = vunpack.c.h.b16 %v2350
        %v2431 = vunpack.c.l.b16 %v2351
        %v2432 = vunpack.c.h.b16 %v2351
        %v2433 = vunpack.c.l.b16 %v2352
        %v2434 = vunpack.c.h.b16 %v2352
        %v2435 = vpack.c.b16 %v2387, %v2385
        %v2436 = vpack.c.b16 %v2388, %v2386
        %v2437 = vpack.c.b16 %v2391, %v2389
        %v2438 = vpack.c.b16 %v2392, %v2390
        %v2439 = vpack.c.b16 %v2395, %v2393
        %v2440 = vpack.c.b16 %v2396, %v2394
        %v2441 = vpack.c.b16 %v2399, %v2397
        %v2442 = vpack.c.b16 %v2400, %v2398
        %v2443 = vpack.c.b16 %v2403, %v2401
        %v2444 = vpack.c.b16 %v2404, %v2402
        %v2445 = vpack.c.b16 %v2407, %v2405
        %v2446 = vpack.c.b16 %v2408, %v2406
        %v2447 = vpack.c.b16 %v2411, %v2409
        %v2448 = vpack.c.b16 %v2412, %v2410
        %v2449 = vpack.c.b16 %v2415, %v2413
        %v2450 = vpack.c.b16 %v2416, %v2414
        %v2451 = vpack.c.b16 %v2419, %v2417
        %v2452 = vpack.c.b16 %v2420, %v2418
        %v2453 = vpack.c.b16 %v2423, %v2421
        %v2454 = vpack.c.b16 %v2424, %v2422
        %v2455 = vpack.c.b16 %v2427, %v2425
        %v2456 = vpack.c.b16 %v2428, %v2426
        %v2457 = vpack.c.b16 %v2431, %v2429
        %v2458 = vpack.c.b16 %v2432, %v2430
        %v2459 = vpack.c.b16 %v2433, %v2433
        %v2460 = vpack.c.b16 %v2434, %v2434
        %v2486 = vsel %vm1144, %v2326, 0
        %v2489 = vsel %vm1148, %v2459, 0
        %v2492 = vsel %vm1148, %v2460, 0
        %2494 = vmatpush.bf16.msra.mxu0 %v2449
        %2495 = vmatpush.bf16.msra.mxu0 %v2447
        %2496 = vmatpush.bf16.msra.mxu0 %v2445
        %2497 = vmatpush.bf16.msra.mxu0 %v2443
        %2498 = vmatpush.bf16.msra.mxu0 %v2441
        %2499 = vmatpush.bf16.msra.mxu0 %v2439
        %2500 = vmatpush.bf16.msra.mxu0 %v2437
        %2501 = vmatpush.bf16.msra.mxu0 %v2435
        %2502 = vmatmul.bf16.gmra.mxu0 %v2325
        %v2503 = vpop.f32.mrf.mxu0
        %v2504 = vadd.f32 %v2356, %v2503
        %v2505 = vpop.f32.mrf.mxu0
        %2506 = vdwg.mxu0
        %2507 = vmatpush.bf16.msra.mxu0 0
        %2508 = vmatpush.bf16.msra.mxu0 0
        %2509 = vmatpush.bf16.msra.mxu0 0
        %2510 = vmatpush.bf16.msra.mxu0 %v2489
        %2511 = vmatpush.bf16.msra.mxu0 %v2457
        %2512 = vmatpush.bf16.msra.mxu0 %v2455
        %2513 = vmatpush.bf16.msra.mxu0 %v2453
        %2514 = vmatpush.bf16.msra.mxu0 %v2451
        %2515 = vmatmul.bf16.gmra.mxu0 %v2486
        %v2516 = vpop.f32.mrf.mxu0
        %v2517 = vadd.f32 %v2504, %v2516
        %v2518 = vpop.f32.mrf.mxu0
        %2519 = vdwg.mxu0
        %2520 = vmatpush.bf16.msra.mxu0 %v2450
        %2521 = vmatpush.bf16.msra.mxu0 %v2448
        %2522 = vmatpush.bf16.msra.mxu0 %v2446
        %2523 = vmatpush.bf16.msra.mxu0 %v2444
        %2524 = vmatpush.bf16.msra.mxu0 %v2442
        %2525 = vmatpush.bf16.msra.mxu0 %v2440
        %2526 = vmatpush.bf16.msra.mxu0 %v2438
        %2527 = vmatpush.bf16.msra.mxu0 %v2436
        %2528 = vmatmul.bf16.gmra.mxu0 %v2325
        %v2529 = vpop.f32.mrf.mxu0
        %v2530 = vadd.f32 %v2357, %v2529
        %v2531 = vpop.f32.mrf.mxu0
        %2532 = vdwg.mxu0
        %2533 = vmatpush.bf16.msra.mxu0 0
        %2534 = vmatpush.bf16.msra.mxu0 0
        %2535 = vmatpush.bf16.msra.mxu0 0
        %2536 = vmatpush.bf16.msra.mxu0 %v2492
        %2537 = vmatpush.bf16.msra.mxu0 %v2458
        %2538 = vmatpush.bf16.msra.mxu0 %v2456
        %2539 = vmatpush.bf16.msra.mxu0 %v2454
        %2540 = vmatpush.bf16.msra.mxu0 %v2452
        %2541 = vmatmul.bf16.gmra.mxu0 %v2486
        %v2542 = vpop.f32.mrf.mxu0
        %v2543 = vadd.f32 %v2530, %v2542
        %v2544 = vpop.f32.mrf.mxu0
        %2545 = vdwg.mxu0
        %v2546 = vmax.f32 %v2517, 0.0
        %v2547 = vmax.f32 %v2543, 0.0
        %v2548 = vpack.c.bf16 %v2546, %v2546
        %v2549 = vpack.c.bf16 %v2547, %v2547
        %s2550 = scalar_lea.vmem %s15, 100
        %v2551 = vld [vmem:[%s2550] sm:$0xf]
        %v2552 = vld [vmem:[%s2550 + $0x4] sm:$0xf]
        %v2553 = vld [vmem:[%s2550 + $0x8] sm:$0xf]
        %v2554 = vld [vmem:[%s2550 + $0xc] sm:$0xf]
        %v2555 = vld [vmem:[%s2550 + $0x10] sm:$0xf]
        %v2556 = vld [vmem:[%s2550 + $0x14] sm:$0xf]
        %v2557 = vld [vmem:[%s2550 + $0x18] sm:$0xf]
        %v2558 = vld [vmem:[%s2550 + $0x1c] sm:$0xf]
        %v2559 = vld [vmem:[%s2550 + $0x20] sm:$0xf]
        %v2560 = vld [vmem:[%s2550 + $0x24] sm:$0xf]
        %v2561 = vld [vmem:[%s2550 + $0x28] sm:$0xf]
        %v2562 = vld [vmem:[%s2550 + $0x2c] sm:$0xf]
        %v2563 = vld [vmem:[%s2550 + $0x30] sm:$0xf]
        %v2564 = vld [vmem:[%s2550 + $0x34] sm:$0xf]
        %v2565 = vld [vmem:[%s2550 + $0x38] sm:$0xf]
        %v2566 = vld [vmem:[%s2550 + $0x3c] sm:$0xf]
        %v2567 = vld [vmem:[%s2550 + $0x40] sm:$0xf]
        %v2568 = vld [vmem:[%s2550 + $0x44] sm:$0xf]
        %v2569 = vld [vmem:[%s2550 + $0x48] sm:$0xf]
        %v2570 = vld [vmem:[%s2550 + $0x4c] sm:$0xf]
        %v2571 = vld [vmem:[%s2550 + $0x50] sm:$0xf]
        %v2572 = vld [vmem:[%s2550 + $0x54] sm:$0xf]
        %v2573 = vld [vmem:[%s2550 + $0x58] sm:$0xf]
        %v2574 = vld [vmem:[%s2550 + $0x5c] sm:$0xf]
        %v2575 = vld [vmem:[%s2550 + $0x60] sm:$0xf]
        %v2576 = vld [vmem:[%s16 + $0x1] sm:$0x1]
        %v2577 = vperm.slane %v2576, 0
        %v2603 = vunpack.c.l.b16 %v2551
        %v2604 = vunpack.c.l.b16 %v2552
        %v2605 = vunpack.c.l.b16 %v2553
        %v2606 = vunpack.c.l.b16 %v2554
        %v2607 = vunpack.c.l.b16 %v2555
        %v2608 = vunpack.c.l.b16 %v2556
        %v2609 = vunpack.c.l.b16 %v2557
        %v2610 = vunpack.c.l.b16 %v2558
        %v2611 = vunpack.c.l.b16 %v2559
        %v2612 = vunpack.c.l.b16 %v2560
        %v2613 = vunpack.c.l.b16 %v2561
        %v2614 = vunpack.c.l.b16 %v2562
        %v2615 = vunpack.c.l.b16 %v2563
        %v2616 = vunpack.c.l.b16 %v2564
        %v2617 = vunpack.c.l.b16 %v2565
        %v2618 = vunpack.c.l.b16 %v2566
        %v2619 = vunpack.c.l.b16 %v2567
        %v2620 = vunpack.c.l.b16 %v2568
        %v2621 = vunpack.c.l.b16 %v2569
        %v2622 = vunpack.c.l.b16 %v2570
        %v2623 = vunpack.c.l.b16 %v2571
        %v2624 = vunpack.c.l.b16 %v2572
        %v2625 = vunpack.c.l.b16 %v2573
        %v2626 = vunpack.c.l.b16 %v2574
        %v2627 = vunpack.c.l.b16 %v2575
        %v2628 = vpack.c.b16 %v2604, %v2603
        %v2629 = vpack.c.b16 %v2606, %v2605
        %v2630 = vpack.c.b16 %v2608, %v2607
        %v2631 = vpack.c.b16 %v2610, %v2609
        %v2632 = vpack.c.b16 %v2612, %v2611
        %v2633 = vpack.c.b16 %v2614, %v2613
        %v2634 = vpack.c.b16 %v2616, %v2615
        %v2635 = vpack.c.b16 %v2618, %v2617
        %v2636 = vpack.c.b16 %v2620, %v2619
        %v2637 = vpack.c.b16 %v2622, %v2621
        %v2638 = vpack.c.b16 %v2624, %v2623
        %v2639 = vpack.c.b16 %v2626, %v2625
        %v2640 = vpack.c.b16 %v2627, %v2627
        %v2654 = vsel %vm1144, %v2549, 0
        %v2657 = vsel %vm1148, %v2640, 0
        %2659 = vmatpush.bf16.msra.mxu0 %v2635
        %2660 = vmatpush.bf16.msra.mxu0 %v2634
        %2661 = vmatpush.bf16.msra.mxu0 %v2633
        %2662 = vmatpush.bf16.msra.mxu0 %v2632
        %2663 = vmatpush.bf16.msra.mxu0 %v2631
        %2664 = vmatpush.bf16.msra.mxu0 %v2630
        %2665 = vmatpush.bf16.msra.mxu0 %v2629
        %2666 = vmatpush.bf16.msra.mxu0 %v2628
        %2667 = vmatmul.bf16.gmra.mxu0 %v2548
        %v2668 = vpop.f32.mrf.mxu0
        %v2669 = vadd.f32 %v2577, %v2668
        %v2670 = vpop.f32.mrf.mxu0
        %2671 = vdwg.mxu0
        %2672 = vmatpush.bf16.msra.mxu0 0
        %2673 = vmatpush.bf16.msra.mxu0 0
        %2674 = vmatpush.bf16.msra.mxu0 0
        %2675 = vmatpush.bf16.msra.mxu0 %v2657
        %2676 = vmatpush.bf16.msra.mxu0 %v2639
        %2677 = vmatpush.bf16.msra.mxu0 %v2638
        %2678 = vmatpush.bf16.msra.mxu0 %v2637
        %2679 = vmatpush.bf16.msra.mxu0 %v2636
        %2680 = vmatmul.bf16.gmra.mxu0 %v2654
        %v2681 = vpop.f32.mrf.mxu0
        %v2682 = vadd.f32 %v2669, %v2681
        %v2683 = vpop.f32.mrf.mxu0
        %2684 = vdwg.mxu0
        %v2685 = vpack.c.bf16 %v1823, %v1822
        %v2686 = vld [vmem:[%s6] sm:$0xff]
        %s2687 = scalar_lea.vmem %s14, 4
        %v2688 = vld [vmem:[%s2687] ss:$8 sm:$0x3]
        %v2690 = vperm.slane %v2688, 0
        %v2691 = vperm.slane %v2688, 1
        %2695 = vrot.lane.b32.xlu0 %v2685, 120
        %v2696 = vpop.permute.xlu0 %2695
        %v2698 = vunpack.c.l.b16 %v2686
        %v2699 = vunpack.c.h.b16 %v2686
        %v2700 = vpack.c.b16 %v2698, %v2698
        %v2701 = vpack.c.b16 %v2699, %v2699
        %v2703 = vsel %vm1847, %v2696, 0
        %v2706 = vsel %vm1148, %v2700, 0
        %v2709 = vsel %vm1148, %v2701, 0
        %2711 = vmatpush.bf16.msra.mxu0 0
        %2712 = vmatpush.bf16.msra.mxu0 0
        %2713 = vmatpush.bf16.msra.mxu0 0
        %2714 = vmatpush.bf16.msra.mxu0 0
        %2715 = vmatpush.bf16.msra.mxu0 0
        %2716 = vmatpush.bf16.msra.mxu0 0
        %2717 = vmatpush.bf16.msra.mxu0 0
        %2718 = vmatpush.bf16.msra.mxu0 %v2706
        %2719 = vmatmul.bf16.gmra.mxu0 %v2703
        %v2720 = vpop.f32.mrf.mxu0
        %v2721 = vadd.f32 %v2690, %v2720
        %v2722 = vpop.f32.mrf.mxu0
        %v2723 = vadd.f32 %v2690, %v2722
        %2724 = vdwg.mxu0
        %2725 = vmatpush.bf16.msra.mxu0 0
        %2726 = vmatpush.bf16.msra.mxu0 0
        %2727 = vmatpush.bf16.msra.mxu0 0
        %2728 = vmatpush.bf16.msra.mxu0 0
        %2729 = vmatpush.bf16.msra.mxu0 0
        %2730 = vmatpush.bf16.msra.mxu0 0
        %2731 = vmatpush.bf16.msra.mxu0 0
        %2732 = vmatpush.bf16.msra.mxu0 %v2709
        %2733 = vmatmul.bf16.gmra.mxu0 %v2703
        %v2734 = vpop.f32.mrf.mxu0
        %v2735 = vadd.f32 %v2691, %v2734
        %v2736 = vpop.f32.mrf.mxu0
        %v2737 = vadd.f32 %v2691, %v2736
        %2738 = vdwg.mxu0
        %v2739 = vmax.f32 %v2721, 0.0
        %v2740 = vmax.f32 %v2735, 0.0
        %v2741 = vmax.f32 %v2723, 0.0
        %v2742 = vmax.f32 %v2737, 0.0
        %v2743 = vpack.c.bf16 %v2741, %v2739
        %v2744 = vpack.c.bf16 %v2742, %v2740
        %s2745 = scalar_lea.vmem [#allocation4], 400
        %v2746 = vld [vmem:[%s2745] sm:$0xff]
        %v2747 = vld [vmem:[%s2745 + $0x8] sm:$0xff]
        %v2748 = vld [vmem:[%s2745 + $0x10] sm:$0xff]
        %v2749 = vld [vmem:[%s2745 + $0x18] sm:$0xff]
        %v2750 = vld [vmem:[%s2745 + $0x20] sm:$0xff]
        %v2751 = vld [vmem:[%s2745 + $0x28] sm:$0xff]
        %v2752 = vld [vmem:[%s2745 + $0x30] sm:$0xff]
        %v2753 = vld [vmem:[%s2745 + $0x38] sm:$0xff]
        %v2754 = vld [vmem:[%s2745 + $0x40] sm:$0xff]
        %v2755 = vld [vmem:[%s2745 + $0x48] sm:$0xff]
        %v2756 = vld [vmem:[%s2745 + $0x50] sm:$0xff]
        %v2757 = vld [vmem:[%s2745 + $0x58] sm:$0xff]
        %v2758 = vld [vmem:[%s2745 + $0x60] sm:$0xff]
        %v2759 = vld [vmem:[%s2745 + $0x68] sm:$0xff]
        %v2760 = vld [vmem:[%s2745 + $0x70] sm:$0xff]
        %v2761 = vld [vmem:[%s2745 + $0x78] sm:$0xff]
        %v2762 = vld [vmem:[%s2745 + $0x80] sm:$0xff]
        %v2763 = vld [vmem:[%s2745 + $0x88] sm:$0xff]
        %v2764 = vld [vmem:[%s2745 + $0x90] sm:$0xff]
        %v2765 = vld [vmem:[%s2745 + $0x98] sm:$0xff]
        %v2766 = vld [vmem:[%s2745 + $0xa0] sm:$0xff]
        %v2767 = vld [vmem:[%s2745 + $0xa8] sm:$0xff]
        %v2768 = vld [vmem:[%s2745 + $0xb0] sm:$0xff]
        %v2769 = vld [vmem:[%s2745 + $0xb8] sm:$0xff]
        %v2770 = vld [vmem:[%s2745 + $0xc0] sm:$0xff]
        %s2771 = scalar_lea.vmem %s14, 5
        %v2772 = vld [vmem:[%s2771] ss:$8 sm:$0x3]
        %v2774 = vperm.slane %v2772, 0
        %v2775 = vperm.slane %v2772, 1
        %v2803 = vunpack.c.l.b16 %v2746
        %v2804 = vunpack.c.h.b16 %v2746
        %v2805 = vunpack.c.l.b16 %v2747
        %v2806 = vunpack.c.h.b16 %v2747
        %v2807 = vunpack.c.l.b16 %v2748
        %v2808 = vunpack.c.h.b16 %v2748
        %v2809 = vunpack.c.l.b16 %v2749
        %v2810 = vunpack.c.h.b16 %v2749
        %v2811 = vunpack.c.l.b16 %v2750
        %v2812 = vunpack.c.h.b16 %v2750
        %v2813 = vunpack.c.l.b16 %v2751
        %v2814 = vunpack.c.h.b16 %v2751
        %v2815 = vunpack.c.l.b16 %v2752
        %v2816 = vunpack.c.h.b16 %v2752
        %v2817 = vunpack.c.l.b16 %v2753
        %v2818 = vunpack.c.h.b16 %v2753
        %v2819 = vunpack.c.l.b16 %v2754
        %v2820 = vunpack.c.h.b16 %v2754
        %v2821 = vunpack.c.l.b16 %v2755
        %v2822 = vunpack.c.h.b16 %v2755
        %v2823 = vunpack.c.l.b16 %v2756
        %v2824 = vunpack.c.h.b16 %v2756
        %v2825 = vunpack.c.l.b16 %v2757
        %v2826 = vunpack.c.h.b16 %v2757
        %v2827 = vunpack.c.l.b16 %v2758
        %v2828 = vunpack.c.h.b16 %v2758
        %v2829 = vunpack.c.l.b16 %v2759
        %v2830 = vunpack.c.h.b16 %v2759
        %v2831 = vunpack.c.l.b16 %v2760
        %v2832 = vunpack.c.h.b16 %v2760
        %v2833 = vunpack.c.l.b16 %v2761
        %v2834 = vunpack.c.h.b16 %v2761
        %v2835 = vunpack.c.l.b16 %v2762
        %v2836 = vunpack.c.h.b16 %v2762
        %v2837 = vunpack.c.l.b16 %v2763
        %v2838 = vunpack.c.h.b16 %v2763
        %v2839 = vunpack.c.l.b16 %v2764
        %v2840 = vunpack.c.h.b16 %v2764
        %v2841 = vunpack.c.l.b16 %v2765
        %v2842 = vunpack.c.h.b16 %v2765
        %v2843 = vunpack.c.l.b16 %v2766
        %v2844 = vunpack.c.h.b16 %v2766
        %v2845 = vunpack.c.l.b16 %v2767
        %v2846 = vunpack.c.h.b16 %v2767
        %v2847 = vunpack.c.l.b16 %v2768
        %v2848 = vunpack.c.h.b16 %v2768
        %v2849 = vunpack.c.l.b16 %v2769
        %v2850 = vunpack.c.h.b16 %v2769
        %v2851 = vunpack.c.l.b16 %v2770
        %v2852 = vunpack.c.h.b16 %v2770
        %v2853 = vpack.c.b16 %v2805, %v2803
        %v2854 = vpack.c.b16 %v2806, %v2804
        %v2855 = vpack.c.b16 %v2809, %v2807
        %v2856 = vpack.c.b16 %v2810, %v2808
        %v2857 = vpack.c.b16 %v2813, %v2811
        %v2858 = vpack.c.b16 %v2814, %v2812
        %v2859 = vpack.c.b16 %v2817, %v2815
        %v2860 = vpack.c.b16 %v2818, %v2816
        %v2861 = vpack.c.b16 %v2821, %v2819
        %v2862 = vpack.c.b16 %v2822, %v2820
        %v2863 = vpack.c.b16 %v2825, %v2823
        %v2864 = vpack.c.b16 %v2826, %v2824
        %v2865 = vpack.c.b16 %v2829, %v2827
        %v2866 = vpack.c.b16 %v2830, %v2828
        %v2867 = vpack.c.b16 %v2833, %v2831
        %v2868 = vpack.c.b16 %v2834, %v2832
        %v2869 = vpack.c.b16 %v2837, %v2835
        %v2870 = vpack.c.b16 %v2838, %v2836
        %v2871 = vpack.c.b16 %v2841, %v2839
        %v2872 = vpack.c.b16 %v2842, %v2840
        %v2873 = vpack.c.b16 %v2845, %v2843
        %v2874 = vpack.c.b16 %v2846, %v2844
        %v2875 = vpack.c.b16 %v2849, %v2847
        %v2876 = vpack.c.b16 %v2850, %v2848
        %v2877 = vpack.c.b16 %v2851, %v2851
        %v2878 = vpack.c.b16 %v2852, %v2852
        %v2904 = vsel %vm1144, %v2744, 0
        %v2907 = vsel %vm1148, %v2877, 0
        %v2910 = vsel %vm1148, %v2878, 0
        %2912 = vmatpush.bf16.msra.mxu0 %v2867
        %2913 = vmatpush.bf16.msra.mxu0 %v2865
        %2914 = vmatpush.bf16.msra.mxu0 %v2863
        %2915 = vmatpush.bf16.msra.mxu0 %v2861
        %2916 = vmatpush.bf16.msra.mxu0 %v2859
        %2917 = vmatpush.bf16.msra.mxu0 %v2857
        %2918 = vmatpush.bf16.msra.mxu0 %v2855
        %2919 = vmatpush.bf16.msra.mxu0 %v2853
        %2920 = vmatmul.bf16.gmra.mxu0 %v2743
        %v2921 = vpop.f32.mrf.mxu0
        %v2922 = vadd.f32 %v2774, %v2921
        %v2923 = vpop.f32.mrf.mxu0
        %v2924 = vadd.f32 %v2774, %v2923
        %2925 = vdwg.mxu0
        %2926 = vmatpush.bf16.msra.mxu0 0
        %2927 = vmatpush.bf16.msra.mxu0 0
        %2928 = vmatpush.bf16.msra.mxu0 0
        %2929 = vmatpush.bf16.msra.mxu0 %v2907
        %2930 = vmatpush.bf16.msra.mxu0 %v2875
        %2931 = vmatpush.bf16.msra.mxu0 %v2873
        %2932 = vmatpush.bf16.msra.mxu0 %v2871
        %2933 = vmatpush.bf16.msra.mxu0 %v2869
        %2934 = vmatmul.bf16.gmra.mxu0 %v2904
        %v2935 = vpop.f32.mrf.mxu0
        %v2936 = vadd.f32 %v2922, %v2935
        %v2937 = vpop.f32.mrf.mxu0
        %v2938 = vadd.f32 %v2924, %v2937
        %2939 = vdwg.mxu0
        %2940 = vmatpush.bf16.msra.mxu0 %v2868
        %2941 = vmatpush.bf16.msra.mxu0 %v2866
        %2942 = vmatpush.bf16.msra.mxu0 %v2864
        %2943 = vmatpush.bf16.msra.mxu0 %v2862
        %2944 = vmatpush.bf16.msra.mxu0 %v2860
        %2945 = vmatpush.bf16.msra.mxu0 %v2858
        %2946 = vmatpush.bf16.msra.mxu0 %v2856
        %2947 = vmatpush.bf16.msra.mxu0 %v2854
        %2948 = vmatmul.bf16.gmra.mxu0 %v2743
        %v2949 = vpop.f32.mrf.mxu0
        %v2950 = vadd.f32 %v2775, %v2949
        %v2951 = vpop.f32.mrf.mxu0
        %v2952 = vadd.f32 %v2775, %v2951
        %2953 = vdwg.mxu0
        %2954 = vmatpush.bf16.msra.mxu0 0
        %2955 = vmatpush.bf16.msra.mxu0 0
        %2956 = vmatpush.bf16.msra.mxu0 0
        %2957 = vmatpush.bf16.msra.mxu0 %v2910
        %2958 = vmatpush.bf16.msra.mxu0 %v2876
        %2959 = vmatpush.bf16.msra.mxu0 %v2874
        %2960 = vmatpush.bf16.msra.mxu0 %v2872
        %2961 = vmatpush.bf16.msra.mxu0 %v2870
        %2962 = vmatmul.bf16.gmra.mxu0 %v2904
        %v2963 = vpop.f32.mrf.mxu0
        %v2964 = vadd.f32 %v2950, %v2963
        %v2965 = vpop.f32.mrf.mxu0
        %v2966 = vadd.f32 %v2952, %v2965
        %2967 = vdwg.mxu0
        %v2968 = vmax.f32 %v2936, 0.0
        %v2969 = vmax.f32 %v2964, 0.0
        %v2970 = vmax.f32 %v2938, 0.0
        %v2971 = vmax.f32 %v2966, 0.0
        %v2972 = vpack.c.bf16 %v2970, %v2968
        %v2973 = vpack.c.bf16 %v2971, %v2969
        %s2974 = scalar_lea.vmem %s15, 200
        %v2975 = vld [vmem:[%s2974] sm:$0xf]
        %v2976 = vld [vmem:[%s2974 + $0x4] sm:$0xf]
        %v2977 = vld [vmem:[%s2974 + $0x8] sm:$0xf]
        %v2978 = vld [vmem:[%s2974 + $0xc] sm:$0xf]
        %v2979 = vld [vmem:[%s2974 + $0x10] sm:$0xf]
        %v2980 = vld [vmem:[%s2974 + $0x14] sm:$0xf]
        %v2981 = vld [vmem:[%s2974 + $0x18] sm:$0xf]
        %v2982 = vld [vmem:[%s2974 + $0x1c] sm:$0xf]
        %v2983 = vld [vmem:[%s2974 + $0x20] sm:$0xf]
        %v2984 = vld [vmem:[%s2974 + $0x24] sm:$0xf]
        %v2985 = vld [vmem:[%s2974 + $0x28] sm:$0xf]
        %v2986 = vld [vmem:[%s2974 + $0x2c] sm:$0xf]
        %v2987 = vld [vmem:[%s2974 + $0x30] sm:$0xf]
        %v2988 = vld [vmem:[%s2974 + $0x34] sm:$0xf]
        %v2989 = vld [vmem:[%s2974 + $0x38] sm:$0xf]
        %v2990 = vld [vmem:[%s2974 + $0x3c] sm:$0xf]
        %v2991 = vld [vmem:[%s2974 + $0x40] sm:$0xf]
        %v2992 = vld [vmem:[%s2974 + $0x44] sm:$0xf]
        %v2993 = vld [vmem:[%s2974 + $0x48] sm:$0xf]
        %v2994 = vld [vmem:[%s2974 + $0x4c] sm:$0xf]
        %v2995 = vld [vmem:[%s2974 + $0x50] sm:$0xf]
        %v2996 = vld [vmem:[%s2974 + $0x54] sm:$0xf]
        %v2997 = vld [vmem:[%s2974 + $0x58] sm:$0xf]
        %v2998 = vld [vmem:[%s2974 + $0x5c] sm:$0xf]
        %v2999 = vld [vmem:[%s2974 + $0x60] sm:$0xf]
        %v3000 = vld [vmem:[%s16 + $0x2] sm:$0x1]
        %v3001 = vperm.slane %v3000, 0
        %v3027 = vunpack.c.l.b16 %v2975
        %v3028 = vunpack.c.l.b16 %v2976
        %v3029 = vunpack.c.l.b16 %v2977
        %v3030 = vunpack.c.l.b16 %v2978
        %v3031 = vunpack.c.l.b16 %v2979
        %v3032 = vunpack.c.l.b16 %v2980
        %v3033 = vunpack.c.l.b16 %v2981
        %v3034 = vunpack.c.l.b16 %v2982
        %v3035 = vunpack.c.l.b16 %v2983
        %v3036 = vunpack.c.l.b16 %v2984
        %v3037 = vunpack.c.l.b16 %v2985
        %v3038 = vunpack.c.l.b16 %v2986
        %v3039 = vunpack.c.l.b16 %v2987
        %v3040 = vunpack.c.l.b16 %v2988
        %v3041 = vunpack.c.l.b16 %v2989
        %v3042 = vunpack.c.l.b16 %v2990
        %v3043 = vunpack.c.l.b16 %v2991
        %v3044 = vunpack.c.l.b16 %v2992
        %v3045 = vunpack.c.l.b16 %v2993
        %v3046 = vunpack.c.l.b16 %v2994
        %v3047 = vunpack.c.l.b16 %v2995
        %v3048 = vunpack.c.l.b16 %v2996
        %v3049 = vunpack.c.l.b16 %v2997
        %v3050 = vunpack.c.l.b16 %v2998
        %v3051 = vunpack.c.l.b16 %v2999
        %v3052 = vpack.c.b16 %v3028, %v3027
        %v3053 = vpack.c.b16 %v3030, %v3029
        %v3054 = vpack.c.b16 %v3032, %v3031
        %v3055 = vpack.c.b16 %v3034, %v3033
        %v3056 = vpack.c.b16 %v3036, %v3035
        %v3057 = vpack.c.b16 %v3038, %v3037
        %v3058 = vpack.c.b16 %v3040, %v3039
        %v3059 = vpack.c.b16 %v3042, %v3041
        %v3060 = vpack.c.b16 %v3044, %v3043
        %v3061 = vpack.c.b16 %v3046, %v3045
        %v3062 = vpack.c.b16 %v3048, %v3047
        %v3063 = vpack.c.b16 %v3050, %v3049
        %v3064 = vpack.c.b16 %v3051, %v3051
        %v3078 = vsel %vm1144, %v2973, 0
        %v3081 = vsel %vm1148, %v3064, 0
        %3083 = vmatpush.bf16.msra.mxu0 %v3059
        %3084 = vmatpush.bf16.msra.mxu0 %v3058
        %3085 = vmatpush.bf16.msra.mxu0 %v3057
        %3086 = vmatpush.bf16.msra.mxu0 %v3056
        %3087 = vmatpush.bf16.msra.mxu0 %v3055
        %3088 = vmatpush.bf16.msra.mxu0 %v3054
        %3089 = vmatpush.bf16.msra.mxu0 %v3053
        %3090 = vmatpush.bf16.msra.mxu0 %v3052
        %3091 = vmatmul.bf16.gmra.mxu0 %v2972
        %v3092 = vpop.f32.mrf.mxu0
        %v3093 = vadd.f32 %v3001, %v3092
        %v3094 = vpop.f32.mrf.mxu0
        %v3095 = vadd.f32 %v3001, %v3094
        %3096 = vdwg.mxu0
        %3097 = vmatpush.bf16.msra.mxu0 0
        %3098 = vmatpush.bf16.msra.mxu0 0
        %3099 = vmatpush.bf16.msra.mxu0 0
        %3100 = vmatpush.bf16.msra.mxu0 %v3081
        %3101 = vmatpush.bf16.msra.mxu0 %v3063
        %3102 = vmatpush.bf16.msra.mxu0 %v3062
        %3103 = vmatpush.bf16.msra.mxu0 %v3061
        %3104 = vmatpush.bf16.msra.mxu0 %v3060
        %3105 = vmatmul.bf16.gmra.mxu0 %v3078
        %v3106 = vpop.f32.mrf.mxu0
        %v3107 = vadd.f32 %v3093, %v3106
        %v3108 = vpop.f32.mrf.mxu0
        %v3109 = vadd.f32 %v3095, %v3108
        %3110 = vdwg.mxu0
        %v3111 = vpack.c.bf16 %v3109, %v3107
        %3113 = vrot.lane.b32.xlu0 %v2682, 50
        %v3114 = vpop.permute.xlu0 %3113
        %vm3116 = vcmask 408576
        %v3117 = vsel %vm3116, %v2275, %v3114
        %v3118 = vpack.c.bf16 %v3117, %v3117
        %v3119 = vld [vmem:[%s10] sm:$0xff]
        %v3120 = vld [vmem:[%s10 + $0x8] sm:$0xff]
        %v3121 = vld [vmem:[%s10 + $0x10] sm:$0xff]
        %v3122 = vld [vmem:[%s10 + $0x18] sm:$0xff]
        %v3123 = vld [vmem:[%s10 + $0x20] sm:$0xff]
        %v3124 = vld [vmem:[%s10 + $0x28] sm:$0xff]
        %v3125 = vld [vmem:[%s10 + $0x30] sm:$0xff]
        %v3126 = vld [vmem:[%s10 + $0x38] sm:$0xff]
        %v3127 = vld [vmem:[%s10 + $0x40] sm:$0xff]
        %v3128 = vld [vmem:[%s10 + $0x48] sm:$0xff]
        %v3129 = vld [vmem:[%s10 + $0x50] sm:$0xff]
        %v3130 = vld [vmem:[%s10 + $0x58] sm:$0xff]
        %v3131 = vld [vmem:[%s10 + $0x60] sm:$0x33]
        %v3145 = vunpack.c.l.b16 %v3119
        %v3146 = vunpack.c.h.b16 %v3119
        %v3147 = vunpack.c.l.b16 %v3120
        %v3148 = vunpack.c.h.b16 %v3120
        %v3149 = vunpack.c.l.b16 %v3121
        %v3150 = vunpack.c.h.b16 %v3121
        %v3151 = vunpack.c.l.b16 %v3122
        %v3152 = vunpack.c.h.b16 %v3122
        %v3153 = vunpack.c.l.b16 %v3123
        %v3154 = vunpack.c.h.b16 %v3123
        %v3155 = vunpack.c.l.b16 %v3124
        %v3156 = vunpack.c.h.b16 %v3124
        %v3157 = vunpack.c.l.b16 %v3125
        %v3158 = vunpack.c.h.b16 %v3125
        %v3159 = vunpack.c.l.b16 %v3126
        %v3160 = vunpack.c.h.b16 %v3126
        %v3161 = vunpack.c.l.b16 %v3127
        %v3162 = vunpack.c.h.b16 %v3127
        %v3163 = vunpack.c.l.b16 %v3128
        %v3164 = vunpack.c.h.b16 %v3128
        %v3165 = vunpack.c.l.b16 %v3129
        %v3166 = vunpack.c.h.b16 %v3129
        %v3167 = vunpack.c.l.b16 %v3130
        %v3168 = vunpack.c.h.b16 %v3130
        %v3169 = vunpack.c.l.b16 %v3131
        %v3170 = vunpack.c.h.b16 %v3131
        %v3171 = vpack.c.b16 %v3147, %v3145
        %v3172 = vpack.c.b16 %v3148, %v3146
        %v3173 = vpack.c.b16 %v3151, %v3149
        %v3174 = vpack.c.b16 %v3152, %v3150
        %v3175 = vpack.c.b16 %v3155, %v3153
        %v3176 = vpack.c.b16 %v3156, %v3154
        %v3177 = vpack.c.b16 %v3159, %v3157
        %v3178 = vpack.c.b16 %v3160, %v3158
        %v3179 = vpack.c.b16 %v3163, %v3161
        %v3180 = vpack.c.b16 %v3164, %v3162
        %v3181 = vpack.c.b16 %v3167, %v3165
        %v3182 = vpack.c.b16 %v3168, %v3166
        %v3183 = vpack.c.b16 %v3169, %v3169
        %v3184 = vpack.c.b16 %v3170, %v3170
        %vm3197 = vcmask 818176
        %v3199 = vsel %vm3197, %v3118, 0
        %vm3201 = vcmask 1041408
        %v3203 = vsel %vm3201, %v3183, 0
        %v3206 = vsel %vm3201, %v3184, 0
        %3208 = vmatpush.bf16.msra.mxu0 0
        %3209 = vmatpush.bf16.msra.mxu0 %v3203
        %3210 = vmatpush.bf16.msra.mxu0 %v3181
        %3211 = vmatpush.bf16.msra.mxu0 %v3179
        %3212 = vmatpush.bf16.msra.mxu0 %v3177
        %3213 = vmatpush.bf16.msra.mxu0 %v3175
        %3214 = vmatpush.bf16.msra.mxu0 %v3173
        %3215 = vmatpush.bf16.msra.mxu0 %v3171
        %3216 = vmatmul.bf16.gmra.mxu0 %v3199
        %v3217 = vpop.f32.mrf.mxu0
        %v3218 = vadd.f32 0.0, %v3217
        %v3219 = vpop.f32.mrf.mxu0
        %3220 = vdwg.mxu0
        %3221 = vmatpush.bf16.msra.mxu0 0
        %3222 = vmatpush.bf16.msra.mxu0 %v3206
        %3223 = vmatpush.bf16.msra.mxu0 %v3182
        %3224 = vmatpush.bf16.msra.mxu0 %v3180
        %3225 = vmatpush.bf16.msra.mxu0 %v3178
        %3226 = vmatpush.bf16.msra.mxu0 %v3176
        %3227 = vmatpush.bf16.msra.mxu0 %v3174
        %3228 = vmatpush.bf16.msra.mxu0 %v3172
        %3229 = vmatmul.bf16.gmra.mxu0 %v3199
        %v3230 = vpop.f32.mrf.mxu0
        %v3231 = vadd.f32 0.0, %v3230
        %v3232 = vpop.f32.mrf.mxu0
        %3233 = vdwg.mxu0
        %v3234 = vld [vmem:[%s12] sm:$0xff]
        %v3235 = vld [vmem:[%s12 + $0x8] sm:$0xff]
        %v3236 = vld [vmem:[%s12 + $0x10] sm:$0xff]
        %v3237 = vld [vmem:[%s12 + $0x18] sm:$0xff]
        %v3238 = vld [vmem:[%s12 + $0x20] sm:$0xff]
        %v3239 = vld [vmem:[%s12 + $0x28] sm:$0xff]
        %v3240 = vld [vmem:[%s12 + $0x30] sm:$0x11]
        %v3248 = vunpack.c.l.b16 %v3234
        %v3249 = vunpack.c.h.b16 %v3234
        %v3250 = vunpack.c.l.b16 %v3235
        %v3251 = vunpack.c.h.b16 %v3235
        %v3252 = vunpack.c.l.b16 %v3236
        %v3253 = vunpack.c.h.b16 %v3236
        %v3254 = vunpack.c.l.b16 %v3237
        %v3255 = vunpack.c.h.b16 %v3237
        %v3256 = vunpack.c.l.b16 %v3238
        %v3257 = vunpack.c.h.b16 %v3238
        %v3258 = vunpack.c.l.b16 %v3239
        %v3259 = vunpack.c.h.b16 %v3239
        %v3260 = vunpack.c.l.b16 %v3240
        %v3261 = vunpack.c.h.b16 %v3240
        %v3262 = vpack.c.b16 %v3250, %v3248
        %v3263 = vpack.c.b16 %v3251, %v3249
        %v3264 = vpack.c.b16 %v3254, %v3252
        %v3265 = vpack.c.b16 %v3255, %v3253
        %v3266 = vpack.c.b16 %v3258, %v3256
        %v3267 = vpack.c.b16 %v3259, %v3257
        %v3268 = vpack.c.b16 %v3260, %v3260
        %v3269 = vpack.c.b16 %v3261, %v3261
        %v3277 = vsel %vm3116, %v3111, 0
        %vm3279 = vcmask 1040384
        %v3281 = vsel %vm3279, %v3268, 0
        %v3284 = vsel %vm3279, %v3269, 0
        %3286 = vmatpush.bf16.msra.mxu0 0
        %3287 = vmatpush.bf16.msra.mxu0 0
        %3288 = vmatpush.bf16.msra.mxu0 0
        %3289 = vmatpush.bf16.msra.mxu0 0
        %3290 = vmatpush.bf16.msra.mxu0 %v3281
        %3291 = vmatpush.bf16.msra.mxu0 %v3266
        %3292 = vmatpush.bf16.msra.mxu0 %v3264
        %3293 = vmatpush.bf16.msra.mxu0 %v3262
        %3294 = vmatmul.bf16.gmra.mxu0 %v3277
        %v3295 = vpop.f32.mrf.mxu0
        %v3296 = vadd.f32 0.0, %v3295
        %v3297 = vpop.f32.mrf.mxu0
        %v3298 = vadd.f32 0.0, %v3297
        %3299 = vdwg.mxu0
        %3300 = vmatpush.bf16.msra.mxu0 0
        %3301 = vmatpush.bf16.msra.mxu0 0
        %3302 = vmatpush.bf16.msra.mxu0 0
        %3303 = vmatpush.bf16.msra.mxu0 0
        %3304 = vmatpush.bf16.msra.mxu0 %v3284
        %3305 = vmatpush.bf16.msra.mxu0 %v3267
        %3306 = vmatpush.bf16.msra.mxu0 %v3265
        %3307 = vmatpush.bf16.msra.mxu0 %v3263
        %3308 = vmatmul.bf16.gmra.mxu0 %v3277
        %v3309 = vpop.f32.mrf.mxu0
        %v3310 = vadd.f32 0.0, %v3309
        %v3311 = vpop.f32.mrf.mxu0
        %v3312 = vadd.f32 0.0, %v3311
        %3313 = vdwg.mxu0
        %v3314 = vadd.f32 %v3296, %v3218
        %v3315 = vadd.f32 %v3310, %v3231
        %v3316 = vadd.f32 %v3298, %v3218
        %v3317 = vadd.f32 %v3312, %v3231
        %s3318 = scalar_lea.vmem %s14, 20
        %v3319 = vld [vmem:[%s3318] ss:$8 sm:$0x3]
        %v3321 = vperm.slane %v3319, 0
        %v3322 = vperm.slane %v3319, 1
        %v3325 = vadd.f32 %v3314, %v3321
        %v3326 = vadd.f32 %v3315, %v3322
        %v3327 = vadd.f32 %v3316, %v3321
        %v3328 = vadd.f32 %v3317, %v3322
        %v3329 = vmax.f32 %v3325, 0.0
        %v3330 = vmax.f32 %v3326, 0.0
        %v3331 = vmax.f32 %v3327, 0.0
        %v3332 = vmax.f32 %v3328, 0.0
        %v3333 = vpack.c.bf16 %v3331, %v3329
        %v3334 = vpack.c.bf16 %v3332, %v3330
        %s3335 = scalar_lea.vmem [#allocation4], 1200
        %v3336 = vld [vmem:[%s3335] sm:$0xff]
        %v3337 = vld [vmem:[%s3335 + $0x8] sm:$0xff]
        %v3338 = vld [vmem:[%s3335 + $0x10] sm:$0xff]
        %v3339 = vld [vmem:[%s3335 + $0x18] sm:$0xff]
        %v3340 = vld [vmem:[%s3335 + $0x20] sm:$0xff]
        %v3341 = vld [vmem:[%s3335 + $0x28] sm:$0xff]
        %v3342 = vld [vmem:[%s3335 + $0x30] sm:$0xff]
        %v3343 = vld [vmem:[%s3335 + $0x38] sm:$0xff]
        %v3344 = vld [vmem:[%s3335 + $0x40] sm:$0xff]
        %v3345 = vld [vmem:[%s3335 + $0x48] sm:$0xff]
        %v3346 = vld [vmem:[%s3335 + $0x50] sm:$0xff]
        %v3347 = vld [vmem:[%s3335 + $0x58] sm:$0xff]
        %v3348 = vld [vmem:[%s3335 + $0x60] sm:$0xff]
        %v3349 = vld [vmem:[%s3335 + $0x68] sm:$0xff]
        %v3350 = vld [vmem:[%s3335 + $0x70] sm:$0xff]
        %v3351 = vld [vmem:[%s3335 + $0x78] sm:$0xff]
        %v3352 = vld [vmem:[%s3335 + $0x80] sm:$0xff]
        %v3353 = vld [vmem:[%s3335 + $0x88] sm:$0xff]
        %v3354 = vld [vmem:[%s3335 + $0x90] sm:$0xff]
        %v3355 = vld [vmem:[%s3335 + $0x98] sm:$0xff]
        %v3356 = vld [vmem:[%s3335 + $0xa0] sm:$0xff]
        %v3357 = vld [vmem:[%s3335 + $0xa8] sm:$0xff]
        %v3358 = vld [vmem:[%s3335 + $0xb0] sm:$0xff]
        %v3359 = vld [vmem:[%s3335 + $0xb8] sm:$0xff]
        %v3360 = vld [vmem:[%s3335 + $0xc0] sm:$0xff]
        %s3361 = scalar_lea.vmem %s14, 21
        %v3362 = vld [vmem:[%s3361] ss:$8 sm:$0x3]
        %v3364 = vperm.slane %v3362, 0
        %v3365 = vperm.slane %v3362, 1
        %v3393 = vunpack.c.l.b16 %v3336
        %v3394 = vunpack.c.h.b16 %v3336
        %v3395 = vunpack.c.l.b16 %v3337
        %v3396 = vunpack.c.h.b16 %v3337
        %v3397 = vunpack.c.l.b16 %v3338
        %v3398 = vunpack.c.h.b16 %v3338
        %v3399 = vunpack.c.l.b16 %v3339
        %v3400 = vunpack.c.h.b16 %v3339
        %v3401 = vunpack.c.l.b16 %v3340
        %v3402 = vunpack.c.h.b16 %v3340
        %v3403 = vunpack.c.l.b16 %v3341
        %v3404 = vunpack.c.h.b16 %v3341
        %v3405 = vunpack.c.l.b16 %v3342
        %v3406 = vunpack.c.h.b16 %v3342
        %v3407 = vunpack.c.l.b16 %v3343
        %v3408 = vunpack.c.h.b16 %v3343
        %v3409 = vunpack.c.l.b16 %v3344
        %v3410 = vunpack.c.h.b16 %v3344
        %v3411 = vunpack.c.l.b16 %v3345
        %v3412 = vunpack.c.h.b16 %v3345
        %v3413 = vunpack.c.l.b16 %v3346
        %v3414 = vunpack.c.h.b16 %v3346
        %v3415 = vunpack.c.l.b16 %v3347
        %v3416 = vunpack.c.h.b16 %v3347
        %v3417 = vunpack.c.l.b16 %v3348
        %v3418 = vunpack.c.h.b16 %v3348
        %v3419 = vunpack.c.l.b16 %v3349
        %v3420 = vunpack.c.h.b16 %v3349
        %v3421 = vunpack.c.l.b16 %v3350
        %v3422 = vunpack.c.h.b16 %v3350
        %v3423 = vunpack.c.l.b16 %v3351
        %v3424 = vunpack.c.h.b16 %v3351
        %v3425 = vunpack.c.l.b16 %v3352
        %v3426 = vunpack.c.h.b16 %v3352
        %v3427 = vunpack.c.l.b16 %v3353
        %v3428 = vunpack.c.h.b16 %v3353
        %v3429 = vunpack.c.l.b16 %v3354
        %v3430 = vunpack.c.h.b16 %v3354
        %v3431 = vunpack.c.l.b16 %v3355
        %v3432 = vunpack.c.h.b16 %v3355
        %v3433 = vunpack.c.l.b16 %v3356
        %v3434 = vunpack.c.h.b16 %v3356
        %v3435 = vunpack.c.l.b16 %v3357
        %v3436 = vunpack.c.h.b16 %v3357
        %v3437 = vunpack.c.l.b16 %v3358
        %v3438 = vunpack.c.h.b16 %v3358
        %v3439 = vunpack.c.l.b16 %v3359
        %v3440 = vunpack.c.h.b16 %v3359
        %v3441 = vunpack.c.l.b16 %v3360
        %v3442 = vunpack.c.h.b16 %v3360
        %v3443 = vpack.c.b16 %v3395, %v3393
        %v3444 = vpack.c.b16 %v3396, %v3394
        %v3445 = vpack.c.b16 %v3399, %v3397
        %v3446 = vpack.c.b16 %v3400, %v3398
        %v3447 = vpack.c.b16 %v3403, %v3401
        %v3448 = vpack.c.b16 %v3404, %v3402
        %v3449 = vpack.c.b16 %v3407, %v3405
        %v3450 = vpack.c.b16 %v3408, %v3406
        %v3451 = vpack.c.b16 %v3411, %v3409
        %v3452 = vpack.c.b16 %v3412, %v3410
        %v3453 = vpack.c.b16 %v3415, %v3413
        %v3454 = vpack.c.b16 %v3416, %v3414
        %v3455 = vpack.c.b16 %v3419, %v3417
        %v3456 = vpack.c.b16 %v3420, %v3418
        %v3457 = vpack.c.b16 %v3423, %v3421
        %v3458 = vpack.c.b16 %v3424, %v3422
        %v3459 = vpack.c.b16 %v3427, %v3425
        %v3460 = vpack.c.b16 %v3428, %v3426
        %v3461 = vpack.c.b16 %v3431, %v3429
        %v3462 = vpack.c.b16 %v3432, %v3430
        %v3463 = vpack.c.b16 %v3435, %v3433
        %v3464 = vpack.c.b16 %v3436, %v3434
        %v3465 = vpack.c.b16 %v3439, %v3437
        %v3466 = vpack.c.b16 %v3440, %v3438
        %v3467 = vpack.c.b16 %v3441, %v3441
        %v3468 = vpack.c.b16 %v3442, %v3442
        %v3494 = vsel %vm1144, %v3334, 0
        %v3497 = vsel %vm1148, %v3467, 0
        %v3500 = vsel %vm1148, %v3468, 0
        %3502 = vmatpush.bf16.msra.mxu0 %v3457
        %3503 = vmatpush.bf16.msra.mxu0 %v3455
        %3504 = vmatpush.bf16.msra.mxu0 %v3453
        %3505 = vmatpush.bf16.msra.mxu0 %v3451
        %3506 = vmatpush.bf16.msra.mxu0 %v3449
        %3507 = vmatpush.bf16.msra.mxu0 %v3447
        %3508 = vmatpush.bf16.msra.mxu0 %v3445
        %3509 = vmatpush.bf16.msra.mxu0 %v3443
        %3510 = vmatmul.bf16.gmra.mxu0 %v3333
        %v3511 = vpop.f32.mrf.mxu0
        %v3512 = vadd.f32 %v3364, %v3511
        %v3513 = vpop.f32.mrf.mxu0
        %v3514 = vadd.f32 %v3364, %v3513
        %3515 = vdwg.mxu0
        %3516 = vmatpush.bf16.msra.mxu0 0
        %3517 = vmatpush.bf16.msra.mxu0 0
        %3518 = vmatpush.bf16.msra.mxu0 0
        %3519 = vmatpush.bf16.msra.mxu0 %v3497
        %3520 = vmatpush.bf16.msra.mxu0 %v3465
        %3521 = vmatpush.bf16.msra.mxu0 %v3463
        %3522 = vmatpush.bf16.msra.mxu0 %v3461
        %3523 = vmatpush.bf16.msra.mxu0 %v3459
        %3524 = vmatmul.bf16.gmra.mxu0 %v3494
        %v3525 = vpop.f32.mrf.mxu0
        %v3526 = vadd.f32 %v3512, %v3525
        %v3527 = vpop.f32.mrf.mxu0
        %v3528 = vadd.f32 %v3514, %v3527
        %3529 = vdwg.mxu0
        %3530 = vmatpush.bf16.msra.mxu0 %v3458
        %3531 = vmatpush.bf16.msra.mxu0 %v3456
        %3532 = vmatpush.bf16.msra.mxu0 %v3454
        %3533 = vmatpush.bf16.msra.mxu0 %v3452
        %3534 = vmatpush.bf16.msra.mxu0 %v3450
        %3535 = vmatpush.bf16.msra.mxu0 %v3448
        %3536 = vmatpush.bf16.msra.mxu0 %v3446
        %3537 = vmatpush.bf16.msra.mxu0 %v3444
        %3538 = vmatmul.bf16.gmra.mxu0 %v3333
        %v3539 = vpop.f32.mrf.mxu0
        %v3540 = vadd.f32 %v3365, %v3539
        %v3541 = vpop.f32.mrf.mxu0
        %v3542 = vadd.f32 %v3365, %v3541
        %3543 = vdwg.mxu0
        %3544 = vmatpush.bf16.msra.mxu0 0
        %3545 = vmatpush.bf16.msra.mxu0 0
        %3546 = vmatpush.bf16.msra.mxu0 0
        %3547 = vmatpush.bf16.msra.mxu0 %v3500
        %3548 = vmatpush.bf16.msra.mxu0 %v3466
        %3549 = vmatpush.bf16.msra.mxu0 %v3464
        %3550 = vmatpush.bf16.msra.mxu0 %v3462
        %3551 = vmatpush.bf16.msra.mxu0 %v3460
        %3552 = vmatmul.bf16.gmra.mxu0 %v3494
        %v3553 = vpop.f32.mrf.mxu0
        %v3554 = vadd.f32 %v3540, %v3553
        %v3555 = vpop.f32.mrf.mxu0
        %v3556 = vadd.f32 %v3542, %v3555
        %3557 = vdwg.mxu0
        %v3558 = vmax.f32 %v3526, 0.0
        %v3559 = vmax.f32 %v3554, 0.0
        %v3560 = vmax.f32 %v3528, 0.0
        %v3561 = vmax.f32 %v3556, 0.0
        %v3562 = vpack.c.bf16 %v3560, %v3558
        %v3563 = vpack.c.bf16 %v3561, %v3559
        %v3564 = vld [vmem:[%s19] sm:$0xf]
        %v3565 = vld [vmem:[%s19 + $0x4] sm:$0xf]
        %v3566 = vld [vmem:[%s19 + $0x8] sm:$0xf]
        %v3567 = vld [vmem:[%s19 + $0xc] sm:$0xf]
        %v3568 = vld [vmem:[%s19 + $0x10] sm:$0xf]
        %v3569 = vld [vmem:[%s19 + $0x14] sm:$0xf]
        %v3570 = vld [vmem:[%s19 + $0x18] sm:$0xf]
        %v3571 = vld [vmem:[%s19 + $0x1c] sm:$0xf]
        %v3572 = vld [vmem:[%s19 + $0x20] sm:$0xf]
        %v3573 = vld [vmem:[%s19 + $0x24] sm:$0xf]
        %v3574 = vld [vmem:[%s19 + $0x28] sm:$0xf]
        %v3575 = vld [vmem:[%s19 + $0x2c] sm:$0xf]
        %v3576 = vld [vmem:[%s19 + $0x30] sm:$0xf]
        %v3577 = vld [vmem:[%s19 + $0x34] sm:$0xf]
        %v3578 = vld [vmem:[%s19 + $0x38] sm:$0xf]
        %v3579 = vld [vmem:[%s19 + $0x3c] sm:$0xf]
        %v3580 = vld [vmem:[%s19 + $0x40] sm:$0xf]
        %v3581 = vld [vmem:[%s19 + $0x44] sm:$0xf]
        %v3582 = vld [vmem:[%s19 + $0x48] sm:$0xf]
        %v3583 = vld [vmem:[%s19 + $0x4c] sm:$0xf]
        %v3584 = vld [vmem:[%s19 + $0x50] sm:$0xf]
        %v3585 = vld [vmem:[%s19 + $0x54] sm:$0xf]
        %v3586 = vld [vmem:[%s19 + $0x58] sm:$0xf]
        %v3587 = vld [vmem:[%s19 + $0x5c] sm:$0xf]
        %v3588 = vld [vmem:[%s19 + $0x60] sm:$0xf]
        %v3589 = vld [vmem:[%s20] sm:$0x1]
        %v3591 = vperm.slane %v3589, 0
        %v3618 = vunpack.c.l.b16 %v3564
        %v3619 = vunpack.c.l.b16 %v3565
        %v3620 = vunpack.c.l.b16 %v3566
        %v3621 = vunpack.c.l.b16 %v3567
        %v3622 = vunpack.c.l.b16 %v3568
        %v3623 = vunpack.c.l.b16 %v3569
        %v3624 = vunpack.c.l.b16 %v3570
        %v3625 = vunpack.c.l.b16 %v3571
        %v3626 = vunpack.c.l.b16 %v3572
        %v3627 = vunpack.c.l.b16 %v3573
        %v3628 = vunpack.c.l.b16 %v3574
        %v3629 = vunpack.c.l.b16 %v3575
        %v3630 = vunpack.c.l.b16 %v3576
        %v3631 = vunpack.c.l.b16 %v3577
        %v3632 = vunpack.c.l.b16 %v3578
        %v3633 = vunpack.c.l.b16 %v3579
        %v3634 = vunpack.c.l.b16 %v3580
        %v3635 = vunpack.c.l.b16 %v3581
        %v3636 = vunpack.c.l.b16 %v3582
        %v3637 = vunpack.c.l.b16 %v3583
        %v3638 = vunpack.c.l.b16 %v3584
        %v3639 = vunpack.c.l.b16 %v3585
        %v3640 = vunpack.c.l.b16 %v3586
        %v3641 = vunpack.c.l.b16 %v3587
        %v3642 = vunpack.c.l.b16 %v3588
        %v3643 = vpack.c.b16 %v3619, %v3618
        %v3644 = vpack.c.b16 %v3621, %v3620
        %v3645 = vpack.c.b16 %v3623, %v3622
        %v3646 = vpack.c.b16 %v3625, %v3624
        %v3647 = vpack.c.b16 %v3627, %v3626
        %v3648 = vpack.c.b16 %v3629, %v3628
        %v3649 = vpack.c.b16 %v3631, %v3630
        %v3650 = vpack.c.b16 %v3633, %v3632
        %v3651 = vpack.c.b16 %v3635, %v3634
        %v3652 = vpack.c.b16 %v3637, %v3636
        %v3653 = vpack.c.b16 %v3639, %v3638
        %v3654 = vpack.c.b16 %v3641, %v3640
        %v3655 = vpack.c.b16 %v3642, %v3642
        %v3669 = vsel %vm1144, %v3563, 0
        %v3672 = vsel %vm1148, %v3655, 0
        %3674 = vmatpush.bf16.msra.mxu0 %v3650
        %3675 = vmatpush.bf16.msra.mxu0 %v3649
        %3676 = vmatpush.bf16.msra.mxu0 %v3648
        %3677 = vmatpush.bf16.msra.mxu0 %v3647
        %3678 = vmatpush.bf16.msra.mxu0 %v3646
        %3679 = vmatpush.bf16.msra.mxu0 %v3645
        %3680 = vmatpush.bf16.msra.mxu0 %v3644
        %3681 = vmatpush.bf16.msra.mxu0 %v3643
        %3682 = vmatmul.bf16.gmra.mxu0 %v3562
        %v3683 = vpop.f32.mrf.mxu0
        %v3684 = vadd.f32 %v3591, %v3683
        %v3685 = vpop.f32.mrf.mxu0
        %v3686 = vadd.f32 %v3591, %v3685
        %3687 = vdwg.mxu0
        %3688 = vmatpush.bf16.msra.mxu0 0
        %3689 = vmatpush.bf16.msra.mxu0 0
        %3690 = vmatpush.bf16.msra.mxu0 0
        %3691 = vmatpush.bf16.msra.mxu0 %v3672
        %3692 = vmatpush.bf16.msra.mxu0 %v3654
        %3693 = vmatpush.bf16.msra.mxu0 %v3653
        %3694 = vmatpush.bf16.msra.mxu0 %v3652
        %3695 = vmatpush.bf16.msra.mxu0 %v3651
        %3696 = vmatmul.bf16.gmra.mxu0 %v3669
        %v3697 = vpop.f32.mrf.mxu0
        %v3698 = vadd.f32 %v3684, %v3697
        %v3699 = vpop.f32.mrf.mxu0
        %v3700 = vadd.f32 %v3686, %v3699
        %3701 = vdwg.mxu0
        %v3702 = vmax.f32 %v3698, -30.0
        %v3703 = vmax.f32 %v3700, -30.0
        %v3704 = vmin.f32 %v3702, 30.0
        %v3705 = vmin.f32 %v3703, 30.0
        %v3706 = vmul.f32 %v3704, 0.5
        %v3707 = vmul.f32 %v3705, 0.5
        %v3708 = vmul.f32 %v3706, 1.442695
        %v3709 = vpow.pop %v3708
        %v3710 = vmul.f32 %v3707, 1.442695
        %v3711 = vpow.pop %v3710
        %v3712 = vld [vmem:[%s11] sm:$0xff]
        %s3713 = scalar_lea.vmem %s14, 22
        %v3714 = vld [vmem:[%s3713] ss:$8 sm:$0x3]
        %v3716 = vperm.slane %v3714, 0
        %v3717 = vperm.slane %v3714, 1
        %v3721 = vunpack.c.l.b16 %v3712
        %v3722 = vunpack.c.h.b16 %v3712
        %v3723 = vpack.c.b16 %v3721, %v3721
        %v3724 = vpack.c.b16 %v3722, %v3722
        %v3726 = vsel %vm1148, %v3723, 0
        %v3729 = vsel %vm1148, %v3724, 0
        %3731 = vmatpush.bf16.msra.mxu0 0
        %3732 = vmatpush.bf16.msra.mxu0 0
        %3733 = vmatpush.bf16.msra.mxu0 0
        %3734 = vmatpush.bf16.msra.mxu0 0
        %3735 = vmatpush.bf16.msra.mxu0 0
        %3736 = vmatpush.bf16.msra.mxu0 0
        %3737 = vmatpush.bf16.msra.mxu0 0
        %3738 = vmatpush.bf16.msra.mxu0 %v3726
        %3739 = vmatmul.bf16.gmra.mxu0 %v2703
        %v3740 = vpop.f32.mrf.mxu0
        %v3741 = vadd.f32 %v3716, %v3740
        %v3742 = vpop.f32.mrf.mxu0
        %v3743 = vadd.f32 %v3716, %v3742
        %3744 = vdwg.mxu0
        %3745 = vmatpush.bf16.msra.mxu0 0
        %3746 = vmatpush.bf16.msra.mxu0 0
        %3747 = vmatpush.bf16.msra.mxu0 0
        %3748 = vmatpush.bf16.msra.mxu0 0
        %3749 = vmatpush.bf16.msra.mxu0 0
        %3750 = vmatpush.bf16.msra.mxu0 0
        %3751 = vmatpush.bf16.msra.mxu0 0
        %3752 = vmatpush.bf16.msra.mxu0 %v3729
        %3753 = vmatmul.bf16.gmra.mxu0 %v2703
        %v3754 = vpop.f32.mrf.mxu0
        %v3755 = vadd.f32 %v3717, %v3754
        %v3756 = vpop.f32.mrf.mxu0
        %v3757 = vadd.f32 %v3717, %v3756
        %3758 = vdwg.mxu0
        %v3759 = vmax.f32 %v3741, 0.0
        %v3760 = vmax.f32 %v3755, 0.0
        %v3761 = vmax.f32 %v3743, 0.0
        %v3762 = vmax.f32 %v3757, 0.0
        %v3763 = vpack.c.bf16 %v3761, %v3759
        %v3764 = vpack.c.bf16 %v3762, %v3760
        %s3765 = scalar_lea.vmem [#allocation4], 1400
        %v3766 = vld [vmem:[%s3765] sm:$0xff]
        %v3767 = vld [vmem:[%s3765 + $0x8] sm:$0xff]
        %v3768 = vld [vmem:[%s3765 + $0x10] sm:$0xff]
        %v3769 = vld [vmem:[%s3765 + $0x18] sm:$0xff]
        %v3770 = vld [vmem:[%s3765 + $0x20] sm:$0xff]
        %v3771 = vld [vmem:[%s3765 + $0x28] sm:$0xff]
        %v3772 = vld [vmem:[%s3765 + $0x30] sm:$0xff]
        %v3773 = vld [vmem:[%s3765 + $0x38] sm:$0xff]
        %v3774 = vld [vmem:[%s3765 + $0x40] sm:$0xff]
        %v3775 = vld [vmem:[%s3765 + $0x48] sm:$0xff]
        %v3776 = vld [vmem:[%s3765 + $0x50] sm:$0xff]
        %v3777 = vld [vmem:[%s3765 + $0x58] sm:$0xff]
        %v3778 = vld [vmem:[%s3765 + $0x60] sm:$0xff]
        %v3779 = vld [vmem:[%s3765 + $0x68] sm:$0xff]
        %v3780 = vld [vmem:[%s3765 + $0x70] sm:$0xff]
        %v3781 = vld [vmem:[%s3765 + $0x78] sm:$0xff]
        %v3782 = vld [vmem:[%s3765 + $0x80] sm:$0xff]
        %v3783 = vld [vmem:[%s3765 + $0x88] sm:$0xff]
        %v3784 = vld [vmem:[%s3765 + $0x90] sm:$0xff]
        %v3785 = vld [vmem:[%s3765 + $0x98] sm:$0xff]
        %v3786 = vld [vmem:[%s3765 + $0xa0] sm:$0xff]
        %v3787 = vld [vmem:[%s3765 + $0xa8] sm:$0xff]
        %v3788 = vld [vmem:[%s3765 + $0xb0] sm:$0xff]
        %v3789 = vld [vmem:[%s3765 + $0xb8] sm:$0xff]
        %v3790 = vld [vmem:[%s3765 + $0xc0] sm:$0xff]
        %s3791 = scalar_lea.vmem %s14, 23
        %v3792 = vld [vmem:[%s3791] ss:$8 sm:$0x3]
        %v3794 = vperm.slane %v3792, 0
        %v3795 = vperm.slane %v3792, 1
        %v3823 = vunpack.c.l.b16 %v3766
        %v3824 = vunpack.c.h.b16 %v3766
        %v3825 = vunpack.c.l.b16 %v3767
        %v3826 = vunpack.c.h.b16 %v3767
        %v3827 = vunpack.c.l.b16 %v3768
        %v3828 = vunpack.c.h.b16 %v3768
        %v3829 = vunpack.c.l.b16 %v3769
        %v3830 = vunpack.c.h.b16 %v3769
        %v3831 = vunpack.c.l.b16 %v3770
        %v3832 = vunpack.c.h.b16 %v3770
        %v3833 = vunpack.c.l.b16 %v3771
        %v3834 = vunpack.c.h.b16 %v3771
        %v3835 = vunpack.c.l.b16 %v3772
        %v3836 = vunpack.c.h.b16 %v3772
        %v3837 = vunpack.c.l.b16 %v3773
        %v3838 = vunpack.c.h.b16 %v3773
        %v3839 = vunpack.c.l.b16 %v3774
        %v3840 = vunpack.c.h.b16 %v3774
        %v3841 = vunpack.c.l.b16 %v3775
        %v3842 = vunpack.c.h.b16 %v3775
        %v3843 = vunpack.c.l.b16 %v3776
        %v3844 = vunpack.c.h.b16 %v3776
        %v3845 = vunpack.c.l.b16 %v3777
        %v3846 = vunpack.c.h.b16 %v3777
        %v3847 = vunpack.c.l.b16 %v3778
        %v3848 = vunpack.c.h.b16 %v3778
        %v3849 = vunpack.c.l.b16 %v3779
        %v3850 = vunpack.c.h.b16 %v3779
        %v3851 = vunpack.c.l.b16 %v3780
        %v3852 = vunpack.c.h.b16 %v3780
        %v3853 = vunpack.c.l.b16 %v3781
        %v3854 = vunpack.c.h.b16 %v3781
        %v3855 = vunpack.c.l.b16 %v3782
        %v3856 = vunpack.c.h.b16 %v3782
        %v3857 = vunpack.c.l.b16 %v3783
        %v3858 = vunpack.c.h.b16 %v3783
        %v3859 = vunpack.c.l.b16 %v3784
        %v3860 = vunpack.c.h.b16 %v3784
        %v3861 = vunpack.c.l.b16 %v3785
        %v3862 = vunpack.c.h.b16 %v3785
        %v3863 = vunpack.c.l.b16 %v3786
        %v3864 = vunpack.c.h.b16 %v3786
        %v3865 = vunpack.c.l.b16 %v3787
        %v3866 = vunpack.c.h.b16 %v3787
        %v3867 = vunpack.c.l.b16 %v3788
        %v3868 = vunpack.c.h.b16 %v3788
        %v3869 = vunpack.c.l.b16 %v3789
        %v3870 = vunpack.c.h.b16 %v3789
        %v3871 = vunpack.c.l.b16 %v3790
        %v3872 = vunpack.c.h.b16 %v3790
        %v3873 = vpack.c.b16 %v3825, %v3823
        %v3874 = vpack.c.b16 %v3826, %v3824
        %v3875 = vpack.c.b16 %v3829, %v3827
        %v3876 = vpack.c.b16 %v3830, %v3828
        %v3877 = vpack.c.b16 %v3833, %v3831
        %v3878 = vpack.c.b16 %v3834, %v3832
        %v3879 = vpack.c.b16 %v3837, %v3835
        %v3880 = vpack.c.b16 %v3838, %v3836
        %v3881 = vpack.c.b16 %v3841, %v3839
        %v3882 = vpack.c.b16 %v3842, %v3840
        %v3883 = vpack.c.b16 %v3845, %v3843
        %v3884 = vpack.c.b16 %v3846, %v3844
        %v3885 = vpack.c.b16 %v3849, %v3847
        %v3886 = vpack.c.b16 %v3850, %v3848
        %v3887 = vpack.c.b16 %v3853, %v3851
        %v3888 = vpack.c.b16 %v3854, %v3852
        %v3889 = vpack.c.b16 %v3857, %v3855
        %v3890 = vpack.c.b16 %v3858, %v3856
        %v3891 = vpack.c.b16 %v3861, %v3859
        %v3892 = vpack.c.b16 %v3862, %v3860
        %v3893 = vpack.c.b16 %v3865, %v3863
        %v3894 = vpack.c.b16 %v3866, %v3864
        %v3895 = vpack.c.b16 %v3869, %v3867
        %v3896 = vpack.c.b16 %v3870, %v3868
        %v3897 = vpack.c.b16 %v3871, %v3871
        %v3898 = vpack.c.b16 %v3872, %v3872
        %v3924 = vsel %vm1144, %v3764, 0
        %v3927 = vsel %vm1148, %v3897, 0
        %v3930 = vsel %vm1148, %v3898, 0
        %3932 = vmatpush.bf16.msra.mxu0 %v3887
        %3933 = vmatpush.bf16.msra.mxu0 %v3885
        %3934 = vmatpush.bf16.msra.mxu0 %v3883
        %3935 = vmatpush.bf16.msra.mxu0 %v3881
        %3936 = vmatpush.bf16.msra.mxu0 %v3879
        %3937 = vmatpush.bf16.msra.mxu0 %v3877
        %3938 = vmatpush.bf16.msra.mxu0 %v3875
        %3939 = vmatpush.bf16.msra.mxu0 %v3873
        %3940 = vmatmul.bf16.gmra.mxu0 %v3763
        %v3941 = vpop.f32.mrf.mxu0
        %v3942 = vadd.f32 %v3794, %v3941
        %v3943 = vpop.f32.mrf.mxu0
        %v3944 = vadd.f32 %v3794, %v3943
        %3945 = vdwg.mxu0
        %3946 = vmatpush.bf16.msra.mxu0 0
        %3947 = vmatpush.bf16.msra.mxu0 0
        %3948 = vmatpush.bf16.msra.mxu0 0
        %3949 = vmatpush.bf16.msra.mxu0 %v3927
        %3950 = vmatpush.bf16.msra.mxu0 %v3895
        %3951 = vmatpush.bf16.msra.mxu0 %v3893
        %3952 = vmatpush.bf16.msra.mxu0 %v3891
        %3953 = vmatpush.bf16.msra.mxu0 %v3889
        %3954 = vmatmul.bf16.gmra.mxu0 %v3924
        %v3955 = vpop.f32.mrf.mxu0
        %v3956 = vadd.f32 %v3942, %v3955
        %v3957 = vpop.f32.mrf.mxu0
        %v3958 = vadd.f32 %v3944, %v3957
        %3959 = vdwg.mxu0
        %3960 = vmatpush.bf16.msra.mxu0 %v3888
        %3961 = vmatpush.bf16.msra.mxu0 %v3886
        %3962 = vmatpush.bf16.msra.mxu0 %v3884
        %3963 = vmatpush.bf16.msra.mxu0 %v3882
        %3964 = vmatpush.bf16.msra.mxu0 %v3880
        %3965 = vmatpush.bf16.msra.mxu0 %v3878
        %3966 = vmatpush.bf16.msra.mxu0 %v3876
        %3967 = vmatpush.bf16.msra.mxu0 %v3874
        %3968 = vmatmul.bf16.gmra.mxu0 %v3763
        %v3969 = vpop.f32.mrf.mxu0
        %v3970 = vadd.f32 %v3795, %v3969
        %v3971 = vpop.f32.mrf.mxu0
        %v3972 = vadd.f32 %v3795, %v3971
        %3973 = vdwg.mxu0
        %3974 = vmatpush.bf16.msra.mxu0 0
        %3975 = vmatpush.bf16.msra.mxu0 0
        %3976 = vmatpush.bf16.msra.mxu0 0
        %3977 = vmatpush.bf16.msra.mxu0 %v3930
        %3978 = vmatpush.bf16.msra.mxu0 %v3896
        %3979 = vmatpush.bf16.msra.mxu0 %v3894
        %3980 = vmatpush.bf16.msra.mxu0 %v3892
        %3981 = vmatpush.bf16.msra.mxu0 %v3890
        %3982 = vmatmul.bf16.gmra.mxu0 %v3924
        %v3983 = vpop.f32.mrf.mxu0
        %v3984 = vadd.f32 %v3970, %v3983
        %v3985 = vpop.f32.mrf.mxu0
        %v3986 = vadd.f32 %v3972, %v3985
        %3987 = vdwg.mxu0
        %v3988 = vmax.f32 %v3956, 0.0
        %v3989 = vmax.f32 %v3984, 0.0
        %v3990 = vmax.f32 %v3958, 0.0
        %v3991 = vmax.f32 %v3986, 0.0
        %v3992 = vpack.c.bf16 %v3990, %v3988
        %v3993 = vpack.c.bf16 %v3991, %v3989
        %v3994 = vld [vmem:[%s21] sm:$0xf]
        %v3995 = vld [vmem:[%s21 + $0x4] sm:$0xf]
        %v3996 = vld [vmem:[%s21 + $0x8] sm:$0xf]
        %v3997 = vld [vmem:[%s21 + $0xc] sm:$0xf]
        %v3998 = vld [vmem:[%s21 + $0x10] sm:$0xf]
        %v3999 = vld [vmem:[%s21 + $0x14] sm:$0xf]
        %v4000 = vld [vmem:[%s21 + $0x18] sm:$0xf]
        %v4001 = vld [vmem:[%s21 + $0x1c] sm:$0xf]
        %v4002 = vld [vmem:[%s21 + $0x20] sm:$0xf]
        %v4003 = vld [vmem:[%s21 + $0x24] sm:$0xf]
        %v4004 = vld [vmem:[%s21 + $0x28] sm:$0xf]
        %v4005 = vld [vmem:[%s21 + $0x2c] sm:$0xf]
        %v4006 = vld [vmem:[%s21 + $0x30] sm:$0xf]
        %v4007 = vld [vmem:[%s21 + $0x34] sm:$0xf]
        %v4008 = vld [vmem:[%s21 + $0x38] sm:$0xf]
        %v4009 = vld [vmem:[%s21 + $0x3c] sm:$0xf]
        %v4010 = vld [vmem:[%s21 + $0x40] sm:$0xf]
        %v4011 = vld [vmem:[%s21 + $0x44] sm:$0xf]
        %v4012 = vld [vmem:[%s21 + $0x48] sm:$0xf]
        %v4013 = vld [vmem:[%s21 + $0x4c] sm:$0xf]
        %v4014 = vld [vmem:[%s21 + $0x50] sm:$0xf]
        %v4015 = vld [vmem:[%s21 + $0x54] sm:$0xf]
        %v4016 = vld [vmem:[%s21 + $0x58] sm:$0xf]
        %v4017 = vld [vmem:[%s21 + $0x5c] sm:$0xf]
        %v4018 = vld [vmem:[%s21 + $0x60] sm:$0xf]
        %v4019 = vld [vmem:[%s22] sm:$0x1]
        %v4021 = vperm.slane %v4019, 0
        %v4048 = vunpack.c.l.b16 %v3994
        %v4049 = vunpack.c.l.b16 %v3995
        %v4050 = vunpack.c.l.b16 %v3996
        %v4051 = vunpack.c.l.b16 %v3997
        %v4052 = vunpack.c.l.b16 %v3998
        %v4053 = vunpack.c.l.b16 %v3999
        %v4054 = vunpack.c.l.b16 %v4000
        %v4055 = vunpack.c.l.b16 %v4001
        %v4056 = vunpack.c.l.b16 %v4002
        %v4057 = vunpack.c.l.b16 %v4003
        %v4058 = vunpack.c.l.b16 %v4004
        %v4059 = vunpack.c.l.b16 %v4005
        %v4060 = vunpack.c.l.b16 %v4006
        %v4061 = vunpack.c.l.b16 %v4007
        %v4062 = vunpack.c.l.b16 %v4008
        %v4063 = vunpack.c.l.b16 %v4009
        %v4064 = vunpack.c.l.b16 %v4010
        %v4065 = vunpack.c.l.b16 %v4011
        %v4066 = vunpack.c.l.b16 %v4012
        %v4067 = vunpack.c.l.b16 %v4013
        %v4068 = vunpack.c.l.b16 %v4014
        %v4069 = vunpack.c.l.b16 %v4015
        %v4070 = vunpack.c.l.b16 %v4016
        %v4071 = vunpack.c.l.b16 %v4017
        %v4072 = vunpack.c.l.b16 %v4018
        %v4073 = vpack.c.b16 %v4049, %v4048
        %v4074 = vpack.c.b16 %v4051, %v4050
        %v4075 = vpack.c.b16 %v4053, %v4052
        %v4076 = vpack.c.b16 %v4055, %v4054
        %v4077 = vpack.c.b16 %v4057, %v4056
        %v4078 = vpack.c.b16 %v4059, %v4058
        %v4079 = vpack.c.b16 %v4061, %v4060
        %v4080 = vpack.c.b16 %v4063, %v4062
        %v4081 = vpack.c.b16 %v4065, %v4064
        %v4082 = vpack.c.b16 %v4067, %v4066
        %v4083 = vpack.c.b16 %v4069, %v4068
        %v4084 = vpack.c.b16 %v4071, %v4070
        %v4085 = vpack.c.b16 %v4072, %v4072
        %v4099 = vsel %vm1144, %v3993, 0
        %v4102 = vsel %vm1148, %v4085, 0
        %4104 = vmatpush.bf16.msra.mxu0 %v4080
        %4105 = vmatpush.bf16.msra.mxu0 %v4079
        %4106 = vmatpush.bf16.msra.mxu0 %v4078
        %4107 = vmatpush.bf16.msra.mxu0 %v4077
        %4108 = vmatpush.bf16.msra.mxu0 %v4076
        %4109 = vmatpush.bf16.msra.mxu0 %v4075
        %4110 = vmatpush.bf16.msra.mxu0 %v4074
        %4111 = vmatpush.bf16.msra.mxu0 %v4073
        %4112 = vmatmul.bf16.gmra.mxu0 %v3992
        %v4113 = vpop.f32.mrf.mxu0
        %v4114 = vadd.f32 %v4021, %v4113
        %v4115 = vpop.f32.mrf.mxu0
        %v4116 = vadd.f32 %v4021, %v4115
        %4117 = vdwg.mxu0
        %4118 = vmatpush.bf16.msra.mxu0 0
        %4119 = vmatpush.bf16.msra.mxu0 0
        %4120 = vmatpush.bf16.msra.mxu0 0
        %4121 = vmatpush.bf16.msra.mxu0 %v4102
        %4122 = vmatpush.bf16.msra.mxu0 %v4084
        %4123 = vmatpush.bf16.msra.mxu0 %v4083
        %4124 = vmatpush.bf16.msra.mxu0 %v4082
        %4125 = vmatpush.bf16.msra.mxu0 %v4081
        %4126 = vmatmul.bf16.gmra.mxu0 %v4099
        %v4127 = vpop.f32.mrf.mxu0
        %v4128 = vadd.f32 %v4114, %v4127
        %v4129 = vpop.f32.mrf.mxu0
        %v4130 = vadd.f32 %v4116, %v4129
        %4131 = vdwg.mxu0
        %v4132 = vmul.f32 %v930, %v4128
        %v4133 = vmul.f32 %v930, %v4130
        %v4134 = vmax.f32 %v4128, 0.0
        %v4135 = vmax.f32 %v4130, 0.0
        %v4136 = vsub.f32 0.0, %v4128
        %v4137 = vsub.f32 0.0, %v4130
        %vm4138 = vcmp.ne.f32.partialorder %v4136, %v4136
        %vm4139 = vcmp.ne.f32.partialorder %v4137, %v4137
        %v4140 = vadd.f32 %v4128, 0.0
        %v4141 = vadd.f32 %v4130, 0.0
        %v4142 = vand.u32 2147483647, %v4136
        %v4143 = vand.u32 2147483647, %v4137
        %v4144 = vsub.f32 0.0, %v4142
        %v4145 = vsub.f32 0.0, %v4143
        %v4146 = vmul.f32 %v4144, 1.442695
        %v4147 = vpow.pop %v4146
        %v4148 = vmul.f32 %v4145, 1.442695
        %v4149 = vpow.pop %v4148
        %v4150 = vadd.f32 %v4147, 1.0
        %v4151 = vlog2.pop %v4150
        %v4152 = vmul.f32 %v4151, 0.6931472
        %v4153 = vmul.f32 -0.5, %v4147
        %v4154 = vadd.f32 %v4153, 1.0
        %v4155 = vmul.f32 %v4154, %v4147
        %v4156 = vand.u32 2147483647, %v4147
        %vm4157 = vcmp.lt.f32.partialorder %v4156, 0.0004427343
        %v4158 = vsel %vm4157, %v4155, %v4152
        %v4159 = vadd.f32 %v4149, 1.0
        %v4160 = vlog2.pop %v4159
        %v4161 = vmul.f32 %v4160, 0.6931472
        %v4162 = vmul.f32 -0.5, %v4149
        %v4163 = vadd.f32 %v4162, 1.0
        %v4164 = vmul.f32 %v4163, %v4149
        %v4165 = vand.u32 2147483647, %v4149
        %vm4166 = vcmp.lt.f32.partialorder %v4165, 0.0004427343
        %v4167 = vsel %vm4166, %v4164, %v4161
        %v4168 = vadd.f32 %v4134, %v4158
        %v4169 = vadd.f32 %v4135, %v4167
        %v4170 = vsel %vm4138, %v4140, %v4168
        %v4171 = vsel %vm4139, %v4141, %v4169
        %v4172 = vsub.f32 %v4132, %v4170
        %v4173 = vsub.f32 %v4133, %v4171
        %v4174 = vsel %vm952, %v4172, 0.0
        %4175 = vadd.xlane.f32.xlu0 %v4174
        %v4176 = vpop.xlane.xlu0 %4175
        %v4177 = vsel %vm952, %v4173, 0.0
        %4178 = vadd.xlane.f32.xlu0 %v4177
        %v4179 = vpop.xlane.xlu0 %4178
        %v4180 = vadd.f32 %v4176, %v1870
        %v4181 = vadd.f32 %v4179, %v1873
        %s4182 = scalar_lea.vmem %s12, 56
        %v4183 = vld [vmem:[%s4182] sm:$0xff]
        %v4184 = vld [vmem:[%s4182 + $0x8] sm:$0xff]
        %v4185 = vld [vmem:[%s4182 + $0x10] sm:$0xff]
        %v4186 = vld [vmem:[%s4182 + $0x18] sm:$0xff]
        %v4187 = vld [vmem:[%s4182 + $0x20] sm:$0xff]
        %v4188 = vld [vmem:[%s4182 + $0x28] sm:$0xff]
        %v4189 = vld [vmem:[%s4182 + $0x30] sm:$0x11]
        %v4197 = vunpack.c.l.b16 %v4183
        %v4198 = vunpack.c.h.b16 %v4183
        %v4199 = vunpack.c.l.b16 %v4184
        %v4200 = vunpack.c.h.b16 %v4184
        %v4201 = vunpack.c.l.b16 %v4185
        %v4202 = vunpack.c.h.b16 %v4185
        %v4203 = vunpack.c.l.b16 %v4186
        %v4204 = vunpack.c.h.b16 %v4186
        %v4205 = vunpack.c.l.b16 %v4187
        %v4206 = vunpack.c.h.b16 %v4187
        %v4207 = vunpack.c.l.b16 %v4188
        %v4208 = vunpack.c.h.b16 %v4188
        %v4209 = vunpack.c.l.b16 %v4189
        %v4210 = vunpack.c.h.b16 %v4189
        %v4211 = vpack.c.b16 %v4199, %v4197
        %v4212 = vpack.c.b16 %v4200, %v4198
        %v4213 = vpack.c.b16 %v4203, %v4201
        %v4214 = vpack.c.b16 %v4204, %v4202
        %v4215 = vpack.c.b16 %v4207, %v4205
        %v4216 = vpack.c.b16 %v4208, %v4206
        %v4217 = vpack.c.b16 %v4209, %v4209
        %v4218 = vpack.c.b16 %v4210, %v4210
        %v4226 = vsel %vm3279, %v4217, 0
        %v4229 = vsel %vm3279, %v4218, 0
        %4231 = vmatpush.bf16.msra.mxu0 0
        %4232 = vmatpush.bf16.msra.mxu0 0
        %4233 = vmatpush.bf16.msra.mxu0 0
        %4234 = vmatpush.bf16.msra.mxu0 0
        %4235 = vmatpush.bf16.msra.mxu0 %v4226
        %4236 = vmatpush.bf16.msra.mxu0 %v4215
        %4237 = vmatpush.bf16.msra.mxu0 %v4213
        %4238 = vmatpush.bf16.msra.mxu0 %v4211
        %4239 = vmatmul.bf16.gmra.mxu0 %v3277
        %v4240 = vpop.f32.mrf.mxu0
        %v4241 = vadd.f32 0.0, %v4240
        %v4242 = vpop.f32.mrf.mxu0
        %v4243 = vadd.f32 0.0, %v4242
        %4244 = vdwg.mxu0
        %4245 = vmatpush.bf16.msra.mxu0 0
        %4246 = vmatpush.bf16.msra.mxu0 0
        %4247 = vmatpush.bf16.msra.mxu0 0
        %4248 = vmatpush.bf16.msra.mxu0 0
        %4249 = vmatpush.bf16.msra.mxu0 %v4229
        %4250 = vmatpush.bf16.msra.mxu0 %v4216
        %4251 = vmatpush.bf16.msra.mxu0 %v4214
        %4252 = vmatpush.bf16.msra.mxu0 %v4212
        %4253 = vmatmul.bf16.gmra.mxu0 %v3277
        %v4254 = vpop.f32.mrf.mxu0
        %v4255 = vadd.f32 0.0, %v4254
        %v4256 = vpop.f32.mrf.mxu0
        %v4257 = vadd.f32 0.0, %v4256
        %4258 = vdwg.mxu0
        %v4259 = vld [vmem:[%s835] sm:$0xff]
        %v4260 = vld [vmem:[%s835 + $0x8] sm:$0xff]
        %v4261 = vld [vmem:[%s835 + $0x10] sm:$0xff]
        %v4262 = vld [vmem:[%s835 + $0x18] sm:$0xff]
        %v4263 = vld [vmem:[%s835 + $0x20] sm:$0xff]
        %v4264 = vld [vmem:[%s835 + $0x28] sm:$0xff]
        %4267 = vrot.lane.b32.xlu0 %v4259, 8
        %v4268 = vpop.permute.xlu0 %4267
        %4269 = vrot.lane.b32.xlu0 %v4260, 8
        %v4270 = vpop.permute.xlu0 %4269
        %v4273 = vmul.f32 %v3709, %v4268
        %v4274 = vmul.f32 %v3711, %v4270
        %4277 = vrot.lane.b32.xlu0 %v4273, 120
        %v4278 = vpop.permute.xlu0 %4277
        %4279 = vrot.lane.b32.xlu0 %v4274, 120
        %v4280 = vpop.permute.xlu0 %4279
        %v4283 = vadd.f32 %v3698, %v4278
        %v4284 = vadd.f32 %v3700, %v4280
        %v4285 = vpack.c.bf16 %v4284, %v4283
        %v4286 = vld [vmem:[%s7] sm:$0xff]
        %s4287 = scalar_lea.vmem %s14, 6
        %v4288 = vld [vmem:[%s4287] ss:$8 sm:$0x3]
        %v4290 = vperm.slane %v4288, 0
        %v4291 = vperm.slane %v4288, 1
        %v4295 = vunpack.c.l.b16 %v4286
        %v4296 = vunpack.c.h.b16 %v4286
        %v4297 = vpack.c.b16 %v4295, %v4295
        %v4298 = vpack.c.b16 %v4296, %v4296
        %v4300 = vsel %vm1847, %v4285, 0
        %v4303 = vsel %vm1148, %v4297, 0
        %v4306 = vsel %vm1148, %v4298, 0
        %4308 = vmatpush.bf16.msra.mxu0 0
        %4309 = vmatpush.bf16.msra.mxu0 0
        %4310 = vmatpush.bf16.msra.mxu0 0
        %4311 = vmatpush.bf16.msra.mxu0 0
        %4312 = vmatpush.bf16.msra.mxu0 0
        %4313 = vmatpush.bf16.msra.mxu0 0
        %4314 = vmatpush.bf16.msra.mxu0 0
        %4315 = vmatpush.bf16.msra.mxu0 %v4303
        %4316 = vmatmul.bf16.gmra.mxu0 %v4300
        %v4317 = vpop.f32.mrf.mxu0
        %v4318 = vadd.f32 %v4290, %v4317
        %v4319 = vpop.f32.mrf.mxu0
        %v4320 = vadd.f32 %v4290, %v4319
        %4321 = vdwg.mxu0
        %4322 = vmatpush.bf16.msra.mxu0 0
        %4323 = vmatpush.bf16.msra.mxu0 0
        %4324 = vmatpush.bf16.msra.mxu0 0
        %4325 = vmatpush.bf16.msra.mxu0 0
        %4326 = vmatpush.bf16.msra.mxu0 0
        %4327 = vmatpush.bf16.msra.mxu0 0
        %4328 = vmatpush.bf16.msra.mxu0 0
        %4329 = vmatpush.bf16.msra.mxu0 %v4306
        %4330 = vmatmul.bf16.gmra.mxu0 %v4300
        %v4331 = vpop.f32.mrf.mxu0
        %v4332 = vadd.f32 %v4291, %v4331
        %v4333 = vpop.f32.mrf.mxu0
        %v4334 = vadd.f32 %v4291, %v4333
        %4335 = vdwg.mxu0
        %v4336 = vmax.f32 %v4318, 0.0
        %v4337 = vmax.f32 %v4332, 0.0
        %v4338 = vmax.f32 %v4320, 0.0
        %v4339 = vmax.f32 %v4334, 0.0
        %v4340 = vpack.c.bf16 %v4338, %v4336
        %v4341 = vpack.c.bf16 %v4339, %v4337
        %s4342 = scalar_lea.vmem [#allocation4], 600
        %v4343 = vld [vmem:[%s4342] sm:$0xff]
        %v4344 = vld [vmem:[%s4342 + $0x8] sm:$0xff]
        %v4345 = vld [vmem:[%s4342 + $0x10] sm:$0xff]
        %v4346 = vld [vmem:[%s4342 + $0x18] sm:$0xff]
        %v4347 = vld [vmem:[%s4342 + $0x20] sm:$0xff]
        %v4348 = vld [vmem:[%s4342 + $0x28] sm:$0xff]
        %v4349 = vld [vmem:[%s4342 + $0x30] sm:$0xff]
        %v4350 = vld [vmem:[%s4342 + $0x38] sm:$0xff]
        %v4351 = vld [vmem:[%s4342 + $0x40] sm:$0xff]
        %v4352 = vld [vmem:[%s4342 + $0x48] sm:$0xff]
        %v4353 = vld [vmem:[%s4342 + $0x50] sm:$0xff]
        %v4354 = vld [vmem:[%s4342 + $0x58] sm:$0xff]
        %v4355 = vld [vmem:[%s4342 + $0x60] sm:$0xff]
        %v4356 = vld [vmem:[%s4342 + $0x68] sm:$0xff]
        %v4357 = vld [vmem:[%s4342 + $0x70] sm:$0xff]
        %v4358 = vld [vmem:[%s4342 + $0x78] sm:$0xff]
        %v4359 = vld [vmem:[%s4342 + $0x80] sm:$0xff]
        %v4360 = vld [vmem:[%s4342 + $0x88] sm:$0xff]
        %v4361 = vld [vmem:[%s4342 + $0x90] sm:$0xff]
        %v4362 = vld [vmem:[%s4342 + $0x98] sm:$0xff]
        %v4363 = vld [vmem:[%s4342 + $0xa0] sm:$0xff]
        %v4364 = vld [vmem:[%s4342 + $0xa8] sm:$0xff]
        %v4365 = vld [vmem:[%s4342 + $0xb0] sm:$0xff]
        %v4366 = vld [vmem:[%s4342 + $0xb8] sm:$0xff]
        %v4367 = vld [vmem:[%s4342 + $0xc0] sm:$0xff]
        %s4368 = scalar_lea.vmem %s14, 7
        %v4369 = vld [vmem:[%s4368] ss:$8 sm:$0x3]
        %v4371 = vperm.slane %v4369, 0
        %v4372 = vperm.slane %v4369, 1
        %v4400 = vunpack.c.l.b16 %v4343
        %v4401 = vunpack.c.h.b16 %v4343
        %v4402 = vunpack.c.l.b16 %v4344
        %v4403 = vunpack.c.h.b16 %v4344
        %v4404 = vunpack.c.l.b16 %v4345
        %v4405 = vunpack.c.h.b16 %v4345
        %v4406 = vunpack.c.l.b16 %v4346
        %v4407 = vunpack.c.h.b16 %v4346
        %v4408 = vunpack.c.l.b16 %v4347
        %v4409 = vunpack.c.h.b16 %v4347
        %v4410 = vunpack.c.l.b16 %v4348
        %v4411 = vunpack.c.h.b16 %v4348
        %v4412 = vunpack.c.l.b16 %v4349
        %v4413 = vunpack.c.h.b16 %v4349
        %v4414 = vunpack.c.l.b16 %v4350
        %v4415 = vunpack.c.h.b16 %v4350
        %v4416 = vunpack.c.l.b16 %v4351
        %v4417 = vunpack.c.h.b16 %v4351
        %v4418 = vunpack.c.l.b16 %v4352
        %v4419 = vunpack.c.h.b16 %v4352
        %v4420 = vunpack.c.l.b16 %v4353
        %v4421 = vunpack.c.h.b16 %v4353
        %v4422 = vunpack.c.l.b16 %v4354
        %v4423 = vunpack.c.h.b16 %v4354
        %v4424 = vunpack.c.l.b16 %v4355
        %v4425 = vunpack.c.h.b16 %v4355
        %v4426 = vunpack.c.l.b16 %v4356
        %v4427 = vunpack.c.h.b16 %v4356
        %v4428 = vunpack.c.l.b16 %v4357
        %v4429 = vunpack.c.h.b16 %v4357
        %v4430 = vunpack.c.l.b16 %v4358
        %v4431 = vunpack.c.h.b16 %v4358
        %v4432 = vunpack.c.l.b16 %v4359
        %v4433 = vunpack.c.h.b16 %v4359
        %v4434 = vunpack.c.l.b16 %v4360
        %v4435 = vunpack.c.h.b16 %v4360
        %v4436 = vunpack.c.l.b16 %v4361
        %v4437 = vunpack.c.h.b16 %v4361
        %v4438 = vunpack.c.l.b16 %v4362
        %v4439 = vunpack.c.h.b16 %v4362
        %v4440 = vunpack.c.l.b16 %v4363
        %v4441 = vunpack.c.h.b16 %v4363
        %v4442 = vunpack.c.l.b16 %v4364
        %v4443 = vunpack.c.h.b16 %v4364
        %v4444 = vunpack.c.l.b16 %v4365
        %v4445 = vunpack.c.h.b16 %v4365
        %v4446 = vunpack.c.l.b16 %v4366
        %v4447 = vunpack.c.h.b16 %v4366
        %v4448 = vunpack.c.l.b16 %v4367
        %v4449 = vunpack.c.h.b16 %v4367
        %v4450 = vpack.c.b16 %v4402, %v4400
        %v4451 = vpack.c.b16 %v4403, %v4401
        %v4452 = vpack.c.b16 %v4406, %v4404
        %v4453 = vpack.c.b16 %v4407, %v4405
        %v4454 = vpack.c.b16 %v4410, %v4408
        %v4455 = vpack.c.b16 %v4411, %v4409
        %v4456 = vpack.c.b16 %v4414, %v4412
        %v4457 = vpack.c.b16 %v4415, %v4413
        %v4458 = vpack.c.b16 %v4418, %v4416
        %v4459 = vpack.c.b16 %v4419, %v4417
        %v4460 = vpack.c.b16 %v4422, %v4420
        %v4461 = vpack.c.b16 %v4423, %v4421
        %v4462 = vpack.c.b16 %v4426, %v4424
        %v4463 = vpack.c.b16 %v4427, %v4425
        %v4464 = vpack.c.b16 %v4430, %v4428
        %v4465 = vpack.c.b16 %v4431, %v4429
        %v4466 = vpack.c.b16 %v4434, %v4432
        %v4467 = vpack.c.b16 %v4435, %v4433
        %v4468 = vpack.c.b16 %v4438, %v4436
        %v4469 = vpack.c.b16 %v4439, %v4437
        %v4470 = vpack.c.b16 %v4442, %v4440
        %v4471 = vpack.c.b16 %v4443, %v4441
        %v4472 = vpack.c.b16 %v4446, %v4444
        %v4473 = vpack.c.b16 %v4447, %v4445
        %v4474 = vpack.c.b16 %v4448, %v4448
        %v4475 = vpack.c.b16 %v4449, %v4449
        %v4501 = vsel %vm1144, %v4341, 0
        %v4504 = vsel %vm1148, %v4474, 0
        %v4507 = vsel %vm1148, %v4475, 0
        %4509 = vmatpush.bf16.msra.mxu0 %v4464
        %4510 = vmatpush.bf16.msra.mxu0 %v4462
        %4511 = vmatpush.bf16.msra.mxu0 %v4460
        %4512 = vmatpush.bf16.msra.mxu0 %v4458
        %4513 = vmatpush.bf16.msra.mxu0 %v4456
        %4514 = vmatpush.bf16.msra.mxu0 %v4454
        %4515 = vmatpush.bf16.msra.mxu0 %v4452
        %4516 = vmatpush.bf16.msra.mxu0 %v4450
        %4517 = vmatmul.bf16.gmra.mxu0 %v4340
        %v4518 = vpop.f32.mrf.mxu0
        %v4519 = vadd.f32 %v4371, %v4518
        %v4520 = vpop.f32.mrf.mxu0
        %v4521 = vadd.f32 %v4371, %v4520
        %4522 = vdwg.mxu0
        %4523 = vmatpush.bf16.msra.mxu0 0
        %4524 = vmatpush.bf16.msra.mxu0 0
        %4525 = vmatpush.bf16.msra.mxu0 0
        %4526 = vmatpush.bf16.msra.mxu0 %v4504
        %4527 = vmatpush.bf16.msra.mxu0 %v4472
        %4528 = vmatpush.bf16.msra.mxu0 %v4470
        %4529 = vmatpush.bf16.msra.mxu0 %v4468
        %4530 = vmatpush.bf16.msra.mxu0 %v4466
        %4531 = vmatmul.bf16.gmra.mxu0 %v4501
        %v4532 = vpop.f32.mrf.mxu0
        %v4533 = vadd.f32 %v4519, %v4532
        %v4534 = vpop.f32.mrf.mxu0
        %v4535 = vadd.f32 %v4521, %v4534
        %4536 = vdwg.mxu0
        %4537 = vmatpush.bf16.msra.mxu0 %v4465
        %4538 = vmatpush.bf16.msra.mxu0 %v4463
        %4539 = vmatpush.bf16.msra.mxu0 %v4461
        %4540 = vmatpush.bf16.msra.mxu0 %v4459
        %4541 = vmatpush.bf16.msra.mxu0 %v4457
        %4542 = vmatpush.bf16.msra.mxu0 %v4455
        %4543 = vmatpush.bf16.msra.mxu0 %v4453
        %4544 = vmatpush.bf16.msra.mxu0 %v4451
        %4545 = vmatmul.bf16.gmra.mxu0 %v4340
        %v4546 = vpop.f32.mrf.mxu0
        %v4547 = vadd.f32 %v4372, %v4546
        %v4548 = vpop.f32.mrf.mxu0
        %v4549 = vadd.f32 %v4372, %v4548
        %4550 = vdwg.mxu0
        %4551 = vmatpush.bf16.msra.mxu0 0
        %4552 = vmatpush.bf16.msra.mxu0 0
        %4553 = vmatpush.bf16.msra.mxu0 0
        %4554 = vmatpush.bf16.msra.mxu0 %v4507
        %4555 = vmatpush.bf16.msra.mxu0 %v4473
        %4556 = vmatpush.bf16.msra.mxu0 %v4471
        %4557 = vmatpush.bf16.msra.mxu0 %v4469
        %4558 = vmatpush.bf16.msra.mxu0 %v4467
        %4559 = vmatmul.bf16.gmra.mxu0 %v4501
        %v4560 = vpop.f32.mrf.mxu0
        %v4561 = vadd.f32 %v4547, %v4560
        %v4562 = vpop.f32.mrf.mxu0
        %v4563 = vadd.f32 %v4549, %v4562
        %4564 = vdwg.mxu0
        %v4565 = vmax.f32 %v4533, 0.0
        %v4566 = vmax.f32 %v4561, 0.0
        %v4567 = vmax.f32 %v4535, 0.0
        %v4568 = vmax.f32 %v4563, 0.0
        %v4569 = vpack.c.bf16 %v4567, %v4565
        %v4570 = vpack.c.bf16 %v4568, %v4566
        %s4571 = scalar_lea.vmem %s15, 300
        %v4572 = vld [vmem:[%s4571] sm:$0xf]
        %v4573 = vld [vmem:[%s4571 + $0x4] sm:$0xf]
        %v4574 = vld [vmem:[%s4571 + $0x8] sm:$0xf]
        %v4575 = vld [vmem:[%s4571 + $0xc] sm:$0xf]
        %v4576 = vld [vmem:[%s4571 + $0x10] sm:$0xf]
        %v4577 = vld [vmem:[%s4571 + $0x14] sm:$0xf]
        %v4578 = vld [vmem:[%s4571 + $0x18] sm:$0xf]
        %v4579 = vld [vmem:[%s4571 + $0x1c] sm:$0xf]
        %v4580 = vld [vmem:[%s4571 + $0x20] sm:$0xf]
        %v4581 = vld [vmem:[%s4571 + $0x24] sm:$0xf]
        %v4582 = vld [vmem:[%s4571 + $0x28] sm:$0xf]
        %v4583 = vld [vmem:[%s4571 + $0x2c] sm:$0xf]
        %v4584 = vld [vmem:[%s4571 + $0x30] sm:$0xf]
        %v4585 = vld [vmem:[%s4571 + $0x34] sm:$0xf]
        %v4586 = vld [vmem:[%s4571 + $0x38] sm:$0xf]
        %v4587 = vld [vmem:[%s4571 + $0x3c] sm:$0xf]
        %v4588 = vld [vmem:[%s4571 + $0x40] sm:$0xf]
        %v4589 = vld [vmem:[%s4571 + $0x44] sm:$0xf]
        %v4590 = vld [vmem:[%s4571 + $0x48] sm:$0xf]
        %v4591 = vld [vmem:[%s4571 + $0x4c] sm:$0xf]
        %v4592 = vld [vmem:[%s4571 + $0x50] sm:$0xf]
        %v4593 = vld [vmem:[%s4571 + $0x54] sm:$0xf]
        %v4594 = vld [vmem:[%s4571 + $0x58] sm:$0xf]
        %v4595 = vld [vmem:[%s4571 + $0x5c] sm:$0xf]
        %v4596 = vld [vmem:[%s4571 + $0x60] sm:$0xf]
        %v4597 = vld [vmem:[%s16 + $0x3] sm:$0x1]
        %v4598 = vperm.slane %v4597, 0
        %v4624 = vunpack.c.l.b16 %v4572
        %v4625 = vunpack.c.l.b16 %v4573
        %v4626 = vunpack.c.l.b16 %v4574
        %v4627 = vunpack.c.l.b16 %v4575
        %v4628 = vunpack.c.l.b16 %v4576
        %v4629 = vunpack.c.l.b16 %v4577
        %v4630 = vunpack.c.l.b16 %v4578
        %v4631 = vunpack.c.l.b16 %v4579
        %v4632 = vunpack.c.l.b16 %v4580
        %v4633 = vunpack.c.l.b16 %v4581
        %v4634 = vunpack.c.l.b16 %v4582
        %v4635 = vunpack.c.l.b16 %v4583
        %v4636 = vunpack.c.l.b16 %v4584
        %v4637 = vunpack.c.l.b16 %v4585
        %v4638 = vunpack.c.l.b16 %v4586
        %v4639 = vunpack.c.l.b16 %v4587
        %v4640 = vunpack.c.l.b16 %v4588
        %v4641 = vunpack.c.l.b16 %v4589
        %v4642 = vunpack.c.l.b16 %v4590
        %v4643 = vunpack.c.l.b16 %v4591
        %v4644 = vunpack.c.l.b16 %v4592
        %v4645 = vunpack.c.l.b16 %v4593
        %v4646 = vunpack.c.l.b16 %v4594
        %v4647 = vunpack.c.l.b16 %v4595
        %v4648 = vunpack.c.l.b16 %v4596
        %v4649 = vpack.c.b16 %v4625, %v4624
        %v4650 = vpack.c.b16 %v4627, %v4626
        %v4651 = vpack.c.b16 %v4629, %v4628
        %v4652 = vpack.c.b16 %v4631, %v4630
        %v4653 = vpack.c.b16 %v4633, %v4632
        %v4654 = vpack.c.b16 %v4635, %v4634
        %v4655 = vpack.c.b16 %v4637, %v4636
        %v4656 = vpack.c.b16 %v4639, %v4638
        %v4657 = vpack.c.b16 %v4641, %v4640
        %v4658 = vpack.c.b16 %v4643, %v4642
        %v4659 = vpack.c.b16 %v4645, %v4644
        %v4660 = vpack.c.b16 %v4647, %v4646
        %v4661 = vpack.c.b16 %v4648, %v4648
        %v4675 = vsel %vm1144, %v4570, 0
        %v4678 = vsel %vm1148, %v4661, 0
        %4680 = vmatpush.bf16.msra.mxu0 %v4656
        %4681 = vmatpush.bf16.msra.mxu0 %v4655
        %4682 = vmatpush.bf16.msra.mxu0 %v4654
        %4683 = vmatpush.bf16.msra.mxu0 %v4653
        %4684 = vmatpush.bf16.msra.mxu0 %v4652
        %4685 = vmatpush.bf16.msra.mxu0 %v4651
        %4686 = vmatpush.bf16.msra.mxu0 %v4650
        %4687 = vmatpush.bf16.msra.mxu0 %v4649
        %4688 = vmatmul.bf16.gmra.mxu0 %v4569
        %v4689 = vpop.f32.mrf.mxu0
        %v4690 = vadd.f32 %v4598, %v4689
        %v4691 = vpop.f32.mrf.mxu0
        %v4692 = vadd.f32 %v4598, %v4691
        %4693 = vdwg.mxu0
        %4694 = vmatpush.bf16.msra.mxu0 0
        %4695 = vmatpush.bf16.msra.mxu0 0
        %4696 = vmatpush.bf16.msra.mxu0 0
        %4697 = vmatpush.bf16.msra.mxu0 %v4678
        %4698 = vmatpush.bf16.msra.mxu0 %v4660
        %4699 = vmatpush.bf16.msra.mxu0 %v4659
        %4700 = vmatpush.bf16.msra.mxu0 %v4658
        %4701 = vmatpush.bf16.msra.mxu0 %v4657
        %4702 = vmatmul.bf16.gmra.mxu0 %v4675
        %v4703 = vpop.f32.mrf.mxu0
        %v4704 = vadd.f32 %v4690, %v4703
        %v4705 = vpop.f32.mrf.mxu0
        %v4706 = vadd.f32 %v4692, %v4705
        %4707 = vdwg.mxu0
        %v4708 = vpack.c.bf16 %v4706, %v4704
        %s4709 = scalar_lea.vmem %s12, 112
        %v4710 = vld [vmem:[%s4709] sm:$0xff]
        %v4711 = vld [vmem:[%s4709 + $0x8] sm:$0xff]
        %v4712 = vld [vmem:[%s4709 + $0x10] sm:$0xff]
        %v4713 = vld [vmem:[%s4709 + $0x18] sm:$0xff]
        %v4714 = vld [vmem:[%s4709 + $0x20] sm:$0xff]
        %v4715 = vld [vmem:[%s4709 + $0x28] sm:$0xff]
        %v4716 = vld [vmem:[%s4709 + $0x30] sm:$0x11]
        %v4724 = vunpack.c.l.b16 %v4710
        %v4725 = vunpack.c.h.b16 %v4710
        %v4726 = vunpack.c.l.b16 %v4711
        %v4727 = vunpack.c.h.b16 %v4711
        %v4728 = vunpack.c.l.b16 %v4712
        %v4729 = vunpack.c.h.b16 %v4712
        %v4730 = vunpack.c.l.b16 %v4713
        %v4731 = vunpack.c.h.b16 %v4713
        %v4732 = vunpack.c.l.b16 %v4714
        %v4733 = vunpack.c.h.b16 %v4714
        %v4734 = vunpack.c.l.b16 %v4715
        %v4735 = vunpack.c.h.b16 %v4715
        %v4736 = vunpack.c.l.b16 %v4716
        %v4737 = vunpack.c.h.b16 %v4716
        %v4738 = vpack.c.b16 %v4726, %v4724
        %v4739 = vpack.c.b16 %v4727, %v4725
        %v4740 = vpack.c.b16 %v4730, %v4728
        %v4741 = vpack.c.b16 %v4731, %v4729
        %v4742 = vpack.c.b16 %v4734, %v4732
        %v4743 = vpack.c.b16 %v4735, %v4733
        %v4744 = vpack.c.b16 %v4736, %v4736
        %v4745 = vpack.c.b16 %v4737, %v4737
        %v4753 = vsel %vm3116, %v4708, 0
        %v4756 = vsel %vm3279, %v4744, 0
        %v4759 = vsel %vm3279, %v4745, 0
        %4761 = vmatpush.bf16.msra.mxu0 0
        %4762 = vmatpush.bf16.msra.mxu0 0
        %4763 = vmatpush.bf16.msra.mxu0 0
        %4764 = vmatpush.bf16.msra.mxu0 0
        %4765 = vmatpush.bf16.msra.mxu0 %v4756
        %4766 = vmatpush.bf16.msra.mxu0 %v4742
        %4767 = vmatpush.bf16.msra.mxu0 %v4740
        %4768 = vmatpush.bf16.msra.mxu0 %v4738
        %4769 = vmatmul.bf16.gmra.mxu0 %v4753
        %v4770 = vpop.f32.mrf.mxu0
        %v4771 = vadd.f32 0.0, %v4770
        %v4772 = vpop.f32.mrf.mxu0
        %v4773 = vadd.f32 0.0, %v4772
        %4774 = vdwg.mxu0
        %4775 = vmatpush.bf16.msra.mxu0 0
        %4776 = vmatpush.bf16.msra.mxu0 0
        %4777 = vmatpush.bf16.msra.mxu0 0
        %4778 = vmatpush.bf16.msra.mxu0 0
        %4779 = vmatpush.bf16.msra.mxu0 %v4759
        %4780 = vmatpush.bf16.msra.mxu0 %v4743
        %4781 = vmatpush.bf16.msra.mxu0 %v4741
        %4782 = vmatpush.bf16.msra.mxu0 %v4739
        %4783 = vmatmul.bf16.gmra.mxu0 %v4753
        %v4784 = vpop.f32.mrf.mxu0
        %v4785 = vadd.f32 0.0, %v4784
        %v4786 = vpop.f32.mrf.mxu0
        %v4787 = vadd.f32 0.0, %v4786
        %4788 = vdwg.mxu0
        %v4789 = vadd.f32 %v4241, %v4771
        %v4790 = vadd.f32 %v4255, %v4785
        %v4791 = vadd.f32 %v4243, %v4773
        %v4792 = vadd.f32 %v4257, %v4787
        %s4793 = scalar_lea.vmem %s14, 32
        %v4794 = vld [vmem:[%s4793] ss:$8 sm:$0x3]
        %v4796 = vperm.slane %v4794, 0
        %v4797 = vperm.slane %v4794, 1
        %v4800 = vadd.f32 %v4789, %v4796
        %v4801 = vadd.f32 %v4790, %v4797
        %v4802 = vadd.f32 %v4791, %v4796
        %v4803 = vadd.f32 %v4792, %v4797
        %v4804 = vmax.f32 %v4800, 0.0
        %v4805 = vmax.f32 %v4801, 0.0
        %v4806 = vmax.f32 %v4802, 0.0
        %v4807 = vmax.f32 %v4803, 0.0
        %v4808 = vpack.c.bf16 %v4806, %v4804
        %v4809 = vpack.c.bf16 %v4807, %v4805
        %s4810 = scalar_lea.vmem [#allocation4], 1600
        %v4811 = vld [vmem:[%s4810] sm:$0xff]
        %v4812 = vld [vmem:[%s4810 + $0x8] sm:$0xff]
        %v4813 = vld [vmem:[%s4810 + $0x10] sm:$0xff]
        %v4814 = vld [vmem:[%s4810 + $0x18] sm:$0xff]
        %v4815 = vld [vmem:[%s4810 + $0x20] sm:$0xff]
        %v4816 = vld [vmem:[%s4810 + $0x28] sm:$0xff]
        %v4817 = vld [vmem:[%s4810 + $0x30] sm:$0xff]
        %v4818 = vld [vmem:[%s4810 + $0x38] sm:$0xff]
        %v4819 = vld [vmem:[%s4810 + $0x40] sm:$0xff]
        %v4820 = vld [vmem:[%s4810 + $0x48] sm:$0xff]
        %v4821 = vld [vmem:[%s4810 + $0x50] sm:$0xff]
        %v4822 = vld [vmem:[%s4810 + $0x58] sm:$0xff]
        %v4823 = vld [vmem:[%s4810 + $0x60] sm:$0xff]
        %v4824 = vld [vmem:[%s4810 + $0x68] sm:$0xff]
        %v4825 = vld [vmem:[%s4810 + $0x70] sm:$0xff]
        %v4826 = vld [vmem:[%s4810 + $0x78] sm:$0xff]
        %v4827 = vld [vmem:[%s4810 + $0x80] sm:$0xff]
        %v4828 = vld [vmem:[%s4810 + $0x88] sm:$0xff]
        %v4829 = vld [vmem:[%s4810 + $0x90] sm:$0xff]
        %v4830 = vld [vmem:[%s4810 + $0x98] sm:$0xff]
        %v4831 = vld [vmem:[%s4810 + $0xa0] sm:$0xff]
        %v4832 = vld [vmem:[%s4810 + $0xa8] sm:$0xff]
        %v4833 = vld [vmem:[%s4810 + $0xb0] sm:$0xff]
        %v4834 = vld [vmem:[%s4810 + $0xb8] sm:$0xff]
        %v4835 = vld [vmem:[%s4810 + $0xc0] sm:$0xff]
        %s4836 = scalar_lea.vmem %s14, 33
        %v4837 = vld [vmem:[%s4836] ss:$8 sm:$0x3]
        %v4839 = vperm.slane %v4837, 0
        %v4840 = vperm.slane %v4837, 1
        %v4868 = vunpack.c.l.b16 %v4811
        %v4869 = vunpack.c.h.b16 %v4811
        %v4870 = vunpack.c.l.b16 %v4812
        %v4871 = vunpack.c.h.b16 %v4812
        %v4872 = vunpack.c.l.b16 %v4813
        %v4873 = vunpack.c.h.b16 %v4813
        %v4874 = vunpack.c.l.b16 %v4814
        %v4875 = vunpack.c.h.b16 %v4814
        %v4876 = vunpack.c.l.b16 %v4815
        %v4877 = vunpack.c.h.b16 %v4815
        %v4878 = vunpack.c.l.b16 %v4816
        %v4879 = vunpack.c.h.b16 %v4816
        %v4880 = vunpack.c.l.b16 %v4817
        %v4881 = vunpack.c.h.b16 %v4817
        %v4882 = vunpack.c.l.b16 %v4818
        %v4883 = vunpack.c.h.b16 %v4818
        %v4884 = vunpack.c.l.b16 %v4819
        %v4885 = vunpack.c.h.b16 %v4819
        %v4886 = vunpack.c.l.b16 %v4820
        %v4887 = vunpack.c.h.b16 %v4820
        %v4888 = vunpack.c.l.b16 %v4821
        %v4889 = vunpack.c.h.b16 %v4821
        %v4890 = vunpack.c.l.b16 %v4822
        %v4891 = vunpack.c.h.b16 %v4822
        %v4892 = vunpack.c.l.b16 %v4823
        %v4893 = vunpack.c.h.b16 %v4823
        %v4894 = vunpack.c.l.b16 %v4824
        %v4895 = vunpack.c.h.b16 %v4824
        %v4896 = vunpack.c.l.b16 %v4825
        %v4897 = vunpack.c.h.b16 %v4825
        %v4898 = vunpack.c.l.b16 %v4826
        %v4899 = vunpack.c.h.b16 %v4826
        %v4900 = vunpack.c.l.b16 %v4827
        %v4901 = vunpack.c.h.b16 %v4827
        %v4902 = vunpack.c.l.b16 %v4828
        %v4903 = vunpack.c.h.b16 %v4828
        %v4904 = vunpack.c.l.b16 %v4829
        %v4905 = vunpack.c.h.b16 %v4829
        %v4906 = vunpack.c.l.b16 %v4830
        %v4907 = vunpack.c.h.b16 %v4830
        %v4908 = vunpack.c.l.b16 %v4831
        %v4909 = vunpack.c.h.b16 %v4831
        %v4910 = vunpack.c.l.b16 %v4832
        %v4911 = vunpack.c.h.b16 %v4832
        %v4912 = vunpack.c.l.b16 %v4833
        %v4913 = vunpack.c.h.b16 %v4833
        %v4914 = vunpack.c.l.b16 %v4834
        %v4915 = vunpack.c.h.b16 %v4834
        %v4916 = vunpack.c.l.b16 %v4835
        %v4917 = vunpack.c.h.b16 %v4835
        %v4918 = vpack.c.b16 %v4870, %v4868
        %v4919 = vpack.c.b16 %v4871, %v4869
        %v4920 = vpack.c.b16 %v4874, %v4872
        %v4921 = vpack.c.b16 %v4875, %v4873
        %v4922 = vpack.c.b16 %v4878, %v4876
        %v4923 = vpack.c.b16 %v4879, %v4877
        %v4924 = vpack.c.b16 %v4882, %v4880
        %v4925 = vpack.c.b16 %v4883, %v4881
        %v4926 = vpack.c.b16 %v4886, %v4884
        %v4927 = vpack.c.b16 %v4887, %v4885
        %v4928 = vpack.c.b16 %v4890, %v4888
        %v4929 = vpack.c.b16 %v4891, %v4889
        %v4930 = vpack.c.b16 %v4894, %v4892
        %v4931 = vpack.c.b16 %v4895, %v4893
        %v4932 = vpack.c.b16 %v4898, %v4896
        %v4933 = vpack.c.b16 %v4899, %v4897
        %v4934 = vpack.c.b16 %v4902, %v4900
        %v4935 = vpack.c.b16 %v4903, %v4901
        %v4936 = vpack.c.b16 %v4906, %v4904
        %v4937 = vpack.c.b16 %v4907, %v4905
        %v4938 = vpack.c.b16 %v4910, %v4908
        %v4939 = vpack.c.b16 %v4911, %v4909
        %v4940 = vpack.c.b16 %v4914, %v4912
        %v4941 = vpack.c.b16 %v4915, %v4913
        %v4942 = vpack.c.b16 %v4916, %v4916
        %v4943 = vpack.c.b16 %v4917, %v4917
        %v4969 = vsel %vm1144, %v4809, 0
        %v4972 = vsel %vm1148, %v4942, 0
        %v4975 = vsel %vm1148, %v4943, 0
        %4977 = vmatpush.bf16.msra.mxu0 %v4932
        %4978 = vmatpush.bf16.msra.mxu0 %v4930
        %4979 = vmatpush.bf16.msra.mxu0 %v4928
        %4980 = vmatpush.bf16.msra.mxu0 %v4926
        %4981 = vmatpush.bf16.msra.mxu0 %v4924
        %4982 = vmatpush.bf16.msra.mxu0 %v4922
        %4983 = vmatpush.bf16.msra.mxu0 %v4920
        %4984 = vmatpush.bf16.msra.mxu0 %v4918
        %4985 = vmatmul.bf16.gmra.mxu0 %v4808
        %v4986 = vpop.f32.mrf.mxu0
        %v4987 = vadd.f32 %v4839, %v4986
        %v4988 = vpop.f32.mrf.mxu0
        %v4989 = vadd.f32 %v4839, %v4988
        %4990 = vdwg.mxu0
        %4991 = vmatpush.bf16.msra.mxu0 0
        %4992 = vmatpush.bf16.msra.mxu0 0
        %4993 = vmatpush.bf16.msra.mxu0 0
        %4994 = vmatpush.bf16.msra.mxu0 %v4972
        %4995 = vmatpush.bf16.msra.mxu0 %v4940
        %4996 = vmatpush.bf16.msra.mxu0 %v4938
        %4997 = vmatpush.bf16.msra.mxu0 %v4936
        %4998 = vmatpush.bf16.msra.mxu0 %v4934
        %4999 = vmatmul.bf16.gmra.mxu0 %v4969
        %v5000 = vpop.f32.mrf.mxu0
        %v5001 = vadd.f32 %v4987, %v5000
        %v5002 = vpop.f32.mrf.mxu0
        %v5003 = vadd.f32 %v4989, %v5002
        %5004 = vdwg.mxu0
        %5005 = vmatpush.bf16.msra.mxu0 %v4933
        %5006 = vmatpush.bf16.msra.mxu0 %v4931
        %5007 = vmatpush.bf16.msra.mxu0 %v4929
        %5008 = vmatpush.bf16.msra.mxu0 %v4927
        %5009 = vmatpush.bf16.msra.mxu0 %v4925
        %5010 = vmatpush.bf16.msra.mxu0 %v4923
        %5011 = vmatpush.bf16.msra.mxu0 %v4921
        %5012 = vmatpush.bf16.msra.mxu0 %v4919
        %5013 = vmatmul.bf16.gmra.mxu0 %v4808
        %v5014 = vpop.f32.mrf.mxu0
        %v5015 = vadd.f32 %v4840, %v5014
        %v5016 = vpop.f32.mrf.mxu0
        %v5017 = vadd.f32 %v4840, %v5016
        %5018 = vdwg.mxu0
        %5019 = vmatpush.bf16.msra.mxu0 0
        %5020 = vmatpush.bf16.msra.mxu0 0
        %5021 = vmatpush.bf16.msra.mxu0 0
        %5022 = vmatpush.bf16.msra.mxu0 %v4975
        %5023 = vmatpush.bf16.msra.mxu0 %v4941
        %5024 = vmatpush.bf16.msra.mxu0 %v4939
        %5025 = vmatpush.bf16.msra.mxu0 %v4937
        %5026 = vmatpush.bf16.msra.mxu0 %v4935
        %5027 = vmatmul.bf16.gmra.mxu0 %v4969
        %v5028 = vpop.f32.mrf.mxu0
        %v5029 = vadd.f32 %v5015, %v5028
        %v5030 = vpop.f32.mrf.mxu0
        %v5031 = vadd.f32 %v5017, %v5030
        %5032 = vdwg.mxu0
        %v5033 = vmax.f32 %v5001, 0.0
        %v5034 = vmax.f32 %v5029, 0.0
        %v5035 = vmax.f32 %v5003, 0.0
        %v5036 = vmax.f32 %v5031, 0.0
        %v5037 = vpack.c.bf16 %v5035, %v5033
        %v5038 = vpack.c.bf16 %v5036, %v5034
        %v5039 = vld [vmem:[%s23] sm:$0xf]
        %v5040 = vld [vmem:[%s23 + $0x4] sm:$0xf]
        %v5041 = vld [vmem:[%s23 + $0x8] sm:$0xf]
        %v5042 = vld [vmem:[%s23 + $0xc] sm:$0xf]
        %v5043 = vld [vmem:[%s23 + $0x10] sm:$0xf]
        %v5044 = vld [vmem:[%s23 + $0x14] sm:$0xf]
        %v5045 = vld [vmem:[%s23 + $0x18] sm:$0xf]
        %v5046 = vld [vmem:[%s23 + $0x1c] sm:$0xf]
        %v5047 = vld [vmem:[%s23 + $0x20] sm:$0xf]
        %v5048 = vld [vmem:[%s23 + $0x24] sm:$0xf]
        %v5049 = vld [vmem:[%s23 + $0x28] sm:$0xf]
        %v5050 = vld [vmem:[%s23 + $0x2c] sm:$0xf]
        %v5051 = vld [vmem:[%s23 + $0x30] sm:$0xf]
        %v5052 = vld [vmem:[%s23 + $0x34] sm:$0xf]
        %v5053 = vld [vmem:[%s23 + $0x38] sm:$0xf]
        %v5054 = vld [vmem:[%s23 + $0x3c] sm:$0xf]
        %v5055 = vld [vmem:[%s23 + $0x40] sm:$0xf]
        %v5056 = vld [vmem:[%s23 + $0x44] sm:$0xf]
        %v5057 = vld [vmem:[%s23 + $0x48] sm:$0xf]
        %v5058 = vld [vmem:[%s23 + $0x4c] sm:$0xf]
        %v5059 = vld [vmem:[%s23 + $0x50] sm:$0xf]
        %v5060 = vld [vmem:[%s23 + $0x54] sm:$0xf]
        %v5061 = vld [vmem:[%s23 + $0x58] sm:$0xf]
        %v5062 = vld [vmem:[%s23 + $0x5c] sm:$0xf]
        %v5063 = vld [vmem:[%s23 + $0x60] sm:$0xf]
        %v5064 = vld [vmem:[%s24] sm:$0x1]
        %v5066 = vperm.slane %v5064, 0
        %v5093 = vunpack.c.l.b16 %v5039
        %v5094 = vunpack.c.l.b16 %v5040
        %v5095 = vunpack.c.l.b16 %v5041
        %v5096 = vunpack.c.l.b16 %v5042
        %v5097 = vunpack.c.l.b16 %v5043
        %v5098 = vunpack.c.l.b16 %v5044
        %v5099 = vunpack.c.l.b16 %v5045
        %v5100 = vunpack.c.l.b16 %v5046
        %v5101 = vunpack.c.l.b16 %v5047
        %v5102 = vunpack.c.l.b16 %v5048
        %v5103 = vunpack.c.l.b16 %v5049
        %v5104 = vunpack.c.l.b16 %v5050
        %v5105 = vunpack.c.l.b16 %v5051
        %v5106 = vunpack.c.l.b16 %v5052
        %v5107 = vunpack.c.l.b16 %v5053
        %v5108 = vunpack.c.l.b16 %v5054
        %v5109 = vunpack.c.l.b16 %v5055
        %v5110 = vunpack.c.l.b16 %v5056
        %v5111 = vunpack.c.l.b16 %v5057
        %v5112 = vunpack.c.l.b16 %v5058
        %v5113 = vunpack.c.l.b16 %v5059
        %v5114 = vunpack.c.l.b16 %v5060
        %v5115 = vunpack.c.l.b16 %v5061
        %v5116 = vunpack.c.l.b16 %v5062
        %v5117 = vunpack.c.l.b16 %v5063
        %v5118 = vpack.c.b16 %v5094, %v5093
        %v5119 = vpack.c.b16 %v5096, %v5095
        %v5120 = vpack.c.b16 %v5098, %v5097
        %v5121 = vpack.c.b16 %v5100, %v5099
        %v5122 = vpack.c.b16 %v5102, %v5101
        %v5123 = vpack.c.b16 %v5104, %v5103
        %v5124 = vpack.c.b16 %v5106, %v5105
        %v5125 = vpack.c.b16 %v5108, %v5107
        %v5126 = vpack.c.b16 %v5110, %v5109
        %v5127 = vpack.c.b16 %v5112, %v5111
        %v5128 = vpack.c.b16 %v5114, %v5113
        %v5129 = vpack.c.b16 %v5116, %v5115
        %v5130 = vpack.c.b16 %v5117, %v5117
        %v5144 = vsel %vm1144, %v5038, 0
        %v5147 = vsel %vm1148, %v5130, 0
        %5149 = vmatpush.bf16.msra.mxu0 %v5125
        %5150 = vmatpush.bf16.msra.mxu0 %v5124
        %5151 = vmatpush.bf16.msra.mxu0 %v5123
        %5152 = vmatpush.bf16.msra.mxu0 %v5122
        %5153 = vmatpush.bf16.msra.mxu0 %v5121
        %5154 = vmatpush.bf16.msra.mxu0 %v5120
        %5155 = vmatpush.bf16.msra.mxu0 %v5119
        %5156 = vmatpush.bf16.msra.mxu0 %v5118
        %5157 = vmatmul.bf16.gmra.mxu0 %v5037
        %v5158 = vpop.f32.mrf.mxu0
        %v5159 = vadd.f32 %v5066, %v5158
        %v5160 = vpop.f32.mrf.mxu0
        %v5161 = vadd.f32 %v5066, %v5160
        %5162 = vdwg.mxu0
        %5163 = vmatpush.bf16.msra.mxu0 0
        %5164 = vmatpush.bf16.msra.mxu0 0
        %5165 = vmatpush.bf16.msra.mxu0 0
        %5166 = vmatpush.bf16.msra.mxu0 %v5147
        %5167 = vmatpush.bf16.msra.mxu0 %v5129
        %5168 = vmatpush.bf16.msra.mxu0 %v5128
        %5169 = vmatpush.bf16.msra.mxu0 %v5127
        %5170 = vmatpush.bf16.msra.mxu0 %v5126
        %5171 = vmatmul.bf16.gmra.mxu0 %v5144
        %v5172 = vpop.f32.mrf.mxu0
        %v5173 = vadd.f32 %v5159, %v5172
        %v5174 = vpop.f32.mrf.mxu0
        %v5175 = vadd.f32 %v5161, %v5174
        %5176 = vdwg.mxu0
        %v5177 = vmul.f32 %v929, %v5173
        %v5178 = vmul.f32 %v929, %v5175
        %v5179 = vmax.f32 %v5173, 0.0
        %v5180 = vmax.f32 %v5175, 0.0
        %v5181 = vsub.f32 0.0, %v5173
        %v5182 = vsub.f32 0.0, %v5175
        %vm5183 = vcmp.ne.f32.partialorder %v5181, %v5181
        %vm5184 = vcmp.ne.f32.partialorder %v5182, %v5182
        %v5185 = vadd.f32 %v5173, 0.0
        %v5186 = vadd.f32 %v5175, 0.0
        %v5187 = vand.u32 2147483647, %v5181
        %v5188 = vand.u32 2147483647, %v5182
        %v5189 = vsub.f32 0.0, %v5187
        %v5190 = vsub.f32 0.0, %v5188
        %v5191 = vmul.f32 %v5189, 1.442695
        %v5192 = vpow.pop %v5191
        %v5193 = vmul.f32 %v5190, 1.442695
        %v5194 = vpow.pop %v5193
        %v5195 = vadd.f32 %v5192, 1.0
        %v5196 = vlog2.pop %v5195
        %v5197 = vmul.f32 %v5196, 0.6931472
        %v5198 = vmul.f32 -0.5, %v5192
        %v5199 = vadd.f32 %v5198, 1.0
        %v5200 = vmul.f32 %v5199, %v5192
        %v5201 = vand.u32 2147483647, %v5192
        %vm5202 = vcmp.lt.f32.partialorder %v5201, 0.0004427343
        %v5203 = vsel %vm5202, %v5200, %v5197
        %v5204 = vadd.f32 %v5194, 1.0
        %v5205 = vlog2.pop %v5204
        %v5206 = vmul.f32 %v5205, 0.6931472
        %v5207 = vmul.f32 -0.5, %v5194
        %v5208 = vadd.f32 %v5207, 1.0
        %v5209 = vmul.f32 %v5208, %v5194
        %v5210 = vand.u32 2147483647, %v5194
        %vm5211 = vcmp.lt.f32.partialorder %v5210, 0.0004427343
        %v5212 = vsel %vm5211, %v5209, %v5206
        %v5213 = vadd.f32 %v5179, %v5203
        %v5214 = vadd.f32 %v5180, %v5212
        %v5215 = vsel %vm5183, %v5185, %v5213
        %v5216 = vsel %vm5184, %v5186, %v5214
        %v5217 = vsub.f32 %v5177, %v5215
        %v5218 = vsub.f32 %v5178, %v5216
        %v5219 = vsel %vm952, %v5217, 0.0
        %5220 = vadd.xlane.f32.xlu0 %v5219
        %v5221 = vpop.xlane.xlu0 %5220
        %v5222 = vsel %vm952, %v5218, 0.0
        %5223 = vadd.xlane.f32.xlu0 %v5222
        %v5224 = vpop.xlane.xlu0 %5223
        %v5225 = vadd.f32 %v3704, 1.837877
        %v5226 = vadd.f32 %v3705, 1.837877
        %v5227 = vmul.f32 %v4259, %v4259
        %v5228 = vmul.f32 %v4260, %v4260
        %5231 = vrot.lane.b32.xlu0 %v5227, 8
        %v5232 = vpop.permute.xlu0 %5231
        %5233 = vrot.lane.b32.xlu0 %v5228, 8
        %v5234 = vpop.permute.xlu0 %5233
        %v5237 = vadd.f32 %v5225, %v5232
        %v5238 = vadd.f32 %v5226, %v5234
        %v5239 = vmul.f32 %v5237, -0.5
        %v5240 = vmul.f32 %v5238, -0.5
        %5243 = vrot.lane.b32.xlu0 %v5239, 120
        %v5244 = vpop.permute.xlu0 %5243
        %5245 = vrot.lane.b32.xlu0 %v5240, 120
        %v5246 = vpop.permute.xlu0 %5245
        %v5249 = vsel %vm1847, %v5244, 0.0
        %5250 = vadd.xlane.f32.xlu0 %v5249
        %v5251 = vpop.xlane.xlu0 %5250
        %v5252 = vsel %vm1847, %v5246, 0.0
        %5253 = vadd.xlane.f32.xlu0 %v5252
        %v5254 = vpop.xlane.xlu0 %5253
        %v5255 = vmul.f32 %v4283, %v4283
        %v5256 = vmul.f32 %v4284, %v4284
        %v5257 = vadd.f32 %v5255, 1.837877
        %v5258 = vadd.f32 %v5256, 1.837877
        %v5259 = vmul.f32 %v5257, -0.5
        %v5260 = vmul.f32 %v5258, -0.5
        %v5261 = vsel %vm1847, %v5259, 0.0
        %5262 = vadd.xlane.f32.xlu0 %v5261
        %v5263 = vpop.xlane.xlu0 %5262
        %v5264 = vsel %vm1847, %v5260, 0.0
        %5265 = vadd.xlane.f32.xlu0 %v5264
        %v5266 = vpop.xlane.xlu0 %5265
        %v5267 = vadd.f32 %v5221, %v4180
        %v5268 = vadd.f32 %v5224, %v4181
        %v5269 = vadd.f32 %v5267, %v5263
        %v5270 = vadd.f32 %v5268, %v5266
        %v5271 = vsub.f32 %v5269, %v5251
        %v5272 = vsub.f32 %v5270, %v5254
        %5275 = vrot.lane.b32.xlu0 %v4261, 8
        %v5276 = vpop.permute.xlu0 %5275
        %5277 = vrot.lane.b32.xlu0 %v4262, 8
        %v5278 = vpop.permute.xlu0 %5277
        %v5281 = vmul.f32 %v3709, %v5276
        %v5282 = vmul.f32 %v3711, %v5278
        %5285 = vrot.lane.b32.xlu0 %v5281, 120
        %v5286 = vpop.permute.xlu0 %5285
        %5287 = vrot.lane.b32.xlu0 %v5282, 120
        %v5288 = vpop.permute.xlu0 %5287
        %v5291 = vadd.f32 %v3698, %v5286
        %v5292 = vadd.f32 %v3700, %v5288
        %v5293 = vpack.c.bf16 %v5292, %v5291
        %v5295 = vsel %vm1847, %v5293, 0
        %5297 = vmatpush.bf16.msra.mxu0 0
        %5298 = vmatpush.bf16.msra.mxu0 0
        %5299 = vmatpush.bf16.msra.mxu0 0
        %5300 = vmatpush.bf16.msra.mxu0 0
        %5301 = vmatpush.bf16.msra.mxu0 0
        %5302 = vmatpush.bf16.msra.mxu0 0
        %5303 = vmatpush.bf16.msra.mxu0 0
        %5304 = vmatpush.bf16.msra.mxu0 %v4303
        %5305 = vmatmul.bf16.gmra.mxu0 %v5295
        %v5306 = vpop.f32.mrf.mxu0
        %v5307 = vadd.f32 %v4290, %v5306
        %v5308 = vpop.f32.mrf.mxu0
        %v5309 = vadd.f32 %v4290, %v5308
        %5310 = vdwg.mxu0
        %5311 = vmatpush.bf16.msra.mxu0 0
        %5312 = vmatpush.bf16.msra.mxu0 0
        %5313 = vmatpush.bf16.msra.mxu0 0
        %5314 = vmatpush.bf16.msra.mxu0 0
        %5315 = vmatpush.bf16.msra.mxu0 0
        %5316 = vmatpush.bf16.msra.mxu0 0
        %5317 = vmatpush.bf16.msra.mxu0 0
        %5318 = vmatpush.bf16.msra.mxu0 %v4306
        %5319 = vmatmul.bf16.gmra.mxu0 %v5295
        %v5320 = vpop.f32.mrf.mxu0
        %v5321 = vadd.f32 %v4291, %v5320
        %v5322 = vpop.f32.mrf.mxu0
        %v5323 = vadd.f32 %v4291, %v5322
        %5324 = vdwg.mxu0
        %v5325 = vmax.f32 %v5307, 0.0
        %v5326 = vmax.f32 %v5321, 0.0
        %v5327 = vmax.f32 %v5309, 0.0
        %v5328 = vmax.f32 %v5323, 0.0
        %v5329 = vpack.c.bf16 %v5327, %v5325
        %v5330 = vpack.c.bf16 %v5328, %v5326
        %v5332 = vsel %vm1144, %v5330, 0
        %5334 = vmatpush.bf16.msra.mxu0 %v4464
        %5335 = vmatpush.bf16.msra.mxu0 %v4462
        %5336 = vmatpush.bf16.msra.mxu0 %v4460
        %5337 = vmatpush.bf16.msra.mxu0 %v4458
        %5338 = vmatpush.bf16.msra.mxu0 %v4456
        %5339 = vmatpush.bf16.msra.mxu0 %v4454
        %5340 = vmatpush.bf16.msra.mxu0 %v4452
        %5341 = vmatpush.bf16.msra.mxu0 %v4450
        %5342 = vmatmul.bf16.gmra.mxu0 %v5329
        %v5343 = vpop.f32.mrf.mxu0
        %v5344 = vadd.f32 %v4371, %v5343
        %v5345 = vpop.f32.mrf.mxu0
        %v5346 = vadd.f32 %v4371, %v5345
        %5347 = vdwg.mxu0
        %5348 = vmatpush.bf16.msra.mxu0 0
        %5349 = vmatpush.bf16.msra.mxu0 0
        %5350 = vmatpush.bf16.msra.mxu0 0
        %5351 = vmatpush.bf16.msra.mxu0 %v4504
        %5352 = vmatpush.bf16.msra.mxu0 %v4472
        %5353 = vmatpush.bf16.msra.mxu0 %v4470
        %5354 = vmatpush.bf16.msra.mxu0 %v4468
        %5355 = vmatpush.bf16.msra.mxu0 %v4466
        %5356 = vmatmul.bf16.gmra.mxu0 %v5332
        %v5357 = vpop.f32.mrf.mxu0
        %v5358 = vadd.f32 %v5344, %v5357
        %v5359 = vpop.f32.mrf.mxu0
        %v5360 = vadd.f32 %v5346, %v5359
        %5361 = vdwg.mxu0
        %5362 = vmatpush.bf16.msra.mxu0 %v4465
        %5363 = vmatpush.bf16.msra.mxu0 %v4463
        %5364 = vmatpush.bf16.msra.mxu0 %v4461
        %5365 = vmatpush.bf16.msra.mxu0 %v4459
        %5366 = vmatpush.bf16.msra.mxu0 %v4457
        %5367 = vmatpush.bf16.msra.mxu0 %v4455
        %5368 = vmatpush.bf16.msra.mxu0 %v4453
        %5369 = vmatpush.bf16.msra.mxu0 %v4451
        %5370 = vmatmul.bf16.gmra.mxu0 %v5329
        %v5371 = vpop.f32.mrf.mxu0
        %v5372 = vadd.f32 %v4372, %v5371
        %v5373 = vpop.f32.mrf.mxu0
        %v5374 = vadd.f32 %v4372, %v5373
        %5375 = vdwg.mxu0
        %5376 = vmatpush.bf16.msra.mxu0 0
        %5377 = vmatpush.bf16.msra.mxu0 0
        %5378 = vmatpush.bf16.msra.mxu0 0
        %5379 = vmatpush.bf16.msra.mxu0 %v4507
        %5380 = vmatpush.bf16.msra.mxu0 %v4473
        %5381 = vmatpush.bf16.msra.mxu0 %v4471
        %5382 = vmatpush.bf16.msra.mxu0 %v4469
        %5383 = vmatpush.bf16.msra.mxu0 %v4467
        %5384 = vmatmul.bf16.gmra.mxu0 %v5332
        %v5385 = vpop.f32.mrf.mxu0
        %v5386 = vadd.f32 %v5372, %v5385
        %v5387 = vpop.f32.mrf.mxu0
        %v5388 = vadd.f32 %v5374, %v5387
        %5389 = vdwg.mxu0
        %v5390 = vmax.f32 %v5358, 0.0
        %v5391 = vmax.f32 %v5386, 0.0
        %v5392 = vmax.f32 %v5360, 0.0
        %v5393 = vmax.f32 %v5388, 0.0
        %v5394 = vpack.c.bf16 %v5392, %v5390
        %v5395 = vpack.c.bf16 %v5393, %v5391
        %v5397 = vsel %vm1144, %v5395, 0
        %5399 = vmatpush.bf16.msra.mxu0 %v4656
        %5400 = vmatpush.bf16.msra.mxu0 %v4655
        %5401 = vmatpush.bf16.msra.mxu0 %v4654
        %5402 = vmatpush.bf16.msra.mxu0 %v4653
        %5403 = vmatpush.bf16.msra.mxu0 %v4652
        %5404 = vmatpush.bf16.msra.mxu0 %v4651
        %5405 = vmatpush.bf16.msra.mxu0 %v4650
        %5406 = vmatpush.bf16.msra.mxu0 %v4649
        %5407 = vmatmul.bf16.gmra.mxu0 %v5394
        %v5408 = vpop.f32.mrf.mxu0
        %v5409 = vadd.f32 %v4598, %v5408
        %v5410 = vpop.f32.mrf.mxu0
        %v5411 = vadd.f32 %v4598, %v5410
        %5412 = vdwg.mxu0
        %5413 = vmatpush.bf16.msra.mxu0 0
        %5414 = vmatpush.bf16.msra.mxu0 0
        %5415 = vmatpush.bf16.msra.mxu0 0
        %5416 = vmatpush.bf16.msra.mxu0 %v4678
        %5417 = vmatpush.bf16.msra.mxu0 %v4660
        %5418 = vmatpush.bf16.msra.mxu0 %v4659
        %5419 = vmatpush.bf16.msra.mxu0 %v4658
        %5420 = vmatpush.bf16.msra.mxu0 %v4657
        %5421 = vmatmul.bf16.gmra.mxu0 %v5397
        %v5422 = vpop.f32.mrf.mxu0
        %v5423 = vadd.f32 %v5409, %v5422
        %v5424 = vpop.f32.mrf.mxu0
        %v5425 = vadd.f32 %v5411, %v5424
        %5426 = vdwg.mxu0
        %v5427 = vpack.c.bf16 %v5425, %v5423
        %v5429 = vsel %vm3116, %v5427, 0
        %5431 = vmatpush.bf16.msra.mxu0 0
        %5432 = vmatpush.bf16.msra.mxu0 0
        %5433 = vmatpush.bf16.msra.mxu0 0
        %5434 = vmatpush.bf16.msra.mxu0 0
        %5435 = vmatpush.bf16.msra.mxu0 %v4756
        %5436 = vmatpush.bf16.msra.mxu0 %v4742
        %5437 = vmatpush.bf16.msra.mxu0 %v4740
        %5438 = vmatpush.bf16.msra.mxu0 %v4738
        %5439 = vmatmul.bf16.gmra.mxu0 %v5429
        %v5440 = vpop.f32.mrf.mxu0
        %v5441 = vadd.f32 0.0, %v5440
        %v5442 = vpop.f32.mrf.mxu0
        %v5443 = vadd.f32 0.0, %v5442
        %5444 = vdwg.mxu0
        %5445 = vmatpush.bf16.msra.mxu0 0
        %5446 = vmatpush.bf16.msra.mxu0 0
        %5447 = vmatpush.bf16.msra.mxu0 0
        %5448 = vmatpush.bf16.msra.mxu0 0
        %5449 = vmatpush.bf16.msra.mxu0 %v4759
        %5450 = vmatpush.bf16.msra.mxu0 %v4743
        %5451 = vmatpush.bf16.msra.mxu0 %v4741
        %5452 = vmatpush.bf16.msra.mxu0 %v4739
        %5453 = vmatmul.bf16.gmra.mxu0 %v5429
        %v5454 = vpop.f32.mrf.mxu0
        %v5455 = vadd.f32 0.0, %v5454
        %v5456 = vpop.f32.mrf.mxu0
        %v5457 = vadd.f32 0.0, %v5456
        %5458 = vdwg.mxu0
        %v5459 = vadd.f32 %v4241, %v5441
        %v5460 = vadd.f32 %v4255, %v5455
        %v5461 = vadd.f32 %v4243, %v5443
        %v5462 = vadd.f32 %v4257, %v5457
        %v5463 = vadd.f32 %v5459, %v4796
        %v5464 = vadd.f32 %v5460, %v4797
        %v5465 = vadd.f32 %v5461, %v4796
        %v5466 = vadd.f32 %v5462, %v4797
        %v5467 = vmax.f32 %v5463, 0.0
        %v5468 = vmax.f32 %v5464, 0.0
        %v5469 = vmax.f32 %v5465, 0.0
        %v5470 = vmax.f32 %v5466, 0.0
        %v5471 = vpack.c.bf16 %v5469, %v5467
        %v5472 = vpack.c.bf16 %v5470, %v5468
        %v5474 = vsel %vm1144, %v5472, 0
        %5476 = vmatpush.bf16.msra.mxu0 %v4932
        %5477 = vmatpush.bf16.msra.mxu0 %v4930
        %5478 = vmatpush.bf16.msra.mxu0 %v4928
        %5479 = vmatpush.bf16.msra.mxu0 %v4926
        %5480 = vmatpush.bf16.msra.mxu0 %v4924
        %5481 = vmatpush.bf16.msra.mxu0 %v4922
        %5482 = vmatpush.bf16.msra.mxu0 %v4920
        %5483 = vmatpush.bf16.msra.mxu0 %v4918
        %5484 = vmatmul.bf16.gmra.mxu0 %v5471
        %v5485 = vpop.f32.mrf.mxu0
        %v5486 = vadd.f32 %v4839, %v5485
        %v5487 = vpop.f32.mrf.mxu0
        %v5488 = vadd.f32 %v4839, %v5487
        %5489 = vdwg.mxu0
        %5490 = vmatpush.bf16.msra.mxu0 0
        %5491 = vmatpush.bf16.msra.mxu0 0
        %5492 = vmatpush.bf16.msra.mxu0 0
        %5493 = vmatpush.bf16.msra.mxu0 %v4972
        %5494 = vmatpush.bf16.msra.mxu0 %v4940
        %5495 = vmatpush.bf16.msra.mxu0 %v4938
        %5496 = vmatpush.bf16.msra.mxu0 %v4936
        %5497 = vmatpush.bf16.msra.mxu0 %v4934
        %5498 = vmatmul.bf16.gmra.mxu0 %v5474
        %v5499 = vpop.f32.mrf.mxu0
        %v5500 = vadd.f32 %v5486, %v5499
        %v5501 = vpop.f32.mrf.mxu0
        %v5502 = vadd.f32 %v5488, %v5501
        %5503 = vdwg.mxu0
        %5504 = vmatpush.bf16.msra.mxu0 %v4933
        %5505 = vmatpush.bf16.msra.mxu0 %v4931
        %5506 = vmatpush.bf16.msra.mxu0 %v4929
        %5507 = vmatpush.bf16.msra.mxu0 %v4927
        %5508 = vmatpush.bf16.msra.mxu0 %v4925
        %5509 = vmatpush.bf16.msra.mxu0 %v4923
        %5510 = vmatpush.bf16.msra.mxu0 %v4921
        %5511 = vmatpush.bf16.msra.mxu0 %v4919
        %5512 = vmatmul.bf16.gmra.mxu0 %v5471
        %v5513 = vpop.f32.mrf.mxu0
        %v5514 = vadd.f32 %v4840, %v5513
        %v5515 = vpop.f32.mrf.mxu0
        %v5516 = vadd.f32 %v4840, %v5515
        %5517 = vdwg.mxu0
        %5518 = vmatpush.bf16.msra.mxu0 0
        %5519 = vmatpush.bf16.msra.mxu0 0
        %5520 = vmatpush.bf16.msra.mxu0 0
        %5521 = vmatpush.bf16.msra.mxu0 %v4975
        %5522 = vmatpush.bf16.msra.mxu0 %v4941
        %5523 = vmatpush.bf16.msra.mxu0 %v4939
        %5524 = vmatpush.bf16.msra.mxu0 %v4937
        %5525 = vmatpush.bf16.msra.mxu0 %v4935
        %5526 = vmatmul.bf16.gmra.mxu0 %v5474
        %v5527 = vpop.f32.mrf.mxu0
        %v5528 = vadd.f32 %v5514, %v5527
        %v5529 = vpop.f32.mrf.mxu0
        %v5530 = vadd.f32 %v5516, %v5529
        %5531 = vdwg.mxu0
        %v5532 = vmax.f32 %v5500, 0.0
        %v5533 = vmax.f32 %v5528, 0.0
        %v5534 = vmax.f32 %v5502, 0.0
        %v5535 = vmax.f32 %v5530, 0.0
        %v5536 = vpack.c.bf16 %v5534, %v5532
        %v5537 = vpack.c.bf16 %v5535, %v5533
        %v5539 = vsel %vm1144, %v5537, 0
        %5541 = vmatpush.bf16.msra.mxu0 %v5125
        %5542 = vmatpush.bf16.msra.mxu0 %v5124
        %5543 = vmatpush.bf16.msra.mxu0 %v5123
        %5544 = vmatpush.bf16.msra.mxu0 %v5122
        %5545 = vmatpush.bf16.msra.mxu0 %v5121
        %5546 = vmatpush.bf16.msra.mxu0 %v5120
        %5547 = vmatpush.bf16.msra.mxu0 %v5119
        %5548 = vmatpush.bf16.msra.mxu0 %v5118
        %5549 = vmatmul.bf16.gmra.mxu0 %v5536
        %v5550 = vpop.f32.mrf.mxu0
        %v5551 = vadd.f32 %v5066, %v5550
        %v5552 = vpop.f32.mrf.mxu0
        %v5553 = vadd.f32 %v5066, %v5552
        %5554 = vdwg.mxu0
        %5555 = vmatpush.bf16.msra.mxu0 0
        %5556 = vmatpush.bf16.msra.mxu0 0
        %5557 = vmatpush.bf16.msra.mxu0 0
        %5558 = vmatpush.bf16.msra.mxu0 %v5147
        %5559 = vmatpush.bf16.msra.mxu0 %v5129
        %5560 = vmatpush.bf16.msra.mxu0 %v5128
        %5561 = vmatpush.bf16.msra.mxu0 %v5127
        %5562 = vmatpush.bf16.msra.mxu0 %v5126
        %5563 = vmatmul.bf16.gmra.mxu0 %v5539
        %v5564 = vpop.f32.mrf.mxu0
        %v5565 = vadd.f32 %v5551, %v5564
        %v5566 = vpop.f32.mrf.mxu0
        %v5567 = vadd.f32 %v5553, %v5566
        %5568 = vdwg.mxu0
        %v5569 = vmul.f32 %v929, %v5565
        %v5570 = vmul.f32 %v929, %v5567
        %v5571 = vmax.f32 %v5565, 0.0
        %v5572 = vmax.f32 %v5567, 0.0
        %v5573 = vsub.f32 0.0, %v5565
        %v5574 = vsub.f32 0.0, %v5567
        %vm5575 = vcmp.ne.f32.partialorder %v5573, %v5573
        %vm5576 = vcmp.ne.f32.partialorder %v5574, %v5574
        %v5577 = vadd.f32 %v5565, 0.0
        %v5578 = vadd.f32 %v5567, 0.0
        %v5579 = vand.u32 2147483647, %v5573
        %v5580 = vand.u32 2147483647, %v5574
        %v5581 = vsub.f32 0.0, %v5579
        %v5582 = vsub.f32 0.0, %v5580
        %v5583 = vmul.f32 %v5581, 1.442695
        %v5584 = vpow.pop %v5583
        %v5585 = vmul.f32 %v5582, 1.442695
        %v5586 = vpow.pop %v5585
        %v5587 = vadd.f32 %v5584, 1.0
        %v5588 = vlog2.pop %v5587
        %v5589 = vmul.f32 %v5588, 0.6931472
        %v5590 = vmul.f32 -0.5, %v5584
        %v5591 = vadd.f32 %v5590, 1.0
        %v5592 = vmul.f32 %v5591, %v5584
        %v5593 = vand.u32 2147483647, %v5584
        %vm5594 = vcmp.lt.f32.partialorder %v5593, 0.0004427343
        %v5595 = vsel %vm5594, %v5592, %v5589
        %v5596 = vadd.f32 %v5586, 1.0
        %v5597 = vlog2.pop %v5596
        %v5598 = vmul.f32 %v5597, 0.6931472
        %v5599 = vmul.f32 -0.5, %v5586
        %v5600 = vadd.f32 %v5599, 1.0
        %v5601 = vmul.f32 %v5600, %v5586
        %v5602 = vand.u32 2147483647, %v5586
        %vm5603 = vcmp.lt.f32.partialorder %v5602, 0.0004427343
        %v5604 = vsel %vm5603, %v5601, %v5598
        %v5605 = vadd.f32 %v5571, %v5595
        %v5606 = vadd.f32 %v5572, %v5604
        %v5607 = vsel %vm5575, %v5577, %v5605
        %v5608 = vsel %vm5576, %v5578, %v5606
        %v5609 = vsub.f32 %v5569, %v5607
        %v5610 = vsub.f32 %v5570, %v5608
        %v5611 = vsel %vm952, %v5609, 0.0
        %5612 = vadd.xlane.f32.xlu0 %v5611
        %v5613 = vpop.xlane.xlu0 %5612
        %v5614 = vsel %vm952, %v5610, 0.0
        %5615 = vadd.xlane.f32.xlu0 %v5614
        %v5616 = vpop.xlane.xlu0 %5615
        %v5617 = vmul.f32 %v4261, %v4261
        %v5618 = vmul.f32 %v4262, %v4262
        %5621 = vrot.lane.b32.xlu0 %v5617, 8
        %v5622 = vpop.permute.xlu0 %5621
        %5623 = vrot.lane.b32.xlu0 %v5618, 8
        %v5624 = vpop.permute.xlu0 %5623
        %v5627 = vadd.f32 %v5225, %v5622
        %v5628 = vadd.f32 %v5226, %v5624
        %v5629 = vmul.f32 %v5627, -0.5
        %v5630 = vmul.f32 %v5628, -0.5
        %5633 = vrot.lane.b32.xlu0 %v5629, 120
        %v5634 = vpop.permute.xlu0 %5633
        %5635 = vrot.lane.b32.xlu0 %v5630, 120
        %v5636 = vpop.permute.xlu0 %5635
        %v5639 = vsel %vm1847, %v5634, 0.0
        %5640 = vadd.xlane.f32.xlu0 %v5639
        %v5641 = vpop.xlane.xlu0 %5640
        %v5642 = vsel %vm1847, %v5636, 0.0
        %5643 = vadd.xlane.f32.xlu0 %v5642
        %v5644 = vpop.xlane.xlu0 %5643
        %v5645 = vmul.f32 %v5291, %v5291
        %v5646 = vmul.f32 %v5292, %v5292
        %v5647 = vadd.f32 %v5645, 1.837877
        %v5648 = vadd.f32 %v5646, 1.837877
        %v5649 = vmul.f32 %v5647, -0.5
        %v5650 = vmul.f32 %v5648, -0.5
        %v5651 = vsel %vm1847, %v5649, 0.0
        %5652 = vadd.xlane.f32.xlu0 %v5651
        %v5653 = vpop.xlane.xlu0 %5652
        %v5654 = vsel %vm1847, %v5650, 0.0
        %5655 = vadd.xlane.f32.xlu0 %v5654
        %v5656 = vpop.xlane.xlu0 %5655
        %v5657 = vadd.f32 %v5613, %v4180
        %v5658 = vadd.f32 %v5616, %v4181
        %v5659 = vadd.f32 %v5657, %v5653
        %v5660 = vadd.f32 %v5658, %v5656
        %v5661 = vsub.f32 %v5659, %v5641
        %v5662 = vsub.f32 %v5660, %v5644
        %v5663 = vmax.f32 %v5271, %v5661
        %v5664 = vmax.f32 %v5272, %v5662
        %v5665 = vsub.f32 %v5271, %v5663
        %v5666 = vsub.f32 %v5272, %v5664
        %v5667 = vmul.f32 %v5665, 1.442695
        %v5668 = vpow.pop %v5667
        %v5669 = vmul.f32 %v5666, 1.442695
        %v5670 = vpow.pop %v5669
        %v5671 = vsub.f32 %v5661, %v5663
        %v5672 = vsub.f32 %v5662, %v5664
        %v5673 = vmul.f32 %v5671, 1.442695
        %v5674 = vpow.pop %v5673
        %v5675 = vmul.f32 %v5672, 1.442695
        %v5676 = vpow.pop %v5675
        %v5677 = vadd.f32 %v5668, %v5674
        %v5678 = vadd.f32 %v5670, %v5676
        %5681 = vrot.lane.b32.xlu0 %v4263, 8
        %v5682 = vpop.permute.xlu0 %5681
        %5683 = vrot.lane.b32.xlu0 %v4264, 8
        %v5684 = vpop.permute.xlu0 %5683
        %v5687 = vmul.f32 %v3709, %v5682
        %v5688 = vmul.f32 %v3711, %v5684
        %5691 = vrot.lane.b32.xlu0 %v5687, 120
        %v5692 = vpop.permute.xlu0 %5691
        %5693 = vrot.lane.b32.xlu0 %v5688, 120
        %v5694 = vpop.permute.xlu0 %5693
        %v5697 = vadd.f32 %v3698, %v5692
        %v5698 = vadd.f32 %v3700, %v5694
        %v5699 = vpack.c.bf16 %v5698, %v5697
        %v5701 = vsel %vm1847, %v5699, 0
        %5703 = vmatpush.bf16.msra.mxu0 0
        %5704 = vmatpush.bf16.msra.mxu0 0
        %5705 = vmatpush.bf16.msra.mxu0 0
        %5706 = vmatpush.bf16.msra.mxu0 0
        %5707 = vmatpush.bf16.msra.mxu0 0
        %5708 = vmatpush.bf16.msra.mxu0 0
        %5709 = vmatpush.bf16.msra.mxu0 0
        %5710 = vmatpush.bf16.msra.mxu0 %v4303
        %5711 = vmatmul.bf16.gmra.mxu0 %v5701
        %v5712 = vpop.f32.mrf.mxu0
        %v5713 = vadd.f32 %v4290, %v5712
        %v5714 = vpop.f32.mrf.mxu0
        %v5715 = vadd.f32 %v4290, %v5714
        %5716 = vdwg.mxu0
        %5717 = vmatpush.bf16.msra.mxu0 0
        %5718 = vmatpush.bf16.msra.mxu0 0
        %5719 = vmatpush.bf16.msra.mxu0 0
        %5720 = vmatpush.bf16.msra.mxu0 0
        %5721 = vmatpush.bf16.msra.mxu0 0
        %5722 = vmatpush.bf16.msra.mxu0 0
        %5723 = vmatpush.bf16.msra.mxu0 0
        %5724 = vmatpush.bf16.msra.mxu0 %v4306
        %5725 = vmatmul.bf16.gmra.mxu0 %v5701
        %v5726 = vpop.f32.mrf.mxu0
        %v5727 = vadd.f32 %v4291, %v5726
        %v5728 = vpop.f32.mrf.mxu0
        %v5729 = vadd.f32 %v4291, %v5728
        %5730 = vdwg.mxu0
        %v5731 = vmax.f32 %v5713, 0.0
        %v5732 = vmax.f32 %v5727, 0.0
        %v5733 = vmax.f32 %v5715, 0.0
        %v5734 = vmax.f32 %v5729, 0.0
        %v5735 = vpack.c.bf16 %v5733, %v5731
        %v5736 = vpack.c.bf16 %v5734, %v5732
        %v5738 = vsel %vm1144, %v5736, 0
        %5740 = vmatpush.bf16.msra.mxu0 %v4464
        %5741 = vmatpush.bf16.msra.mxu0 %v4462
        %5742 = vmatpush.bf16.msra.mxu0 %v4460
        %5743 = vmatpush.bf16.msra.mxu0 %v4458
        %5744 = vmatpush.bf16.msra.mxu0 %v4456
        %5745 = vmatpush.bf16.msra.mxu0 %v4454
        %5746 = vmatpush.bf16.msra.mxu0 %v4452
        %5747 = vmatpush.bf16.msra.mxu0 %v4450
        %5748 = vmatmul.bf16.gmra.mxu0 %v5735
        %v5749 = vpop.f32.mrf.mxu0
        %v5750 = vadd.f32 %v4371, %v5749
        %v5751 = vpop.f32.mrf.mxu0
        %v5752 = vadd.f32 %v4371, %v5751
        %5753 = vdwg.mxu0
        %5754 = vmatpush.bf16.msra.mxu0 0
        %5755 = vmatpush.bf16.msra.mxu0 0
        %5756 = vmatpush.bf16.msra.mxu0 0
        %5757 = vmatpush.bf16.msra.mxu0 %v4504
        %5758 = vmatpush.bf16.msra.mxu0 %v4472
        %5759 = vmatpush.bf16.msra.mxu0 %v4470
        %5760 = vmatpush.bf16.msra.mxu0 %v4468
        %5761 = vmatpush.bf16.msra.mxu0 %v4466
        %5762 = vmatmul.bf16.gmra.mxu0 %v5738
        %v5763 = vpop.f32.mrf.mxu0
        %v5764 = vadd.f32 %v5750, %v5763
        %v5765 = vpop.f32.mrf.mxu0
        %v5766 = vadd.f32 %v5752, %v5765
        %5767 = vdwg.mxu0
        %5768 = vmatpush.bf16.msra.mxu0 %v4465
        %5769 = vmatpush.bf16.msra.mxu0 %v4463
        %5770 = vmatpush.bf16.msra.mxu0 %v4461
        %5771 = vmatpush.bf16.msra.mxu0 %v4459
        %5772 = vmatpush.bf16.msra.mxu0 %v4457
        %5773 = vmatpush.bf16.msra.mxu0 %v4455
        %5774 = vmatpush.bf16.msra.mxu0 %v4453
        %5775 = vmatpush.bf16.msra.mxu0 %v4451
        %5776 = vmatmul.bf16.gmra.mxu0 %v5735
        %v5777 = vpop.f32.mrf.mxu0
        %v5778 = vadd.f32 %v4372, %v5777
        %v5779 = vpop.f32.mrf.mxu0
        %v5780 = vadd.f32 %v4372, %v5779
        %5781 = vdwg.mxu0
        %5782 = vmatpush.bf16.msra.mxu0 0
        %5783 = vmatpush.bf16.msra.mxu0 0
        %5784 = vmatpush.bf16.msra.mxu0 0
        %5785 = vmatpush.bf16.msra.mxu0 %v4507
        %5786 = vmatpush.bf16.msra.mxu0 %v4473
        %5787 = vmatpush.bf16.msra.mxu0 %v4471
        %5788 = vmatpush.bf16.msra.mxu0 %v4469
        %5789 = vmatpush.bf16.msra.mxu0 %v4467
        %5790 = vmatmul.bf16.gmra.mxu0 %v5738
        %v5791 = vpop.f32.mrf.mxu0
        %v5792 = vadd.f32 %v5778, %v5791
        %v5793 = vpop.f32.mrf.mxu0
        %v5794 = vadd.f32 %v5780, %v5793
        %5795 = vdwg.mxu0
        %v5796 = vmax.f32 %v5764, 0.0
        %v5797 = vmax.f32 %v5792, 0.0
        %v5798 = vmax.f32 %v5766, 0.0
        %v5799 = vmax.f32 %v5794, 0.0
        %v5800 = vpack.c.bf16 %v5798, %v5796
        %v5801 = vpack.c.bf16 %v5799, %v5797
        %v5803 = vsel %vm1144, %v5801, 0
        %5805 = vmatpush.bf16.msra.mxu0 %v4656
        %5806 = vmatpush.bf16.msra.mxu0 %v4655
        %5807 = vmatpush.bf16.msra.mxu0 %v4654
        %5808 = vmatpush.bf16.msra.mxu0 %v4653
        %5809 = vmatpush.bf16.msra.mxu0 %v4652
        %5810 = vmatpush.bf16.msra.mxu0 %v4651
        %5811 = vmatpush.bf16.msra.mxu0 %v4650
        %5812 = vmatpush.bf16.msra.mxu0 %v4649
        %5813 = vmatmul.bf16.gmra.mxu0 %v5800
        %v5814 = vpop.f32.mrf.mxu0
        %v5815 = vadd.f32 %v4598, %v5814
        %v5816 = vpop.f32.mrf.mxu0
        %v5817 = vadd.f32 %v4598, %v5816
        %5818 = vdwg.mxu0
        %5819 = vmatpush.bf16.msra.mxu0 0
        %5820 = vmatpush.bf16.msra.mxu0 0
        %5821 = vmatpush.bf16.msra.mxu0 0
        %5822 = vmatpush.bf16.msra.mxu0 %v4678
        %5823 = vmatpush.bf16.msra.mxu0 %v4660
        %5824 = vmatpush.bf16.msra.mxu0 %v4659
        %5825 = vmatpush.bf16.msra.mxu0 %v4658
        %5826 = vmatpush.bf16.msra.mxu0 %v4657
        %5827 = vmatmul.bf16.gmra.mxu0 %v5803
        %v5828 = vpop.f32.mrf.mxu0
        %v5829 = vadd.f32 %v5815, %v5828
        %v5830 = vpop.f32.mrf.mxu0
        %v5831 = vadd.f32 %v5817, %v5830
        %5832 = vdwg.mxu0
        %v5833 = vpack.c.bf16 %v5831, %v5829
        %v5835 = vsel %vm3116, %v5833, 0
        %5837 = vmatpush.bf16.msra.mxu0 0
        %5838 = vmatpush.bf16.msra.mxu0 0
        %5839 = vmatpush.bf16.msra.mxu0 0
        %5840 = vmatpush.bf16.msra.mxu0 0
        %5841 = vmatpush.bf16.msra.mxu0 %v4756
        %5842 = vmatpush.bf16.msra.mxu0 %v4742
        %5843 = vmatpush.bf16.msra.mxu0 %v4740
        %5844 = vmatpush.bf16.msra.mxu0 %v4738
        %5845 = vmatmul.bf16.gmra.mxu0 %v5835
        %v5846 = vpop.f32.mrf.mxu0
        %v5847 = vadd.f32 0.0, %v5846
        %v5848 = vpop.f32.mrf.mxu0
        %v5849 = vadd.f32 0.0, %v5848
        %5850 = vdwg.mxu0
        %5851 = vmatpush.bf16.msra.mxu0 0
        %5852 = vmatpush.bf16.msra.mxu0 0
        %5853 = vmatpush.bf16.msra.mxu0 0
        %5854 = vmatpush.bf16.msra.mxu0 0
        %5855 = vmatpush.bf16.msra.mxu0 %v4759
        %5856 = vmatpush.bf16.msra.mxu0 %v4743
        %5857 = vmatpush.bf16.msra.mxu0 %v4741
        %5858 = vmatpush.bf16.msra.mxu0 %v4739
        %5859 = vmatmul.bf16.gmra.mxu0 %v5835
        %v5860 = vpop.f32.mrf.mxu0
        %v5861 = vadd.f32 0.0, %v5860
        %v5862 = vpop.f32.mrf.mxu0
        %v5863 = vadd.f32 0.0, %v5862
        %5864 = vdwg.mxu0
        %v5865 = vadd.f32 %v4241, %v5847
        %v5866 = vadd.f32 %v4255, %v5861
        %v5867 = vadd.f32 %v4243, %v5849
        %v5868 = vadd.f32 %v4257, %v5863
        %v5869 = vadd.f32 %v5865, %v4796
        %v5870 = vadd.f32 %v5866, %v4797
        %v5871 = vadd.f32 %v5867, %v4796
        %v5872 = vadd.f32 %v5868, %v4797
        %v5873 = vmax.f32 %v5869, 0.0
        %v5874 = vmax.f32 %v5870, 0.0
        %v5875 = vmax.f32 %v5871, 0.0
        %v5876 = vmax.f32 %v5872, 0.0
        %v5877 = vpack.c.bf16 %v5875, %v5873
        %v5878 = vpack.c.bf16 %v5876, %v5874
        %v5880 = vsel %vm1144, %v5878, 0
        %5882 = vmatpush.bf16.msra.mxu0 %v4932
        %5883 = vmatpush.bf16.msra.mxu0 %v4930
        %5884 = vmatpush.bf16.msra.mxu0 %v4928
        %5885 = vmatpush.bf16.msra.mxu0 %v4926
        %5886 = vmatpush.bf16.msra.mxu0 %v4924
        %5887 = vmatpush.bf16.msra.mxu0 %v4922
        %5888 = vmatpush.bf16.msra.mxu0 %v4920
        %5889 = vmatpush.bf16.msra.mxu0 %v4918
        %5890 = vmatmul.bf16.gmra.mxu0 %v5877
        %v5891 = vpop.f32.mrf.mxu0
        %v5892 = vadd.f32 %v4839, %v5891
        %v5893 = vpop.f32.mrf.mxu0
        %v5894 = vadd.f32 %v4839, %v5893
        %5895 = vdwg.mxu0
        %5896 = vmatpush.bf16.msra.mxu0 0
        %5897 = vmatpush.bf16.msra.mxu0 0
        %5898 = vmatpush.bf16.msra.mxu0 0
        %5899 = vmatpush.bf16.msra.mxu0 %v4972
        %5900 = vmatpush.bf16.msra.mxu0 %v4940
        %5901 = vmatpush.bf16.msra.mxu0 %v4938
        %5902 = vmatpush.bf16.msra.mxu0 %v4936
        %5903 = vmatpush.bf16.msra.mxu0 %v4934
        %5904 = vmatmul.bf16.gmra.mxu0 %v5880
        %v5905 = vpop.f32.mrf.mxu0
        %v5906 = vadd.f32 %v5892, %v5905
        %v5907 = vpop.f32.mrf.mxu0
        %v5908 = vadd.f32 %v5894, %v5907
        %5909 = vdwg.mxu0
        %5910 = vmatpush.bf16.msra.mxu0 %v4933
        %5911 = vmatpush.bf16.msra.mxu0 %v4931
        %5912 = vmatpush.bf16.msra.mxu0 %v4929
        %5913 = vmatpush.bf16.msra.mxu0 %v4927
        %5914 = vmatpush.bf16.msra.mxu0 %v4925
        %5915 = vmatpush.bf16.msra.mxu0 %v4923
        %5916 = vmatpush.bf16.msra.mxu0 %v4921
        %5917 = vmatpush.bf16.msra.mxu0 %v4919
        %5918 = vmatmul.bf16.gmra.mxu0 %v5877
        %v5919 = vpop.f32.mrf.mxu0
        %v5920 = vadd.f32 %v4840, %v5919
        %v5921 = vpop.f32.mrf.mxu0
        %v5922 = vadd.f32 %v4840, %v5921
        %5923 = vdwg.mxu0
        %5924 = vmatpush.bf16.msra.mxu0 0
        %5925 = vmatpush.bf16.msra.mxu0 0
        %5926 = vmatpush.bf16.msra.mxu0 0
        %5927 = vmatpush.bf16.msra.mxu0 %v4975
        %5928 = vmatpush.bf16.msra.mxu0 %v4941
        %5929 = vmatpush.bf16.msra.mxu0 %v4939
        %5930 = vmatpush.bf16.msra.mxu0 %v4937
        %5931 = vmatpush.bf16.msra.mxu0 %v4935
        %5932 = vmatmul.bf16.gmra.mxu0 %v5880
        %v5933 = vpop.f32.mrf.mxu0
        %v5934 = vadd.f32 %v5920, %v5933
        %v5935 = vpop.f32.mrf.mxu0
        %v5936 = vadd.f32 %v5922, %v5935
        %5937 = vdwg.mxu0
        %v5938 = vmax.f32 %v5906, 0.0
        %v5939 = vmax.f32 %v5934, 0.0
        %v5940 = vmax.f32 %v5908, 0.0
        %v5941 = vmax.f32 %v5936, 0.0
        %v5942 = vpack.c.bf16 %v5940, %v5938
        %v5943 = vpack.c.bf16 %v5941, %v5939
        %v5945 = vsel %vm1144, %v5943, 0
        %5947 = vmatpush.bf16.msra.mxu0 %v5125
        %5948 = vmatpush.bf16.msra.mxu0 %v5124
        %5949 = vmatpush.bf16.msra.mxu0 %v5123
        %5950 = vmatpush.bf16.msra.mxu0 %v5122
        %5951 = vmatpush.bf16.msra.mxu0 %v5121
        %5952 = vmatpush.bf16.msra.mxu0 %v5120
        %5953 = vmatpush.bf16.msra.mxu0 %v5119
        %5954 = vmatpush.bf16.msra.mxu0 %v5118
        %5955 = vmatmul.bf16.gmra.mxu0 %v5942
        %v5956 = vpop.f32.mrf.mxu0
        %v5957 = vadd.f32 %v5066, %v5956
        %v5958 = vpop.f32.mrf.mxu0
        %v5959 = vadd.f32 %v5066, %v5958
        %5960 = vdwg.mxu0
        %5961 = vmatpush.bf16.msra.mxu0 0
        %5962 = vmatpush.bf16.msra.mxu0 0
        %5963 = vmatpush.bf16.msra.mxu0 0
        %5964 = vmatpush.bf16.msra.mxu0 %v5147
        %5965 = vmatpush.bf16.msra.mxu0 %v5129
        %5966 = vmatpush.bf16.msra.mxu0 %v5128
        %5967 = vmatpush.bf16.msra.mxu0 %v5127
        %5968 = vmatpush.bf16.msra.mxu0 %v5126
        %5969 = vmatmul.bf16.gmra.mxu0 %v5945
        %v5970 = vpop.f32.mrf.mxu0
        %v5971 = vadd.f32 %v5957, %v5970
        %v5972 = vpop.f32.mrf.mxu0
        %v5973 = vadd.f32 %v5959, %v5972
        %5974 = vdwg.mxu0
        %v5975 = vmul.f32 %v929, %v5971
        %v5976 = vmul.f32 %v929, %v5973
        %v5977 = vmax.f32 %v5971, 0.0
        %v5978 = vmax.f32 %v5973, 0.0
        %v5979 = vsub.f32 0.0, %v5971
        %v5980 = vsub.f32 0.0, %v5973
        %vm5981 = vcmp.ne.f32.partialorder %v5979, %v5979
        %vm5982 = vcmp.ne.f32.partialorder %v5980, %v5980
        %v5983 = vadd.f32 %v5971, 0.0
        %v5984 = vadd.f32 %v5973, 0.0
        %v5985 = vand.u32 2147483647, %v5979
        %v5986 = vand.u32 2147483647, %v5980
        %v5987 = vsub.f32 0.0, %v5985
        %v5988 = vsub.f32 0.0, %v5986
        %v5989 = vmul.f32 %v5987, 1.442695
        %v5990 = vpow.pop %v5989
        %v5991 = vmul.f32 %v5988, 1.442695
        %v5992 = vpow.pop %v5991
        %v5993 = vadd.f32 %v5990, 1.0
        %v5994 = vlog2.pop %v5993
        %v5995 = vmul.f32 %v5994, 0.6931472
        %v5996 = vmul.f32 -0.5, %v5990
        %v5997 = vadd.f32 %v5996, 1.0
        %v5998 = vmul.f32 %v5997, %v5990
        %v5999 = vand.u32 2147483647, %v5990
        %vm6000 = vcmp.lt.f32.partialorder %v5999, 0.0004427343
        %v6001 = vsel %vm6000, %v5998, %v5995
        %v6002 = vadd.f32 %v5992, 1.0
        %v6003 = vlog2.pop %v6002
        %v6004 = vmul.f32 %v6003, 0.6931472
        %v6005 = vmul.f32 -0.5, %v5992
        %v6006 = vadd.f32 %v6005, 1.0
        %v6007 = vmul.f32 %v6006, %v5992
        %v6008 = vand.u32 2147483647, %v5992
        %vm6009 = vcmp.lt.f32.partialorder %v6008, 0.0004427343
        %v6010 = vsel %vm6009, %v6007, %v6004
        %v6011 = vadd.f32 %v5977, %v6001
        %v6012 = vadd.f32 %v5978, %v6010
        %v6013 = vsel %vm5981, %v5983, %v6011
        %v6014 = vsel %vm5982, %v5984, %v6012
        %v6015 = vsub.f32 %v5975, %v6013
        %v6016 = vsub.f32 %v5976, %v6014
        %v6017 = vsel %vm952, %v6015, 0.0
        %6018 = vadd.xlane.f32.xlu0 %v6017
        %v6019 = vpop.xlane.xlu0 %6018
        %v6020 = vsel %vm952, %v6016, 0.0
        %6021 = vadd.xlane.f32.xlu0 %v6020
        %v6022 = vpop.xlane.xlu0 %6021
        %v6023 = vmul.f32 %v4263, %v4263
        %v6024 = vmul.f32 %v4264, %v4264
        %6027 = vrot.lane.b32.xlu0 %v6023, 8
        %v6028 = vpop.permute.xlu0 %6027
        %6029 = vrot.lane.b32.xlu0 %v6024, 8
        %v6030 = vpop.permute.xlu0 %6029
        %v6033 = vadd.f32 %v5225, %v6028
        %v6034 = vadd.f32 %v5226, %v6030
        %v6035 = vmul.f32 %v6033, -0.5
        %v6036 = vmul.f32 %v6034, -0.5
        %6039 = vrot.lane.b32.xlu0 %v6035, 120
        %v6040 = vpop.permute.xlu0 %6039
        %6041 = vrot.lane.b32.xlu0 %v6036, 120
        %v6042 = vpop.permute.xlu0 %6041
        %v6045 = vsel %vm1847, %v6040, 0.0
        %6046 = vadd.xlane.f32.xlu0 %v6045
        %v6047 = vpop.xlane.xlu0 %6046
        %v6048 = vsel %vm1847, %v6042, 0.0
        %6049 = vadd.xlane.f32.xlu0 %v6048
        %v6050 = vpop.xlane.xlu0 %6049
        %v6051 = vmul.f32 %v5697, %v5697
        %v6052 = vmul.f32 %v5698, %v5698
        %v6053 = vadd.f32 %v6051, 1.837877
        %v6054 = vadd.f32 %v6052, 1.837877
        %v6055 = vmul.f32 %v6053, -0.5
        %v6056 = vmul.f32 %v6054, -0.5
        %v6057 = vsel %vm1847, %v6055, 0.0
        %6058 = vadd.xlane.f32.xlu0 %v6057
        %v6059 = vpop.xlane.xlu0 %6058
        %v6060 = vsel %vm1847, %v6056, 0.0
        %6061 = vadd.xlane.f32.xlu0 %v6060
        %v6062 = vpop.xlane.xlu0 %6061
        %v6063 = vadd.f32 %v6019, %v4180
        %v6064 = vadd.f32 %v6022, %v4181
        %v6065 = vadd.f32 %v6063, %v6059
        %v6066 = vadd.f32 %v6064, %v6062
        %v6067 = vsub.f32 %v6065, %v6047
        %v6068 = vsub.f32 %v6066, %v6050
        %v6069 = vmax.f32 %v5663, %v6067
        %v6070 = vmax.f32 %v5664, %v6068
        %v6071 = vsub.f32 %v5663, %v6069
        %v6072 = vsub.f32 %v5664, %v6070
        %v6073 = vmul.f32 %v6071, 1.442695
        %v6074 = vpow.pop %v6073
        %v6075 = vmul.f32 %v6072, 1.442695
        %v6076 = vpow.pop %v6075
        %v6077 = vmul.f32 %v5677, %v6074
        %v6078 = vmul.f32 %v5678, %v6076
        %v6079 = vsub.f32 %v6067, %v6069
        %v6080 = vsub.f32 %v6068, %v6070
        %v6081 = vmul.f32 %v6079, 1.442695
        %v6082 = vpow.pop %v6081
        %v6083 = vmul.f32 %v6080, 1.442695
        %v6084 = vpow.pop %v6083
        %v6085 = vadd.f32 %v6077, %v6082
        %v6086 = vadd.f32 %v6078, %v6084
        %v6087 = vlog2.pop %v6085
        %v6088 = vmul.f32 %v6087, 0.6931472
        %v6089 = vlog2.pop %v6086
        %v6090 = vmul.f32 %v6089, 0.6931472
        %v6091 = vadd.f32 %v6069, %v6088
        %v6092 = vadd.f32 %v6070, %v6090
        %v6093 = vsub.f32 %v6091, 1.0986123
        %v6094 = vsub.f32 %v6092, 1.0986123
        %v6095 = vsub.f32 %v6093, %v1850
        %v6096 = vsub.f32 %v6094, %v1853
        %v6097 = vadd.f32 %v6095, %v6096
        %v6098 = vmul.f32 %v6097, 0.5
        %vm6099 = vcmask 7168
        %6100 = vst.msk [vmem:[%s927] sm:$0xff] %vm6099, %v6098
        %p6101 = scmp.lt.s32.totalorder %s37, 1
        %s6102 = scalar_select %p6101, %s37, 1
        %s6103 = smul.addr %s6102, 8
        %s6104 = scalar_lea.vmem %s25, %s6103
        // Predicated region
        $region201: #{tpu_custom_call.1} parent=187 // pred_check
          %p6105 = pneg %p600
        $region202: #{tpu_custom_call.1} parent=187 // pred_check_branch
          %6107 = sbr.rel (%p6105) target = $region204
        $region203: #{tpu_custom_call.1} parent=187 // pred_region
          _
        $region204: #{tpu_custom_call.1} parent=187 // pred_fallthru
          _
      $region188: #{tpu_custom_call.1} parent=5 // pred_fallthru
        _
      %p6108 = scmp.le.s32.totalorder 2, %s32
      // Predicated region
      $region205: #{tpu_custom_call.1} parent=5 // pred_check
        %p6109 = pneg %p6108
      $region206: #{tpu_custom_call.1} parent=5 // pred_check_branch
        %6111 = sbr.rel (%p6109) target = $region208
      $region207: #{tpu_custom_call.1} parent=5 // pred_region
        %s6112 = ssub.s32 %s32, 2
        // Predicated region
        $region209: #{tpu_custom_call.1} parent=207 // pred_check
          %p6113 = pneg %p606
        $region210: #{tpu_custom_call.1} parent=207 // pred_check_branch
          %6115 = sbr.rel (%p6113) target = $region212
        $region211: #{tpu_custom_call.1} parent=207 // pred_region
          %p6116 = scmp.lt.s32.totalorder %s38, 1
          %s6117 = scalar_select %p6116, %s38, 1
          %s6118 = smul.addr %s6117, 8
          %s6119 = scalar_lea.vmem %s25, %s6118
        $region212: #{tpu_custom_call.1} parent=207 // pred_fallthru
          _
      $region208: #{tpu_custom_call.1} parent=5 // pred_fallthru
        _
    $region6: #{tpu_custom_call.1} parent=1 // loop_footer
      %s36 = sadd.s32 1, %s32
    $region7: #{tpu_custom_call.1} parent=1 // loop_footer_branch
      %31 = sbr.rel target = $region3
    $region8: #{tpu_custom_call.1} parent=1 // loop_exit
      _
    %6120 = vsyncpa [#allocation5], 1
    %s6121 = scalar_lea.sflag [#allocation5], 1
    %6122 = vsyncpa %s6121, 1

</llo_original>
